<compile_context>
chip_gen: v7x
topology: tpu7x:2x2x1
jax: 0.10.0
libtpu: 0.0.40
codegen_flags: <defaults>
</compile_context>

<pallas_src>
import functools

import numpy as np
import jax
import jax.numpy as jnp
from jax.experimental import pallas as pl
from jax.experimental.pallas import tpu as pltpu

SLOPE = 0.05          # LeakyReLU negative slope used by D2.forward
EPS = 1e-5            # nn.BatchNorm2d default eps
_PLANE_ROWS = 5       # rows per image in every H-residue plane (32x32 input)


# ------------------------------ Pallas kernel ------------------------------

def _leaky(v, slope):
    return jnp.where(v >= 0.0, v, slope * v)


def _d2_kernel(planes_ref, lw1_ref, lw2_ref, lw3_ref,
               t2_ref, tt2_ref, g2_ref, b2_ref,
               t3_ref, tt3_ref, g3_ref, b3_ref,
               wfc_ref, out_ref, q1_scr, q2_scr,
               *, n_batch, slope, eps):
    f32 = jnp.float32
    pr = _PLANE_ROWS

    # Inter-layer activations (row-residue planes of the padded layer outputs)
    # live entirely in VMEM scratch.  Zero-init so the H-padding rows (never
    # written) stay zero.
    q1_scr[...] = jnp.zeros(q1_scr.shape, f32)
    q2_scr[...] = jnp.zeros(q2_scr.shape, f32)

    # ---------------- layer 1: Conv(3->c1, 4, s2, p1) + LeakyReLU (no BN) ---
    # Output rows produced grouped by (oh mod 4) so the mod-4 residue planes of
    # the padded output (layer-2 input) are filled with contiguous stores.
    for n in range(n_batch):
        for g in range(4):                        # oh = 4*m + g, m in [0,4)
            acc = None
            for kh in range(4):
                q = 2 * g + kh                    # padded input row = 8*(m+s)+r8
                r8, s = q % 8, q // 8
                lhs = planes_ref[r8, pl.ds(n * pr + s, 4), :]        # (4, 102)
                t = jnp.dot(lhs, lw1_ref[kh], preferred_element_type=f32)
                acc = t if acc is None else acc + t                  # (4, 144)
            acc = _leaky(acc, slope)
            r4, off = (g + 1) % 4, (g + 1) // 4   # Y1 row 4m+g -> padded row 4m+g+1
            q1_scr[r4, pl.ds(n * pr + off, 4), :] = acc

    # ------------- layer 2: Conv(c1->c2) + BatchNorm(train) + LeakyReLU -----
    raw2 = []
    s1 = s2 = None
    for n in range(n_batch):
        for p in range(2):                        # oh = 2*m + p, m in [0,4)
            acc = None
            for kh in range(4):
                q = 2 * p + kh
                r4, s = q % 4, q // 4
                lhs = q1_scr[r4, pl.ds(n * pr + s, 4), :]            # (4, 144)
                t = jnp.dot(lhs, lw2_ref[kh], preferred_element_type=f32)
                acc = t if acc is None else acc + t                  # (4, 160)
            raw2.append((n, p, acc))
            rs = jnp.sum(acc, axis=0, keepdims=True)
            rq = jnp.sum(acc * acc, axis=0, keepdims=True)
            s1 = rs if s1 is None else s1 + rs
            s2 = rq if s2 is None else s2 + rq
    m2 = float(n_batch * 8 * 8)
    mean = jnp.dot(s1, t2_ref[...], preferred_element_type=f32) / m2    # (1,c2)
    ex2 = jnp.dot(s2, t2_ref[...], preferred_element_type=f32) / m2
    var = jnp.maximum(ex2 - mean * mean, 0.0)
    scale = g2_ref[...] * jax.lax.rsqrt(var + eps)
    shift = b2_ref[...] - mean * scale
    scale_t = jnp.dot(scale, tt2_ref[...], preferred_element_type=f32)  # (1,160)
    shift_t = jnp.dot(shift, tt2_ref[...], preferred_element_type=f32)  # 0 at W-pad
    for n, p, acc in raw2:
        y = _leaky(acc * scale_t + shift_t, slope)
        r2, off = (p + 1) % 2, (p + 1) // 2
        q2_scr[r2, pl.ds(n * pr + off, 4), :] = y

    # ------------- layer 3: Conv(c2->c3) + BatchNorm(train) + LeakyReLU -----
    raw3 = []
    s1 = s2 = None
    for n in range(n_batch):
        acc = None
        for kh in range(4):                       # dense 4x4 output rows
            r2, s = kh % 2, kh // 2
            lhs = q2_scr[r2, pl.ds(n * pr + s, 4), :]                # (4, 160)
            t = jnp.dot(lhs, lw3_ref[kh], preferred_element_type=f32)
            acc = t if acc is None else acc + t                      # (4, 128)
        raw3.append(acc)
        rs = jnp.sum(acc, axis=0, keepdims=True)
        rq = jnp.sum(acc * acc, axis=0, keepdims=True)
        s1 = rs if s1 is None else s1 + rs
        s2 = rq if s2 is None else s2 + rq
    m3 = float(n_batch * 4 * 4)
    mean = jnp.dot(s1, t3_ref[...], preferred_element_type=f32) / m3
    ex2 = jnp.dot(s2, t3_ref[...], preferred_element_type=f32) / m3
    var = jnp.maximum(ex2 - mean * mean, 0.0)
    scale = g3_ref[...] * jax.lax.rsqrt(var + eps)
    shift = b3_ref[...] - mean * scale
    scale_t = jnp.dot(scale, tt3_ref[...], preferred_element_type=f32)  # (1,128)
    shift_t = jnp.dot(shift, tt3_ref[...], preferred_element_type=f32)

    # ------------- fc: Conv2d(c3, n_out, 4, 1, 0) on the 4x4 map (no act) ---
    for n in range(n_batch):
        y3 = _leaky(raw3[n] * scale_t + shift_t, slope)              # (4, 128)
        o = None
        for oh in range(4):
            t = jnp.dot(y3[oh:oh + 1, :], wfc_ref[oh],
                        preferred_element_type=f32)                  # (1, n_out)
            o = t if o is None else o + t
        out_ref[pl.ds(n, 1), :] = o


# --------------------------- wrapper / host prep ---------------------------

def _full_spec(shape):
    zeros = (0,) * len(shape)
    return pl.BlockSpec(shape, lambda i, _z=zeros: _z)


def _make_input_planes(x_nchw):
    """NCHW input -> mod-8 row-residue planes of the 1-padded image.

    planes[r, n*5 + i, :] = flatten_(w,c)(x_padded[n, 8*i + r, :, :]), zero for
    rows beyond the padded height.  Shape (8, N*5, (W+2)*C).  A handful of XLA
    ops on a ~26 KB tensor, done once per forward.
    """
    n, c, h, w = x_nchw.shape
    x = jnp.transpose(x_nchw, (0, 2, 3, 1)).astype(jnp.float32)
    xp = jnp.pad(x, ((0, 0), (1, 1), (1, 1), (0, 0)))
    hp, wp = h + 2, w + 2
    rows = xp.reshape(n, hp, wp * c)
    rows = jnp.pad(rows, ((0, 0), (0, 8 * _PLANE_ROWS - hp), (0, 0)))
    planes = rows.reshape(n, _PLANE_ROWS, 8, wp * c)
    return jnp.transpose(planes, (2, 0, 1, 3)).reshape(8, n * _PLANE_ROWS, wp * c)


def _lowered_weight(w, out_w, pad_out):
    """(Cout,Cin,4,4) torch conv weight -> per-kh row operator B[kh].

    B[kh] maps a flattened padded input row (order (iw, ci)) to a flattened
    output row (order (slot, co)); the kw taps, the W stride and both W
    paddings (input and, if pad_out, the next layer's) are folded in.
    """
    w = np.asarray(w, np.float32)
    cout, cin, ksz, _ = w.shape
    wp_in = 2 * out_w + 2
    off = 1 if pad_out else 0
    slots = out_w + 2 * off
    B = np.zeros((ksz, wp_in * cin, slots * cout), np.float32)
    for kh in range(ksz):
        for ow in range(out_w):
            for kw in range(ksz):
                iw = 2 * ow + kw
                B[kh, iw * cin:(iw + 1) * cin,
                  (ow + off) * cout:(ow + off + 1) * cout] = w[:, :, kh, kw].T
    return jnp.asarray(B)


def _chan_mats(out_w, c, pad_out):
    """0/1 matrices folding (w,channel)-interleaved lanes to channels and back
    (zero columns at the W-padding slots keep the padding exactly zero)."""
    off = 1 if pad_out else 0
    slots = out_w + 2 * off
    T = np.zeros((slots * c, c), np.float32)
    for ow in range(out_w):
        T[(ow + off) * c:(ow + off + 1) * c, :] = np.eye(c, dtype=np.float32)
    return jnp.asarray(T), jnp.asarray(T.T)


def prepare_params(params):
    """One-time host-side repack of the PyTorch-layout weights (outside jit)."""
    c2 = params["w2"].shape[0]
    c3 = params["w3"].shape[0]
    n_out = params["w_fc"].shape[0]
    t2, tt2 = _chan_mats(8, c2, True)
    t3, tt3 = _chan_mats(4, c3, False)
    wfc = np.transpose(np.asarray(params["w_fc"], np.float32), (2, 3, 1, 0))
    return {
        "lw1": _lowered_weight(params["w1"], 16, True),    # (4, 102, 144)
        "lw2": _lowered_weight(params["w2"], 8, True),     # (4, 144, 160)
        "lw3": _lowered_weight(params["w3"], 4, False),    # (4, 160, 128)
        "t2": t2, "tt2": tt2,
        "bn2_g": params["g2"].astype(jnp.float32).reshape(1, c2),
        "bn2_b": params["b2"].astype(jnp.float32).reshape(1, c2),
        "t3": t3, "tt3": tt3,
        "bn3_g": params["g3"].astype(jnp.float32).reshape(1, c3),
        "bn3_b": params["b3"].astype(jnp.float32).reshape(1, c3),
        "wfc": jnp.asarray(wfc.reshape(4, 4 * c3, n_out)), # (4, 4*c3, n_out)
    }


def d2_forward(prep, x_nchw):
    """Forward pass of D2 (training-mode BatchNorm statistics), one kernel."""
    n, c, h, w = x_nchw.shape
    assert (h, w) == (32, 32), "D2 needs 32x32 inputs (3 s2 convs + 4x4 fc)"
    planes = _make_input_planes(x_nchw)

    n_out = prep["wfc"].shape[-1]
    args = (planes, prep["lw1"], prep["lw2"], prep["lw3"],
            prep["t2"], prep["tt2"], prep["bn2_g"], prep["bn2_b"],
            prep["t3"], prep["tt3"], prep["bn3_g"], prep["bn3_b"],
            prep["wfc"])

    kernel = functools.partial(_d2_kernel, n_batch=n, slope=SLOPE, eps=EPS)
    out = pl.pallas_call(
        kernel,
        out_shape=jax.ShapeDtypeStruct((n, n_out), jnp.float32),
        grid=(1,),
        in_specs=[_full_spec(a.shape) for a in args],
        out_specs=_full_spec((n, n_out)),
        scratch_shapes=[
            # mod-4 residue planes of padded conv1 output, (4, N*5, 18*c1)
            pltpu.VMEM((4, n * _PLANE_ROWS, prep["lw1"].shape[2]), jnp.float32),
            # mod-2 residue planes of padded conv2 output, (2, N*5, 10*c2)
            pltpu.VMEM((2, n * _PLANE_ROWS, prep["lw2"].shape[2]), jnp.float32),
        ],
        compiler_params=pltpu.CompilerParams(
            dimension_semantics=("arbitrary",)),
    )(*args)
    return jnp.squeeze(out)


# --------------------------------- driver ----------------------------------

def init_params(key, conv_dim=8, use_labels=False):
    n_out = 11 if use_labels else 1
    ks = jax.random.split(key, 4)

    def wt(k, shape):
        fan_in = shape[1] * shape[2] * shape[3]
        return jax.random.normal(k, shape, jnp.float32) / jnp.sqrt(fan_in)

    return {
        "w1": wt(ks[0], (conv_dim, 3, 4, 4)),
        "w2": wt(ks[1], (conv_dim * 2, conv_dim, 4, 4)),
        "g2": jnp.ones((conv_dim * 2,), jnp.float32),
        "b2": jnp.zeros((conv_dim * 2,), jnp.float32),
        "w3": wt(ks[2], (conv_dim * 4, conv_dim * 2, 4, 4)),
        "g3": jnp.ones((conv_dim * 4,), jnp.float32),
        "b3": jnp.zeros((conv_dim * 4,), jnp.float32),
        "w_fc": wt(ks[3], (n_out, conv_dim * 4, 4, 4)),
    }


if __name__ == "__main__":
    key = jax.random.PRNGKey(0)
    k_x, k_p = jax.random.split(key)
    # Spatial size must be 32 so three stride-2 convs + the 4x4 fc reduce to 1x1.
    x = jax.random.normal(k_x, (2, 3, 32, 32), jnp.float32)   # NCHW like PyTorch
    params = init_params(k_p, conv_dim=8)
    prep = prepare_params(params)                             # host-side, once

    out = jax.jit(d2_forward)(prep, x)
    out = jax.block_until_ready(out)
    assert out.shape == (2,), out.shape
    print("KERNEL_OK")
</pallas_src>

<mosaic_0001>
module attributes {stable_mosaic.version = 11 : i64} {
  func.func @_d2_kernel(%arg0: i32, %arg1: memref<8x10x102xf32, #tpu.memory_space<vmem>>, %arg2: memref<4x102x144xf32, #tpu.memory_space<vmem>>, %arg3: memref<4x144x160xf32, #tpu.memory_space<vmem>>, %arg4: memref<4x160x128xf32, #tpu.memory_space<vmem>>, %arg5: memref<160x16xf32, #tpu.memory_space<vmem>>, %arg6: memref<16x160xf32, #tpu.memory_space<vmem>>, %arg7: memref<1x16xf32, #tpu.memory_space<vmem>>, %arg8: memref<1x16xf32, #tpu.memory_space<vmem>>, %arg9: memref<128x32xf32, #tpu.memory_space<vmem>>, %arg10: memref<32x128xf32, #tpu.memory_space<vmem>>, %arg11: memref<1x32xf32, #tpu.memory_space<vmem>>, %arg12: memref<1x32xf32, #tpu.memory_space<vmem>>, %arg13: memref<4x128x1xf32, #tpu.memory_space<vmem>>, %arg14: memref<2x1xf32, #tpu.memory_space<vmem>>, %arg15: memref<4x10x144xf32, #tpu.memory_space<vmem>>, %arg16: memref<2x10x160xf32, #tpu.memory_space<vmem>>) attributes {dimension_semantics = [#tpu.dimension_semantics<arbitrary>], iteration_bounds = array<i64: 1>, scalar_prefetch = 0 : i64, scratch_operands = 2 : i64, tpu.core_type = #tpu.core_type<tc>, window_params = [{pipeline_mode = #tpu.pipeline_mode<synchronous>, transform_indices = @transform_0, window_bounds = array<i64: 8, 10, 102>}, {pipeline_mode = #tpu.pipeline_mode<synchronous>, transform_indices = @transform_1, window_bounds = array<i64: 4, 102, 144>}, {pipeline_mode = #tpu.pipeline_mode<synchronous>, transform_indices = @transform_2, window_bounds = array<i64: 4, 144, 160>}, {pipeline_mode = #tpu.pipeline_mode<synchronous>, transform_indices = @transform_3, window_bounds = array<i64: 4, 160, 128>}, {pipeline_mode = #tpu.pipeline_mode<synchronous>, transform_indices = @transform_4, window_bounds = array<i64: 160, 16>}, {pipeline_mode = #tpu.pipeline_mode<synchronous>, transform_indices = @transform_5, window_bounds = array<i64: 16, 160>}, {pipeline_mode = #tpu.pipeline_mode<synchronous>, transform_indices = @transform_6, window_bounds = array<i64: 1, 16>}, {pipeline_mode = #tpu.pipeline_mode<synchronous>, transform_indices = @transform_7, window_bounds = array<i64: 1, 16>}, {pipeline_mode = #tpu.pipeline_mode<synchronous>, transform_indices = @transform_8, window_bounds = array<i64: 128, 32>}, {pipeline_mode = #tpu.pipeline_mode<synchronous>, transform_indices = @transform_9, window_bounds = array<i64: 32, 128>}, {pipeline_mode = #tpu.pipeline_mode<synchronous>, transform_indices = @transform_10, window_bounds = array<i64: 1, 32>}, {pipeline_mode = #tpu.pipeline_mode<synchronous>, transform_indices = @transform_11, window_bounds = array<i64: 1, 32>}, {pipeline_mode = #tpu.pipeline_mode<synchronous>, transform_indices = @transform_12, window_bounds = array<i64: 4, 128, 1>}, {pipeline_mode = #tpu.pipeline_mode<synchronous>, transform_indices = @transform_13, window_bounds = array<i64: 2, 1>}]} {
    %cst = arith.constant 0.000000e+00 : f32
    %0 = vector.broadcast %cst : f32 to vector<4x10x144xf32>
    %c0 = arith.constant 0 : index
    %c0_0 = arith.constant 0 : index
    %c0_1 = arith.constant 0 : index
    %1 = vector.load %arg15[%c0, %c0_0, %c0_1] : memref<4x10x144xf32, #tpu.memory_space<vmem>>, vector<4x10x144xf32>
    tpu.vector_store %arg15[%c0, %c0_0, %c0_1], %0 {strides = array<i32>} : memref<4x10x144xf32, #tpu.memory_space<vmem>>, vector<4x10x144xf32>,
    %cst_2 = arith.constant 0.000000e+00 : f32
    %2 = vector.broadcast %cst_2 : f32 to vector<2x10x160xf32>
    %c0_3 = arith.constant 0 : index
    %c0_4 = arith.constant 0 : index
    %c0_5 = arith.constant 0 : index
    %3 = vector.load %arg16[%c0_3, %c0_4, %c0_5] : memref<2x10x160xf32, #tpu.memory_space<vmem>>, vector<2x10x160xf32>
    tpu.vector_store %arg16[%c0_3, %c0_4, %c0_5], %2 {strides = array<i32>} : memref<2x10x160xf32, #tpu.memory_space<vmem>>, vector<2x10x160xf32>,
    %c0_6 = arith.constant 0 : index
    %c0_7 = arith.constant 0 : index
    %c0_8 = arith.constant 0 : index
    %4 = vector.load %arg1[%c0_6, %c0_7, %c0_8] : memref<8x10x102xf32, #tpu.memory_space<vmem>>, vector<1x4x102xf32>
    %5 = vector.shape_cast %4 : vector<1x4x102xf32> to vector<4x102xf32>
    %c0_9 = arith.constant 0 : index
    %c0_10 = arith.constant 0 : index
    %c0_11 = arith.constant 0 : index
    %6 = vector.load %arg2[%c0_9, %c0_10, %c0_11] : memref<4x102x144xf32, #tpu.memory_space<vmem>>, vector<1x102x144xf32>
    %7 = vector.shape_cast %6 : vector<1x102x144xf32> to vector<102x144xf32>
    %cst_12 = arith.constant dense<0.000000e+00> : vector<4x144xf32>
    %8 = tpu.matmul %5, %7, %cst_12 {dimension_numbers = #tpu.dot_dimension_numbers<[1], [0], [0], [1], [0, 0, 1, 1], [], []>} : vector<4x102xf32>, vector<102x144xf32>, vector<4x144xf32> -> vector<4x144xf32>
    %c1 = arith.constant 1 : index
    %c0_13 = arith.constant 0 : index
    %c0_14 = arith.constant 0 : index
    %9 = vector.load %arg1[%c1, %c0_13, %c0_14] : memref<8x10x102xf32, #tpu.memory_space<vmem>>, vector<1x4x102xf32>
    %10 = vector.shape_cast %9 : vector<1x4x102xf32> to vector<4x102xf32>
    %c1_15 = arith.constant 1 : index
    %c0_16 = arith.constant 0 : index
    %c0_17 = arith.constant 0 : index
    %11 = vector.load %arg2[%c1_15, %c0_16, %c0_17] : memref<4x102x144xf32, #tpu.memory_space<vmem>>, vector<1x102x144xf32>
    %12 = vector.shape_cast %11 : vector<1x102x144xf32> to vector<102x144xf32>
    %cst_18 = arith.constant dense<0.000000e+00> : vector<4x144xf32>
    %13 = tpu.matmul %10, %12, %cst_18 {dimension_numbers = #tpu.dot_dimension_numbers<[1], [0], [0], [1], [0, 0, 1, 1], [], []>} : vector<4x102xf32>, vector<102x144xf32>, vector<4x144xf32> -> vector<4x144xf32>
    %14 = arith.addf %8, %13 : vector<4x144xf32>
    %c2 = arith.constant 2 : index
    %c0_19 = arith.constant 0 : index
    %c0_20 = arith.constant 0 : index
    %15 = vector.load %arg1[%c2, %c0_19, %c0_20] : memref<8x10x102xf32, #tpu.memory_space<vmem>>, vector<1x4x102xf32>
    %16 = vector.shape_cast %15 : vector<1x4x102xf32> to vector<4x102xf32>
    %c2_21 = arith.constant 2 : index
    %c0_22 = arith.constant 0 : index
    %c0_23 = arith.constant 0 : index
    %17 = vector.load %arg2[%c2_21, %c0_22, %c0_23] : memref<4x102x144xf32, #tpu.memory_space<vmem>>, vector<1x102x144xf32>
    %18 = vector.shape_cast %17 : vector<1x102x144xf32> to vector<102x144xf32>
    %cst_24 = arith.constant dense<0.000000e+00> : vector<4x144xf32>
    %19 = tpu.matmul %16, %18, %cst_24 {dimension_numbers = #tpu.dot_dimension_numbers<[1], [0], [0], [1], [0, 0, 1, 1], [], []>} : vector<4x102xf32>, vector<102x144xf32>, vector<4x144xf32> -> vector<4x144xf32>
    %20 = arith.addf %14, %19 : vector<4x144xf32>
    %c3 = arith.constant 3 : index
    %c0_25 = arith.constant 0 : index
    %c0_26 = arith.constant 0 : index
    %21 = vector.load %arg1[%c3, %c0_25, %c0_26] : memref<8x10x102xf32, #tpu.memory_space<vmem>>, vector<1x4x102xf32>
    %22 = vector.shape_cast %21 : vector<1x4x102xf32> to vector<4x102xf32>
    %c3_27 = arith.constant 3 : index
    %c0_28 = arith.constant 0 : index
    %c0_29 = arith.constant 0 : index
    %23 = vector.load %arg2[%c3_27, %c0_28, %c0_29] : memref<4x102x144xf32, #tpu.memory_space<vmem>>, vector<1x102x144xf32>
    %24 = vector.shape_cast %23 : vector<1x102x144xf32> to vector<102x144xf32>
    %cst_30 = arith.constant dense<0.000000e+00> : vector<4x144xf32>
    %25 = tpu.matmul %22, %24, %cst_30 {dimension_numbers = #tpu.dot_dimension_numbers<[1], [0], [0], [1], [0, 0, 1, 1], [], []>} : vector<4x102xf32>, vector<102x144xf32>, vector<4x144xf32> -> vector<4x144xf32>
    %26 = arith.addf %20, %25 : vector<4x144xf32>
    %cst_31 = arith.constant 0.000000e+00 : f32
    %27 = vector.broadcast %cst_31 : f32 to vector<4x144xf32>
    %28 = arith.cmpf oge, %26, %27 : vector<4x144xf32>
    %cst_32 = arith.constant 5.000000e-02 : f32
    %29 = vector.broadcast %cst_32 : f32 to vector<4x144xf32>
    %30 = arith.mulf %29, %26 : vector<4x144xf32>
    %31 = arith.select %28, %26, %30 : vector<4x144xi1>, vector<4x144xf32>
    %c1_33 = arith.constant 1 : index
    %c0_34 = arith.constant 0 : index
    %c0_35 = arith.constant 0 : index
    %32 = vector.load %arg15[%c1_33, %c0_34, %c0_35] : memref<4x10x144xf32, #tpu.memory_space<vmem>>, vector<1x4x144xf32>
    %33 = vector.shape_cast %32 : vector<1x4x144xf32> to vector<4x144xf32>
    %34 = vector.shape_cast %31 : vector<4x144xf32> to vector<1x4x144xf32>
    tpu.vector_store %arg15[%c1_33, %c0_34, %c0_35], %34 {strides = array<i32>} : memref<4x10x144xf32, #tpu.memory_space<vmem>>, vector<1x4x144xf32>,
    %c2_36 = arith.constant 2 : index
    %c0_37 = arith.constant 0 : index
    %c0_38 = arith.constant 0 : index
    %35 = vector.load %arg1[%c2_36, %c0_37, %c0_38] : memref<8x10x102xf32, #tpu.memory_space<vmem>>, vector<1x4x102xf32>
    %36 = vector.shape_cast %35 : vector<1x4x102xf32> to vector<4x102xf32>
    %c0_39 = arith.constant 0 : index
    %c0_40 = arith.constant 0 : index
    %c0_41 = arith.constant 0 : index
    %37 = vector.load %arg2[%c0_39, %c0_40, %c0_41] : memref<4x102x144xf32, #tpu.memory_space<vmem>>, vector<1x102x144xf32>
    %38 = vector.shape_cast %37 : vector<1x102x144xf32> to vector<102x144xf32>
    %cst_42 = arith.constant dense<0.000000e+00> : vector<4x144xf32>
    %39 = tpu.matmul %36, %38, %cst_42 {dimension_numbers = #tpu.dot_dimension_numbers<[1], [0], [0], [1], [0, 0, 1, 1], [], []>} : vector<4x102xf32>, vector<102x144xf32>, vector<4x144xf32> -> vector<4x144xf32>
    %c3_43 = arith.constant 3 : index
    %c0_44 = arith.constant 0 : index
    %c0_45 = arith.constant 0 : index
    %40 = vector.load %arg1[%c3_43, %c0_44, %c0_45] : memref<8x10x102xf32, #tpu.memory_space<vmem>>, vector<1x4x102xf32>
    %41 = vector.shape_cast %40 : vector<1x4x102xf32> to vector<4x102xf32>
    %c1_46 = arith.constant 1 : index
    %c0_47 = arith.constant 0 : index
    %c0_48 = arith.constant 0 : index
    %42 = vector.load %arg2[%c1_46, %c0_47, %c0_48] : memref<4x102x144xf32, #tpu.memory_space<vmem>>, vector<1x102x144xf32>
    %43 = vector.shape_cast %42 : vector<1x102x144xf32> to vector<102x144xf32>
    %cst_49 = arith.constant dense<0.000000e+00> : vector<4x144xf32>
    %44 = tpu.matmul %41, %43, %cst_49 {dimension_numbers = #tpu.dot_dimension_numbers<[1], [0], [0], [1], [0, 0, 1, 1], [], []>} : vector<4x102xf32>, vector<102x144xf32>, vector<4x144xf32> -> vector<4x144xf32>
    %45 = arith.addf %39, %44 : vector<4x144xf32>
    %c4 = arith.constant 4 : index
    %c0_50 = arith.constant 0 : index
    %c0_51 = arith.constant 0 : index
    %46 = vector.load %arg1[%c4, %c0_50, %c0_51] : memref<8x10x102xf32, #tpu.memory_space<vmem>>, vector<1x4x102xf32>
    %47 = vector.shape_cast %46 : vector<1x4x102xf32> to vector<4x102xf32>
    %c2_52 = arith.constant 2 : index
    %c0_53 = arith.constant 0 : index
    %c0_54 = arith.constant 0 : index
    %48 = vector.load %arg2[%c2_52, %c0_53, %c0_54] : memref<4x102x144xf32, #tpu.memory_space<vmem>>, vector<1x102x144xf32>
    %49 = vector.shape_cast %48 : vector<1x102x144xf32> to vector<102x144xf32>
    %cst_55 = arith.constant dense<0.000000e+00> : vector<4x144xf32>
    %50 = tpu.matmul %47, %49, %cst_55 {dimension_numbers = #tpu.dot_dimension_numbers<[1], [0], [0], [1], [0, 0, 1, 1], [], []>} : vector<4x102xf32>, vector<102x144xf32>, vector<4x144xf32> -> vector<4x144xf32>
    %51 = arith.addf %45, %50 : vector<4x144xf32>
    %c5 = arith.constant 5 : index
    %c0_56 = arith.constant 0 : index
    %c0_57 = arith.constant 0 : index
    %52 = vector.load %arg1[%c5, %c0_56, %c0_57] : memref<8x10x102xf32, #tpu.memory_space<vmem>>, vector<1x4x102xf32>
    %53 = vector.shape_cast %52 : vector<1x4x102xf32> to vector<4x102xf32>
    %c3_58 = arith.constant 3 : index
    %c0_59 = arith.constant 0 : index
    %c0_60 = arith.constant 0 : index
    %54 = vector.load %arg2[%c3_58, %c0_59, %c0_60] : memref<4x102x144xf32, #tpu.memory_space<vmem>>, vector<1x102x144xf32>
    %55 = vector.shape_cast %54 : vector<1x102x144xf32> to vector<102x144xf32>
    %cst_61 = arith.constant dense<0.000000e+00> : vector<4x144xf32>
    %56 = tpu.matmul %53, %55, %cst_61 {dimension_numbers = #tpu.dot_dimension_numbers<[1], [0], [0], [1], [0, 0, 1, 1], [], []>} : vector<4x102xf32>, vector<102x144xf32>, vector<4x144xf32> -> vector<4x144xf32>
    %57 = arith.addf %51, %56 : vector<4x144xf32>
    %cst_62 = arith.constant 0.000000e+00 : f32
    %58 = vector.broadcast %cst_62 : f32 to vector<4x144xf32>
    %59 = arith.cmpf oge, %57, %58 : vector<4x144xf32>
    %cst_63 = arith.constant 5.000000e-02 : f32
    %60 = vector.broadcast %cst_63 : f32 to vector<4x144xf32>
    %61 = arith.mulf %60, %57 : vector<4x144xf32>
    %62 = arith.select %59, %57, %61 : vector<4x144xi1>, vector<4x144xf32>
    %c2_64 = arith.constant 2 : index
    %c0_65 = arith.constant 0 : index
    %c0_66 = arith.constant 0 : index
    %63 = vector.load %arg15[%c2_64, %c0_65, %c0_66] : memref<4x10x144xf32, #tpu.memory_space<vmem>>, vector<1x4x144xf32>
    %64 = vector.shape_cast %63 : vector<1x4x144xf32> to vector<4x144xf32>
    %65 = vector.shape_cast %62 : vector<4x144xf32> to vector<1x4x144xf32>
    tpu.vector_store %arg15[%c2_64, %c0_65, %c0_66], %65 {strides = array<i32>} : memref<4x10x144xf32, #tpu.memory_space<vmem>>, vector<1x4x144xf32>,
    %c4_67 = arith.constant 4 : index
    %c0_68 = arith.constant 0 : index
    %c0_69 = arith.constant 0 : index
    %66 = vector.load %arg1[%c4_67, %c0_68, %c0_69] : memref<8x10x102xf32, #tpu.memory_space<vmem>>, vector<1x4x102xf32>
    %67 = vector.shape_cast %66 : vector<1x4x102xf32> to vector<4x102xf32>
    %c0_70 = arith.constant 0 : index
    %c0_71 = arith.constant 0 : index
    %c0_72 = arith.constant 0 : index
    %68 = vector.load %arg2[%c0_70, %c0_71, %c0_72] : memref<4x102x144xf32, #tpu.memory_space<vmem>>, vector<1x102x144xf32>
    %69 = vector.shape_cast %68 : vector<1x102x144xf32> to vector<102x144xf32>
    %cst_73 = arith.constant dense<0.000000e+00> : vector<4x144xf32>
    %70 = tpu.matmul %67, %69, %cst_73 {dimension_numbers = #tpu.dot_dimension_numbers<[1], [0], [0], [1], [0, 0, 1, 1], [], []>} : vector<4x102xf32>, vector<102x144xf32>, vector<4x144xf32> -> vector<4x144xf32>
    %c5_74 = arith.constant 5 : index
    %c0_75 = arith.constant 0 : index
    %c0_76 = arith.constant 0 : index
    %71 = vector.load %arg1[%c5_74, %c0_75, %c0_76] : memref<8x10x102xf32, #tpu.memory_space<vmem>>, vector<1x4x102xf32>
    %72 = vector.shape_cast %71 : vector<1x4x102xf32> to vector<4x102xf32>
    %c1_77 = arith.constant 1 : index
    %c0_78 = arith.constant 0 : index
    %c0_79 = arith.constant 0 : index
    %73 = vector.load %arg2[%c1_77, %c0_78, %c0_79] : memref<4x102x144xf32, #tpu.memory_space<vmem>>, vector<1x102x144xf32>
    %74 = vector.shape_cast %73 : vector<1x102x144xf32> to vector<102x144xf32>
    %cst_80 = arith.constant dense<0.000000e+00> : vector<4x144xf32>
    %75 = tpu.matmul %72, %74, %cst_80 {dimension_numbers = #tpu.dot_dimension_numbers<[1], [0], [0], [1], [0, 0, 1, 1], [], []>} : vector<4x102xf32>, vector<102x144xf32>, vector<4x144xf32> -> vector<4x144xf32>
    %76 = arith.addf %70, %75 : vector<4x144xf32>
    %c6 = arith.constant 6 : index
    %c0_81 = arith.constant 0 : index
    %c0_82 = arith.constant 0 : index
    %77 = vector.load %arg1[%c6, %c0_81, %c0_82] : memref<8x10x102xf32, #tpu.memory_space<vmem>>, vector<1x4x102xf32>
    %78 = vector.shape_cast %77 : vector<1x4x102xf32> to vector<4x102xf32>
    %c2_83 = arith.constant 2 : index
    %c0_84 = arith.constant 0 : index
    %c0_85 = arith.constant 0 : index
    %79 = vector.load %arg2[%c2_83, %c0_84, %c0_85] : memref<4x102x144xf32, #tpu.memory_space<vmem>>, vector<1x102x144xf32>
    %80 = vector.shape_cast %79 : vector<1x102x144xf32> to vector<102x144xf32>
    %cst_86 = arith.constant dense<0.000000e+00> : vector<4x144xf32>
    %81 = tpu.matmul %78, %80, %cst_86 {dimension_numbers = #tpu.dot_dimension_numbers<[1], [0], [0], [1], [0, 0, 1, 1], [], []>} : vector<4x102xf32>, vector<102x144xf32>, vector<4x144xf32> -> vector<4x144xf32>
    %82 = arith.addf %76, %81 : vector<4x144xf32>
    %c7 = arith.constant 7 : index
    %c0_87 = arith.constant 0 : index
    %c0_88 = arith.constant 0 : index
    %83 = vector.load %arg1[%c7, %c0_87, %c0_88] : memref<8x10x102xf32, #tpu.memory_space<vmem>>, vector<1x4x102xf32>
    %84 = vector.shape_cast %83 : vector<1x4x102xf32> to vector<4x102xf32>
    %c3_89 = arith.constant 3 : index
    %c0_90 = arith.constant 0 : index
    %c0_91 = arith.constant 0 : index
    %85 = vector.load %arg2[%c3_89, %c0_90, %c0_91] : memref<4x102x144xf32, #tpu.memory_space<vmem>>, vector<1x102x144xf32>
    %86 = vector.shape_cast %85 : vector<1x102x144xf32> to vector<102x144xf32>
    %cst_92 = arith.constant dense<0.000000e+00> : vector<4x144xf32>
    %87 = tpu.matmul %84, %86, %cst_92 {dimension_numbers = #tpu.dot_dimension_numbers<[1], [0], [0], [1], [0, 0, 1, 1], [], []>} : vector<4x102xf32>, vector<102x144xf32>, vector<4x144xf32> -> vector<4x144xf32>
    %88 = arith.addf %82, %87 : vector<4x144xf32>
    %cst_93 = arith.constant 0.000000e+00 : f32
    %89 = vector.broadcast %cst_93 : f32 to vector<4x144xf32>
    %90 = arith.cmpf oge, %88, %89 : vector<4x144xf32>
    %cst_94 = arith.constant 5.000000e-02 : f32
    %91 = vector.broadcast %cst_94 : f32 to vector<4x144xf32>
    %92 = arith.mulf %91, %88 : vector<4x144xf32>
    %93 = arith.select %90, %88, %92 : vector<4x144xi1>, vector<4x144xf32>
    %c3_95 = arith.constant 3 : index
    %c0_96 = arith.constant 0 : index
    %c0_97 = arith.constant 0 : index
    %94 = vector.load %arg15[%c3_95, %c0_96, %c0_97] : memref<4x10x144xf32, #tpu.memory_space<vmem>>, vector<1x4x144xf32>
    %95 = vector.shape_cast %94 : vector<1x4x144xf32> to vector<4x144xf32>
    %96 = vector.shape_cast %93 : vector<4x144xf32> to vector<1x4x144xf32>
    tpu.vector_store %arg15[%c3_95, %c0_96, %c0_97], %96 {strides = array<i32>} : memref<4x10x144xf32, #tpu.memory_space<vmem>>, vector<1x4x144xf32>,
    %c6_98 = arith.constant 6 : index
    %c0_99 = arith.constant 0 : index
    %c0_100 = arith.constant 0 : index
    %97 = vector.load %arg1[%c6_98, %c0_99, %c0_100] : memref<8x10x102xf32, #tpu.memory_space<vmem>>, vector<1x4x102xf32>
    %98 = vector.shape_cast %97 : vector<1x4x102xf32> to vector<4x102xf32>
    %c0_101 = arith.constant 0 : index
    %c0_102 = arith.constant 0 : index
    %c0_103 = arith.constant 0 : index
    %99 = vector.load %arg2[%c0_101, %c0_102, %c0_103] : memref<4x102x144xf32, #tpu.memory_space<vmem>>, vector<1x102x144xf32>
    %100 = vector.shape_cast %99 : vector<1x102x144xf32> to vector<102x144xf32>
    %cst_104 = arith.constant dense<0.000000e+00> : vector<4x144xf32>
    %101 = tpu.matmul %98, %100, %cst_104 {dimension_numbers = #tpu.dot_dimension_numbers<[1], [0], [0], [1], [0, 0, 1, 1], [], []>} : vector<4x102xf32>, vector<102x144xf32>, vector<4x144xf32> -> vector<4x144xf32>
    %c7_105 = arith.constant 7 : index
    %c0_106 = arith.constant 0 : index
    %c0_107 = arith.constant 0 : index
    %102 = vector.load %arg1[%c7_105, %c0_106, %c0_107] : memref<8x10x102xf32, #tpu.memory_space<vmem>>, vector<1x4x102xf32>
    %103 = vector.shape_cast %102 : vector<1x4x102xf32> to vector<4x102xf32>
    %c1_108 = arith.constant 1 : index
    %c0_109 = arith.constant 0 : index
    %c0_110 = arith.constant 0 : index
    %104 = vector.load %arg2[%c1_108, %c0_109, %c0_110] : memref<4x102x144xf32, #tpu.memory_space<vmem>>, vector<1x102x144xf32>
    %105 = vector.shape_cast %104 : vector<1x102x144xf32> to vector<102x144xf32>
    %cst_111 = arith.constant dense<0.000000e+00> : vector<4x144xf32>
    %106 = tpu.matmul %103, %105, %cst_111 {dimension_numbers = #tpu.dot_dimension_numbers<[1], [0], [0], [1], [0, 0, 1, 1], [], []>} : vector<4x102xf32>, vector<102x144xf32>, vector<4x144xf32> -> vector<4x144xf32>
    %107 = arith.addf %101, %106 : vector<4x144xf32>
    %c0_112 = arith.constant 0 : index
    %c1_113 = arith.constant 1 : index
    %c0_114 = arith.constant 0 : index
    %108 = vector.load %arg1[%c0_112, %c1_113, %c0_114] : memref<8x10x102xf32, #tpu.memory_space<vmem>>, vector<1x4x102xf32>
    %109 = vector.shape_cast %108 : vector<1x4x102xf32> to vector<4x102xf32>
    %c2_115 = arith.constant 2 : index
    %c0_116 = arith.constant 0 : index
    %c0_117 = arith.constant 0 : index
    %110 = vector.load %arg2[%c2_115, %c0_116, %c0_117] : memref<4x102x144xf32, #tpu.memory_space<vmem>>, vector<1x102x144xf32>
    %111 = vector.shape_cast %110 : vector<1x102x144xf32> to vector<102x144xf32>
    %cst_118 = arith.constant dense<0.000000e+00> : vector<4x144xf32>
    %112 = tpu.matmul %109, %111, %cst_118 {dimension_numbers = #tpu.dot_dimension_numbers<[1], [0], [0], [1], [0, 0, 1, 1], [], []>} : vector<4x102xf32>, vector<102x144xf32>, vector<4x144xf32> -> vector<4x144xf32>
    %113 = arith.addf %107, %112 : vector<4x144xf32>
    %c1_119 = arith.constant 1 : index
    %c1_120 = arith.constant 1 : index
    %c0_121 = arith.constant 0 : index
    %114 = vector.load %arg1[%c1_119, %c1_120, %c0_121] : memref<8x10x102xf32, #tpu.memory_space<vmem>>, vector<1x4x102xf32>
    %115 = vector.shape_cast %114 : vector<1x4x102xf32> to vector<4x102xf32>
    %c3_122 = arith.constant 3 : index
    %c0_123 = arith.constant 0 : index
    %c0_124 = arith.constant 0 : index
    %116 = vector.load %arg2[%c3_122, %c0_123, %c0_124] : memref<4x102x144xf32, #tpu.memory_space<vmem>>, vector<1x102x144xf32>
    %117 = vector.shape_cast %116 : vector<1x102x144xf32> to vector<102x144xf32>
    %cst_125 = arith.constant dense<0.000000e+00> : vector<4x144xf32>
    %118 = tpu.matmul %115, %117, %cst_125 {dimension_numbers = #tpu.dot_dimension_numbers<[1], [0], [0], [1], [0, 0, 1, 1], [], []>} : vector<4x102xf32>, vector<102x144xf32>, vector<4x144xf32> -> vector<4x144xf32>
    %119 = arith.addf %113, %118 : vector<4x144xf32>
    %cst_126 = arith.constant 0.000000e+00 : f32
    %120 = vector.broadcast %cst_126 : f32 to vector<4x144xf32>
    %121 = arith.cmpf oge, %119, %120 : vector<4x144xf32>
    %cst_127 = arith.constant 5.000000e-02 : f32
    %122 = vector.broadcast %cst_127 : f32 to vector<4x144xf32>
    %123 = arith.mulf %122, %119 : vector<4x144xf32>
    %124 = arith.select %121, %119, %123 : vector<4x144xi1>, vector<4x144xf32>
    %c0_128 = arith.constant 0 : index
    %c1_129 = arith.constant 1 : index
    %c0_130 = arith.constant 0 : index
    %125 = vector.load %arg15[%c0_128, %c1_129, %c0_130] : memref<4x10x144xf32, #tpu.memory_space<vmem>>, vector<1x4x144xf32>
    %126 = vector.shape_cast %125 : vector<1x4x144xf32> to vector<4x144xf32>
    %127 = vector.shape_cast %124 : vector<4x144xf32> to vector<1x4x144xf32>
    tpu.vector_store %arg15[%c0_128, %c1_129, %c0_130], %127 {strides = array<i32>} : memref<4x10x144xf32, #tpu.memory_space<vmem>>, vector<1x4x144xf32>,
    %c0_131 = arith.constant 0 : index
    %c5_132 = arith.constant 5 : index
    %c0_133 = arith.constant 0 : index
    %128 = vector.load %arg1[%c0_131, %c5_132, %c0_133] : memref<8x10x102xf32, #tpu.memory_space<vmem>>, vector<1x4x102xf32>
    %129 = vector.shape_cast %128 : vector<1x4x102xf32> to vector<4x102xf32>
    %c0_134 = arith.constant 0 : index
    %c0_135 = arith.constant 0 : index
    %c0_136 = arith.constant 0 : index
    %130 = vector.load %arg2[%c0_134, %c0_135, %c0_136] : memref<4x102x144xf32, #tpu.memory_space<vmem>>, vector<1x102x144xf32>
    %131 = vector.shape_cast %130 : vector<1x102x144xf32> to vector<102x144xf32>
    %cst_137 = arith.constant dense<0.000000e+00> : vector<4x144xf32>
    %132 = tpu.matmul %129, %131, %cst_137 {dimension_numbers = #tpu.dot_dimension_numbers<[1], [0], [0], [1], [0, 0, 1, 1], [], []>} : vector<4x102xf32>, vector<102x144xf32>, vector<4x144xf32> -> vector<4x144xf32>
    %c1_138 = arith.constant 1 : index
    %c5_139 = arith.constant 5 : index
    %c0_140 = arith.constant 0 : index
    %133 = vector.load %arg1[%c1_138, %c5_139, %c0_140] : memref<8x10x102xf32, #tpu.memory_space<vmem>>, vector<1x4x102xf32>
    %134 = vector.shape_cast %133 : vector<1x4x102xf32> to vector<4x102xf32>
    %c1_141 = arith.constant 1 : index
    %c0_142 = arith.constant 0 : index
    %c0_143 = arith.constant 0 : index
    %135 = vector.load %arg2[%c1_141, %c0_142, %c0_143] : memref<4x102x144xf32, #tpu.memory_space<vmem>>, vector<1x102x144xf32>
    %136 = vector.shape_cast %135 : vector<1x102x144xf32> to vector<102x144xf32>
    %cst_144 = arith.constant dense<0.000000e+00> : vector<4x144xf32>
    %137 = tpu.matmul %134, %136, %cst_144 {dimension_numbers = #tpu.dot_dimension_numbers<[1], [0], [0], [1], [0, 0, 1, 1], [], []>} : vector<4x102xf32>, vector<102x144xf32>, vector<4x144xf32> -> vector<4x144xf32>
    %138 = arith.addf %132, %137 : vector<4x144xf32>
    %c2_145 = arith.constant 2 : index
    %c5_146 = arith.constant 5 : index
    %c0_147 = arith.constant 0 : index
    %139 = vector.load %arg1[%c2_145, %c5_146, %c0_147] : memref<8x10x102xf32, #tpu.memory_space<vmem>>, vector<1x4x102xf32>
    %140 = vector.shape_cast %139 : vector<1x4x102xf32> to vector<4x102xf32>
    %c2_148 = arith.constant 2 : index
    %c0_149 = arith.constant 0 : index
    %c0_150 = arith.constant 0 : index
    %141 = vector.load %arg2[%c2_148, %c0_149, %c0_150] : memref<4x102x144xf32, #tpu.memory_space<vmem>>, vector<1x102x144xf32>
    %142 = vector.shape_cast %141 : vector<1x102x144xf32> to vector<102x144xf32>
    %cst_151 = arith.constant dense<0.000000e+00> : vector<4x144xf32>
    %143 = tpu.matmul %140, %142, %cst_151 {dimension_numbers = #tpu.dot_dimension_numbers<[1], [0], [0], [1], [0, 0, 1, 1], [], []>} : vector<4x102xf32>, vector<102x144xf32>, vector<4x144xf32> -> vector<4x144xf32>
    %144 = arith.addf %138, %143 : vector<4x144xf32>
    %c3_152 = arith.constant 3 : index
    %c5_153 = arith.constant 5 : index
    %c0_154 = arith.constant 0 : index
    %145 = vector.load %arg1[%c3_152, %c5_153, %c0_154] : memref<8x10x102xf32, #tpu.memory_space<vmem>>, vector<1x4x102xf32>
    %146 = vector.shape_cast %145 : vector<1x4x102xf32> to vector<4x102xf32>
    %c3_155 = arith.constant 3 : index
    %c0_156 = arith.constant 0 : index
    %c0_157 = arith.constant 0 : index
    %147 = vector.load %arg2[%c3_155, %c0_156, %c0_157] : memref<4x102x144xf32, #tpu.memory_space<vmem>>, vector<1x102x144xf32>
    %148 = vector.shape_cast %147 : vector<1x102x144xf32> to vector<102x144xf32>
    %cst_158 = arith.constant dense<0.000000e+00> : vector<4x144xf32>
    %149 = tpu.matmul %146, %148, %cst_158 {dimension_numbers = #tpu.dot_dimension_numbers<[1], [0], [0], [1], [0, 0, 1, 1], [], []>} : vector<4x102xf32>, vector<102x144xf32>, vector<4x144xf32> -> vector<4x144xf32>
    %150 = arith.addf %144, %149 : vector<4x144xf32>
    %cst_159 = arith.constant 0.000000e+00 : f32
    %151 = vector.broadcast %cst_159 : f32 to vector<4x144xf32>
    %152 = arith.cmpf oge, %150, %151 : vector<4x144xf32>
    %cst_160 = arith.constant 5.000000e-02 : f32
    %153 = vector.broadcast %cst_160 : f32 to vector<4x144xf32>
    %154 = arith.mulf %153, %150 : vector<4x144xf32>
    %155 = arith.select %152, %150, %154 : vector<4x144xi1>, vector<4x144xf32>
    %c1_161 = arith.constant 1 : index
    %c5_162 = arith.constant 5 : index
    %c0_163 = arith.constant 0 : index
    %156 = vector.load %arg15[%c1_161, %c5_162, %c0_163] : memref<4x10x144xf32, #tpu.memory_space<vmem>>, vector<1x4x144xf32>
    %157 = vector.shape_cast %156 : vector<1x4x144xf32> to vector<4x144xf32>
    %158 = vector.shape_cast %155 : vector<4x144xf32> to vector<1x4x144xf32>
    tpu.vector_store %arg15[%c1_161, %c5_162, %c0_163], %158 {strides = array<i32>} : memref<4x10x144xf32, #tpu.memory_space<vmem>>, vector<1x4x144xf32>,
    %c2_164 = arith.constant 2 : index
    %c5_165 = arith.constant 5 : index
    %c0_166 = arith.constant 0 : index
    %159 = vector.load %arg1[%c2_164, %c5_165, %c0_166] : memref<8x10x102xf32, #tpu.memory_space<vmem>>, vector<1x4x102xf32>
    %160 = vector.shape_cast %159 : vector<1x4x102xf32> to vector<4x102xf32>
    %c0_167 = arith.constant 0 : index
    %c0_168 = arith.constant 0 : index
    %c0_169 = arith.constant 0 : index
    %161 = vector.load %arg2[%c0_167, %c0_168, %c0_169] : memref<4x102x144xf32, #tpu.memory_space<vmem>>, vector<1x102x144xf32>
    %162 = vector.shape_cast %161 : vector<1x102x144xf32> to vector<102x144xf32>
    %cst_170 = arith.constant dense<0.000000e+00> : vector<4x144xf32>
    %163 = tpu.matmul %160, %162, %cst_170 {dimension_numbers = #tpu.dot_dimension_numbers<[1], [0], [0], [1], [0, 0, 1, 1], [], []>} : vector<4x102xf32>, vector<102x144xf32>, vector<4x144xf32> -> vector<4x144xf32>
    %c3_171 = arith.constant 3 : index
    %c5_172 = arith.constant 5 : index
    %c0_173 = arith.constant 0 : index
    %164 = vector.load %arg1[%c3_171, %c5_172, %c0_173] : memref<8x10x102xf32, #tpu.memory_space<vmem>>, vector<1x4x102xf32>
    %165 = vector.shape_cast %164 : vector<1x4x102xf32> to vector<4x102xf32>
    %c1_174 = arith.constant 1 : index
    %c0_175 = arith.constant 0 : index
    %c0_176 = arith.constant 0 : index
    %166 = vector.load %arg2[%c1_174, %c0_175, %c0_176] : memref<4x102x144xf32, #tpu.memory_space<vmem>>, vector<1x102x144xf32>
    %167 = vector.shape_cast %166 : vector<1x102x144xf32> to vector<102x144xf32>
    %cst_177 = arith.constant dense<0.000000e+00> : vector<4x144xf32>
    %168 = tpu.matmul %165, %167, %cst_177 {dimension_numbers = #tpu.dot_dimension_numbers<[1], [0], [0], [1], [0, 0, 1, 1], [], []>} : vector<4x102xf32>, vector<102x144xf32>, vector<4x144xf32> -> vector<4x144xf32>
    %169 = arith.addf %163, %168 : vector<4x144xf32>
    %c4_178 = arith.constant 4 : index
    %c5_179 = arith.constant 5 : index
    %c0_180 = arith.constant 0 : index
    %170 = vector.load %arg1[%c4_178, %c5_179, %c0_180] : memref<8x10x102xf32, #tpu.memory_space<vmem>>, vector<1x4x102xf32>
    %171 = vector.shape_cast %170 : vector<1x4x102xf32> to vector<4x102xf32>
    %c2_181 = arith.constant 2 : index
    %c0_182 = arith.constant 0 : index
    %c0_183 = arith.constant 0 : index
    %172 = vector.load %arg2[%c2_181, %c0_182, %c0_183] : memref<4x102x144xf32, #tpu.memory_space<vmem>>, vector<1x102x144xf32>
    %173 = vector.shape_cast %172 : vector<1x102x144xf32> to vector<102x144xf32>
    %cst_184 = arith.constant dense<0.000000e+00> : vector<4x144xf32>
    %174 = tpu.matmul %171, %173, %cst_184 {dimension_numbers = #tpu.dot_dimension_numbers<[1], [0], [0], [1], [0, 0, 1, 1], [], []>} : vector<4x102xf32>, vector<102x144xf32>, vector<4x144xf32> -> vector<4x144xf32>
    %175 = arith.addf %169, %174 : vector<4x144xf32>
    %c5_185 = arith.constant 5 : index
    %c5_186 = arith.constant 5 : index
    %c0_187 = arith.constant 0 : index
    %176 = vector.load %arg1[%c5_185, %c5_186, %c0_187] : memref<8x10x102xf32, #tpu.memory_space<vmem>>, vector<1x4x102xf32>
    %177 = vector.shape_cast %176 : vector<1x4x102xf32> to vector<4x102xf32>
    %c3_188 = arith.constant 3 : index
    %c0_189 = arith.constant 0 : index
    %c0_190 = arith.constant 0 : index
    %178 = vector.load %arg2[%c3_188, %c0_189, %c0_190] : memref<4x102x144xf32, #tpu.memory_space<vmem>>, vector<1x102x144xf32>
    %179 = vector.shape_cast %178 : vector<1x102x144xf32> to vector<102x144xf32>
    %cst_191 = arith.constant dense<0.000000e+00> : vector<4x144xf32>
    %180 = tpu.matmul %177, %179, %cst_191 {dimension_numbers = #tpu.dot_dimension_numbers<[1], [0], [0], [1], [0, 0, 1, 1], [], []>} : vector<4x102xf32>, vector<102x144xf32>, vector<4x144xf32> -> vector<4x144xf32>
    %181 = arith.addf %175, %180 : vector<4x144xf32>
    %cst_192 = arith.constant 0.000000e+00 : f32
    %182 = vector.broadcast %cst_192 : f32 to vector<4x144xf32>
    %183 = arith.cmpf oge, %181, %182 : vector<4x144xf32>
    %cst_193 = arith.constant 5.000000e-02 : f32
    %184 = vector.broadcast %cst_193 : f32 to vector<4x144xf32>
    %185 = arith.mulf %184, %181 : vector<4x144xf32>
    %186 = arith.select %183, %181, %185 : vector<4x144xi1>, vector<4x144xf32>
    %c2_194 = arith.constant 2 : index
    %c5_195 = arith.constant 5 : index
    %c0_196 = arith.constant 0 : index
    %187 = vector.load %arg15[%c2_194, %c5_195, %c0_196] : memref<4x10x144xf32, #tpu.memory_space<vmem>>, vector<1x4x144xf32>
    %188 = vector.shape_cast %187 : vector<1x4x144xf32> to vector<4x144xf32>
    %189 = vector.shape_cast %186 : vector<4x144xf32> to vector<1x4x144xf32>
    tpu.vector_store %arg15[%c2_194, %c5_195, %c0_196], %189 {strides = array<i32>} : memref<4x10x144xf32, #tpu.memory_space<vmem>>, vector<1x4x144xf32>,
    %c4_197 = arith.constant 4 : index
    %c5_198 = arith.constant 5 : index
    %c0_199 = arith.constant 0 : index
    %190 = vector.load %arg1[%c4_197, %c5_198, %c0_199] : memref<8x10x102xf32, #tpu.memory_space<vmem>>, vector<1x4x102xf32>
    %191 = vector.shape_cast %190 : vector<1x4x102xf32> to vector<4x102xf32>
    %c0_200 = arith.constant 0 : index
    %c0_201 = arith.constant 0 : index
    %c0_202 = arith.constant 0 : index
    %192 = vector.load %arg2[%c0_200, %c0_201, %c0_202] : memref<4x102x144xf32, #tpu.memory_space<vmem>>, vector<1x102x144xf32>
    %193 = vector.shape_cast %192 : vector<1x102x144xf32> to vector<102x144xf32>
    %cst_203 = arith.constant dense<0.000000e+00> : vector<4x144xf32>
    %194 = tpu.matmul %191, %193, %cst_203 {dimension_numbers = #tpu.dot_dimension_numbers<[1], [0], [0], [1], [0, 0, 1, 1], [], []>} : vector<4x102xf32>, vector<102x144xf32>, vector<4x144xf32> -> vector<4x144xf32>
    %c5_204 = arith.constant 5 : index
    %c5_205 = arith.constant 5 : index
    %c0_206 = arith.constant 0 : index
    %195 = vector.load %arg1[%c5_204, %c5_205, %c0_206] : memref<8x10x102xf32, #tpu.memory_space<vmem>>, vector<1x4x102xf32>
    %196 = vector.shape_cast %195 : vector<1x4x102xf32> to vector<4x102xf32>
    %c1_207 = arith.constant 1 : index
    %c0_208 = arith.constant 0 : index
    %c0_209 = arith.constant 0 : index
    %197 = vector.load %arg2[%c1_207, %c0_208, %c0_209] : memref<4x102x144xf32, #tpu.memory_space<vmem>>, vector<1x102x144xf32>
    %198 = vector.shape_cast %197 : vector<1x102x144xf32> to vector<102x144xf32>
    %cst_210 = arith.constant dense<0.000000e+00> : vector<4x144xf32>
    %199 = tpu.matmul %196, %198, %cst_210 {dimension_numbers = #tpu.dot_dimension_numbers<[1], [0], [0], [1], [0, 0, 1, 1], [], []>} : vector<4x102xf32>, vector<102x144xf32>, vector<4x144xf32> -> vector<4x144xf32>
    %200 = arith.addf %194, %199 : vector<4x144xf32>
    %c6_211 = arith.constant 6 : index
    %c5_212 = arith.constant 5 : index
    %c0_213 = arith.constant 0 : index
    %201 = vector.load %arg1[%c6_211, %c5_212, %c0_213] : memref<8x10x102xf32, #tpu.memory_space<vmem>>, vector<1x4x102xf32>
    %202 = vector.shape_cast %201 : vector<1x4x102xf32> to vector<4x102xf32>
    %c2_214 = arith.constant 2 : index
    %c0_215 = arith.constant 0 : index
    %c0_216 = arith.constant 0 : index
    %203 = vector.load %arg2[%c2_214, %c0_215, %c0_216] : memref<4x102x144xf32, #tpu.memory_space<vmem>>, vector<1x102x144xf32>
    %204 = vector.shape_cast %203 : vector<1x102x144xf32> to vector<102x144xf32>
    %cst_217 = arith.constant dense<0.000000e+00> : vector<4x144xf32>
    %205 = tpu.matmul %202, %204, %cst_217 {dimension_numbers = #tpu.dot_dimension_numbers<[1], [0], [0], [1], [0, 0, 1, 1], [], []>} : vector<4x102xf32>, vector<102x144xf32>, vector<4x144xf32> -> vector<4x144xf32>
    %206 = arith.addf %200, %205 : vector<4x144xf32>
    %c7_218 = arith.constant 7 : index
    %c5_219 = arith.constant 5 : index
    %c0_220 = arith.constant 0 : index
    %207 = vector.load %arg1[%c7_218, %c5_219, %c0_220] : memref<8x10x102xf32, #tpu.memory_space<vmem>>, vector<1x4x102xf32>
    %208 = vector.shape_cast %207 : vector<1x4x102xf32> to vector<4x102xf32>
    %c3_221 = arith.constant 3 : index
    %c0_222 = arith.constant 0 : index
    %c0_223 = arith.constant 0 : index
    %209 = vector.load %arg2[%c3_221, %c0_222, %c0_223] : memref<4x102x144xf32, #tpu.memory_space<vmem>>, vector<1x102x144xf32>
    %210 = vector.shape_cast %209 : vector<1x102x144xf32> to vector<102x144xf32>
    %cst_224 = arith.constant dense<0.000000e+00> : vector<4x144xf32>
    %211 = tpu.matmul %208, %210, %cst_224 {dimension_numbers = #tpu.dot_dimension_numbers<[1], [0], [0], [1], [0, 0, 1, 1], [], []>} : vector<4x102xf32>, vector<102x144xf32>, vector<4x144xf32> -> vector<4x144xf32>
    %212 = arith.addf %206, %211 : vector<4x144xf32>
    %cst_225 = arith.constant 0.000000e+00 : f32
    %213 = vector.broadcast %cst_225 : f32 to vector<4x144xf32>
    %214 = arith.cmpf oge, %212, %213 : vector<4x144xf32>
    %cst_226 = arith.constant 5.000000e-02 : f32
    %215 = vector.broadcast %cst_226 : f32 to vector<4x144xf32>
    %216 = arith.mulf %215, %212 : vector<4x144xf32>
    %217 = arith.select %214, %212, %216 : vector<4x144xi1>, vector<4x144xf32>
    %c3_227 = arith.constant 3 : index
    %c5_228 = arith.constant 5 : index
    %c0_229 = arith.constant 0 : index
    %218 = vector.load %arg15[%c3_227, %c5_228, %c0_229] : memref<4x10x144xf32, #tpu.memory_space<vmem>>, vector<1x4x144xf32>
    %219 = vector.shape_cast %218 : vector<1x4x144xf32> to vector<4x144xf32>
    %220 = vector.shape_cast %217 : vector<4x144xf32> to vector<1x4x144xf32>
    tpu.vector_store %arg15[%c3_227, %c5_228, %c0_229], %220 {strides = array<i32>} : memref<4x10x144xf32, #tpu.memory_space<vmem>>, vector<1x4x144xf32>,
    %c6_230 = arith.constant 6 : index
    %c5_231 = arith.constant 5 : index
    %c0_232 = arith.constant 0 : index
    %221 = vector.load %arg1[%c6_230, %c5_231, %c0_232] : memref<8x10x102xf32, #tpu.memory_space<vmem>>, vector<1x4x102xf32>
    %222 = vector.shape_cast %221 : vector<1x4x102xf32> to vector<4x102xf32>
    %c0_233 = arith.constant 0 : index
    %c0_234 = arith.constant 0 : index
    %c0_235 = arith.constant 0 : index
    %223 = vector.load %arg2[%c0_233, %c0_234, %c0_235] : memref<4x102x144xf32, #tpu.memory_space<vmem>>, vector<1x102x144xf32>
    %224 = vector.shape_cast %223 : vector<1x102x144xf32> to vector<102x144xf32>
    %cst_236 = arith.constant dense<0.000000e+00> : vector<4x144xf32>
    %225 = tpu.matmul %222, %224, %cst_236 {dimension_numbers = #tpu.dot_dimension_numbers<[1], [0], [0], [1], [0, 0, 1, 1], [], []>} : vector<4x102xf32>, vector<102x144xf32>, vector<4x144xf32> -> vector<4x144xf32>
    %c7_237 = arith.constant 7 : index
    %c5_238 = arith.constant 5 : index
    %c0_239 = arith.constant 0 : index
    %226 = vector.load %arg1[%c7_237, %c5_238, %c0_239] : memref<8x10x102xf32, #tpu.memory_space<vmem>>, vector<1x4x102xf32>
    %227 = vector.shape_cast %226 : vector<1x4x102xf32> to vector<4x102xf32>
    %c1_240 = arith.constant 1 : index
    %c0_241 = arith.constant 0 : index
    %c0_242 = arith.constant 0 : index
    %228 = vector.load %arg2[%c1_240, %c0_241, %c0_242] : memref<4x102x144xf32, #tpu.memory_space<vmem>>, vector<1x102x144xf32>
    %229 = vector.shape_cast %228 : vector<1x102x144xf32> to vector<102x144xf32>
    %cst_243 = arith.constant dense<0.000000e+00> : vector<4x144xf32>
    %230 = tpu.matmul %227, %229, %cst_243 {dimension_numbers = #tpu.dot_dimension_numbers<[1], [0], [0], [1], [0, 0, 1, 1], [], []>} : vector<4x102xf32>, vector<102x144xf32>, vector<4x144xf32> -> vector<4x144xf32>
    %231 = arith.addf %225, %230 : vector<4x144xf32>
    %c0_244 = arith.constant 0 : index
    %c6_245 = arith.constant 6 : index
    %c0_246 = arith.constant 0 : index
    %232 = vector.load %arg1[%c0_244, %c6_245, %c0_246] : memref<8x10x102xf32, #tpu.memory_space<vmem>>, vector<1x4x102xf32>
    %233 = vector.shape_cast %232 : vector<1x4x102xf32> to vector<4x102xf32>
    %c2_247 = arith.constant 2 : index
    %c0_248 = arith.constant 0 : index
    %c0_249 = arith.constant 0 : index
    %234 = vector.load %arg2[%c2_247, %c0_248, %c0_249] : memref<4x102x144xf32, #tpu.memory_space<vmem>>, vector<1x102x144xf32>
    %235 = vector.shape_cast %234 : vector<1x102x144xf32> to vector<102x144xf32>
    %cst_250 = arith.constant dense<0.000000e+00> : vector<4x144xf32>
    %236 = tpu.matmul %233, %235, %cst_250 {dimension_numbers = #tpu.dot_dimension_numbers<[1], [0], [0], [1], [0, 0, 1, 1], [], []>} : vector<4x102xf32>, vector<102x144xf32>, vector<4x144xf32> -> vector<4x144xf32>
    %237 = arith.addf %231, %236 : vector<4x144xf32>
    %c1_251 = arith.constant 1 : index
    %c6_252 = arith.constant 6 : index
    %c0_253 = arith.constant 0 : index
    %238 = vector.load %arg1[%c1_251, %c6_252, %c0_253] : memref<8x10x102xf32, #tpu.memory_space<vmem>>, vector<1x4x102xf32>
    %239 = vector.shape_cast %238 : vector<1x4x102xf32> to vector<4x102xf32>
    %c3_254 = arith.constant 3 : index
    %c0_255 = arith.constant 0 : index
    %c0_256 = arith.constant 0 : index
    %240 = vector.load %arg2[%c3_254, %c0_255, %c0_256] : memref<4x102x144xf32, #tpu.memory_space<vmem>>, vector<1x102x144xf32>
    %241 = vector.shape_cast %240 : vector<1x102x144xf32> to vector<102x144xf32>
    %cst_257 = arith.constant dense<0.000000e+00> : vector<4x144xf32>
    %242 = tpu.matmul %239, %241, %cst_257 {dimension_numbers = #tpu.dot_dimension_numbers<[1], [0], [0], [1], [0, 0, 1, 1], [], []>} : vector<4x102xf32>, vector<102x144xf32>, vector<4x144xf32> -> vector<4x144xf32>
    %243 = arith.addf %237, %242 : vector<4x144xf32>
    %cst_258 = arith.constant 0.000000e+00 : f32
    %244 = vector.broadcast %cst_258 : f32 to vector<4x144xf32>
    %245 = arith.cmpf oge, %243, %244 : vector<4x144xf32>
    %cst_259 = arith.constant 5.000000e-02 : f32
    %246 = vector.broadcast %cst_259 : f32 to vector<4x144xf32>
    %247 = arith.mulf %246, %243 : vector<4x144xf32>
    %248 = arith.select %245, %243, %247 : vector<4x144xi1>, vector<4x144xf32>
    %c0_260 = arith.constant 0 : index
    %c6_261 = arith.constant 6 : index
    %c0_262 = arith.constant 0 : index
    %249 = vector.load %arg15[%c0_260, %c6_261, %c0_262] : memref<4x10x144xf32, #tpu.memory_space<vmem>>, vector<1x4x144xf32>
    %250 = vector.shape_cast %249 : vector<1x4x144xf32> to vector<4x144xf32>
    %251 = vector.shape_cast %248 : vector<4x144xf32> to vector<1x4x144xf32>
    tpu.vector_store %arg15[%c0_260, %c6_261, %c0_262], %251 {strides = array<i32>} : memref<4x10x144xf32, #tpu.memory_space<vmem>>, vector<1x4x144xf32>,
    %c0_263 = arith.constant 0 : index
    %c0_264 = arith.constant 0 : index
    %c0_265 = arith.constant 0 : index
    %252 = vector.load %arg15[%c0_263, %c0_264, %c0_265] : memref<4x10x144xf32, #tpu.memory_space<vmem>>, vector<1x4x144xf32>
    %253 = vector.shape_cast %252 : vector<1x4x144xf32> to vector<4x144xf32>
    %c0_266 = arith.constant 0 : index
    %c0_267 = arith.constant 0 : index
    %c0_268 = arith.constant 0 : index
    %254 = vector.load %arg3[%c0_266, %c0_267, %c0_268] : memref<4x144x160xf32, #tpu.memory_space<vmem>>, vector<1x144x160xf32>
    %255 = vector.shape_cast %254 : vector<1x144x160xf32> to vector<144x160xf32>
    %cst_269 = arith.constant dense<0.000000e+00> : vector<4x160xf32>
    %256 = tpu.matmul %253, %255, %cst_269 {dimension_numbers = #tpu.dot_dimension_numbers<[1], [0], [0], [1], [0, 0, 1, 1], [], []>} : vector<4x144xf32>, vector<144x160xf32>, vector<4x160xf32> -> vector<4x160xf32>
    %c1_270 = arith.constant 1 : index
    %c0_271 = arith.constant 0 : index
    %c0_272 = arith.constant 0 : index
    %257 = vector.load %arg15[%c1_270, %c0_271, %c0_272] : memref<4x10x144xf32, #tpu.memory_space<vmem>>, vector<1x4x144xf32>
    %258 = vector.shape_cast %257 : vector<1x4x144xf32> to vector<4x144xf32>
    %c1_273 = arith.constant 1 : index
    %c0_274 = arith.constant 0 : index
    %c0_275 = arith.constant 0 : index
    %259 = vector.load %arg3[%c1_273, %c0_274, %c0_275] : memref<4x144x160xf32, #tpu.memory_space<vmem>>, vector<1x144x160xf32>
    %260 = vector.shape_cast %259 : vector<1x144x160xf32> to vector<144x160xf32>
    %cst_276 = arith.constant dense<0.000000e+00> : vector<4x160xf32>
    %261 = tpu.matmul %258, %260, %cst_276 {dimension_numbers = #tpu.dot_dimension_numbers<[1], [0], [0], [1], [0, 0, 1, 1], [], []>} : vector<4x144xf32>, vector<144x160xf32>, vector<4x160xf32> -> vector<4x160xf32>
    %262 = arith.addf %256, %261 : vector<4x160xf32>
    %c2_277 = arith.constant 2 : index
    %c0_278 = arith.constant 0 : index
    %c0_279 = arith.constant 0 : index
    %263 = vector.load %arg15[%c2_277, %c0_278, %c0_279] : memref<4x10x144xf32, #tpu.memory_space<vmem>>, vector<1x4x144xf32>
    %264 = vector.shape_cast %263 : vector<1x4x144xf32> to vector<4x144xf32>
    %c2_280 = arith.constant 2 : index
    %c0_281 = arith.constant 0 : index
    %c0_282 = arith.constant 0 : index
    %265 = vector.load %arg3[%c2_280, %c0_281, %c0_282] : memref<4x144x160xf32, #tpu.memory_space<vmem>>, vector<1x144x160xf32>
    %266 = vector.shape_cast %265 : vector<1x144x160xf32> to vector<144x160xf32>
    %cst_283 = arith.constant dense<0.000000e+00> : vector<4x160xf32>
    %267 = tpu.matmul %264, %266, %cst_283 {dimension_numbers = #tpu.dot_dimension_numbers<[1], [0], [0], [1], [0, 0, 1, 1], [], []>} : vector<4x144xf32>, vector<144x160xf32>, vector<4x160xf32> -> vector<4x160xf32>
    %268 = arith.addf %262, %267 : vector<4x160xf32>
    %c3_284 = arith.constant 3 : index
    %c0_285 = arith.constant 0 : index
    %c0_286 = arith.constant 0 : index
    %269 = vector.load %arg15[%c3_284, %c0_285, %c0_286] : memref<4x10x144xf32, #tpu.memory_space<vmem>>, vector<1x4x144xf32>
    %270 = vector.shape_cast %269 : vector<1x4x144xf32> to vector<4x144xf32>
    %c3_287 = arith.constant 3 : index
    %c0_288 = arith.constant 0 : index
    %c0_289 = arith.constant 0 : index
    %271 = vector.load %arg3[%c3_287, %c0_288, %c0_289] : memref<4x144x160xf32, #tpu.memory_space<vmem>>, vector<1x144x160xf32>
    %272 = vector.shape_cast %271 : vector<1x144x160xf32> to vector<144x160xf32>
    %cst_290 = arith.constant dense<0.000000e+00> : vector<4x160xf32>
    %273 = tpu.matmul %270, %272, %cst_290 {dimension_numbers = #tpu.dot_dimension_numbers<[1], [0], [0], [1], [0, 0, 1, 1], [], []>} : vector<4x144xf32>, vector<144x160xf32>, vector<4x160xf32> -> vector<4x160xf32>
    %274 = arith.addf %268, %273 : vector<4x160xf32>
    %cst_291 = arith.constant dense<0.000000e+00> : vector<160xf32>
    %275 = vector.multi_reduction <add>, %274, %cst_291 [0] : vector<4x160xf32> to vector<160xf32>
    %276 = vector.shape_cast %275 : vector<160xf32> to vector<1x160xf32>
    %277 = arith.mulf %274, %274 : vector<4x160xf32>
    %cst_292 = arith.constant dense<0.000000e+00> : vector<160xf32>
    %278 = vector.multi_reduction <add>, %277, %cst_292 [0] : vector<4x160xf32> to vector<160xf32>
    %279 = vector.shape_cast %278 : vector<160xf32> to vector<1x160xf32>
    %c2_293 = arith.constant 2 : index
    %c0_294 = arith.constant 0 : index
    %c0_295 = arith.constant 0 : index
    %280 = vector.load %arg15[%c2_293, %c0_294, %c0_295] : memref<4x10x144xf32, #tpu.memory_space<vmem>>, vector<1x4x144xf32>
    %281 = vector.shape_cast %280 : vector<1x4x144xf32> to vector<4x144xf32>
    %c0_296 = arith.constant 0 : index
    %c0_297 = arith.constant 0 : index
    %c0_298 = arith.constant 0 : index
    %282 = vector.load %arg3[%c0_296, %c0_297, %c0_298] : memref<4x144x160xf32, #tpu.memory_space<vmem>>, vector<1x144x160xf32>
    %283 = vector.shape_cast %282 : vector<1x144x160xf32> to vector<144x160xf32>
    %cst_299 = arith.constant dense<0.000000e+00> : vector<4x160xf32>
    %284 = tpu.matmul %281, %283, %cst_299 {dimension_numbers = #tpu.dot_dimension_numbers<[1], [0], [0], [1], [0, 0, 1, 1], [], []>} : vector<4x144xf32>, vector<144x160xf32>, vector<4x160xf32> -> vector<4x160xf32>
    %c3_300 = arith.constant 3 : index
    %c0_301 = arith.constant 0 : index
    %c0_302 = arith.constant 0 : index
    %285 = vector.load %arg15[%c3_300, %c0_301, %c0_302] : memref<4x10x144xf32, #tpu.memory_space<vmem>>, vector<1x4x144xf32>
    %286 = vector.shape_cast %285 : vector<1x4x144xf32> to vector<4x144xf32>
    %c1_303 = arith.constant 1 : index
    %c0_304 = arith.constant 0 : index
    %c0_305 = arith.constant 0 : index
    %287 = vector.load %arg3[%c1_303, %c0_304, %c0_305] : memref<4x144x160xf32, #tpu.memory_space<vmem>>, vector<1x144x160xf32>
    %288 = vector.shape_cast %287 : vector<1x144x160xf32> to vector<144x160xf32>
    %cst_306 = arith.constant dense<0.000000e+00> : vector<4x160xf32>
    %289 = tpu.matmul %286, %288, %cst_306 {dimension_numbers = #tpu.dot_dimension_numbers<[1], [0], [0], [1], [0, 0, 1, 1], [], []>} : vector<4x144xf32>, vector<144x160xf32>, vector<4x160xf32> -> vector<4x160xf32>
    %290 = arith.addf %284, %289 : vector<4x160xf32>
    %c0_307 = arith.constant 0 : index
    %c1_308 = arith.constant 1 : index
    %c0_309 = arith.constant 0 : index
    %291 = vector.load %arg15[%c0_307, %c1_308, %c0_309] : memref<4x10x144xf32, #tpu.memory_space<vmem>>, vector<1x4x144xf32>
    %292 = vector.shape_cast %291 : vector<1x4x144xf32> to vector<4x144xf32>
    %c2_310 = arith.constant 2 : index
    %c0_311 = arith.constant 0 : index
    %c0_312 = arith.constant 0 : index
    %293 = vector.load %arg3[%c2_310, %c0_311, %c0_312] : memref<4x144x160xf32, #tpu.memory_space<vmem>>, vector<1x144x160xf32>
    %294 = vector.shape_cast %293 : vector<1x144x160xf32> to vector<144x160xf32>
    %cst_313 = arith.constant dense<0.000000e+00> : vector<4x160xf32>
    %295 = tpu.matmul %292, %294, %cst_313 {dimension_numbers = #tpu.dot_dimension_numbers<[1], [0], [0], [1], [0, 0, 1, 1], [], []>} : vector<4x144xf32>, vector<144x160xf32>, vector<4x160xf32> -> vector<4x160xf32>
    %296 = arith.addf %290, %295 : vector<4x160xf32>
    %c1_314 = arith.constant 1 : index
    %c1_315 = arith.constant 1 : index
    %c0_316 = arith.constant 0 : index
    %297 = vector.load %arg15[%c1_314, %c1_315, %c0_316] : memref<4x10x144xf32, #tpu.memory_space<vmem>>, vector<1x4x144xf32>
    %298 = vector.shape_cast %297 : vector<1x4x144xf32> to vector<4x144xf32>
    %c3_317 = arith.constant 3 : index
    %c0_318 = arith.constant 0 : index
    %c0_319 = arith.constant 0 : index
    %299 = vector.load %arg3[%c3_317, %c0_318, %c0_319] : memref<4x144x160xf32, #tpu.memory_space<vmem>>, vector<1x144x160xf32>
    %300 = vector.shape_cast %299 : vector<1x144x160xf32> to vector<144x160xf32>
    %cst_320 = arith.constant dense<0.000000e+00> : vector<4x160xf32>
    %301 = tpu.matmul %298, %300, %cst_320 {dimension_numbers = #tpu.dot_dimension_numbers<[1], [0], [0], [1], [0, 0, 1, 1], [], []>} : vector<4x144xf32>, vector<144x160xf32>, vector<4x160xf32> -> vector<4x160xf32>
    %302 = arith.addf %296, %301 : vector<4x160xf32>
    %cst_321 = arith.constant dense<0.000000e+00> : vector<160xf32>
    %303 = vector.multi_reduction <add>, %302, %cst_321 [0] : vector<4x160xf32> to vector<160xf32>
    %304 = vector.shape_cast %303 : vector<160xf32> to vector<1x160xf32>
    %305 = arith.mulf %302, %302 : vector<4x160xf32>
    %cst_322 = arith.constant dense<0.000000e+00> : vector<160xf32>
    %306 = vector.multi_reduction <add>, %305, %cst_322 [0] : vector<4x160xf32> to vector<160xf32>
    %307 = vector.shape_cast %306 : vector<160xf32> to vector<1x160xf32>
    %308 = arith.addf %276, %304 : vector<1x160xf32>
    %309 = arith.addf %279, %307 : vector<1x160xf32>
    %c0_323 = arith.constant 0 : index
    %c5_324 = arith.constant 5 : index
    %c0_325 = arith.constant 0 : index
    %310 = vector.load %arg15[%c0_323, %c5_324, %c0_325] : memref<4x10x144xf32, #tpu.memory_space<vmem>>, vector<1x4x144xf32>
    %311 = vector.shape_cast %310 : vector<1x4x144xf32> to vector<4x144xf32>
    %c0_326 = arith.constant 0 : index
    %c0_327 = arith.constant 0 : index
    %c0_328 = arith.constant 0 : index
    %312 = vector.load %arg3[%c0_326, %c0_327, %c0_328] : memref<4x144x160xf32, #tpu.memory_space<vmem>>, vector<1x144x160xf32>
    %313 = vector.shape_cast %312 : vector<1x144x160xf32> to vector<144x160xf32>
    %cst_329 = arith.constant dense<0.000000e+00> : vector<4x160xf32>
    %314 = tpu.matmul %311, %313, %cst_329 {dimension_numbers = #tpu.dot_dimension_numbers<[1], [0], [0], [1], [0, 0, 1, 1], [], []>} : vector<4x144xf32>, vector<144x160xf32>, vector<4x160xf32> -> vector<4x160xf32>
    %c1_330 = arith.constant 1 : index
    %c5_331 = arith.constant 5 : index
    %c0_332 = arith.constant 0 : index
    %315 = vector.load %arg15[%c1_330, %c5_331, %c0_332] : memref<4x10x144xf32, #tpu.memory_space<vmem>>, vector<1x4x144xf32>
    %316 = vector.shape_cast %315 : vector<1x4x144xf32> to vector<4x144xf32>
    %c1_333 = arith.constant 1 : index
    %c0_334 = arith.constant 0 : index
    %c0_335 = arith.constant 0 : index
    %317 = vector.load %arg3[%c1_333, %c0_334, %c0_335] : memref<4x144x160xf32, #tpu.memory_space<vmem>>, vector<1x144x160xf32>
    %318 = vector.shape_cast %317 : vector<1x144x160xf32> to vector<144x160xf32>
    %cst_336 = arith.constant dense<0.000000e+00> : vector<4x160xf32>
    %319 = tpu.matmul %316, %318, %cst_336 {dimension_numbers = #tpu.dot_dimension_numbers<[1], [0], [0], [1], [0, 0, 1, 1], [], []>} : vector<4x144xf32>, vector<144x160xf32>, vector<4x160xf32> -> vector<4x160xf32>
    %320 = arith.addf %314, %319 : vector<4x160xf32>
    %c2_337 = arith.constant 2 : index
    %c5_338 = arith.constant 5 : index
    %c0_339 = arith.constant 0 : index
    %321 = vector.load %arg15[%c2_337, %c5_338, %c0_339] : memref<4x10x144xf32, #tpu.memory_space<vmem>>, vector<1x4x144xf32>
    %322 = vector.shape_cast %321 : vector<1x4x144xf32> to vector<4x144xf32>
    %c2_340 = arith.constant 2 : index
    %c0_341 = arith.constant 0 : index
    %c0_342 = arith.constant 0 : index
    %323 = vector.load %arg3[%c2_340, %c0_341, %c0_342] : memref<4x144x160xf32, #tpu.memory_space<vmem>>, vector<1x144x160xf32>
    %324 = vector.shape_cast %323 : vector<1x144x160xf32> to vector<144x160xf32>
    %cst_343 = arith.constant dense<0.000000e+00> : vector<4x160xf32>
    %325 = tpu.matmul %322, %324, %cst_343 {dimension_numbers = #tpu.dot_dimension_numbers<[1], [0], [0], [1], [0, 0, 1, 1], [], []>} : vector<4x144xf32>, vector<144x160xf32>, vector<4x160xf32> -> vector<4x160xf32>
    %326 = arith.addf %320, %325 : vector<4x160xf32>
    %c3_344 = arith.constant 3 : index
    %c5_345 = arith.constant 5 : index
    %c0_346 = arith.constant 0 : index
    %327 = vector.load %arg15[%c3_344, %c5_345, %c0_346] : memref<4x10x144xf32, #tpu.memory_space<vmem>>, vector<1x4x144xf32>
    %328 = vector.shape_cast %327 : vector<1x4x144xf32> to vector<4x144xf32>
    %c3_347 = arith.constant 3 : index
    %c0_348 = arith.constant 0 : index
    %c0_349 = arith.constant 0 : index
    %329 = vector.load %arg3[%c3_347, %c0_348, %c0_349] : memref<4x144x160xf32, #tpu.memory_space<vmem>>, vector<1x144x160xf32>
    %330 = vector.shape_cast %329 : vector<1x144x160xf32> to vector<144x160xf32>
    %cst_350 = arith.constant dense<0.000000e+00> : vector<4x160xf32>
    %331 = tpu.matmul %328, %330, %cst_350 {dimension_numbers = #tpu.dot_dimension_numbers<[1], [0], [0], [1], [0, 0, 1, 1], [], []>} : vector<4x144xf32>, vector<144x160xf32>, vector<4x160xf32> -> vector<4x160xf32>
    %332 = arith.addf %326, %331 : vector<4x160xf32>
    %cst_351 = arith.constant dense<0.000000e+00> : vector<160xf32>
    %333 = vector.multi_reduction <add>, %332, %cst_351 [0] : vector<4x160xf32> to vector<160xf32>
    %334 = vector.shape_cast %333 : vector<160xf32> to vector<1x160xf32>
    %335 = arith.mulf %332, %332 : vector<4x160xf32>
    %cst_352 = arith.constant dense<0.000000e+00> : vector<160xf32>
    %336 = vector.multi_reduction <add>, %335, %cst_352 [0] : vector<4x160xf32> to vector<160xf32>
    %337 = vector.shape_cast %336 : vector<160xf32> to vector<1x160xf32>
    %338 = arith.addf %308, %334 : vector<1x160xf32>
    %339 = arith.addf %309, %337 : vector<1x160xf32>
    %c2_353 = arith.constant 2 : index
    %c5_354 = arith.constant 5 : index
    %c0_355 = arith.constant 0 : index
    %340 = vector.load %arg15[%c2_353, %c5_354, %c0_355] : memref<4x10x144xf32, #tpu.memory_space<vmem>>, vector<1x4x144xf32>
    %341 = vector.shape_cast %340 : vector<1x4x144xf32> to vector<4x144xf32>
    %c0_356 = arith.constant 0 : index
    %c0_357 = arith.constant 0 : index
    %c0_358 = arith.constant 0 : index
    %342 = vector.load %arg3[%c0_356, %c0_357, %c0_358] : memref<4x144x160xf32, #tpu.memory_space<vmem>>, vector<1x144x160xf32>
    %343 = vector.shape_cast %342 : vector<1x144x160xf32> to vector<144x160xf32>
    %cst_359 = arith.constant dense<0.000000e+00> : vector<4x160xf32>
    %344 = tpu.matmul %341, %343, %cst_359 {dimension_numbers = #tpu.dot_dimension_numbers<[1], [0], [0], [1], [0, 0, 1, 1], [], []>} : vector<4x144xf32>, vector<144x160xf32>, vector<4x160xf32> -> vector<4x160xf32>
    %c3_360 = arith.constant 3 : index
    %c5_361 = arith.constant 5 : index
    %c0_362 = arith.constant 0 : index
    %345 = vector.load %arg15[%c3_360, %c5_361, %c0_362] : memref<4x10x144xf32, #tpu.memory_space<vmem>>, vector<1x4x144xf32>
    %346 = vector.shape_cast %345 : vector<1x4x144xf32> to vector<4x144xf32>
    %c1_363 = arith.constant 1 : index
    %c0_364 = arith.constant 0 : index
    %c0_365 = arith.constant 0 : index
    %347 = vector.load %arg3[%c1_363, %c0_364, %c0_365] : memref<4x144x160xf32, #tpu.memory_space<vmem>>, vector<1x144x160xf32>
    %348 = vector.shape_cast %347 : vector<1x144x160xf32> to vector<144x160xf32>
    %cst_366 = arith.constant dense<0.000000e+00> : vector<4x160xf32>
    %349 = tpu.matmul %346, %348, %cst_366 {dimension_numbers = #tpu.dot_dimension_numbers<[1], [0], [0], [1], [0, 0, 1, 1], [], []>} : vector<4x144xf32>, vector<144x160xf32>, vector<4x160xf32> -> vector<4x160xf32>
    %350 = arith.addf %344, %349 : vector<4x160xf32>
    %c0_367 = arith.constant 0 : index
    %c6_368 = arith.constant 6 : index
    %c0_369 = arith.constant 0 : index
    %351 = vector.load %arg15[%c0_367, %c6_368, %c0_369] : memref<4x10x144xf32, #tpu.memory_space<vmem>>, vector<1x4x144xf32>
    %352 = vector.shape_cast %351 : vector<1x4x144xf32> to vector<4x144xf32>
    %c2_370 = arith.constant 2 : index
    %c0_371 = arith.constant 0 : index
    %c0_372 = arith.constant 0 : index
    %353 = vector.load %arg3[%c2_370, %c0_371, %c0_372] : memref<4x144x160xf32, #tpu.memory_space<vmem>>, vector<1x144x160xf32>
    %354 = vector.shape_cast %353 : vector<1x144x160xf32> to vector<144x160xf32>
    %cst_373 = arith.constant dense<0.000000e+00> : vector<4x160xf32>
    %355 = tpu.matmul %352, %354, %cst_373 {dimension_numbers = #tpu.dot_dimension_numbers<[1], [0], [0], [1], [0, 0, 1, 1], [], []>} : vector<4x144xf32>, vector<144x160xf32>, vector<4x160xf32> -> vector<4x160xf32>
    %356 = arith.addf %350, %355 : vector<4x160xf32>
    %c1_374 = arith.constant 1 : index
    %c6_375 = arith.constant 6 : index
    %c0_376 = arith.constant 0 : index
    %357 = vector.load %arg15[%c1_374, %c6_375, %c0_376] : memref<4x10x144xf32, #tpu.memory_space<vmem>>, vector<1x4x144xf32>
    %358 = vector.shape_cast %357 : vector<1x4x144xf32> to vector<4x144xf32>
    %c3_377 = arith.constant 3 : index
    %c0_378 = arith.constant 0 : index
    %c0_379 = arith.constant 0 : index
    %359 = vector.load %arg3[%c3_377, %c0_378, %c0_379] : memref<4x144x160xf32, #tpu.memory_space<vmem>>, vector<1x144x160xf32>
    %360 = vector.shape_cast %359 : vector<1x144x160xf32> to vector<144x160xf32>
    %cst_380 = arith.constant dense<0.000000e+00> : vector<4x160xf32>
    %361 = tpu.matmul %358, %360, %cst_380 {dimension_numbers = #tpu.dot_dimension_numbers<[1], [0], [0], [1], [0, 0, 1, 1], [], []>} : vector<4x144xf32>, vector<144x160xf32>, vector<4x160xf32> -> vector<4x160xf32>
    %362 = arith.addf %356, %361 : vector<4x160xf32>
    %cst_381 = arith.constant dense<0.000000e+00> : vector<160xf32>
    %363 = vector.multi_reduction <add>, %362, %cst_381 [0] : vector<4x160xf32> to vector<160xf32>
    %364 = vector.shape_cast %363 : vector<160xf32> to vector<1x160xf32>
    %365 = arith.mulf %362, %362 : vector<4x160xf32>
    %cst_382 = arith.constant dense<0.000000e+00> : vector<160xf32>
    %366 = vector.multi_reduction <add>, %365, %cst_382 [0] : vector<4x160xf32> to vector<160xf32>
    %367 = vector.shape_cast %366 : vector<160xf32> to vector<1x160xf32>
    %368 = arith.addf %338, %364 : vector<1x160xf32>
    %369 = arith.addf %339, %367 : vector<1x160xf32>
    %c0_383 = arith.constant 0 : index
    %c0_384 = arith.constant 0 : index
    %370 = vector.load %arg5[%c0_383, %c0_384] : memref<160x16xf32, #tpu.memory_space<vmem>>, vector<160x16xf32>
    %cst_385 = arith.constant dense<0.000000e+00> : vector<1x16xf32>
    %371 = tpu.matmul %368, %370, %cst_385 {dimension_numbers = #tpu.dot_dimension_numbers<[1], [0], [0], [1], [0, 0, 1, 1], [], []>} : vector<1x160xf32>, vector<160x16xf32>, vector<1x16xf32> -> vector<1x16xf32>
    %cst_386 = arith.constant 1.280000e+02 : f32
    %372 = vector.broadcast %cst_386 : f32 to vector<1x16xf32>
    %373 = arith.divf %371, %372 : vector<1x16xf32>
    %c0_387 = arith.constant 0 : index
    %c0_388 = arith.constant 0 : index
    %374 = vector.load %arg5[%c0_387, %c0_388] : memref<160x16xf32, #tpu.memory_space<vmem>>, vector<160x16xf32>
    %cst_389 = arith.constant dense<0.000000e+00> : vector<1x16xf32>
    %375 = tpu.matmul %369, %374, %cst_389 {dimension_numbers = #tpu.dot_dimension_numbers<[1], [0], [0], [1], [0, 0, 1, 1], [], []>} : vector<1x160xf32>, vector<160x16xf32>, vector<1x16xf32> -> vector<1x16xf32>
    %cst_390 = arith.constant 1.280000e+02 : f32
    %376 = vector.broadcast %cst_390 : f32 to vector<1x16xf32>
    %377 = arith.divf %375, %376 : vector<1x16xf32>
    %378 = arith.mulf %373, %373 : vector<1x16xf32>
    %379 = arith.subf %377, %378 : vector<1x16xf32>
    %cst_391 = arith.constant 0.000000e+00 : f32
    %380 = vector.broadcast %cst_391 : f32 to vector<1x16xf32>
    %381 = arith.maximumf %379, %380 : vector<1x16xf32>
    %c0_392 = arith.constant 0 : index
    %c0_393 = arith.constant 0 : index
    %382 = vector.load %arg7[%c0_392, %c0_393] : memref<1x16xf32, #tpu.memory_space<vmem>>, vector<1x16xf32>
    %cst_394 = arith.constant 9.99999974E-6 : f32
    %383 = vector.broadcast %cst_394 : f32 to vector<1x16xf32>
    %384 = arith.addf %381, %383 : vector<1x16xf32>
    %385 = math.rsqrt %384 : vector<1x16xf32>
    %386 = arith.mulf %382, %385 : vector<1x16xf32>
    %c0_395 = arith.constant 0 : index
    %c0_396 = arith.constant 0 : index
    %387 = vector.load %arg8[%c0_395, %c0_396] : memref<1x16xf32, #tpu.memory_space<vmem>>, vector<1x16xf32>
    %388 = arith.mulf %373, %386 : vector<1x16xf32>
    %389 = arith.subf %387, %388 : vector<1x16xf32>
    %c0_397 = arith.constant 0 : index
    %c0_398 = arith.constant 0 : index
    %390 = vector.load %arg6[%c0_397, %c0_398] : memref<16x160xf32, #tpu.memory_space<vmem>>, vector<16x160xf32>
    %cst_399 = arith.constant dense<0.000000e+00> : vector<1x160xf32>
    %391 = tpu.matmul %386, %390, %cst_399 {dimension_numbers = #tpu.dot_dimension_numbers<[1], [0], [0], [1], [0, 0, 1, 1], [], []>} : vector<1x16xf32>, vector<16x160xf32>, vector<1x160xf32> -> vector<1x160xf32>
    %c0_400 = arith.constant 0 : index
    %c0_401 = arith.constant 0 : index
    %392 = vector.load %arg6[%c0_400, %c0_401] : memref<16x160xf32, #tpu.memory_space<vmem>>, vector<16x160xf32>
    %cst_402 = arith.constant dense<0.000000e+00> : vector<1x160xf32>
    %393 = tpu.matmul %389, %392, %cst_402 {dimension_numbers = #tpu.dot_dimension_numbers<[1], [0], [0], [1], [0, 0, 1, 1], [], []>} : vector<1x16xf32>, vector<16x160xf32>, vector<1x160xf32> -> vector<1x160xf32>
    %394 = vector.broadcast %391 : vector<1x160xf32> to vector<4x160xf32>
    %395 = arith.mulf %274, %394 : vector<4x160xf32>
    %396 = vector.broadcast %393 : vector<1x160xf32> to vector<4x160xf32>
    %397 = arith.addf %395, %396 : vector<4x160xf32>
    %cst_403 = arith.constant 0.000000e+00 : f32
    %398 = vector.broadcast %cst_403 : f32 to vector<4x160xf32>
    %399 = arith.cmpf oge, %397, %398 : vector<4x160xf32>
    %cst_404 = arith.constant 5.000000e-02 : f32
    %400 = vector.broadcast %cst_404 : f32 to vector<4x160xf32>
    %401 = arith.mulf %400, %397 : vector<4x160xf32>
    %402 = arith.select %399, %397, %401 : vector<4x160xi1>, vector<4x160xf32>
    %c1_405 = arith.constant 1 : index
    %c0_406 = arith.constant 0 : index
    %c0_407 = arith.constant 0 : index
    %403 = vector.load %arg16[%c1_405, %c0_406, %c0_407] : memref<2x10x160xf32, #tpu.memory_space<vmem>>, vector<1x4x160xf32>
    %404 = vector.shape_cast %403 : vector<1x4x160xf32> to vector<4x160xf32>
    %405 = vector.shape_cast %402 : vector<4x160xf32> to vector<1x4x160xf32>
    tpu.vector_store %arg16[%c1_405, %c0_406, %c0_407], %405 {strides = array<i32>} : memref<2x10x160xf32, #tpu.memory_space<vmem>>, vector<1x4x160xf32>,
    %406 = vector.broadcast %391 : vector<1x160xf32> to vector<4x160xf32>
    %407 = arith.mulf %302, %406 : vector<4x160xf32>
    %408 = vector.broadcast %393 : vector<1x160xf32> to vector<4x160xf32>
    %409 = arith.addf %407, %408 : vector<4x160xf32>
    %cst_408 = arith.constant 0.000000e+00 : f32
    %410 = vector.broadcast %cst_408 : f32 to vector<4x160xf32>
    %411 = arith.cmpf oge, %409, %410 : vector<4x160xf32>
    %cst_409 = arith.constant 5.000000e-02 : f32
    %412 = vector.broadcast %cst_409 : f32 to vector<4x160xf32>
    %413 = arith.mulf %412, %409 : vector<4x160xf32>
    %414 = arith.select %411, %409, %413 : vector<4x160xi1>, vector<4x160xf32>
    %c0_410 = arith.constant 0 : index
    %c1_411 = arith.constant 1 : index
    %c0_412 = arith.constant 0 : index
    %415 = vector.load %arg16[%c0_410, %c1_411, %c0_412] : memref<2x10x160xf32, #tpu.memory_space<vmem>>, vector<1x4x160xf32>
    %416 = vector.shape_cast %415 : vector<1x4x160xf32> to vector<4x160xf32>
    %417 = vector.shape_cast %414 : vector<4x160xf32> to vector<1x4x160xf32>
    tpu.vector_store %arg16[%c0_410, %c1_411, %c0_412], %417 {strides = array<i32>} : memref<2x10x160xf32, #tpu.memory_space<vmem>>, vector<1x4x160xf32>,
    %418 = vector.broadcast %391 : vector<1x160xf32> to vector<4x160xf32>
    %419 = arith.mulf %332, %418 : vector<4x160xf32>
    %420 = vector.broadcast %393 : vector<1x160xf32> to vector<4x160xf32>
    %421 = arith.addf %419, %420 : vector<4x160xf32>
    %cst_413 = arith.constant 0.000000e+00 : f32
    %422 = vector.broadcast %cst_413 : f32 to vector<4x160xf32>
    %423 = arith.cmpf oge, %421, %422 : vector<4x160xf32>
    %cst_414 = arith.constant 5.000000e-02 : f32
    %424 = vector.broadcast %cst_414 : f32 to vector<4x160xf32>
    %425 = arith.mulf %424, %421 : vector<4x160xf32>
    %426 = arith.select %423, %421, %425 : vector<4x160xi1>, vector<4x160xf32>
    %c1_415 = arith.constant 1 : index
    %c5_416 = arith.constant 5 : index
    %c0_417 = arith.constant 0 : index
    %427 = vector.load %arg16[%c1_415, %c5_416, %c0_417] : memref<2x10x160xf32, #tpu.memory_space<vmem>>, vector<1x4x160xf32>
    %428 = vector.shape_cast %427 : vector<1x4x160xf32> to vector<4x160xf32>
    %429 = vector.shape_cast %426 : vector<4x160xf32> to vector<1x4x160xf32>
    tpu.vector_store %arg16[%c1_415, %c5_416, %c0_417], %429 {strides = array<i32>} : memref<2x10x160xf32, #tpu.memory_space<vmem>>, vector<1x4x160xf32>,
    %430 = vector.broadcast %391 : vector<1x160xf32> to vector<4x160xf32>
    %431 = arith.mulf %362, %430 : vector<4x160xf32>
    %432 = vector.broadcast %393 : vector<1x160xf32> to vector<4x160xf32>
    %433 = arith.addf %431, %432 : vector<4x160xf32>
    %cst_418 = arith.constant 0.000000e+00 : f32
    %434 = vector.broadcast %cst_418 : f32 to vector<4x160xf32>
    %435 = arith.cmpf oge, %433, %434 : vector<4x160xf32>
    %cst_419 = arith.constant 5.000000e-02 : f32
    %436 = vector.broadcast %cst_419 : f32 to vector<4x160xf32>
    %437 = arith.mulf %436, %433 : vector<4x160xf32>
    %438 = arith.select %435, %433, %437 : vector<4x160xi1>, vector<4x160xf32>
    %c0_420 = arith.constant 0 : index
    %c6_421 = arith.constant 6 : index
    %c0_422 = arith.constant 0 : index
    %439 = vector.load %arg16[%c0_420, %c6_421, %c0_422] : memref<2x10x160xf32, #tpu.memory_space<vmem>>, vector<1x4x160xf32>
    %440 = vector.shape_cast %439 : vector<1x4x160xf32> to vector<4x160xf32>
    %441 = vector.shape_cast %438 : vector<4x160xf32> to vector<1x4x160xf32>
    tpu.vector_store %arg16[%c0_420, %c6_421, %c0_422], %441 {strides = array<i32>} : memref<2x10x160xf32, #tpu.memory_space<vmem>>, vector<1x4x160xf32>,
    %c0_423 = arith.constant 0 : index
    %c0_424 = arith.constant 0 : index
    %c0_425 = arith.constant 0 : index
    %442 = vector.load %arg16[%c0_423, %c0_424, %c0_425] : memref<2x10x160xf32, #tpu.memory_space<vmem>>, vector<1x4x160xf32>
    %443 = vector.shape_cast %442 : vector<1x4x160xf32> to vector<4x160xf32>
    %c0_426 = arith.constant 0 : index
    %c0_427 = arith.constant 0 : index
    %c0_428 = arith.constant 0 : index
    %444 = vector.load %arg4[%c0_426, %c0_427, %c0_428] : memref<4x160x128xf32, #tpu.memory_space<vmem>>, vector<1x160x128xf32>
    %445 = vector.shape_cast %444 : vector<1x160x128xf32> to vector<160x128xf32>
    %cst_429 = arith.constant dense<0.000000e+00> : vector<4x128xf32>
    %446 = tpu.matmul %443, %445, %cst_429 {dimension_numbers = #tpu.dot_dimension_numbers<[1], [0], [0], [1], [0, 0, 1, 1], [], []>} : vector<4x160xf32>, vector<160x128xf32>, vector<4x128xf32> -> vector<4x128xf32>
    %c1_430 = arith.constant 1 : index
    %c0_431 = arith.constant 0 : index
    %c0_432 = arith.constant 0 : index
    %447 = vector.load %arg16[%c1_430, %c0_431, %c0_432] : memref<2x10x160xf32, #tpu.memory_space<vmem>>, vector<1x4x160xf32>
    %448 = vector.shape_cast %447 : vector<1x4x160xf32> to vector<4x160xf32>
    %c1_433 = arith.constant 1 : index
    %c0_434 = arith.constant 0 : index
    %c0_435 = arith.constant 0 : index
    %449 = vector.load %arg4[%c1_433, %c0_434, %c0_435] : memref<4x160x128xf32, #tpu.memory_space<vmem>>, vector<1x160x128xf32>
    %450 = vector.shape_cast %449 : vector<1x160x128xf32> to vector<160x128xf32>
    %cst_436 = arith.constant dense<0.000000e+00> : vector<4x128xf32>
    %451 = tpu.matmul %448, %450, %cst_436 {dimension_numbers = #tpu.dot_dimension_numbers<[1], [0], [0], [1], [0, 0, 1, 1], [], []>} : vector<4x160xf32>, vector<160x128xf32>, vector<4x128xf32> -> vector<4x128xf32>
    %452 = arith.addf %446, %451 : vector<4x128xf32>
    %c0_437 = arith.constant 0 : index
    %c1_438 = arith.constant 1 : index
    %c0_439 = arith.constant 0 : index
    %453 = vector.load %arg16[%c0_437, %c1_438, %c0_439] : memref<2x10x160xf32, #tpu.memory_space<vmem>>, vector<1x4x160xf32>
    %454 = vector.shape_cast %453 : vector<1x4x160xf32> to vector<4x160xf32>
    %c2_440 = arith.constant 2 : index
    %c0_441 = arith.constant 0 : index
    %c0_442 = arith.constant 0 : index
    %455 = vector.load %arg4[%c2_440, %c0_441, %c0_442] : memref<4x160x128xf32, #tpu.memory_space<vmem>>, vector<1x160x128xf32>
    %456 = vector.shape_cast %455 : vector<1x160x128xf32> to vector<160x128xf32>
    %cst_443 = arith.constant dense<0.000000e+00> : vector<4x128xf32>
    %457 = tpu.matmul %454, %456, %cst_443 {dimension_numbers = #tpu.dot_dimension_numbers<[1], [0], [0], [1], [0, 0, 1, 1], [], []>} : vector<4x160xf32>, vector<160x128xf32>, vector<4x128xf32> -> vector<4x128xf32>
    %458 = arith.addf %452, %457 : vector<4x128xf32>
    %c1_444 = arith.constant 1 : index
    %c1_445 = arith.constant 1 : index
    %c0_446 = arith.constant 0 : index
    %459 = vector.load %arg16[%c1_444, %c1_445, %c0_446] : memref<2x10x160xf32, #tpu.memory_space<vmem>>, vector<1x4x160xf32>
    %460 = vector.shape_cast %459 : vector<1x4x160xf32> to vector<4x160xf32>
    %c3_447 = arith.constant 3 : index
    %c0_448 = arith.constant 0 : index
    %c0_449 = arith.constant 0 : index
    %461 = vector.load %arg4[%c3_447, %c0_448, %c0_449] : memref<4x160x128xf32, #tpu.memory_space<vmem>>, vector<1x160x128xf32>
    %462 = vector.shape_cast %461 : vector<1x160x128xf32> to vector<160x128xf32>
    %cst_450 = arith.constant dense<0.000000e+00> : vector<4x128xf32>
    %463 = tpu.matmul %460, %462, %cst_450 {dimension_numbers = #tpu.dot_dimension_numbers<[1], [0], [0], [1], [0, 0, 1, 1], [], []>} : vector<4x160xf32>, vector<160x128xf32>, vector<4x128xf32> -> vector<4x128xf32>
    %464 = arith.addf %458, %463 : vector<4x128xf32>
    %cst_451 = arith.constant dense<0.000000e+00> : vector<128xf32>
    %465 = vector.multi_reduction <add>, %464, %cst_451 [0] : vector<4x128xf32> to vector<128xf32>
    %466 = vector.shape_cast %465 : vector<128xf32> to vector<1x128xf32>
    %467 = arith.mulf %464, %464 : vector<4x128xf32>
    %cst_452 = arith.constant dense<0.000000e+00> : vector<128xf32>
    %468 = vector.multi_reduction <add>, %467, %cst_452 [0] : vector<4x128xf32> to vector<128xf32>
    %469 = vector.shape_cast %468 : vector<128xf32> to vector<1x128xf32>
    %c0_453 = arith.constant 0 : index
    %c5_454 = arith.constant 5 : index
    %c0_455 = arith.constant 0 : index
    %470 = vector.load %arg16[%c0_453, %c5_454, %c0_455] : memref<2x10x160xf32, #tpu.memory_space<vmem>>, vector<1x4x160xf32>
    %471 = vector.shape_cast %470 : vector<1x4x160xf32> to vector<4x160xf32>
    %c0_456 = arith.constant 0 : index
    %c0_457 = arith.constant 0 : index
    %c0_458 = arith.constant 0 : index
    %472 = vector.load %arg4[%c0_456, %c0_457, %c0_458] : memref<4x160x128xf32, #tpu.memory_space<vmem>>, vector<1x160x128xf32>
    %473 = vector.shape_cast %472 : vector<1x160x128xf32> to vector<160x128xf32>
    %cst_459 = arith.constant dense<0.000000e+00> : vector<4x128xf32>
    %474 = tpu.matmul %471, %473, %cst_459 {dimension_numbers = #tpu.dot_dimension_numbers<[1], [0], [0], [1], [0, 0, 1, 1], [], []>} : vector<4x160xf32>, vector<160x128xf32>, vector<4x128xf32> -> vector<4x128xf32>
    %c1_460 = arith.constant 1 : index
    %c5_461 = arith.constant 5 : index
    %c0_462 = arith.constant 0 : index
    %475 = vector.load %arg16[%c1_460, %c5_461, %c0_462] : memref<2x10x160xf32, #tpu.memory_space<vmem>>, vector<1x4x160xf32>
    %476 = vector.shape_cast %475 : vector<1x4x160xf32> to vector<4x160xf32>
    %c1_463 = arith.constant 1 : index
    %c0_464 = arith.constant 0 : index
    %c0_465 = arith.constant 0 : index
    %477 = vector.load %arg4[%c1_463, %c0_464, %c0_465] : memref<4x160x128xf32, #tpu.memory_space<vmem>>, vector<1x160x128xf32>
    %478 = vector.shape_cast %477 : vector<1x160x128xf32> to vector<160x128xf32>
    %cst_466 = arith.constant dense<0.000000e+00> : vector<4x128xf32>
    %479 = tpu.matmul %476, %478, %cst_466 {dimension_numbers = #tpu.dot_dimension_numbers<[1], [0], [0], [1], [0, 0, 1, 1], [], []>} : vector<4x160xf32>, vector<160x128xf32>, vector<4x128xf32> -> vector<4x128xf32>
    %480 = arith.addf %474, %479 : vector<4x128xf32>
    %c0_467 = arith.constant 0 : index
    %c6_468 = arith.constant 6 : index
    %c0_469 = arith.constant 0 : index
    %481 = vector.load %arg16[%c0_467, %c6_468, %c0_469] : memref<2x10x160xf32, #tpu.memory_space<vmem>>, vector<1x4x160xf32>
    %482 = vector.shape_cast %481 : vector<1x4x160xf32> to vector<4x160xf32>
    %c2_470 = arith.constant 2 : index
    %c0_471 = arith.constant 0 : index
    %c0_472 = arith.constant 0 : index
    %483 = vector.load %arg4[%c2_470, %c0_471, %c0_472] : memref<4x160x128xf32, #tpu.memory_space<vmem>>, vector<1x160x128xf32>
    %484 = vector.shape_cast %483 : vector<1x160x128xf32> to vector<160x128xf32>
    %cst_473 = arith.constant dense<0.000000e+00> : vector<4x128xf32>
    %485 = tpu.matmul %482, %484, %cst_473 {dimension_numbers = #tpu.dot_dimension_numbers<[1], [0], [0], [1], [0, 0, 1, 1], [], []>} : vector<4x160xf32>, vector<160x128xf32>, vector<4x128xf32> -> vector<4x128xf32>
    %486 = arith.addf %480, %485 : vector<4x128xf32>
    %c1_474 = arith.constant 1 : index
    %c6_475 = arith.constant 6 : index
    %c0_476 = arith.constant 0 : index
    %487 = vector.load %arg16[%c1_474, %c6_475, %c0_476] : memref<2x10x160xf32, #tpu.memory_space<vmem>>, vector<1x4x160xf32>
    %488 = vector.shape_cast %487 : vector<1x4x160xf32> to vector<4x160xf32>
    %c3_477 = arith.constant 3 : index
    %c0_478 = arith.constant 0 : index
    %c0_479 = arith.constant 0 : index
    %489 = vector.load %arg4[%c3_477, %c0_478, %c0_479] : memref<4x160x128xf32, #tpu.memory_space<vmem>>, vector<1x160x128xf32>
    %490 = vector.shape_cast %489 : vector<1x160x128xf32> to vector<160x128xf32>
    %cst_480 = arith.constant dense<0.000000e+00> : vector<4x128xf32>
    %491 = tpu.matmul %488, %490, %cst_480 {dimension_numbers = #tpu.dot_dimension_numbers<[1], [0], [0], [1], [0, 0, 1, 1], [], []>} : vector<4x160xf32>, vector<160x128xf32>, vector<4x128xf32> -> vector<4x128xf32>
    %492 = arith.addf %486, %491 : vector<4x128xf32>
    %cst_481 = arith.constant dense<0.000000e+00> : vector<128xf32>
    %493 = vector.multi_reduction <add>, %492, %cst_481 [0] : vector<4x128xf32> to vector<128xf32>
    %494 = vector.shape_cast %493 : vector<128xf32> to vector<1x128xf32>
    %495 = arith.mulf %492, %492 : vector<4x128xf32>
    %cst_482 = arith.constant dense<0.000000e+00> : vector<128xf32>
    %496 = vector.multi_reduction <add>, %495, %cst_482 [0] : vector<4x128xf32> to vector<128xf32>
    %497 = vector.shape_cast %496 : vector<128xf32> to vector<1x128xf32>
    %498 = arith.addf %466, %494 : vector<1x128xf32>
    %499 = arith.addf %469, %497 : vector<1x128xf32>
    %c0_483 = arith.constant 0 : index
    %c0_484 = arith.constant 0 : index
    %500 = vector.load %arg9[%c0_483, %c0_484] : memref<128x32xf32, #tpu.memory_space<vmem>>, vector<128x32xf32>
    %cst_485 = arith.constant dense<0.000000e+00> : vector<1x32xf32>
    %501 = tpu.matmul %498, %500, %cst_485 {dimension_numbers = #tpu.dot_dimension_numbers<[1], [0], [0], [1], [0, 0, 1, 1], [], []>} : vector<1x128xf32>, vector<128x32xf32>, vector<1x32xf32> -> vector<1x32xf32>
    %cst_486 = arith.constant 3.200000e+01 : f32
    %502 = vector.broadcast %cst_486 : f32 to vector<1x32xf32>
    %503 = arith.divf %501, %502 : vector<1x32xf32>
    %c0_487 = arith.constant 0 : index
    %c0_488 = arith.constant 0 : index
    %504 = vector.load %arg9[%c0_487, %c0_488] : memref<128x32xf32, #tpu.memory_space<vmem>>, vector<128x32xf32>
    %cst_489 = arith.constant dense<0.000000e+00> : vector<1x32xf32>
    %505 = tpu.matmul %499, %504, %cst_489 {dimension_numbers = #tpu.dot_dimension_numbers<[1], [0], [0], [1], [0, 0, 1, 1], [], []>} : vector<1x128xf32>, vector<128x32xf32>, vector<1x32xf32> -> vector<1x32xf32>
    %cst_490 = arith.constant 3.200000e+01 : f32
    %506 = vector.broadcast %cst_490 : f32 to vector<1x32xf32>
    %507 = arith.divf %505, %506 : vector<1x32xf32>
    %508 = arith.mulf %503, %503 : vector<1x32xf32>
    %509 = arith.subf %507, %508 : vector<1x32xf32>
    %cst_491 = arith.constant 0.000000e+00 : f32
    %510 = vector.broadcast %cst_491 : f32 to vector<1x32xf32>
    %511 = arith.maximumf %509, %510 : vector<1x32xf32>
    %c0_492 = arith.constant 0 : index
    %c0_493 = arith.constant 0 : index
    %512 = vector.load %arg11[%c0_492, %c0_493] : memref<1x32xf32, #tpu.memory_space<vmem>>, vector<1x32xf32>
    %cst_494 = arith.constant 9.99999974E-6 : f32
    %513 = vector.broadcast %cst_494 : f32 to vector<1x32xf32>
    %514 = arith.addf %511, %513 : vector<1x32xf32>
    %515 = math.rsqrt %514 : vector<1x32xf32>
    %516 = arith.mulf %512, %515 : vector<1x32xf32>
    %c0_495 = arith.constant 0 : index
    %c0_496 = arith.constant 0 : index
    %517 = vector.load %arg12[%c0_495, %c0_496] : memref<1x32xf32, #tpu.memory_space<vmem>>, vector<1x32xf32>
    %518 = arith.mulf %503, %516 : vector<1x32xf32>
    %519 = arith.subf %517, %518 : vector<1x32xf32>
    %c0_497 = arith.constant 0 : index
    %c0_498 = arith.constant 0 : index
    %520 = vector.load %arg10[%c0_497, %c0_498] : memref<32x128xf32, #tpu.memory_space<vmem>>, vector<32x128xf32>
    %cst_499 = arith.constant dense<0.000000e+00> : vector<1x128xf32>
    %521 = tpu.matmul %516, %520, %cst_499 {dimension_numbers = #tpu.dot_dimension_numbers<[1], [0], [0], [1], [0, 0, 1, 1], [], []>} : vector<1x32xf32>, vector<32x128xf32>, vector<1x128xf32> -> vector<1x128xf32>
    %c0_500 = arith.constant 0 : index
    %c0_501 = arith.constant 0 : index
    %522 = vector.load %arg10[%c0_500, %c0_501] : memref<32x128xf32, #tpu.memory_space<vmem>>, vector<32x128xf32>
    %cst_502 = arith.constant dense<0.000000e+00> : vector<1x128xf32>
    %523 = tpu.matmul %519, %522, %cst_502 {dimension_numbers = #tpu.dot_dimension_numbers<[1], [0], [0], [1], [0, 0, 1, 1], [], []>} : vector<1x32xf32>, vector<32x128xf32>, vector<1x128xf32> -> vector<1x128xf32>
    %524 = vector.broadcast %521 : vector<1x128xf32> to vector<4x128xf32>
    %525 = arith.mulf %464, %524 : vector<4x128xf32>
    %526 = vector.broadcast %523 : vector<1x128xf32> to vector<4x128xf32>
    %527 = arith.addf %525, %526 : vector<4x128xf32>
    %cst_503 = arith.constant 0.000000e+00 : f32
    %528 = vector.broadcast %cst_503 : f32 to vector<4x128xf32>
    %529 = arith.cmpf oge, %527, %528 : vector<4x128xf32>
    %cst_504 = arith.constant 5.000000e-02 : f32
    %530 = vector.broadcast %cst_504 : f32 to vector<4x128xf32>
    %531 = arith.mulf %530, %527 : vector<4x128xf32>
    %532 = arith.select %529, %527, %531 : vector<4x128xi1>, vector<4x128xf32>
    %533 = vector.extract_strided_slice %532 {offsets = [0, 0], sizes = [1, 128], strides = [1, 1]} : vector<4x128xf32> to vector<1x128xf32>
    %c0_505 = arith.constant 0 : index
    %c0_506 = arith.constant 0 : index
    %c0_507 = arith.constant 0 : index
    %534 = vector.load %arg13[%c0_505, %c0_506, %c0_507] : memref<4x128x1xf32, #tpu.memory_space<vmem>>, vector<1x128x1xf32>
    %535 = vector.shape_cast %534 : vector<1x128x1xf32> to vector<128x1xf32>
    %cst_508 = arith.constant dense<0.000000e+00> : vector<1x1xf32>
    %536 = tpu.matmul %533, %535, %cst_508 {dimension_numbers = #tpu.dot_dimension_numbers<[1], [0], [0], [1], [0, 0, 1, 1], [], []>} : vector<1x128xf32>, vector<128x1xf32>, vector<1x1xf32> -> vector<1x1xf32>
    %537 = vector.extract_strided_slice %532 {offsets = [1, 0], sizes = [1, 128], strides = [1, 1]} : vector<4x128xf32> to vector<1x128xf32>
    %c1_509 = arith.constant 1 : index
    %c0_510 = arith.constant 0 : index
    %c0_511 = arith.constant 0 : index
    %538 = vector.load %arg13[%c1_509, %c0_510, %c0_511] : memref<4x128x1xf32, #tpu.memory_space<vmem>>, vector<1x128x1xf32>
    %539 = vector.shape_cast %538 : vector<1x128x1xf32> to vector<128x1xf32>
    %cst_512 = arith.constant dense<0.000000e+00> : vector<1x1xf32>
    %540 = tpu.matmul %537, %539, %cst_512 {dimension_numbers = #tpu.dot_dimension_numbers<[1], [0], [0], [1], [0, 0, 1, 1], [], []>} : vector<1x128xf32>, vector<128x1xf32>, vector<1x1xf32> -> vector<1x1xf32>
    %541 = arith.addf %536, %540 : vector<1x1xf32>
    %542 = vector.extract_strided_slice %532 {offsets = [2, 0], sizes = [1, 128], strides = [1, 1]} : vector<4x128xf32> to vector<1x128xf32>
    %c2_513 = arith.constant 2 : index
    %c0_514 = arith.constant 0 : index
    %c0_515 = arith.constant 0 : index
    %543 = vector.load %arg13[%c2_513, %c0_514, %c0_515] : memref<4x128x1xf32, #tpu.memory_space<vmem>>, vector<1x128x1xf32>
    %544 = vector.shape_cast %543 : vector<1x128x1xf32> to vector<128x1xf32>
    %cst_516 = arith.constant dense<0.000000e+00> : vector<1x1xf32>
    %545 = tpu.matmul %542, %544, %cst_516 {dimension_numbers = #tpu.dot_dimension_numbers<[1], [0], [0], [1], [0, 0, 1, 1], [], []>} : vector<1x128xf32>, vector<128x1xf32>, vector<1x1xf32> -> vector<1x1xf32>
    %546 = arith.addf %541, %545 : vector<1x1xf32>
    %547 = vector.extract_strided_slice %532 {offsets = [3, 0], sizes = [1, 128], strides = [1, 1]} : vector<4x128xf32> to vector<1x128xf32>
    %c3_517 = arith.constant 3 : index
    %c0_518 = arith.constant 0 : index
    %c0_519 = arith.constant 0 : index
    %548 = vector.load %arg13[%c3_517, %c0_518, %c0_519] : memref<4x128x1xf32, #tpu.memory_space<vmem>>, vector<1x128x1xf32>
    %549 = vector.shape_cast %548 : vector<1x128x1xf32> to vector<128x1xf32>
    %cst_520 = arith.constant dense<0.000000e+00> : vector<1x1xf32>
    %550 = tpu.matmul %547, %549, %cst_520 {dimension_numbers = #tpu.dot_dimension_numbers<[1], [0], [0], [1], [0, 0, 1, 1], [], []>} : vector<1x128xf32>, vector<128x1xf32>, vector<1x1xf32> -> vector<1x1xf32>
    %551 = arith.addf %546, %550 : vector<1x1xf32>
    %c0_521 = arith.constant 0 : index
    %c0_522 = arith.constant 0 : index
    %552 = vector.load %arg14[%c0_521, %c0_522] : memref<2x1xf32, #tpu.memory_space<vmem>>, vector<1x1xf32>
    tpu.vector_store %arg14[%c0_521, %c0_522], %551 {strides = array<i32>} : memref<2x1xf32, #tpu.memory_space<vmem>>, vector<1x1xf32>,
    %553 = vector.broadcast %521 : vector<1x128xf32> to vector<4x128xf32>
    %554 = arith.mulf %492, %553 : vector<4x128xf32>
    %555 = vector.broadcast %523 : vector<1x128xf32> to vector<4x128xf32>
    %556 = arith.addf %554, %555 : vector<4x128xf32>
    %cst_523 = arith.constant 0.000000e+00 : f32
    %557 = vector.broadcast %cst_523 : f32 to vector<4x128xf32>
    %558 = arith.cmpf oge, %556, %557 : vector<4x128xf32>
    %cst_524 = arith.constant 5.000000e-02 : f32
    %559 = vector.broadcast %cst_524 : f32 to vector<4x128xf32>
    %560 = arith.mulf %559, %556 : vector<4x128xf32>
    %561 = arith.select %558, %556, %560 : vector<4x128xi1>, vector<4x128xf32>
    %562 = vector.extract_strided_slice %561 {offsets = [0, 0], sizes = [1, 128], strides = [1, 1]} : vector<4x128xf32> to vector<1x128xf32>
    %c0_525 = arith.constant 0 : index
    %c0_526 = arith.constant 0 : index
    %c0_527 = arith.constant 0 : index
    %563 = vector.load %arg13[%c0_525, %c0_526, %c0_527] : memref<4x128x1xf32, #tpu.memory_space<vmem>>, vector<1x128x1xf32>
    %564 = vector.shape_cast %563 : vector<1x128x1xf32> to vector<128x1xf32>
    %cst_528 = arith.constant dense<0.000000e+00> : vector<1x1xf32>
    %565 = tpu.matmul %562, %564, %cst_528 {dimension_numbers = #tpu.dot_dimension_numbers<[1], [0], [0], [1], [0, 0, 1, 1], [], []>} : vector<1x128xf32>, vector<128x1xf32>, vector<1x1xf32> -> vector<1x1xf32>
    %566 = vector.extract_strided_slice %561 {offsets = [1, 0], sizes = [1, 128], strides = [1, 1]} : vector<4x128xf32> to vector<1x128xf32>
    %c1_529 = arith.constant 1 : index
    %c0_530 = arith.constant 0 : index
    %c0_531 = arith.constant 0 : index
    %567 = vector.load %arg13[%c1_529, %c0_530, %c0_531] : memref<4x128x1xf32, #tpu.memory_space<vmem>>, vector<1x128x1xf32>
    %568 = vector.shape_cast %567 : vector<1x128x1xf32> to vector<128x1xf32>
    %cst_532 = arith.constant dense<0.000000e+00> : vector<1x1xf32>
    %569 = tpu.matmul %566, %568, %cst_532 {dimension_numbers = #tpu.dot_dimension_numbers<[1], [0], [0], [1], [0, 0, 1, 1], [], []>} : vector<1x128xf32>, vector<128x1xf32>, vector<1x1xf32> -> vector<1x1xf32>
    %570 = arith.addf %565, %569 : vector<1x1xf32>
    %571 = vector.extract_strided_slice %561 {offsets = [2, 0], sizes = [1, 128], strides = [1, 1]} : vector<4x128xf32> to vector<1x128xf32>
    %c2_533 = arith.constant 2 : index
    %c0_534 = arith.constant 0 : index
    %c0_535 = arith.constant 0 : index
    %572 = vector.load %arg13[%c2_533, %c0_534, %c0_535] : memref<4x128x1xf32, #tpu.memory_space<vmem>>, vector<1x128x1xf32>
    %573 = vector.shape_cast %572 : vector<1x128x1xf32> to vector<128x1xf32>
    %cst_536 = arith.constant dense<0.000000e+00> : vector<1x1xf32>
    %574 = tpu.matmul %571, %573, %cst_536 {dimension_numbers = #tpu.dot_dimension_numbers<[1], [0], [0], [1], [0, 0, 1, 1], [], []>} : vector<1x128xf32>, vector<128x1xf32>, vector<1x1xf32> -> vector<1x1xf32>
    %575 = arith.addf %570, %574 : vector<1x1xf32>
    %576 = vector.extract_strided_slice %561 {offsets = [3, 0], sizes = [1, 128], strides = [1, 1]} : vector<4x128xf32> to vector<1x128xf32>
    %c3_537 = arith.constant 3 : index
    %c0_538 = arith.constant 0 : index
    %c0_539 = arith.constant 0 : index
    %577 = vector.load %arg13[%c3_537, %c0_538, %c0_539] : memref<4x128x1xf32, #tpu.memory_space<vmem>>, vector<1x128x1xf32>
    %578 = vector.shape_cast %577 : vector<1x128x1xf32> to vector<128x1xf32>
    %cst_540 = arith.constant dense<0.000000e+00> : vector<1x1xf32>
    %579 = tpu.matmul %576, %578, %cst_540 {dimension_numbers = #tpu.dot_dimension_numbers<[1], [0], [0], [1], [0, 0, 1, 1], [], []>} : vector<1x128xf32>, vector<128x1xf32>, vector<1x1xf32> -> vector<1x1xf32>
    %580 = arith.addf %575, %579 : vector<1x1xf32>
    %c1_541 = arith.constant 1 : index
    %c0_542 = arith.constant 0 : index
    %581 = vector.load %arg14[%c1_541, %c0_542] : memref<2x1xf32, #tpu.memory_space<vmem>>, vector<1x1xf32>
    tpu.vector_store %arg14[%c1_541, %c0_542], %580 {strides = array<i32>} : memref<2x1xf32, #tpu.memory_space<vmem>>, vector<1x1xf32>,
    return
  }
  func.func @transform_0(%arg0: i32) -> (i32, i32, i32) {
    %c0_i32 = arith.constant 0 : i32
    %c0_i32_0 = arith.constant 0 : i32
    %c0_i32_1 = arith.constant 0 : i32
    %c0_i32_2 = arith.constant 0 : i32
    return %c0_i32, %c0_i32_0, %c0_i32_1 : i32, i32, i32
  }
  func.func @transform_1(%arg0: i32) -> (i32, i32, i32) {
    %c0_i32 = arith.constant 0 : i32
    %c0_i32_0 = arith.constant 0 : i32
    %c0_i32_1 = arith.constant 0 : i32
    %c0_i32_2 = arith.constant 0 : i32
    return %c0_i32, %c0_i32_0, %c0_i32_1 : i32, i32, i32
  }
  func.func @transform_2(%arg0: i32) -> (i32, i32, i32) {
    %c0_i32 = arith.constant 0 : i32
    %c0_i32_0 = arith.constant 0 : i32
    %c0_i32_1 = arith.constant 0 : i32
    %c0_i32_2 = arith.constant 0 : i32
    return %c0_i32, %c0_i32_0, %c0_i32_1 : i32, i32, i32
  }
  func.func @transform_3(%arg0: i32) -> (i32, i32, i32) {
    %c0_i32 = arith.constant 0 : i32
    %c0_i32_0 = arith.constant 0 : i32
    %c0_i32_1 = arith.constant 0 : i32
    %c0_i32_2 = arith.constant 0 : i32
    return %c0_i32, %c0_i32_0, %c0_i32_1 : i32, i32, i32
  }
  func.func @transform_4(%arg0: i32) -> (i32, i32) {
    %c0_i32 = arith.constant 0 : i32
    %c0_i32_0 = arith.constant 0 : i32
    %c0_i32_1 = arith.constant 0 : i32
    return %c0_i32, %c0_i32_0 : i32, i32
  }
  func.func @transform_5(%arg0: i32) -> (i32, i32) {
    %c0_i32 = arith.constant 0 : i32
    %c0_i32_0 = arith.constant 0 : i32
    %c0_i32_1 = arith.constant 0 : i32
    return %c0_i32, %c0_i32_0 : i32, i32
  }
  func.func @transform_6(%arg0: i32) -> (i32, i32) {
    %c0_i32 = arith.constant 0 : i32
    %c0_i32_0 = arith.constant 0 : i32
    %c0_i32_1 = arith.constant 0 : i32
    return %c0_i32, %c0_i32_0 : i32, i32
  }
  func.func @transform_7(%arg0: i32) -> (i32, i32) {
    %c0_i32 = arith.constant 0 : i32
    %c0_i32_0 = arith.constant 0 : i32
    %c0_i32_1 = arith.constant 0 : i32
    return %c0_i32, %c0_i32_0 : i32, i32
  }
  func.func @transform_8(%arg0: i32) -> (i32, i32) {
    %c0_i32 = arith.constant 0 : i32
    %c0_i32_0 = arith.constant 0 : i32
    %c0_i32_1 = arith.constant 0 : i32
    return %c0_i32, %c0_i32_0 : i32, i32
  }
  func.func @transform_9(%arg0: i32) -> (i32, i32) {
    %c0_i32 = arith.constant 0 : i32
    %c0_i32_0 = arith.constant 0 : i32
    %c0_i32_1 = arith.constant 0 : i32
    return %c0_i32, %c0_i32_0 : i32, i32
  }
  func.func @transform_10(%arg0: i32) -> (i32, i32) {
    %c0_i32 = arith.constant 0 : i32
    %c0_i32_0 = arith.constant 0 : i32
    %c0_i32_1 = arith.constant 0 : i32
    return %c0_i32, %c0_i32_0 : i32, i32
  }
  func.func @transform_11(%arg0: i32) -> (i32, i32) {
    %c0_i32 = arith.constant 0 : i32
    %c0_i32_0 = arith.constant 0 : i32
    %c0_i32_1 = arith.constant 0 : i32
    return %c0_i32, %c0_i32_0 : i32, i32
  }
  func.func @transform_12(%arg0: i32) -> (i32, i32, i32) {
    %c0_i32 = arith.constant 0 : i32
    %c0_i32_0 = arith.constant 0 : i32
    %c0_i32_1 = arith.constant 0 : i32
    %c0_i32_2 = arith.constant 0 : i32
    return %c0_i32, %c0_i32_0, %c0_i32_1 : i32, i32, i32
  }
  func.func @transform_13(%arg0: i32) -> (i32, i32) {
    %c0_i32 = arith.constant 0 : i32
    %c0_i32_0 = arith.constant 0 : i32
    %c0_i32_1 = arith.constant 0 : i32
    return %c0_i32, %c0_i32_0 : i32, i32
  }
}

</mosaic_0001>

<llo_original>
// kernel: d2_forward.1
$region0: #{d2_forward.1}
  #allocation0 [shape = 'u32[]', space=smem, size = 0x4, offset = 0x4, fixed_abs, tag = 'smem constant byte address 0x4 - core index']
  #allocation1 [shape = 'u32[144,128]{1,0:T(1,128)}', space=vmem, size = 0x12000, scoped, tag = 'internal scratch']
  #allocation2 [shape = 'f32[4,10,144]{2,1,0:T(8,128)}', space=vmem, size = 0x10000, scoped, tag = 'scratch operand']
  #allocation3 [shape = 'f32[2,10,160]{2,1,0:T(8,128)}', space=vmem, size = 0x8000, scoped, tag = 'scratch operand']
  %s0 = inlined_call_operand.vmem [shape: f32[8,10,102], index: 0, kind: input, shape index: {}]
  %s1 = inlined_call_operand.vmem [shape: f32[4,102,144], index: 1, kind: input, shape index: {}]
  %s2 = inlined_call_operand.vmem [shape: f32[4,144,160], index: 2, kind: input, shape index: {}]
  %s3 = inlined_call_operand.vmem [shape: f32[4,160,128], index: 3, kind: input, shape index: {}]
  %s4 = inlined_call_operand.vmem [shape: f32[160,16], index: 4, kind: input, shape index: {}]
  %s5 = inlined_call_operand.vmem [shape: f32[16,160], index: 5, kind: input, shape index: {}]
  %s6 = inlined_call_operand.vmem [shape: f32[1,16], index: 6, kind: input, shape index: {}]
  %s7 = inlined_call_operand.vmem [shape: f32[1,16], index: 7, kind: input, shape index: {}]
  %s8 = inlined_call_operand.vmem [shape: f32[128,32], index: 8, kind: input, shape index: {}]
  %s9 = inlined_call_operand.vmem [shape: f32[32,128], index: 9, kind: input, shape index: {}]
  %s10 = inlined_call_operand.vmem [shape: f32[1,32], index: 10, kind: input, shape index: {}]
  %s11 = inlined_call_operand.vmem [shape: f32[1,32], index: 11, kind: input, shape index: {}]
  %s12 = inlined_call_operand.vmem [shape: f32[4,128,1], index: 12, kind: input, shape index: {}]
  %s13 = inlined_call_operand.vmem [shape: f32[2,1], index: 13, kind: output, shape index: {}]
  %s14 = sld [smem:[#allocation0]]
  $region62: #{d2_forward.1} parent=0
    _
  %s16 = ssub.s32 1, %s14
  %s17 = scalar_select 0, %s16, %s14
  // Predicated region
  $region2: #{d2_forward.1} parent=0 // pred_check
    _
  $region3: #{d2_forward.1} parent=0 // pred_check_branch
    %19 = sbr.rel (0) target = $region5
  $region4: #{d2_forward.1} parent=0 // pred_region
    _
  $region5: #{d2_forward.1} parent=0 // pred_fallthru
    _
  // Predicated region
  $region6: #{d2_forward.1} parent=0 // pred_check
    _
  $region7: #{d2_forward.1} parent=0 // pred_check_branch
    %21 = sbr.rel (0) target = $region9
  $region8: #{d2_forward.1} parent=0 // pred_region
    _
  $region9: #{d2_forward.1} parent=0 // pred_fallthru
    _
  // Predicated region
  $region10: #{d2_forward.1} parent=0 // pred_check
    _
  $region11: #{d2_forward.1} parent=0 // pred_check_branch
    %23 = sbr.rel (0) target = $region13
  $region12: #{d2_forward.1} parent=0 // pred_region
    _
  $region13: #{d2_forward.1} parent=0 // pred_fallthru
    _
  // Predicated region
  $region14: #{d2_forward.1} parent=0 // pred_check
    _
  $region15: #{d2_forward.1} parent=0 // pred_check_branch
    %25 = sbr.rel (0) target = $region17
  $region16: #{d2_forward.1} parent=0 // pred_region
    _
  $region17: #{d2_forward.1} parent=0 // pred_fallthru
    _
  // Predicated region
  $region18: #{d2_forward.1} parent=0 // pred_check
    _
  $region19: #{d2_forward.1} parent=0 // pred_check_branch
    %27 = sbr.rel (0) target = $region21
  $region20: #{d2_forward.1} parent=0 // pred_region
    _
  $region21: #{d2_forward.1} parent=0 // pred_fallthru
    _
  // Predicated region
  $region22: #{d2_forward.1} parent=0 // pred_check
    _
  $region23: #{d2_forward.1} parent=0 // pred_check_branch
    %29 = sbr.rel (0) target = $region25
  $region24: #{d2_forward.1} parent=0 // pred_region
    _
  $region25: #{d2_forward.1} parent=0 // pred_fallthru
    _
  // Predicated region
  $region26: #{d2_forward.1} parent=0 // pred_check
    _
  $region27: #{d2_forward.1} parent=0 // pred_check_branch
    %31 = sbr.rel (0) target = $region29
  $region28: #{d2_forward.1} parent=0 // pred_region
    _
  $region29: #{d2_forward.1} parent=0 // pred_fallthru
    _
  // Predicated region
  $region30: #{d2_forward.1} parent=0 // pred_check
    _
  $region31: #{d2_forward.1} parent=0 // pred_check_branch
    %33 = sbr.rel (0) target = $region33
  $region32: #{d2_forward.1} parent=0 // pred_region
    _
  $region33: #{d2_forward.1} parent=0 // pred_fallthru
    _
  // Predicated region
  $region34: #{d2_forward.1} parent=0 // pred_check
    _
  $region35: #{d2_forward.1} parent=0 // pred_check_branch
    %35 = sbr.rel (0) target = $region37
  $region36: #{d2_forward.1} parent=0 // pred_region
    _
  $region37: #{d2_forward.1} parent=0 // pred_fallthru
    _
  // Predicated region
  $region38: #{d2_forward.1} parent=0 // pred_check
    _
  $region39: #{d2_forward.1} parent=0 // pred_check_branch
    %37 = sbr.rel (0) target = $region41
  $region40: #{d2_forward.1} parent=0 // pred_region
    _
  $region41: #{d2_forward.1} parent=0 // pred_fallthru
    _
  // Predicated region
  $region42: #{d2_forward.1} parent=0 // pred_check
    _
  $region43: #{d2_forward.1} parent=0 // pred_check_branch
    %39 = sbr.rel (0) target = $region45
  $region44: #{d2_forward.1} parent=0 // pred_region
    _
  $region45: #{d2_forward.1} parent=0 // pred_fallthru
    _
  // Predicated region
  $region46: #{d2_forward.1} parent=0 // pred_check
    _
  $region47: #{d2_forward.1} parent=0 // pred_check_branch
    %41 = sbr.rel (0) target = $region49
  $region48: #{d2_forward.1} parent=0 // pred_region
    _
  $region49: #{d2_forward.1} parent=0 // pred_fallthru
    _
  // Predicated region
  $region50: #{d2_forward.1} parent=0 // pred_check
    _
  $region51: #{d2_forward.1} parent=0 // pred_check_branch
    %43 = sbr.rel (0) target = $region53
  $region52: #{d2_forward.1} parent=0 // pred_region
    _
  $region53: #{d2_forward.1} parent=0 // pred_fallthru
    _
  %44 = vst [vmem:[#allocation2] sm:$0xff] 0.0
  %vm45 = vcmask 130048
  %46 = vst.msk [vmem:[#allocation2 + $0x8] sm:$0xff] %vm45, 0.0
  %47 = vst [vmem:[#allocation2 + $0x10] sm:$0x3] 0.0
  %vm48 = vcmask 123904
  %49 = vst.msk [vmem:[#allocation2 + $0x18] sm:$0x3] %vm48, 0.0
  %50 = vst [vmem:[#allocation2 + $0x20] sm:$0xff] 0.0
  %51 = vst.msk [vmem:[#allocation2 + $0x28] sm:$0xff] %vm45, 0.0
  %52 = vst [vmem:[#allocation2 + $0x30] sm:$0x3] 0.0
  %53 = vst.msk [vmem:[#allocation2 + $0x38] sm:$0x3] %vm48, 0.0
  %54 = vst [vmem:[#allocation2 + $0x40] sm:$0xff] 0.0
  %55 = vst.msk [vmem:[#allocation2 + $0x48] sm:$0xff] %vm45, 0.0
  %56 = vst [vmem:[#allocation2 + $0x50] sm:$0x3] 0.0
  %57 = vst.msk [vmem:[#allocation2 + $0x58] sm:$0x3] %vm48, 0.0
  %58 = vst [vmem:[#allocation2 + $0x60] sm:$0xff] 0.0
  %59 = vst.msk [vmem:[#allocation2 + $0x68] sm:$0xff] %vm45, 0.0
  %60 = vst [vmem:[#allocation2 + $0x70] sm:$0x3] 0.0
  %61 = vst.msk [vmem:[#allocation2 + $0x78] sm:$0x3] %vm48, 0.0
  %62 = vst [vmem:[#allocation3] sm:$0xff] 0.0
  %vm63 = vcmask 261120
  %64 = vst.msk [vmem:[#allocation3 + $0x8] sm:$0xff] %vm63, 0.0
  %65 = vst [vmem:[#allocation3 + $0x10] sm:$0x3] 0.0
  %vm66 = vcmask 254976
  %67 = vst.msk [vmem:[#allocation3 + $0x18] sm:$0x3] %vm66, 0.0
  %68 = vst [vmem:[#allocation3 + $0x20] sm:$0xff] 0.0
  %69 = vst.msk [vmem:[#allocation3 + $0x28] sm:$0xff] %vm63, 0.0
  %70 = vst [vmem:[#allocation3 + $0x30] sm:$0x3] 0.0
  %71 = vst.msk [vmem:[#allocation3 + $0x38] sm:$0x3] %vm66, 0.0
  %v72 = vld [vmem:[%s0] sm:$0xf]
  %v73 = vld [vmem:[%s1] sm:$0xff]
  %v74 = vld [vmem:[%s1 + $0x8] sm:$0xff]
  %v75 = vld [vmem:[%s1 + $0x10] sm:$0xff]
  %v76 = vld [vmem:[%s1 + $0x18] sm:$0xff]
  %v77 = vld [vmem:[%s1 + $0x20] sm:$0xff]
  %v78 = vld [vmem:[%s1 + $0x28] sm:$0xff]
  %v79 = vld [vmem:[%s1 + $0x30] sm:$0xff]
  %v80 = vld [vmem:[%s1 + $0x38] sm:$0xff]
  %v81 = vld [vmem:[%s1 + $0x40] sm:$0xff]
  %v82 = vld [vmem:[%s1 + $0x48] sm:$0xff]
  %v83 = vld [vmem:[%s1 + $0x50] sm:$0xff]
  %v84 = vld [vmem:[%s1 + $0x58] sm:$0xff]
  %v85 = vld [vmem:[%s1 + $0x60] sm:$0xff]
  %v86 = vld [vmem:[%s1 + $0x68] sm:$0xff]
  %v87 = vld [vmem:[%s1 + $0x70] sm:$0xff]
  %v88 = vld [vmem:[%s1 + $0x78] sm:$0xff]
  %v89 = vld [vmem:[%s1 + $0x80] sm:$0xff]
  %v90 = vld [vmem:[%s1 + $0x88] sm:$0xff]
  %v91 = vld [vmem:[%s1 + $0x90] sm:$0xff]
  %v92 = vld [vmem:[%s1 + $0x98] sm:$0xff]
  %v93 = vld [vmem:[%s1 + $0xa0] sm:$0xff]
  %v94 = vld [vmem:[%s1 + $0xa8] sm:$0xff]
  %v95 = vld [vmem:[%s1 + $0xb0] sm:$0xff]
  %v96 = vld [vmem:[%s1 + $0xb8] sm:$0xff]
  %v97 = vld [vmem:[%s1 + $0xc0] sm:$0x3f]
  %v98 = vld [vmem:[%s1 + $0xc8] sm:$0x3f]
  %s99 = scalar_lea.vmem %s0, 16
  %v100 = vld [vmem:[%s99] sm:$0xf]
  %s101 = scalar_lea.vmem %s1, 208
  %v102 = vld [vmem:[%s101] sm:$0xff]
  %v103 = vld [vmem:[%s101 + $0x8] sm:$0xff]
  %v104 = vld [vmem:[%s101 + $0x10] sm:$0xff]
  %v105 = vld [vmem:[%s101 + $0x18] sm:$0xff]
  %v106 = vld [vmem:[%s101 + $0x20] sm:$0xff]
  %v107 = vld [vmem:[%s101 + $0x28] sm:$0xff]
  %v108 = vld [vmem:[%s101 + $0x30] sm:$0xff]
  %v109 = vld [vmem:[%s101 + $0x38] sm:$0xff]
  %v110 = vld [vmem:[%s101 + $0x40] sm:$0xff]
  %v111 = vld [vmem:[%s101 + $0x48] sm:$0xff]
  %v112 = vld [vmem:[%s101 + $0x50] sm:$0xff]
  %v113 = vld [vmem:[%s101 + $0x58] sm:$0xff]
  %v114 = vld [vmem:[%s101 + $0x60] sm:$0xff]
  %v115 = vld [vmem:[%s101 + $0x68] sm:$0xff]
  %v116 = vld [vmem:[%s101 + $0x70] sm:$0xff]
  %v117 = vld [vmem:[%s101 + $0x78] sm:$0xff]
  %v118 = vld [vmem:[%s101 + $0x80] sm:$0xff]
  %v119 = vld [vmem:[%s101 + $0x88] sm:$0xff]
  %v120 = vld [vmem:[%s101 + $0x90] sm:$0xff]
  %v121 = vld [vmem:[%s101 + $0x98] sm:$0xff]
  %v122 = vld [vmem:[%s101 + $0xa0] sm:$0xff]
  %v123 = vld [vmem:[%s101 + $0xa8] sm:$0xff]
  %v124 = vld [vmem:[%s101 + $0xb0] sm:$0xff]
  %v125 = vld [vmem:[%s101 + $0xb8] sm:$0xff]
  %v126 = vld [vmem:[%s101 + $0xc0] sm:$0x3f]
  %v127 = vld [vmem:[%s101 + $0xc8] sm:$0x3f]
  %vm128 = vcmask 834560
  %v130 = vsel %vm128, %v100, 0
  %vm132 = vcmask 1045504
  %v134 = vsel %vm132, %v126, 0
  %v137 = vsel %vm132, %v127, 0
  %139 = vmatprep.subr.mxu0 %v103
  %140 = vmatpush1.msra.mxu0 %v102
  %141 = vmatprep.subr.mxu0 %v105
  %142 = vmatpush1.msra.mxu0 %v104
  %143 = vmatprep.subr.mxu0 %v107
  %144 = vmatpush1.msra.mxu0 %v106
  %145 = vmatprep.subr.mxu0 %v109
  %146 = vmatpush1.msra.mxu0 %v108
  %147 = vmatprep.subr.mxu0 %v111
  %148 = vmatpush1.msra.mxu0 %v110
  %149 = vmatprep.subr.mxu0 %v113
  %150 = vmatpush1.msra.mxu0 %v112
  %151 = vmatprep.subr.mxu0 %v115
  %152 = vmatpush1.msra.mxu0 %v114
  %153 = vmatprep.subr.mxu0 %v117
  %154 = vmatpush1.msra.mxu0 %v116
  %155 = vmatprep.subr.mxu0 %v119
  %156 = vmatpush1.msra.mxu0 %v118
  %157 = vmatprep.subr.mxu0 %v121
  %158 = vmatpush1.msra.mxu0 %v120
  %159 = vmatprep.subr.mxu0 %v123
  %160 = vmatpush1.msra.mxu0 %v122
  %161 = vmatprep.subr.mxu0 %v125
  %162 = vmatpush1.msra.mxu0 %v124
  %163 = vmatprep.subr.mxu0 %v137
  %164 = vmatpush1.msra.mxu0 %v134
  %165 = vmatprep.subr.mxu0 0.0
  %166 = vmatpush1.msra.mxu0 0.0
  %167 = vmatprep.subr.mxu0 0.0
  %168 = vmatpush1.msra.mxu0 0.0
  %169 = vmatprep.subr.mxu0 0.0
  %170 = vmatpush1.msra.mxu0 0.0
  %171 = vmatprep.subr.mxu0 0.0
  %172 = vmatpush1.msra.mxu0 0.0
  %173 = vmatprep.subr.mxu0 0.0
  %174 = vmatpush1.msra.mxu0 0.0
  %175 = vmatprep.subr.mxu0 0.0
  %176 = vmatpush1.msra.mxu0 0.0
  %177 = vmatprep.subr.mxu0 0.0
  %178 = vmatpush1.msra.mxu0 0.0
  %179 = vmatprep.subr.mxu0 0.0
  %180 = vmatpush1.msra.mxu0 0.0
  %181 = vmatprep.subr.mxu0 0.0
  %182 = vmatpush1.msra.mxu0 0.0
  %183 = vmatprep.subr.mxu0 0.0
  %184 = vmatpush1.msra.mxu0 0.0
  %185 = vmatprep.subr.mxu0 0.0
  %186 = vmatpush1.msra.mxu0 0.0
  %187 = vmatprep.subr.mxu0 0.0
  %188 = vmatpush1.msra.mxu0 0.0
  %189 = vmatprep.subr.mxu0 0.0
  %190 = vmatpush1.msra.mxu0 0.0
  %191 = vmatprep.subr.mxu0 0.0
  %192 = vmatpush1.msra.mxu0 0.0
  %193 = vmatprep.subr.mxu0 0.0
  %194 = vmatpush1.msra.mxu0 0.0
  %195 = vmatprep.subr.mxu0 0.0
  %196 = vmatpush1.msra.mxu0 0.0
  %197 = vmatprep.subr.mxu0 0.0
  %198 = vmatpush1.msra.mxu0 0.0
  %199 = vmatprep.subr.mxu0 0.0
  %200 = vmatpush1.msra.mxu0 0.0
  %201 = vmatprep.subr.mxu0 0.0
  %202 = vmatpush1.msra.mxu0 0.0
  %203 = vmatprep.mubr.f32.mxu0 0.0
  %204 = vmatmul.mubr.f32.gmra.mrb[0].mxu0 %v130
  %v205 = vpop.f32.mrb[0].mxu0
  %v206 = vadd.f32 0.0, %v205
  %v207 = vpop.f32.mrb[0].mxu0
  %v208 = vadd.f32 0.0, %v207
  %209 = vdwg.mxu0
  %v211 = vsel %vm128, %v72, 0
  %v214 = vsel %vm132, %v97, 0
  %v217 = vsel %vm132, %v98, 0
  %219 = vmatprep.subr.mxu0 %v74
  %220 = vmatpush1.msra.mxu0 %v73
  %221 = vmatprep.subr.mxu0 %v76
  %222 = vmatpush1.msra.mxu0 %v75
  %223 = vmatprep.subr.mxu0 %v78
  %224 = vmatpush1.msra.mxu0 %v77
  %225 = vmatprep.subr.mxu0 %v80
  %226 = vmatpush1.msra.mxu0 %v79
  %227 = vmatprep.subr.mxu0 %v82
  %228 = vmatpush1.msra.mxu0 %v81
  %229 = vmatprep.subr.mxu0 %v84
  %230 = vmatpush1.msra.mxu0 %v83
  %231 = vmatprep.subr.mxu0 %v86
  %232 = vmatpush1.msra.mxu0 %v85
  %233 = vmatprep.subr.mxu0 %v88
  %234 = vmatpush1.msra.mxu0 %v87
  %235 = vmatprep.subr.mxu0 %v90
  %236 = vmatpush1.msra.mxu0 %v89
  %237 = vmatprep.subr.mxu0 %v92
  %238 = vmatpush1.msra.mxu0 %v91
  %239 = vmatprep.subr.mxu0 %v94
  %240 = vmatpush1.msra.mxu0 %v93
  %241 = vmatprep.subr.mxu0 %v96
  %242 = vmatpush1.msra.mxu0 %v95
  %243 = vmatprep.subr.mxu0 %v217
  %244 = vmatpush1.msra.mxu0 %v214
  %245 = vmatprep.subr.mxu0 0.0
  %246 = vmatpush1.msra.mxu0 0.0
  %247 = vmatprep.subr.mxu0 0.0
  %248 = vmatpush1.msra.mxu0 0.0
  %249 = vmatprep.subr.mxu0 0.0
  %250 = vmatpush1.msra.mxu0 0.0
  %251 = vmatprep.subr.mxu0 0.0
  %252 = vmatpush1.msra.mxu0 0.0
  %253 = vmatprep.subr.mxu0 0.0
  %254 = vmatpush1.msra.mxu0 0.0
  %255 = vmatprep.subr.mxu0 0.0
  %256 = vmatpush1.msra.mxu0 0.0
  %257 = vmatprep.subr.mxu0 0.0
  %258 = vmatpush1.msra.mxu0 0.0
  %259 = vmatprep.subr.mxu0 0.0
  %260 = vmatpush1.msra.mxu0 0.0
  %261 = vmatprep.subr.mxu0 0.0
  %262 = vmatpush1.msra.mxu0 0.0
  %263 = vmatprep.subr.mxu0 0.0
  %264 = vmatpush1.msra.mxu0 0.0
  %265 = vmatprep.subr.mxu0 0.0
  %266 = vmatpush1.msra.mxu0 0.0
  %267 = vmatprep.subr.mxu0 0.0
  %268 = vmatpush1.msra.mxu0 0.0
  %269 = vmatprep.subr.mxu0 0.0
  %270 = vmatpush1.msra.mxu0 0.0
  %271 = vmatprep.subr.mxu0 0.0
  %272 = vmatpush1.msra.mxu0 0.0
  %273 = vmatprep.subr.mxu0 0.0
  %274 = vmatpush1.msra.mxu0 0.0
  %275 = vmatprep.subr.mxu0 0.0
  %276 = vmatpush1.msra.mxu0 0.0
  %277 = vmatprep.subr.mxu0 0.0
  %278 = vmatpush1.msra.mxu0 0.0
  %279 = vmatprep.subr.mxu0 0.0
  %280 = vmatpush1.msra.mxu0 0.0
  %281 = vmatprep.subr.mxu0 0.0
  %282 = vmatpush1.msra.mxu0 0.0
  %283 = vmatprep.mubr.f32.mxu0 0.0
  %284 = vmatmul.mubr.f32.gmra.mrb[0].mxu0 %v211
  %v285 = vpop.f32.mrb[0].mxu0
  %v286 = vadd.f32 %v206, %v285
  %v287 = vpop.f32.mrb[0].mxu0
  %v288 = vadd.f32 %v208, %v287
  %289 = vdwg.mxu0
  %s290 = scalar_lea.vmem %s0, 32
  %v291 = vld [vmem:[%s290] sm:$0xf]
  %s292 = scalar_lea.vmem %s1, 416
  %v293 = vld [vmem:[%s292] sm:$0xff]
  %v294 = vld [vmem:[%s292 + $0x8] sm:$0xff]
  %v295 = vld [vmem:[%s292 + $0x10] sm:$0xff]
  %v296 = vld [vmem:[%s292 + $0x18] sm:$0xff]
  %v297 = vld [vmem:[%s292 + $0x20] sm:$0xff]
  %v298 = vld [vmem:[%s292 + $0x28] sm:$0xff]
  %v299 = vld [vmem:[%s292 + $0x30] sm:$0xff]
  %v300 = vld [vmem:[%s292 + $0x38] sm:$0xff]
  %v301 = vld [vmem:[%s292 + $0x40] sm:$0xff]
  %v302 = vld [vmem:[%s292 + $0x48] sm:$0xff]
  %v303 = vld [vmem:[%s292 + $0x50] sm:$0xff]
  %v304 = vld [vmem:[%s292 + $0x58] sm:$0xff]
  %v305 = vld [vmem:[%s292 + $0x60] sm:$0xff]
  %v306 = vld [vmem:[%s292 + $0x68] sm:$0xff]
  %v307 = vld [vmem:[%s292 + $0x70] sm:$0xff]
  %v308 = vld [vmem:[%s292 + $0x78] sm:$0xff]
  %v309 = vld [vmem:[%s292 + $0x80] sm:$0xff]
  %v310 = vld [vmem:[%s292 + $0x88] sm:$0xff]
  %v311 = vld [vmem:[%s292 + $0x90] sm:$0xff]
  %v312 = vld [vmem:[%s292 + $0x98] sm:$0xff]
  %v313 = vld [vmem:[%s292 + $0xa0] sm:$0xff]
  %v314 = vld [vmem:[%s292 + $0xa8] sm:$0xff]
  %v315 = vld [vmem:[%s292 + $0xb0] sm:$0xff]
  %v316 = vld [vmem:[%s292 + $0xb8] sm:$0xff]
  %v317 = vld [vmem:[%s292 + $0xc0] sm:$0x3f]
  %v318 = vld [vmem:[%s292 + $0xc8] sm:$0x3f]
  %v320 = vsel %vm128, %v291, 0
  %v323 = vsel %vm132, %v317, 0
  %v326 = vsel %vm132, %v318, 0
  %328 = vmatprep.subr.mxu0 %v294
  %329 = vmatpush1.msra.mxu0 %v293
  %330 = vmatprep.subr.mxu0 %v296
  %331 = vmatpush1.msra.mxu0 %v295
  %332 = vmatprep.subr.mxu0 %v298
  %333 = vmatpush1.msra.mxu0 %v297
  %334 = vmatprep.subr.mxu0 %v300
  %335 = vmatpush1.msra.mxu0 %v299
  %336 = vmatprep.subr.mxu0 %v302
  %337 = vmatpush1.msra.mxu0 %v301
  %338 = vmatprep.subr.mxu0 %v304
  %339 = vmatpush1.msra.mxu0 %v303
  %340 = vmatprep.subr.mxu0 %v306
  %341 = vmatpush1.msra.mxu0 %v305
  %342 = vmatprep.subr.mxu0 %v308
  %343 = vmatpush1.msra.mxu0 %v307
  %344 = vmatprep.subr.mxu0 %v310
  %345 = vmatpush1.msra.mxu0 %v309
  %346 = vmatprep.subr.mxu0 %v312
  %347 = vmatpush1.msra.mxu0 %v311
  %348 = vmatprep.subr.mxu0 %v314
  %349 = vmatpush1.msra.mxu0 %v313
  %350 = vmatprep.subr.mxu0 %v316
  %351 = vmatpush1.msra.mxu0 %v315
  %352 = vmatprep.subr.mxu0 %v326
  %353 = vmatpush1.msra.mxu0 %v323
  %354 = vmatprep.subr.mxu0 0.0
  %355 = vmatpush1.msra.mxu0 0.0
  %356 = vmatprep.subr.mxu0 0.0
  %357 = vmatpush1.msra.mxu0 0.0
  %358 = vmatprep.subr.mxu0 0.0
  %359 = vmatpush1.msra.mxu0 0.0
  %360 = vmatprep.subr.mxu0 0.0
  %361 = vmatpush1.msra.mxu0 0.0
  %362 = vmatprep.subr.mxu0 0.0
  %363 = vmatpush1.msra.mxu0 0.0
  %364 = vmatprep.subr.mxu0 0.0
  %365 = vmatpush1.msra.mxu0 0.0
  %366 = vmatprep.subr.mxu0 0.0
  %367 = vmatpush1.msra.mxu0 0.0
  %368 = vmatprep.subr.mxu0 0.0
  %369 = vmatpush1.msra.mxu0 0.0
  %370 = vmatprep.subr.mxu0 0.0
  %371 = vmatpush1.msra.mxu0 0.0
  %372 = vmatprep.subr.mxu0 0.0
  %373 = vmatpush1.msra.mxu0 0.0
  %374 = vmatprep.subr.mxu0 0.0
  %375 = vmatpush1.msra.mxu0 0.0
  %376 = vmatprep.subr.mxu0 0.0
  %377 = vmatpush1.msra.mxu0 0.0
  %378 = vmatprep.subr.mxu0 0.0
  %379 = vmatpush1.msra.mxu0 0.0
  %380 = vmatprep.subr.mxu0 0.0
  %381 = vmatpush1.msra.mxu0 0.0
  %382 = vmatprep.subr.mxu0 0.0
  %383 = vmatpush1.msra.mxu0 0.0
  %384 = vmatprep.subr.mxu0 0.0
  %385 = vmatpush1.msra.mxu0 0.0
  %386 = vmatprep.subr.mxu0 0.0
  %387 = vmatpush1.msra.mxu0 0.0
  %388 = vmatprep.subr.mxu0 0.0
  %389 = vmatpush1.msra.mxu0 0.0
  %390 = vmatprep.subr.mxu0 0.0
  %391 = vmatpush1.msra.mxu0 0.0
  %392 = vmatprep.mubr.f32.mxu0 0.0
  %393 = vmatmul.mubr.f32.gmra.mrb[0].mxu0 %v320
  %v394 = vpop.f32.mrb[0].mxu0
  %v395 = vadd.f32 0.0, %v394
  %v396 = vpop.f32.mrb[0].mxu0
  %v397 = vadd.f32 0.0, %v396
  %398 = vdwg.mxu0
  %v399 = vadd.f32 %v286, %v395
  %v400 = vadd.f32 %v288, %v397
  %s401 = scalar_lea.vmem %s0, 48
  %v402 = vld [vmem:[%s401] sm:$0xf]
  %s403 = scalar_lea.vmem %s1, 624
  %v404 = vld [vmem:[%s403] sm:$0xff]
  %v405 = vld [vmem:[%s403 + $0x8] sm:$0xff]
  %v406 = vld [vmem:[%s403 + $0x10] sm:$0xff]
  %v407 = vld [vmem:[%s403 + $0x18] sm:$0xff]
  %v408 = vld [vmem:[%s403 + $0x20] sm:$0xff]
  %v409 = vld [vmem:[%s403 + $0x28] sm:$0xff]
  %v410 = vld [vmem:[%s403 + $0x30] sm:$0xff]
  %v411 = vld [vmem:[%s403 + $0x38] sm:$0xff]
  %v412 = vld [vmem:[%s403 + $0x40] sm:$0xff]
  %v413 = vld [vmem:[%s403 + $0x48] sm:$0xff]
  %v414 = vld [vmem:[%s403 + $0x50] sm:$0xff]
  %v415 = vld [vmem:[%s403 + $0x58] sm:$0xff]
  %v416 = vld [vmem:[%s403 + $0x60] sm:$0xff]
  %v417 = vld [vmem:[%s403 + $0x68] sm:$0xff]
  %v418 = vld [vmem:[%s403 + $0x70] sm:$0xff]
  %v419 = vld [vmem:[%s403 + $0x78] sm:$0xff]
  %v420 = vld [vmem:[%s403 + $0x80] sm:$0xff]
  %v421 = vld [vmem:[%s403 + $0x88] sm:$0xff]
  %v422 = vld [vmem:[%s403 + $0x90] sm:$0xff]
  %v423 = vld [vmem:[%s403 + $0x98] sm:$0xff]
  %v424 = vld [vmem:[%s403 + $0xa0] sm:$0xff]
  %v425 = vld [vmem:[%s403 + $0xa8] sm:$0xff]
  %v426 = vld [vmem:[%s403 + $0xb0] sm:$0xff]
  %v427 = vld [vmem:[%s403 + $0xb8] sm:$0xff]
  %v428 = vld [vmem:[%s403 + $0xc0] sm:$0x3f]
  %v429 = vld [vmem:[%s403 + $0xc8] sm:$0x3f]
  %v431 = vsel %vm128, %v402, 0
  %v434 = vsel %vm132, %v428, 0
  %v437 = vsel %vm132, %v429, 0
  %439 = vmatprep.subr.mxu0 %v405
  %440 = vmatpush1.msra.mxu0 %v404
  %441 = vmatprep.subr.mxu0 %v407
  %442 = vmatpush1.msra.mxu0 %v406
  %443 = vmatprep.subr.mxu0 %v409
  %444 = vmatpush1.msra.mxu0 %v408
  %445 = vmatprep.subr.mxu0 %v411
  %446 = vmatpush1.msra.mxu0 %v410
  %447 = vmatprep.subr.mxu0 %v413
  %448 = vmatpush1.msra.mxu0 %v412
  %449 = vmatprep.subr.mxu0 %v415
  %450 = vmatpush1.msra.mxu0 %v414
  %451 = vmatprep.subr.mxu0 %v417
  %452 = vmatpush1.msra.mxu0 %v416
  %453 = vmatprep.subr.mxu0 %v419
  %454 = vmatpush1.msra.mxu0 %v418
  %455 = vmatprep.subr.mxu0 %v421
  %456 = vmatpush1.msra.mxu0 %v420
  %457 = vmatprep.subr.mxu0 %v423
  %458 = vmatpush1.msra.mxu0 %v422
  %459 = vmatprep.subr.mxu0 %v425
  %460 = vmatpush1.msra.mxu0 %v424
  %461 = vmatprep.subr.mxu0 %v427
  %462 = vmatpush1.msra.mxu0 %v426
  %463 = vmatprep.subr.mxu0 %v437
  %464 = vmatpush1.msra.mxu0 %v434
  %465 = vmatprep.subr.mxu0 0.0
  %466 = vmatpush1.msra.mxu0 0.0
  %467 = vmatprep.subr.mxu0 0.0
  %468 = vmatpush1.msra.mxu0 0.0
  %469 = vmatprep.subr.mxu0 0.0
  %470 = vmatpush1.msra.mxu0 0.0
  %471 = vmatprep.subr.mxu0 0.0
  %472 = vmatpush1.msra.mxu0 0.0
  %473 = vmatprep.subr.mxu0 0.0
  %474 = vmatpush1.msra.mxu0 0.0
  %475 = vmatprep.subr.mxu0 0.0
  %476 = vmatpush1.msra.mxu0 0.0
  %477 = vmatprep.subr.mxu0 0.0
  %478 = vmatpush1.msra.mxu0 0.0
  %479 = vmatprep.subr.mxu0 0.0
  %480 = vmatpush1.msra.mxu0 0.0
  %481 = vmatprep.subr.mxu0 0.0
  %482 = vmatpush1.msra.mxu0 0.0
  %483 = vmatprep.subr.mxu0 0.0
  %484 = vmatpush1.msra.mxu0 0.0
  %485 = vmatprep.subr.mxu0 0.0
  %486 = vmatpush1.msra.mxu0 0.0
  %487 = vmatprep.subr.mxu0 0.0
  %488 = vmatpush1.msra.mxu0 0.0
  %489 = vmatprep.subr.mxu0 0.0
  %490 = vmatpush1.msra.mxu0 0.0
  %491 = vmatprep.subr.mxu0 0.0
  %492 = vmatpush1.msra.mxu0 0.0
  %493 = vmatprep.subr.mxu0 0.0
  %494 = vmatpush1.msra.mxu0 0.0
  %495 = vmatprep.subr.mxu0 0.0
  %496 = vmatpush1.msra.mxu0 0.0
  %497 = vmatprep.subr.mxu0 0.0
  %498 = vmatpush1.msra.mxu0 0.0
  %499 = vmatprep.subr.mxu0 0.0
  %500 = vmatpush1.msra.mxu0 0.0
  %501 = vmatprep.subr.mxu0 0.0
  %502 = vmatpush1.msra.mxu0 0.0
  %503 = vmatprep.mubr.f32.mxu0 0.0
  %504 = vmatmul.mubr.f32.gmra.mrb[0].mxu0 %v431
  %v505 = vpop.f32.mrb[0].mxu0
  %v506 = vadd.f32 0.0, %v505
  %v507 = vpop.f32.mrb[0].mxu0
  %v508 = vadd.f32 0.0, %v507
  %509 = vdwg.mxu0
  %v510 = vadd.f32 %v399, %v506
  %v511 = vadd.f32 %v400, %v508
  %vm512 = vcmp.ge.f32.partialorder %v510, 0.0
  %vm513 = vcmp.ge.f32.partialorder %v511, 0.0
  %v514 = vmul.f32 %v510, 0.05
  %v515 = vmul.f32 %v511, 0.05
  %v516 = vsel %vm512, %v510, %v514
  %v517 = vsel %vm513, %v511, %v515
  %s518 = scalar_lea.vmem [#allocation2], 32
  %519 = vst [vmem:[%s518] sm:$0xf] %v516
  %vm520 = vcmask 125952
  %521 = vst.msk [vmem:[%s518 + $0x8] sm:$0xf] %vm520, %v517
  %v522 = vld [vmem:[%s290] sm:$0xf]
  %v523 = vld [vmem:[%s1] sm:$0xff]
  %v524 = vld [vmem:[%s1 + $0x8] sm:$0xff]
  %v525 = vld [vmem:[%s1 + $0x10] sm:$0xff]
  %v526 = vld [vmem:[%s1 + $0x18] sm:$0xff]
  %v527 = vld [vmem:[%s1 + $0x20] sm:$0xff]
  %v528 = vld [vmem:[%s1 + $0x28] sm:$0xff]
  %v529 = vld [vmem:[%s1 + $0x30] sm:$0xff]
  %v530 = vld [vmem:[%s1 + $0x38] sm:$0xff]
  %v531 = vld [vmem:[%s1 + $0x40] sm:$0xff]
  %v532 = vld [vmem:[%s1 + $0x48] sm:$0xff]
  %v533 = vld [vmem:[%s1 + $0x50] sm:$0xff]
  %v534 = vld [vmem:[%s1 + $0x58] sm:$0xff]
  %v535 = vld [vmem:[%s1 + $0x60] sm:$0xff]
  %v536 = vld [vmem:[%s1 + $0x68] sm:$0xff]
  %v537 = vld [vmem:[%s1 + $0x70] sm:$0xff]
  %v538 = vld [vmem:[%s1 + $0x78] sm:$0xff]
  %v539 = vld [vmem:[%s1 + $0x80] sm:$0xff]
  %v540 = vld [vmem:[%s1 + $0x88] sm:$0xff]
  %v541 = vld [vmem:[%s1 + $0x90] sm:$0xff]
  %v542 = vld [vmem:[%s1 + $0x98] sm:$0xff]
  %v543 = vld [vmem:[%s1 + $0xa0] sm:$0xff]
  %v544 = vld [vmem:[%s1 + $0xa8] sm:$0xff]
  %v545 = vld [vmem:[%s1 + $0xb0] sm:$0xff]
  %v546 = vld [vmem:[%s1 + $0xb8] sm:$0xff]
  %v547 = vld [vmem:[%s1 + $0xc0] sm:$0x3f]
  %v548 = vld [vmem:[%s1 + $0xc8] sm:$0x3f]
  %v549 = vld [vmem:[%s401] sm:$0xf]
  %v550 = vld [vmem:[%s101] sm:$0xff]
  %v551 = vld [vmem:[%s101 + $0x8] sm:$0xff]
  %v552 = vld [vmem:[%s101 + $0x10] sm:$0xff]
  %v553 = vld [vmem:[%s101 + $0x18] sm:$0xff]
  %v554 = vld [vmem:[%s101 + $0x20] sm:$0xff]
  %v555 = vld [vmem:[%s101 + $0x28] sm:$0xff]
  %v556 = vld [vmem:[%s101 + $0x30] sm:$0xff]
  %v557 = vld [vmem:[%s101 + $0x38] sm:$0xff]
  %v558 = vld [vmem:[%s101 + $0x40] sm:$0xff]
  %v559 = vld [vmem:[%s101 + $0x48] sm:$0xff]
  %v560 = vld [vmem:[%s101 + $0x50] sm:$0xff]
  %v561 = vld [vmem:[%s101 + $0x58] sm:$0xff]
  %v562 = vld [vmem:[%s101 + $0x60] sm:$0xff]
  %v563 = vld [vmem:[%s101 + $0x68] sm:$0xff]
  %v564 = vld [vmem:[%s101 + $0x70] sm:$0xff]
  %v565 = vld [vmem:[%s101 + $0x78] sm:$0xff]
  %v566 = vld [vmem:[%s101 + $0x80] sm:$0xff]
  %v567 = vld [vmem:[%s101 + $0x88] sm:$0xff]
  %v568 = vld [vmem:[%s101 + $0x90] sm:$0xff]
  %v569 = vld [vmem:[%s101 + $0x98] sm:$0xff]
  %v570 = vld [vmem:[%s101 + $0xa0] sm:$0xff]
  %v571 = vld [vmem:[%s101 + $0xa8] sm:$0xff]
  %v572 = vld [vmem:[%s101 + $0xb0] sm:$0xff]
  %v573 = vld [vmem:[%s101 + $0xb8] sm:$0xff]
  %v574 = vld [vmem:[%s101 + $0xc0] sm:$0x3f]
  %v575 = vld [vmem:[%s101 + $0xc8] sm:$0x3f]
  %v577 = vsel %vm128, %v549, 0
  %v580 = vsel %vm132, %v574, 0
  %v583 = vsel %vm132, %v575, 0
  %585 = vmatprep.subr.mxu0 %v551
  %586 = vmatpush1.msra.mxu0 %v550
  %587 = vmatprep.subr.mxu0 %v553
  %588 = vmatpush1.msra.mxu0 %v552
  %589 = vmatprep.subr.mxu0 %v555
  %590 = vmatpush1.msra.mxu0 %v554
  %591 = vmatprep.subr.mxu0 %v557
  %592 = vmatpush1.msra.mxu0 %v556
  %593 = vmatprep.subr.mxu0 %v559
  %594 = vmatpush1.msra.mxu0 %v558
  %595 = vmatprep.subr.mxu0 %v561
  %596 = vmatpush1.msra.mxu0 %v560
  %597 = vmatprep.subr.mxu0 %v563
  %598 = vmatpush1.msra.mxu0 %v562
  %599 = vmatprep.subr.mxu0 %v565
  %600 = vmatpush1.msra.mxu0 %v564
  %601 = vmatprep.subr.mxu0 %v567
  %602 = vmatpush1.msra.mxu0 %v566
  %603 = vmatprep.subr.mxu0 %v569
  %604 = vmatpush1.msra.mxu0 %v568
  %605 = vmatprep.subr.mxu0 %v571
  %606 = vmatpush1.msra.mxu0 %v570
  %607 = vmatprep.subr.mxu0 %v573
  %608 = vmatpush1.msra.mxu0 %v572
  %609 = vmatprep.subr.mxu0 %v583
  %610 = vmatpush1.msra.mxu0 %v580
  %611 = vmatprep.subr.mxu0 0.0
  %612 = vmatpush1.msra.mxu0 0.0
  %613 = vmatprep.subr.mxu0 0.0
  %614 = vmatpush1.msra.mxu0 0.0
  %615 = vmatprep.subr.mxu0 0.0
  %616 = vmatpush1.msra.mxu0 0.0
  %617 = vmatprep.subr.mxu0 0.0
  %618 = vmatpush1.msra.mxu0 0.0
  %619 = vmatprep.subr.mxu0 0.0
  %620 = vmatpush1.msra.mxu0 0.0
  %621 = vmatprep.subr.mxu0 0.0
  %622 = vmatpush1.msra.mxu0 0.0
  %623 = vmatprep.subr.mxu0 0.0
  %624 = vmatpush1.msra.mxu0 0.0
  %625 = vmatprep.subr.mxu0 0.0
  %626 = vmatpush1.msra.mxu0 0.0
  %627 = vmatprep.subr.mxu0 0.0
  %628 = vmatpush1.msra.mxu0 0.0
  %629 = vmatprep.subr.mxu0 0.0
  %630 = vmatpush1.msra.mxu0 0.0
  %631 = vmatprep.subr.mxu0 0.0
  %632 = vmatpush1.msra.mxu0 0.0
  %633 = vmatprep.subr.mxu0 0.0
  %634 = vmatpush1.msra.mxu0 0.0
  %635 = vmatprep.subr.mxu0 0.0
  %636 = vmatpush1.msra.mxu0 0.0
  %637 = vmatprep.subr.mxu0 0.0
  %638 = vmatpush1.msra.mxu0 0.0
  %639 = vmatprep.subr.mxu0 0.0
  %640 = vmatpush1.msra.mxu0 0.0
  %641 = vmatprep.subr.mxu0 0.0
  %642 = vmatpush1.msra.mxu0 0.0
  %643 = vmatprep.subr.mxu0 0.0
  %644 = vmatpush1.msra.mxu0 0.0
  %645 = vmatprep.subr.mxu0 0.0
  %646 = vmatpush1.msra.mxu0 0.0
  %647 = vmatprep.subr.mxu0 0.0
  %648 = vmatpush1.msra.mxu0 0.0
  %649 = vmatprep.mubr.f32.mxu0 0.0
  %650 = vmatmul.mubr.f32.gmra.mrb[0].mxu0 %v577
  %v651 = vpop.f32.mrb[0].mxu0
  %v652 = vadd.f32 0.0, %v651
  %v653 = vpop.f32.mrb[0].mxu0
  %v654 = vadd.f32 0.0, %v653
  %655 = vdwg.mxu0
  %v657 = vsel %vm128, %v522, 0
  %v660 = vsel %vm132, %v547, 0
  %v663 = vsel %vm132, %v548, 0
  %665 = vmatprep.subr.mxu0 %v524
  %666 = vmatpush1.msra.mxu0 %v523
  %667 = vmatprep.subr.mxu0 %v526
  %668 = vmatpush1.msra.mxu0 %v525
  %669 = vmatprep.subr.mxu0 %v528
  %670 = vmatpush1.msra.mxu0 %v527
  %671 = vmatprep.subr.mxu0 %v530
  %672 = vmatpush1.msra.mxu0 %v529
  %673 = vmatprep.subr.mxu0 %v532
  %674 = vmatpush1.msra.mxu0 %v531
  %675 = vmatprep.subr.mxu0 %v534
  %676 = vmatpush1.msra.mxu0 %v533
  %677 = vmatprep.subr.mxu0 %v536
  %678 = vmatpush1.msra.mxu0 %v535
  %679 = vmatprep.subr.mxu0 %v538
  %680 = vmatpush1.msra.mxu0 %v537
  %681 = vmatprep.subr.mxu0 %v540
  %682 = vmatpush1.msra.mxu0 %v539
  %683 = vmatprep.subr.mxu0 %v542
  %684 = vmatpush1.msra.mxu0 %v541
  %685 = vmatprep.subr.mxu0 %v544
  %686 = vmatpush1.msra.mxu0 %v543
  %687 = vmatprep.subr.mxu0 %v546
  %688 = vmatpush1.msra.mxu0 %v545
  %689 = vmatprep.subr.mxu0 %v663
  %690 = vmatpush1.msra.mxu0 %v660
  %691 = vmatprep.subr.mxu0 0.0
  %692 = vmatpush1.msra.mxu0 0.0
  %693 = vmatprep.subr.mxu0 0.0
  %694 = vmatpush1.msra.mxu0 0.0
  %695 = vmatprep.subr.mxu0 0.0
  %696 = vmatpush1.msra.mxu0 0.0
  %697 = vmatprep.subr.mxu0 0.0
  %698 = vmatpush1.msra.mxu0 0.0
  %699 = vmatprep.subr.mxu0 0.0
  %700 = vmatpush1.msra.mxu0 0.0
  %701 = vmatprep.subr.mxu0 0.0
  %702 = vmatpush1.msra.mxu0 0.0
  %703 = vmatprep.subr.mxu0 0.0
  %704 = vmatpush1.msra.mxu0 0.0
  %705 = vmatprep.subr.mxu0 0.0
  %706 = vmatpush1.msra.mxu0 0.0
  %707 = vmatprep.subr.mxu0 0.0
  %708 = vmatpush1.msra.mxu0 0.0
  %709 = vmatprep.subr.mxu0 0.0
  %710 = vmatpush1.msra.mxu0 0.0
  %711 = vmatprep.subr.mxu0 0.0
  %712 = vmatpush1.msra.mxu0 0.0
  %713 = vmatprep.subr.mxu0 0.0
  %714 = vmatpush1.msra.mxu0 0.0
  %715 = vmatprep.subr.mxu0 0.0
  %716 = vmatpush1.msra.mxu0 0.0
  %717 = vmatprep.subr.mxu0 0.0
  %718 = vmatpush1.msra.mxu0 0.0
  %719 = vmatprep.subr.mxu0 0.0
  %720 = vmatpush1.msra.mxu0 0.0
  %721 = vmatprep.subr.mxu0 0.0
  %722 = vmatpush1.msra.mxu0 0.0
  %723 = vmatprep.subr.mxu0 0.0
  %724 = vmatpush1.msra.mxu0 0.0
  %725 = vmatprep.subr.mxu0 0.0
  %726 = vmatpush1.msra.mxu0 0.0
  %727 = vmatprep.subr.mxu0 0.0
  %728 = vmatpush1.msra.mxu0 0.0
  %729 = vmatprep.mubr.f32.mxu0 0.0
  %730 = vmatmul.mubr.f32.gmra.mrb[0].mxu0 %v657
  %v731 = vpop.f32.mrb[0].mxu0
  %v732 = vadd.f32 %v652, %v731
  %v733 = vpop.f32.mrb[0].mxu0
  %v734 = vadd.f32 %v654, %v733
  %735 = vdwg.mxu0
  %s736 = scalar_lea.vmem %s0, 64
  %v737 = vld [vmem:[%s736] sm:$0xf]
  %v738 = vld [vmem:[%s292] sm:$0xff]
  %v739 = vld [vmem:[%s292 + $0x8] sm:$0xff]
  %v740 = vld [vmem:[%s292 + $0x10] sm:$0xff]
  %v741 = vld [vmem:[%s292 + $0x18] sm:$0xff]
  %v742 = vld [vmem:[%s292 + $0x20] sm:$0xff]
  %v743 = vld [vmem:[%s292 + $0x28] sm:$0xff]
  %v744 = vld [vmem:[%s292 + $0x30] sm:$0xff]
  %v745 = vld [vmem:[%s292 + $0x38] sm:$0xff]
  %v746 = vld [vmem:[%s292 + $0x40] sm:$0xff]
  %v747 = vld [vmem:[%s292 + $0x48] sm:$0xff]
  %v748 = vld [vmem:[%s292 + $0x50] sm:$0xff]
  %v749 = vld [vmem:[%s292 + $0x58] sm:$0xff]
  %v750 = vld [vmem:[%s292 + $0x60] sm:$0xff]
  %v751 = vld [vmem:[%s292 + $0x68] sm:$0xff]
  %v752 = vld [vmem:[%s292 + $0x70] sm:$0xff]
  %v753 = vld [vmem:[%s292 + $0x78] sm:$0xff]
  %v754 = vld [vmem:[%s292 + $0x80] sm:$0xff]
  %v755 = vld [vmem:[%s292 + $0x88] sm:$0xff]
  %v756 = vld [vmem:[%s292 + $0x90] sm:$0xff]
  %v757 = vld [vmem:[%s292 + $0x98] sm:$0xff]
  %v758 = vld [vmem:[%s292 + $0xa0] sm:$0xff]
  %v759 = vld [vmem:[%s292 + $0xa8] sm:$0xff]
  %v760 = vld [vmem:[%s292 + $0xb0] sm:$0xff]
  %v761 = vld [vmem:[%s292 + $0xb8] sm:$0xff]
  %v762 = vld [vmem:[%s292 + $0xc0] sm:$0x3f]
  %v763 = vld [vmem:[%s292 + $0xc8] sm:$0x3f]
  %v765 = vsel %vm128, %v737, 0
  %v768 = vsel %vm132, %v762, 0
  %v771 = vsel %vm132, %v763, 0
  %773 = vmatprep.subr.mxu0 %v739
  %774 = vmatpush1.msra.mxu0 %v738
  %775 = vmatprep.subr.mxu0 %v741
  %776 = vmatpush1.msra.mxu0 %v740
  %777 = vmatprep.subr.mxu0 %v743
  %778 = vmatpush1.msra.mxu0 %v742
  %779 = vmatprep.subr.mxu0 %v745
  %780 = vmatpush1.msra.mxu0 %v744
  %781 = vmatprep.subr.mxu0 %v747
  %782 = vmatpush1.msra.mxu0 %v746
  %783 = vmatprep.subr.mxu0 %v749
  %784 = vmatpush1.msra.mxu0 %v748
  %785 = vmatprep.subr.mxu0 %v751
  %786 = vmatpush1.msra.mxu0 %v750
  %787 = vmatprep.subr.mxu0 %v753
  %788 = vmatpush1.msra.mxu0 %v752
  %789 = vmatprep.subr.mxu0 %v755
  %790 = vmatpush1.msra.mxu0 %v754
  %791 = vmatprep.subr.mxu0 %v757
  %792 = vmatpush1.msra.mxu0 %v756
  %793 = vmatprep.subr.mxu0 %v759
  %794 = vmatpush1.msra.mxu0 %v758
  %795 = vmatprep.subr.mxu0 %v761
  %796 = vmatpush1.msra.mxu0 %v760
  %797 = vmatprep.subr.mxu0 %v771
  %798 = vmatpush1.msra.mxu0 %v768
  %799 = vmatprep.subr.mxu0 0.0
  %800 = vmatpush1.msra.mxu0 0.0
  %801 = vmatprep.subr.mxu0 0.0
  %802 = vmatpush1.msra.mxu0 0.0
  %803 = vmatprep.subr.mxu0 0.0
  %804 = vmatpush1.msra.mxu0 0.0
  %805 = vmatprep.subr.mxu0 0.0
  %806 = vmatpush1.msra.mxu0 0.0
  %807 = vmatprep.subr.mxu0 0.0
  %808 = vmatpush1.msra.mxu0 0.0
  %809 = vmatprep.subr.mxu0 0.0
  %810 = vmatpush1.msra.mxu0 0.0
  %811 = vmatprep.subr.mxu0 0.0
  %812 = vmatpush1.msra.mxu0 0.0
  %813 = vmatprep.subr.mxu0 0.0
  %814 = vmatpush1.msra.mxu0 0.0
  %815 = vmatprep.subr.mxu0 0.0
  %816 = vmatpush1.msra.mxu0 0.0
  %817 = vmatprep.subr.mxu0 0.0
  %818 = vmatpush1.msra.mxu0 0.0
  %819 = vmatprep.subr.mxu0 0.0
  %820 = vmatpush1.msra.mxu0 0.0
  %821 = vmatprep.subr.mxu0 0.0
  %822 = vmatpush1.msra.mxu0 0.0
  %823 = vmatprep.subr.mxu0 0.0
  %824 = vmatpush1.msra.mxu0 0.0
  %825 = vmatprep.subr.mxu0 0.0
  %826 = vmatpush1.msra.mxu0 0.0
  %827 = vmatprep.subr.mxu0 0.0
  %828 = vmatpush1.msra.mxu0 0.0
  %829 = vmatprep.subr.mxu0 0.0
  %830 = vmatpush1.msra.mxu0 0.0
  %831 = vmatprep.subr.mxu0 0.0
  %832 = vmatpush1.msra.mxu0 0.0
  %833 = vmatprep.subr.mxu0 0.0
  %834 = vmatpush1.msra.mxu0 0.0
  %835 = vmatprep.subr.mxu0 0.0
  %836 = vmatpush1.msra.mxu0 0.0
  %837 = vmatprep.mubr.f32.mxu0 0.0
  %838 = vmatmul.mubr.f32.gmra.mrb[0].mxu0 %v765
  %v839 = vpop.f32.mrb[0].mxu0
  %v840 = vadd.f32 0.0, %v839
  %v841 = vpop.f32.mrb[0].mxu0
  %v842 = vadd.f32 0.0, %v841
  %843 = vdwg.mxu0
  %v844 = vadd.f32 %v732, %v840
  %v845 = vadd.f32 %v734, %v842
  %s846 = scalar_lea.vmem %s0, 80
  %v847 = vld [vmem:[%s846] sm:$0xf]
  %v848 = vld [vmem:[%s403] sm:$0xff]
  %v849 = vld [vmem:[%s403 + $0x8] sm:$0xff]
  %v850 = vld [vmem:[%s403 + $0x10] sm:$0xff]
  %v851 = vld [vmem:[%s403 + $0x18] sm:$0xff]
  %v852 = vld [vmem:[%s403 + $0x20] sm:$0xff]
  %v853 = vld [vmem:[%s403 + $0x28] sm:$0xff]
  %v854 = vld [vmem:[%s403 + $0x30] sm:$0xff]
  %v855 = vld [vmem:[%s403 + $0x38] sm:$0xff]
  %v856 = vld [vmem:[%s403 + $0x40] sm:$0xff]
  %v857 = vld [vmem:[%s403 + $0x48] sm:$0xff]
  %v858 = vld [vmem:[%s403 + $0x50] sm:$0xff]
  %v859 = vld [vmem:[%s403 + $0x58] sm:$0xff]
  %v860 = vld [vmem:[%s403 + $0x60] sm:$0xff]
  %v861 = vld [vmem:[%s403 + $0x68] sm:$0xff]
  %v862 = vld [vmem:[%s403 + $0x70] sm:$0xff]
  %v863 = vld [vmem:[%s403 + $0x78] sm:$0xff]
  %v864 = vld [vmem:[%s403 + $0x80] sm:$0xff]
  %v865 = vld [vmem:[%s403 + $0x88] sm:$0xff]
  %v866 = vld [vmem:[%s403 + $0x90] sm:$0xff]
  %v867 = vld [vmem:[%s403 + $0x98] sm:$0xff]
  %v868 = vld [vmem:[%s403 + $0xa0] sm:$0xff]
  %v869 = vld [vmem:[%s403 + $0xa8] sm:$0xff]
  %v870 = vld [vmem:[%s403 + $0xb0] sm:$0xff]
  %v871 = vld [vmem:[%s403 + $0xb8] sm:$0xff]
  %v872 = vld [vmem:[%s403 + $0xc0] sm:$0x3f]
  %v873 = vld [vmem:[%s403 + $0xc8] sm:$0x3f]
  %v875 = vsel %vm128, %v847, 0
  %v878 = vsel %vm132, %v872, 0
  %v881 = vsel %vm132, %v873, 0
  %883 = vmatprep.subr.mxu0 %v849
  %884 = vmatpush1.msra.mxu0 %v848
  %885 = vmatprep.subr.mxu0 %v851
  %886 = vmatpush1.msra.mxu0 %v850
  %887 = vmatprep.subr.mxu0 %v853
  %888 = vmatpush1.msra.mxu0 %v852
  %889 = vmatprep.subr.mxu0 %v855
  %890 = vmatpush1.msra.mxu0 %v854
  %891 = vmatprep.subr.mxu0 %v857
  %892 = vmatpush1.msra.mxu0 %v856
  %893 = vmatprep.subr.mxu0 %v859
  %894 = vmatpush1.msra.mxu0 %v858
  %895 = vmatprep.subr.mxu0 %v861
  %896 = vmatpush1.msra.mxu0 %v860
  %897 = vmatprep.subr.mxu0 %v863
  %898 = vmatpush1.msra.mxu0 %v862
  %899 = vmatprep.subr.mxu0 %v865
  %900 = vmatpush1.msra.mxu0 %v864
  %901 = vmatprep.subr.mxu0 %v867
  %902 = vmatpush1.msra.mxu0 %v866
  %903 = vmatprep.subr.mxu0 %v869
  %904 = vmatpush1.msra.mxu0 %v868
  %905 = vmatprep.subr.mxu0 %v871
  %906 = vmatpush1.msra.mxu0 %v870
  %907 = vmatprep.subr.mxu0 %v881
  %908 = vmatpush1.msra.mxu0 %v878
  %909 = vmatprep.subr.mxu0 0.0
  %910 = vmatpush1.msra.mxu0 0.0
  %911 = vmatprep.subr.mxu0 0.0
  %912 = vmatpush1.msra.mxu0 0.0
  %913 = vmatprep.subr.mxu0 0.0
  %914 = vmatpush1.msra.mxu0 0.0
  %915 = vmatprep.subr.mxu0 0.0
  %916 = vmatpush1.msra.mxu0 0.0
  %917 = vmatprep.subr.mxu0 0.0
  %918 = vmatpush1.msra.mxu0 0.0
  %919 = vmatprep.subr.mxu0 0.0
  %920 = vmatpush1.msra.mxu0 0.0
  %921 = vmatprep.subr.mxu0 0.0
  %922 = vmatpush1.msra.mxu0 0.0
  %923 = vmatprep.subr.mxu0 0.0
  %924 = vmatpush1.msra.mxu0 0.0
  %925 = vmatprep.subr.mxu0 0.0
  %926 = vmatpush1.msra.mxu0 0.0
  %927 = vmatprep.subr.mxu0 0.0
  %928 = vmatpush1.msra.mxu0 0.0
  %929 = vmatprep.subr.mxu0 0.0
  %930 = vmatpush1.msra.mxu0 0.0
  %931 = vmatprep.subr.mxu0 0.0
  %932 = vmatpush1.msra.mxu0 0.0
  %933 = vmatprep.subr.mxu0 0.0
  %934 = vmatpush1.msra.mxu0 0.0
  %935 = vmatprep.subr.mxu0 0.0
  %936 = vmatpush1.msra.mxu0 0.0
  %937 = vmatprep.subr.mxu0 0.0
  %938 = vmatpush1.msra.mxu0 0.0
  %939 = vmatprep.subr.mxu0 0.0
  %940 = vmatpush1.msra.mxu0 0.0
  %941 = vmatprep.subr.mxu0 0.0
  %942 = vmatpush1.msra.mxu0 0.0
  %943 = vmatprep.subr.mxu0 0.0
  %944 = vmatpush1.msra.mxu0 0.0
  %945 = vmatprep.subr.mxu0 0.0
  %946 = vmatpush1.msra.mxu0 0.0
  %947 = vmatprep.mubr.f32.mxu0 0.0
  %948 = vmatmul.mubr.f32.gmra.mrb[0].mxu0 %v875
  %v949 = vpop.f32.mrb[0].mxu0
  %v950 = vadd.f32 0.0, %v949
  %v951 = vpop.f32.mrb[0].mxu0
  %v952 = vadd.f32 0.0, %v951
  %953 = vdwg.mxu0
  %v954 = vadd.f32 %v844, %v950
  %v955 = vadd.f32 %v845, %v952
  %vm956 = vcmp.ge.f32.partialorder %v954, 0.0
  %vm957 = vcmp.ge.f32.partialorder %v955, 0.0
  %v958 = vmul.f32 %v954, 0.05
  %v959 = vmul.f32 %v955, 0.05
  %v960 = vsel %vm956, %v954, %v958
  %v961 = vsel %vm957, %v955, %v959
  %s962 = scalar_lea.vmem [#allocation2], 64
  %963 = vst [vmem:[%s962] sm:$0xf] %v960
  %964 = vst.msk [vmem:[%s962 + $0x8] sm:$0xf] %vm520, %v961
  %v965 = vld [vmem:[%s736] sm:$0xf]
  %v966 = vld [vmem:[%s1] sm:$0xff]
  %v967 = vld [vmem:[%s1 + $0x8] sm:$0xff]
  %v968 = vld [vmem:[%s1 + $0x10] sm:$0xff]
  %v969 = vld [vmem:[%s1 + $0x18] sm:$0xff]
  %v970 = vld [vmem:[%s1 + $0x20] sm:$0xff]
  %v971 = vld [vmem:[%s1 + $0x28] sm:$0xff]
  %v972 = vld [vmem:[%s1 + $0x30] sm:$0xff]
  %v973 = vld [vmem:[%s1 + $0x38] sm:$0xff]
  %v974 = vld [vmem:[%s1 + $0x40] sm:$0xff]
  %v975 = vld [vmem:[%s1 + $0x48] sm:$0xff]
  %v976 = vld [vmem:[%s1 + $0x50] sm:$0xff]
  %v977 = vld [vmem:[%s1 + $0x58] sm:$0xff]
  %v978 = vld [vmem:[%s1 + $0x60] sm:$0xff]
  %v979 = vld [vmem:[%s1 + $0x68] sm:$0xff]
  %v980 = vld [vmem:[%s1 + $0x70] sm:$0xff]
  %v981 = vld [vmem:[%s1 + $0x78] sm:$0xff]
  %v982 = vld [vmem:[%s1 + $0x80] sm:$0xff]
  %v983 = vld [vmem:[%s1 + $0x88] sm:$0xff]
  %v984 = vld [vmem:[%s1 + $0x90] sm:$0xff]
  %v985 = vld [vmem:[%s1 + $0x98] sm:$0xff]
  %v986 = vld [vmem:[%s1 + $0xa0] sm:$0xff]
  %v987 = vld [vmem:[%s1 + $0xa8] sm:$0xff]
  %v988 = vld [vmem:[%s1 + $0xb0] sm:$0xff]
  %v989 = vld [vmem:[%s1 + $0xb8] sm:$0xff]
  %v990 = vld [vmem:[%s1 + $0xc0] sm:$0x3f]
  %v991 = vld [vmem:[%s1 + $0xc8] sm:$0x3f]
  %v992 = vld [vmem:[%s846] sm:$0xf]
  %v993 = vld [vmem:[%s101] sm:$0xff]
  %v994 = vld [vmem:[%s101 + $0x8] sm:$0xff]
  %v995 = vld [vmem:[%s101 + $0x10] sm:$0xff]
  %v996 = vld [vmem:[%s101 + $0x18] sm:$0xff]
  %v997 = vld [vmem:[%s101 + $0x20] sm:$0xff]
  %v998 = vld [vmem:[%s101 + $0x28] sm:$0xff]
  %v999 = vld [vmem:[%s101 + $0x30] sm:$0xff]
  %v1000 = vld [vmem:[%s101 + $0x38] sm:$0xff]
  %v1001 = vld [vmem:[%s101 + $0x40] sm:$0xff]
  %v1002 = vld [vmem:[%s101 + $0x48] sm:$0xff]
  %v1003 = vld [vmem:[%s101 + $0x50] sm:$0xff]
  %v1004 = vld [vmem:[%s101 + $0x58] sm:$0xff]
  %v1005 = vld [vmem:[%s101 + $0x60] sm:$0xff]
  %v1006 = vld [vmem:[%s101 + $0x68] sm:$0xff]
  %v1007 = vld [vmem:[%s101 + $0x70] sm:$0xff]
  %v1008 = vld [vmem:[%s101 + $0x78] sm:$0xff]
  %v1009 = vld [vmem:[%s101 + $0x80] sm:$0xff]
  %v1010 = vld [vmem:[%s101 + $0x88] sm:$0xff]
  %v1011 = vld [vmem:[%s101 + $0x90] sm:$0xff]
  %v1012 = vld [vmem:[%s101 + $0x98] sm:$0xff]
  %v1013 = vld [vmem:[%s101 + $0xa0] sm:$0xff]
  %v1014 = vld [vmem:[%s101 + $0xa8] sm:$0xff]
  %v1015 = vld [vmem:[%s101 + $0xb0] sm:$0xff]
  %v1016 = vld [vmem:[%s101 + $0xb8] sm:$0xff]
  %v1017 = vld [vmem:[%s101 + $0xc0] sm:$0x3f]
  %v1018 = vld [vmem:[%s101 + $0xc8] sm:$0x3f]
  %v1020 = vsel %vm128, %v992, 0
  %v1023 = vsel %vm132, %v1017, 0
  %v1026 = vsel %vm132, %v1018, 0
  %1028 = vmatprep.subr.mxu0 %v994
  %1029 = vmatpush1.msra.mxu0 %v993
  %1030 = vmatprep.subr.mxu0 %v996
  %1031 = vmatpush1.msra.mxu0 %v995
  %1032 = vmatprep.subr.mxu0 %v998
  %1033 = vmatpush1.msra.mxu0 %v997
  %1034 = vmatprep.subr.mxu0 %v1000
  %1035 = vmatpush1.msra.mxu0 %v999
  %1036 = vmatprep.subr.mxu0 %v1002
  %1037 = vmatpush1.msra.mxu0 %v1001
  %1038 = vmatprep.subr.mxu0 %v1004
  %1039 = vmatpush1.msra.mxu0 %v1003
  %1040 = vmatprep.subr.mxu0 %v1006
  %1041 = vmatpush1.msra.mxu0 %v1005
  %1042 = vmatprep.subr.mxu0 %v1008
  %1043 = vmatpush1.msra.mxu0 %v1007
  %1044 = vmatprep.subr.mxu0 %v1010
  %1045 = vmatpush1.msra.mxu0 %v1009
  %1046 = vmatprep.subr.mxu0 %v1012
  %1047 = vmatpush1.msra.mxu0 %v1011
  %1048 = vmatprep.subr.mxu0 %v1014
  %1049 = vmatpush1.msra.mxu0 %v1013
  %1050 = vmatprep.subr.mxu0 %v1016
  %1051 = vmatpush1.msra.mxu0 %v1015
  %1052 = vmatprep.subr.mxu0 %v1026
  %1053 = vmatpush1.msra.mxu0 %v1023
  %1054 = vmatprep.subr.mxu0 0.0
  %1055 = vmatpush1.msra.mxu0 0.0
  %1056 = vmatprep.subr.mxu0 0.0
  %1057 = vmatpush1.msra.mxu0 0.0
  %1058 = vmatprep.subr.mxu0 0.0
  %1059 = vmatpush1.msra.mxu0 0.0
  %1060 = vmatprep.subr.mxu0 0.0
  %1061 = vmatpush1.msra.mxu0 0.0
  %1062 = vmatprep.subr.mxu0 0.0
  %1063 = vmatpush1.msra.mxu0 0.0
  %1064 = vmatprep.subr.mxu0 0.0
  %1065 = vmatpush1.msra.mxu0 0.0
  %1066 = vmatprep.subr.mxu0 0.0
  %1067 = vmatpush1.msra.mxu0 0.0
  %1068 = vmatprep.subr.mxu0 0.0
  %1069 = vmatpush1.msra.mxu0 0.0
  %1070 = vmatprep.subr.mxu0 0.0
  %1071 = vmatpush1.msra.mxu0 0.0
  %1072 = vmatprep.subr.mxu0 0.0
  %1073 = vmatpush1.msra.mxu0 0.0
  %1074 = vmatprep.subr.mxu0 0.0
  %1075 = vmatpush1.msra.mxu0 0.0
  %1076 = vmatprep.subr.mxu0 0.0
  %1077 = vmatpush1.msra.mxu0 0.0
  %1078 = vmatprep.subr.mxu0 0.0
  %1079 = vmatpush1.msra.mxu0 0.0
  %1080 = vmatprep.subr.mxu0 0.0
  %1081 = vmatpush1.msra.mxu0 0.0
  %1082 = vmatprep.subr.mxu0 0.0
  %1083 = vmatpush1.msra.mxu0 0.0
  %1084 = vmatprep.subr.mxu0 0.0
  %1085 = vmatpush1.msra.mxu0 0.0
  %1086 = vmatprep.subr.mxu0 0.0
  %1087 = vmatpush1.msra.mxu0 0.0
  %1088 = vmatprep.subr.mxu0 0.0
  %1089 = vmatpush1.msra.mxu0 0.0
  %1090 = vmatprep.subr.mxu0 0.0
  %1091 = vmatpush1.msra.mxu0 0.0
  %1092 = vmatprep.mubr.f32.mxu0 0.0
  %1093 = vmatmul.mubr.f32.gmra.mrb[0].mxu0 %v1020
  %v1094 = vpop.f32.mrb[0].mxu0
  %v1095 = vadd.f32 0.0, %v1094
  %v1096 = vpop.f32.mrb[0].mxu0
  %v1097 = vadd.f32 0.0, %v1096
  %1098 = vdwg.mxu0
  %v1100 = vsel %vm128, %v965, 0
  %v1103 = vsel %vm132, %v990, 0
  %v1106 = vsel %vm132, %v991, 0
  %1108 = vmatprep.subr.mxu0 %v967
  %1109 = vmatpush1.msra.mxu0 %v966
  %1110 = vmatprep.subr.mxu0 %v969
  %1111 = vmatpush1.msra.mxu0 %v968
  %1112 = vmatprep.subr.mxu0 %v971
  %1113 = vmatpush1.msra.mxu0 %v970
  %1114 = vmatprep.subr.mxu0 %v973
  %1115 = vmatpush1.msra.mxu0 %v972
  %1116 = vmatprep.subr.mxu0 %v975
  %1117 = vmatpush1.msra.mxu0 %v974
  %1118 = vmatprep.subr.mxu0 %v977
  %1119 = vmatpush1.msra.mxu0 %v976
  %1120 = vmatprep.subr.mxu0 %v979
  %1121 = vmatpush1.msra.mxu0 %v978
  %1122 = vmatprep.subr.mxu0 %v981
  %1123 = vmatpush1.msra.mxu0 %v980
  %1124 = vmatprep.subr.mxu0 %v983
  %1125 = vmatpush1.msra.mxu0 %v982
  %1126 = vmatprep.subr.mxu0 %v985
  %1127 = vmatpush1.msra.mxu0 %v984
  %1128 = vmatprep.subr.mxu0 %v987
  %1129 = vmatpush1.msra.mxu0 %v986
  %1130 = vmatprep.subr.mxu0 %v989
  %1131 = vmatpush1.msra.mxu0 %v988
  %1132 = vmatprep.subr.mxu0 %v1106
  %1133 = vmatpush1.msra.mxu0 %v1103
  %1134 = vmatprep.subr.mxu0 0.0
  %1135 = vmatpush1.msra.mxu0 0.0
  %1136 = vmatprep.subr.mxu0 0.0
  %1137 = vmatpush1.msra.mxu0 0.0
  %1138 = vmatprep.subr.mxu0 0.0
  %1139 = vmatpush1.msra.mxu0 0.0
  %1140 = vmatprep.subr.mxu0 0.0
  %1141 = vmatpush1.msra.mxu0 0.0
  %1142 = vmatprep.subr.mxu0 0.0
  %1143 = vmatpush1.msra.mxu0 0.0
  %1144 = vmatprep.subr.mxu0 0.0
  %1145 = vmatpush1.msra.mxu0 0.0
  %1146 = vmatprep.subr.mxu0 0.0
  %1147 = vmatpush1.msra.mxu0 0.0
  %1148 = vmatprep.subr.mxu0 0.0
  %1149 = vmatpush1.msra.mxu0 0.0
  %1150 = vmatprep.subr.mxu0 0.0
  %1151 = vmatpush1.msra.mxu0 0.0
  %1152 = vmatprep.subr.mxu0 0.0
  %1153 = vmatpush1.msra.mxu0 0.0
  %1154 = vmatprep.subr.mxu0 0.0
  %1155 = vmatpush1.msra.mxu0 0.0
  %1156 = vmatprep.subr.mxu0 0.0
  %1157 = vmatpush1.msra.mxu0 0.0
  %1158 = vmatprep.subr.mxu0 0.0
  %1159 = vmatpush1.msra.mxu0 0.0
  %1160 = vmatprep.subr.mxu0 0.0
  %1161 = vmatpush1.msra.mxu0 0.0
  %1162 = vmatprep.subr.mxu0 0.0
  %1163 = vmatpush1.msra.mxu0 0.0
  %1164 = vmatprep.subr.mxu0 0.0
  %1165 = vmatpush1.msra.mxu0 0.0
  %1166 = vmatprep.subr.mxu0 0.0
  %1167 = vmatpush1.msra.mxu0 0.0
  %1168 = vmatprep.subr.mxu0 0.0
  %1169 = vmatpush1.msra.mxu0 0.0
  %1170 = vmatprep.subr.mxu0 0.0
  %1171 = vmatpush1.msra.mxu0 0.0
  %1172 = vmatprep.mubr.f32.mxu0 0.0
  %1173 = vmatmul.mubr.f32.gmra.mrb[0].mxu0 %v1100
  %v1174 = vpop.f32.mrb[0].mxu0
  %v1175 = vadd.f32 %v1095, %v1174
  %v1176 = vpop.f32.mrb[0].mxu0
  %v1177 = vadd.f32 %v1097, %v1176
  %1178 = vdwg.mxu0
  %s1179 = scalar_lea.vmem %s0, 96
  %v1180 = vld [vmem:[%s1179] sm:$0xf]
  %v1181 = vld [vmem:[%s292] sm:$0xff]
  %v1182 = vld [vmem:[%s292 + $0x8] sm:$0xff]
  %v1183 = vld [vmem:[%s292 + $0x10] sm:$0xff]
  %v1184 = vld [vmem:[%s292 + $0x18] sm:$0xff]
  %v1185 = vld [vmem:[%s292 + $0x20] sm:$0xff]
  %v1186 = vld [vmem:[%s292 + $0x28] sm:$0xff]
  %v1187 = vld [vmem:[%s292 + $0x30] sm:$0xff]
  %v1188 = vld [vmem:[%s292 + $0x38] sm:$0xff]
  %v1189 = vld [vmem:[%s292 + $0x40] sm:$0xff]
  %v1190 = vld [vmem:[%s292 + $0x48] sm:$0xff]
  %v1191 = vld [vmem:[%s292 + $0x50] sm:$0xff]
  %v1192 = vld [vmem:[%s292 + $0x58] sm:$0xff]
  %v1193 = vld [vmem:[%s292 + $0x60] sm:$0xff]
  %v1194 = vld [vmem:[%s292 + $0x68] sm:$0xff]
  %v1195 = vld [vmem:[%s292 + $0x70] sm:$0xff]
  %v1196 = vld [vmem:[%s292 + $0x78] sm:$0xff]
  %v1197 = vld [vmem:[%s292 + $0x80] sm:$0xff]
  %v1198 = vld [vmem:[%s292 + $0x88] sm:$0xff]
  %v1199 = vld [vmem:[%s292 + $0x90] sm:$0xff]
  %v1200 = vld [vmem:[%s292 + $0x98] sm:$0xff]
  %v1201 = vld [vmem:[%s292 + $0xa0] sm:$0xff]
  %v1202 = vld [vmem:[%s292 + $0xa8] sm:$0xff]
  %v1203 = vld [vmem:[%s292 + $0xb0] sm:$0xff]
  %v1204 = vld [vmem:[%s292 + $0xb8] sm:$0xff]
  %v1205 = vld [vmem:[%s292 + $0xc0] sm:$0x3f]
  %v1206 = vld [vmem:[%s292 + $0xc8] sm:$0x3f]
  %v1208 = vsel %vm128, %v1180, 0
  %v1211 = vsel %vm132, %v1205, 0
  %v1214 = vsel %vm132, %v1206, 0
  %1216 = vmatprep.subr.mxu0 %v1182
  %1217 = vmatpush1.msra.mxu0 %v1181
  %1218 = vmatprep.subr.mxu0 %v1184
  %1219 = vmatpush1.msra.mxu0 %v1183
  %1220 = vmatprep.subr.mxu0 %v1186
  %1221 = vmatpush1.msra.mxu0 %v1185
  %1222 = vmatprep.subr.mxu0 %v1188
  %1223 = vmatpush1.msra.mxu0 %v1187
  %1224 = vmatprep.subr.mxu0 %v1190
  %1225 = vmatpush1.msra.mxu0 %v1189
  %1226 = vmatprep.subr.mxu0 %v1192
  %1227 = vmatpush1.msra.mxu0 %v1191
  %1228 = vmatprep.subr.mxu0 %v1194
  %1229 = vmatpush1.msra.mxu0 %v1193
  %1230 = vmatprep.subr.mxu0 %v1196
  %1231 = vmatpush1.msra.mxu0 %v1195
  %1232 = vmatprep.subr.mxu0 %v1198
  %1233 = vmatpush1.msra.mxu0 %v1197
  %1234 = vmatprep.subr.mxu0 %v1200
  %1235 = vmatpush1.msra.mxu0 %v1199
  %1236 = vmatprep.subr.mxu0 %v1202
  %1237 = vmatpush1.msra.mxu0 %v1201
  %1238 = vmatprep.subr.mxu0 %v1204
  %1239 = vmatpush1.msra.mxu0 %v1203
  %1240 = vmatprep.subr.mxu0 %v1214
  %1241 = vmatpush1.msra.mxu0 %v1211
  %1242 = vmatprep.subr.mxu0 0.0
  %1243 = vmatpush1.msra.mxu0 0.0
  %1244 = vmatprep.subr.mxu0 0.0
  %1245 = vmatpush1.msra.mxu0 0.0
  %1246 = vmatprep.subr.mxu0 0.0
  %1247 = vmatpush1.msra.mxu0 0.0
  %1248 = vmatprep.subr.mxu0 0.0
  %1249 = vmatpush1.msra.mxu0 0.0
  %1250 = vmatprep.subr.mxu0 0.0
  %1251 = vmatpush1.msra.mxu0 0.0
  %1252 = vmatprep.subr.mxu0 0.0
  %1253 = vmatpush1.msra.mxu0 0.0
  %1254 = vmatprep.subr.mxu0 0.0
  %1255 = vmatpush1.msra.mxu0 0.0
  %1256 = vmatprep.subr.mxu0 0.0
  %1257 = vmatpush1.msra.mxu0 0.0
  %1258 = vmatprep.subr.mxu0 0.0
  %1259 = vmatpush1.msra.mxu0 0.0
  %1260 = vmatprep.subr.mxu0 0.0
  %1261 = vmatpush1.msra.mxu0 0.0
  %1262 = vmatprep.subr.mxu0 0.0
  %1263 = vmatpush1.msra.mxu0 0.0
  %1264 = vmatprep.subr.mxu0 0.0
  %1265 = vmatpush1.msra.mxu0 0.0
  %1266 = vmatprep.subr.mxu0 0.0
  %1267 = vmatpush1.msra.mxu0 0.0
  %1268 = vmatprep.subr.mxu0 0.0
  %1269 = vmatpush1.msra.mxu0 0.0
  %1270 = vmatprep.subr.mxu0 0.0
  %1271 = vmatpush1.msra.mxu0 0.0
  %1272 = vmatprep.subr.mxu0 0.0
  %1273 = vmatpush1.msra.mxu0 0.0
  %1274 = vmatprep.subr.mxu0 0.0
  %1275 = vmatpush1.msra.mxu0 0.0
  %1276 = vmatprep.subr.mxu0 0.0
  %1277 = vmatpush1.msra.mxu0 0.0
  %1278 = vmatprep.subr.mxu0 0.0
  %1279 = vmatpush1.msra.mxu0 0.0
  %1280 = vmatprep.mubr.f32.mxu0 0.0
  %1281 = vmatmul.mubr.f32.gmra.mrb[0].mxu0 %v1208
  %v1282 = vpop.f32.mrb[0].mxu0
  %v1283 = vadd.f32 0.0, %v1282
  %v1284 = vpop.f32.mrb[0].mxu0
  %v1285 = vadd.f32 0.0, %v1284
  %1286 = vdwg.mxu0
  %v1287 = vadd.f32 %v1175, %v1283
  %v1288 = vadd.f32 %v1177, %v1285
  %s1289 = scalar_lea.vmem %s0, 112
  %v1290 = vld [vmem:[%s1289] sm:$0xf]
  %v1291 = vld [vmem:[%s403] sm:$0xff]
  %v1292 = vld [vmem:[%s403 + $0x8] sm:$0xff]
  %v1293 = vld [vmem:[%s403 + $0x10] sm:$0xff]
  %v1294 = vld [vmem:[%s403 + $0x18] sm:$0xff]
  %v1295 = vld [vmem:[%s403 + $0x20] sm:$0xff]
  %v1296 = vld [vmem:[%s403 + $0x28] sm:$0xff]
  %v1297 = vld [vmem:[%s403 + $0x30] sm:$0xff]
  %v1298 = vld [vmem:[%s403 + $0x38] sm:$0xff]
  %v1299 = vld [vmem:[%s403 + $0x40] sm:$0xff]
  %v1300 = vld [vmem:[%s403 + $0x48] sm:$0xff]
  %v1301 = vld [vmem:[%s403 + $0x50] sm:$0xff]
  %v1302 = vld [vmem:[%s403 + $0x58] sm:$0xff]
  %v1303 = vld [vmem:[%s403 + $0x60] sm:$0xff]
  %v1304 = vld [vmem:[%s403 + $0x68] sm:$0xff]
  %v1305 = vld [vmem:[%s403 + $0x70] sm:$0xff]
  %v1306 = vld [vmem:[%s403 + $0x78] sm:$0xff]
  %v1307 = vld [vmem:[%s403 + $0x80] sm:$0xff]
  %v1308 = vld [vmem:[%s403 + $0x88] sm:$0xff]
  %v1309 = vld [vmem:[%s403 + $0x90] sm:$0xff]
  %v1310 = vld [vmem:[%s403 + $0x98] sm:$0xff]
  %v1311 = vld [vmem:[%s403 + $0xa0] sm:$0xff]
  %v1312 = vld [vmem:[%s403 + $0xa8] sm:$0xff]
  %v1313 = vld [vmem:[%s403 + $0xb0] sm:$0xff]
  %v1314 = vld [vmem:[%s403 + $0xb8] sm:$0xff]
  %v1315 = vld [vmem:[%s403 + $0xc0] sm:$0x3f]
  %v1316 = vld [vmem:[%s403 + $0xc8] sm:$0x3f]
  %v1318 = vsel %vm128, %v1290, 0
  %v1321 = vsel %vm132, %v1315, 0
  %v1324 = vsel %vm132, %v1316, 0
  %1326 = vmatprep.subr.mxu0 %v1292
  %1327 = vmatpush1.msra.mxu0 %v1291
  %1328 = vmatprep.subr.mxu0 %v1294
  %1329 = vmatpush1.msra.mxu0 %v1293
  %1330 = vmatprep.subr.mxu0 %v1296
  %1331 = vmatpush1.msra.mxu0 %v1295
  %1332 = vmatprep.subr.mxu0 %v1298
  %1333 = vmatpush1.msra.mxu0 %v1297
  %1334 = vmatprep.subr.mxu0 %v1300
  %1335 = vmatpush1.msra.mxu0 %v1299
  %1336 = vmatprep.subr.mxu0 %v1302
  %1337 = vmatpush1.msra.mxu0 %v1301
  %1338 = vmatprep.subr.mxu0 %v1304
  %1339 = vmatpush1.msra.mxu0 %v1303
  %1340 = vmatprep.subr.mxu0 %v1306
  %1341 = vmatpush1.msra.mxu0 %v1305
  %1342 = vmatprep.subr.mxu0 %v1308
  %1343 = vmatpush1.msra.mxu0 %v1307
  %1344 = vmatprep.subr.mxu0 %v1310
  %1345 = vmatpush1.msra.mxu0 %v1309
  %1346 = vmatprep.subr.mxu0 %v1312
  %1347 = vmatpush1.msra.mxu0 %v1311
  %1348 = vmatprep.subr.mxu0 %v1314
  %1349 = vmatpush1.msra.mxu0 %v1313
  %1350 = vmatprep.subr.mxu0 %v1324
  %1351 = vmatpush1.msra.mxu0 %v1321
  %1352 = vmatprep.subr.mxu0 0.0
  %1353 = vmatpush1.msra.mxu0 0.0
  %1354 = vmatprep.subr.mxu0 0.0
  %1355 = vmatpush1.msra.mxu0 0.0
  %1356 = vmatprep.subr.mxu0 0.0
  %1357 = vmatpush1.msra.mxu0 0.0
  %1358 = vmatprep.subr.mxu0 0.0
  %1359 = vmatpush1.msra.mxu0 0.0
  %1360 = vmatprep.subr.mxu0 0.0
  %1361 = vmatpush1.msra.mxu0 0.0
  %1362 = vmatprep.subr.mxu0 0.0
  %1363 = vmatpush1.msra.mxu0 0.0
  %1364 = vmatprep.subr.mxu0 0.0
  %1365 = vmatpush1.msra.mxu0 0.0
  %1366 = vmatprep.subr.mxu0 0.0
  %1367 = vmatpush1.msra.mxu0 0.0
  %1368 = vmatprep.subr.mxu0 0.0
  %1369 = vmatpush1.msra.mxu0 0.0
  %1370 = vmatprep.subr.mxu0 0.0
  %1371 = vmatpush1.msra.mxu0 0.0
  %1372 = vmatprep.subr.mxu0 0.0
  %1373 = vmatpush1.msra.mxu0 0.0
  %1374 = vmatprep.subr.mxu0 0.0
  %1375 = vmatpush1.msra.mxu0 0.0
  %1376 = vmatprep.subr.mxu0 0.0
  %1377 = vmatpush1.msra.mxu0 0.0
  %1378 = vmatprep.subr.mxu0 0.0
  %1379 = vmatpush1.msra.mxu0 0.0
  %1380 = vmatprep.subr.mxu0 0.0
  %1381 = vmatpush1.msra.mxu0 0.0
  %1382 = vmatprep.subr.mxu0 0.0
  %1383 = vmatpush1.msra.mxu0 0.0
  %1384 = vmatprep.subr.mxu0 0.0
  %1385 = vmatpush1.msra.mxu0 0.0
  %1386 = vmatprep.subr.mxu0 0.0
  %1387 = vmatpush1.msra.mxu0 0.0
  %1388 = vmatprep.subr.mxu0 0.0
  %1389 = vmatpush1.msra.mxu0 0.0
  %1390 = vmatprep.mubr.f32.mxu0 0.0
  %1391 = vmatmul.mubr.f32.gmra.mrb[0].mxu0 %v1318
  %v1392 = vpop.f32.mrb[0].mxu0
  %v1393 = vadd.f32 0.0, %v1392
  %v1394 = vpop.f32.mrb[0].mxu0
  %v1395 = vadd.f32 0.0, %v1394
  %1396 = vdwg.mxu0
  %v1397 = vadd.f32 %v1287, %v1393
  %v1398 = vadd.f32 %v1288, %v1395
  %vm1399 = vcmp.ge.f32.partialorder %v1397, 0.0
  %vm1400 = vcmp.ge.f32.partialorder %v1398, 0.0
  %v1401 = vmul.f32 %v1397, 0.05
  %v1402 = vmul.f32 %v1398, 0.05
  %v1403 = vsel %vm1399, %v1397, %v1401
  %v1404 = vsel %vm1400, %v1398, %v1402
  %s1405 = scalar_lea.vmem [#allocation2], 96
  %1406 = vst [vmem:[%s1405] sm:$0xf] %v1403
  %1407 = vst.msk [vmem:[%s1405 + $0x8] sm:$0xf] %vm520, %v1404
  %v1408 = vld [vmem:[%s1179] sm:$0xf]
  %v1409 = vld [vmem:[%s1] sm:$0xff]
  %v1410 = vld [vmem:[%s1 + $0x8] sm:$0xff]
  %v1411 = vld [vmem:[%s1 + $0x10] sm:$0xff]
  %v1412 = vld [vmem:[%s1 + $0x18] sm:$0xff]
  %v1413 = vld [vmem:[%s1 + $0x20] sm:$0xff]
  %v1414 = vld [vmem:[%s1 + $0x28] sm:$0xff]
  %v1415 = vld [vmem:[%s1 + $0x30] sm:$0xff]
  %v1416 = vld [vmem:[%s1 + $0x38] sm:$0xff]
  %v1417 = vld [vmem:[%s1 + $0x40] sm:$0xff]
  %v1418 = vld [vmem:[%s1 + $0x48] sm:$0xff]
  %v1419 = vld [vmem:[%s1 + $0x50] sm:$0xff]
  %v1420 = vld [vmem:[%s1 + $0x58] sm:$0xff]
  %v1421 = vld [vmem:[%s1 + $0x60] sm:$0xff]
  %v1422 = vld [vmem:[%s1 + $0x68] sm:$0xff]
  %v1423 = vld [vmem:[%s1 + $0x70] sm:$0xff]
  %v1424 = vld [vmem:[%s1 + $0x78] sm:$0xff]
  %v1425 = vld [vmem:[%s1 + $0x80] sm:$0xff]
  %v1426 = vld [vmem:[%s1 + $0x88] sm:$0xff]
  %v1427 = vld [vmem:[%s1 + $0x90] sm:$0xff]
  %v1428 = vld [vmem:[%s1 + $0x98] sm:$0xff]
  %v1429 = vld [vmem:[%s1 + $0xa0] sm:$0xff]
  %v1430 = vld [vmem:[%s1 + $0xa8] sm:$0xff]
  %v1431 = vld [vmem:[%s1 + $0xb0] sm:$0xff]
  %v1432 = vld [vmem:[%s1 + $0xb8] sm:$0xff]
  %v1433 = vld [vmem:[%s1 + $0xc0] sm:$0x3f]
  %v1434 = vld [vmem:[%s1 + $0xc8] sm:$0x3f]
  %v1435 = vld [vmem:[%s1289] sm:$0xf]
  %v1436 = vld [vmem:[%s101] sm:$0xff]
  %v1437 = vld [vmem:[%s101 + $0x8] sm:$0xff]
  %v1438 = vld [vmem:[%s101 + $0x10] sm:$0xff]
  %v1439 = vld [vmem:[%s101 + $0x18] sm:$0xff]
  %v1440 = vld [vmem:[%s101 + $0x20] sm:$0xff]
  %v1441 = vld [vmem:[%s101 + $0x28] sm:$0xff]
  %v1442 = vld [vmem:[%s101 + $0x30] sm:$0xff]
  %v1443 = vld [vmem:[%s101 + $0x38] sm:$0xff]
  %v1444 = vld [vmem:[%s101 + $0x40] sm:$0xff]
  %v1445 = vld [vmem:[%s101 + $0x48] sm:$0xff]
  %v1446 = vld [vmem:[%s101 + $0x50] sm:$0xff]
  %v1447 = vld [vmem:[%s101 + $0x58] sm:$0xff]
  %v1448 = vld [vmem:[%s101 + $0x60] sm:$0xff]
  %v1449 = vld [vmem:[%s101 + $0x68] sm:$0xff]
  %v1450 = vld [vmem:[%s101 + $0x70] sm:$0xff]
  %v1451 = vld [vmem:[%s101 + $0x78] sm:$0xff]
  %v1452 = vld [vmem:[%s101 + $0x80] sm:$0xff]
  %v1453 = vld [vmem:[%s101 + $0x88] sm:$0xff]
  %v1454 = vld [vmem:[%s101 + $0x90] sm:$0xff]
  %v1455 = vld [vmem:[%s101 + $0x98] sm:$0xff]
  %v1456 = vld [vmem:[%s101 + $0xa0] sm:$0xff]
  %v1457 = vld [vmem:[%s101 + $0xa8] sm:$0xff]
  %v1458 = vld [vmem:[%s101 + $0xb0] sm:$0xff]
  %v1459 = vld [vmem:[%s101 + $0xb8] sm:$0xff]
  %v1460 = vld [vmem:[%s101 + $0xc0] sm:$0x3f]
  %v1461 = vld [vmem:[%s101 + $0xc8] sm:$0x3f]
  %v1463 = vsel %vm128, %v1435, 0
  %v1466 = vsel %vm132, %v1460, 0
  %v1469 = vsel %vm132, %v1461, 0
  %1471 = vmatprep.subr.mxu0 %v1437
  %1472 = vmatpush1.msra.mxu0 %v1436
  %1473 = vmatprep.subr.mxu0 %v1439
  %1474 = vmatpush1.msra.mxu0 %v1438
  %1475 = vmatprep.subr.mxu0 %v1441
  %1476 = vmatpush1.msra.mxu0 %v1440
  %1477 = vmatprep.subr.mxu0 %v1443
  %1478 = vmatpush1.msra.mxu0 %v1442
  %1479 = vmatprep.subr.mxu0 %v1445
  %1480 = vmatpush1.msra.mxu0 %v1444
  %1481 = vmatprep.subr.mxu0 %v1447
  %1482 = vmatpush1.msra.mxu0 %v1446
  %1483 = vmatprep.subr.mxu0 %v1449
  %1484 = vmatpush1.msra.mxu0 %v1448
  %1485 = vmatprep.subr.mxu0 %v1451
  %1486 = vmatpush1.msra.mxu0 %v1450
  %1487 = vmatprep.subr.mxu0 %v1453
  %1488 = vmatpush1.msra.mxu0 %v1452
  %1489 = vmatprep.subr.mxu0 %v1455
  %1490 = vmatpush1.msra.mxu0 %v1454
  %1491 = vmatprep.subr.mxu0 %v1457
  %1492 = vmatpush1.msra.mxu0 %v1456
  %1493 = vmatprep.subr.mxu0 %v1459
  %1494 = vmatpush1.msra.mxu0 %v1458
  %1495 = vmatprep.subr.mxu0 %v1469
  %1496 = vmatpush1.msra.mxu0 %v1466
  %1497 = vmatprep.subr.mxu0 0.0
  %1498 = vmatpush1.msra.mxu0 0.0
  %1499 = vmatprep.subr.mxu0 0.0
  %1500 = vmatpush1.msra.mxu0 0.0
  %1501 = vmatprep.subr.mxu0 0.0
  %1502 = vmatpush1.msra.mxu0 0.0
  %1503 = vmatprep.subr.mxu0 0.0
  %1504 = vmatpush1.msra.mxu0 0.0
  %1505 = vmatprep.subr.mxu0 0.0
  %1506 = vmatpush1.msra.mxu0 0.0
  %1507 = vmatprep.subr.mxu0 0.0
  %1508 = vmatpush1.msra.mxu0 0.0
  %1509 = vmatprep.subr.mxu0 0.0
  %1510 = vmatpush1.msra.mxu0 0.0
  %1511 = vmatprep.subr.mxu0 0.0
  %1512 = vmatpush1.msra.mxu0 0.0
  %1513 = vmatprep.subr.mxu0 0.0
  %1514 = vmatpush1.msra.mxu0 0.0
  %1515 = vmatprep.subr.mxu0 0.0
  %1516 = vmatpush1.msra.mxu0 0.0
  %1517 = vmatprep.subr.mxu0 0.0
  %1518 = vmatpush1.msra.mxu0 0.0
  %1519 = vmatprep.subr.mxu0 0.0
  %1520 = vmatpush1.msra.mxu0 0.0
  %1521 = vmatprep.subr.mxu0 0.0
  %1522 = vmatpush1.msra.mxu0 0.0
  %1523 = vmatprep.subr.mxu0 0.0
  %1524 = vmatpush1.msra.mxu0 0.0
  %1525 = vmatprep.subr.mxu0 0.0
  %1526 = vmatpush1.msra.mxu0 0.0
  %1527 = vmatprep.subr.mxu0 0.0
  %1528 = vmatpush1.msra.mxu0 0.0
  %1529 = vmatprep.subr.mxu0 0.0
  %1530 = vmatpush1.msra.mxu0 0.0
  %1531 = vmatprep.subr.mxu0 0.0
  %1532 = vmatpush1.msra.mxu0 0.0
  %1533 = vmatprep.subr.mxu0 0.0
  %1534 = vmatpush1.msra.mxu0 0.0
  %1535 = vmatprep.mubr.f32.mxu0 0.0
  %1536 = vmatmul.mubr.f32.gmra.mrb[0].mxu0 %v1463
  %v1537 = vpop.f32.mrb[0].mxu0
  %v1538 = vadd.f32 0.0, %v1537
  %v1539 = vpop.f32.mrb[0].mxu0
  %v1540 = vadd.f32 0.0, %v1539
  %1541 = vdwg.mxu0
  %v1543 = vsel %vm128, %v1408, 0
  %v1546 = vsel %vm132, %v1433, 0
  %v1549 = vsel %vm132, %v1434, 0
  %1551 = vmatprep.subr.mxu0 %v1410
  %1552 = vmatpush1.msra.mxu0 %v1409
  %1553 = vmatprep.subr.mxu0 %v1412
  %1554 = vmatpush1.msra.mxu0 %v1411
  %1555 = vmatprep.subr.mxu0 %v1414
  %1556 = vmatpush1.msra.mxu0 %v1413
  %1557 = vmatprep.subr.mxu0 %v1416
  %1558 = vmatpush1.msra.mxu0 %v1415
  %1559 = vmatprep.subr.mxu0 %v1418
  %1560 = vmatpush1.msra.mxu0 %v1417
  %1561 = vmatprep.subr.mxu0 %v1420
  %1562 = vmatpush1.msra.mxu0 %v1419
  %1563 = vmatprep.subr.mxu0 %v1422
  %1564 = vmatpush1.msra.mxu0 %v1421
  %1565 = vmatprep.subr.mxu0 %v1424
  %1566 = vmatpush1.msra.mxu0 %v1423
  %1567 = vmatprep.subr.mxu0 %v1426
  %1568 = vmatpush1.msra.mxu0 %v1425
  %1569 = vmatprep.subr.mxu0 %v1428
  %1570 = vmatpush1.msra.mxu0 %v1427
  %1571 = vmatprep.subr.mxu0 %v1430
  %1572 = vmatpush1.msra.mxu0 %v1429
  %1573 = vmatprep.subr.mxu0 %v1432
  %1574 = vmatpush1.msra.mxu0 %v1431
  %1575 = vmatprep.subr.mxu0 %v1549
  %1576 = vmatpush1.msra.mxu0 %v1546
  %1577 = vmatprep.subr.mxu0 0.0
  %1578 = vmatpush1.msra.mxu0 0.0
  %1579 = vmatprep.subr.mxu0 0.0
  %1580 = vmatpush1.msra.mxu0 0.0
  %1581 = vmatprep.subr.mxu0 0.0
  %1582 = vmatpush1.msra.mxu0 0.0
  %1583 = vmatprep.subr.mxu0 0.0
  %1584 = vmatpush1.msra.mxu0 0.0
  %1585 = vmatprep.subr.mxu0 0.0
  %1586 = vmatpush1.msra.mxu0 0.0
  %1587 = vmatprep.subr.mxu0 0.0
  %1588 = vmatpush1.msra.mxu0 0.0
  %1589 = vmatprep.subr.mxu0 0.0
  %1590 = vmatpush1.msra.mxu0 0.0
  %1591 = vmatprep.subr.mxu0 0.0
  %1592 = vmatpush1.msra.mxu0 0.0
  %1593 = vmatprep.subr.mxu0 0.0
  %1594 = vmatpush1.msra.mxu0 0.0
  %1595 = vmatprep.subr.mxu0 0.0
  %1596 = vmatpush1.msra.mxu0 0.0
  %1597 = vmatprep.subr.mxu0 0.0
  %1598 = vmatpush1.msra.mxu0 0.0
  %1599 = vmatprep.subr.mxu0 0.0
  %1600 = vmatpush1.msra.mxu0 0.0
  %1601 = vmatprep.subr.mxu0 0.0
  %1602 = vmatpush1.msra.mxu0 0.0
  %1603 = vmatprep.subr.mxu0 0.0
  %1604 = vmatpush1.msra.mxu0 0.0
  %1605 = vmatprep.subr.mxu0 0.0
  %1606 = vmatpush1.msra.mxu0 0.0
  %1607 = vmatprep.subr.mxu0 0.0
  %1608 = vmatpush1.msra.mxu0 0.0
  %1609 = vmatprep.subr.mxu0 0.0
  %1610 = vmatpush1.msra.mxu0 0.0
  %1611 = vmatprep.subr.mxu0 0.0
  %1612 = vmatpush1.msra.mxu0 0.0
  %1613 = vmatprep.subr.mxu0 0.0
  %1614 = vmatpush1.msra.mxu0 0.0
  %1615 = vmatprep.mubr.f32.mxu0 0.0
  %1616 = vmatmul.mubr.f32.gmra.mrb[0].mxu0 %v1543
  %v1617 = vpop.f32.mrb[0].mxu0
  %v1618 = vadd.f32 %v1538, %v1617
  %v1619 = vpop.f32.mrb[0].mxu0
  %v1620 = vadd.f32 %v1540, %v1619
  %1621 = vdwg.mxu0
  %v1622 = vld [vmem:[%s0 + $0x1] sm:$0xf]
  %v1623 = vld [vmem:[%s292] sm:$0xff]
  %v1624 = vld [vmem:[%s292 + $0x8] sm:$0xff]
  %v1625 = vld [vmem:[%s292 + $0x10] sm:$0xff]
  %v1626 = vld [vmem:[%s292 + $0x18] sm:$0xff]
  %v1627 = vld [vmem:[%s292 + $0x20] sm:$0xff]
  %v1628 = vld [vmem:[%s292 + $0x28] sm:$0xff]
  %v1629 = vld [vmem:[%s292 + $0x30] sm:$0xff]
  %v1630 = vld [vmem:[%s292 + $0x38] sm:$0xff]
  %v1631 = vld [vmem:[%s292 + $0x40] sm:$0xff]
  %v1632 = vld [vmem:[%s292 + $0x48] sm:$0xff]
  %v1633 = vld [vmem:[%s292 + $0x50] sm:$0xff]
  %v1634 = vld [vmem:[%s292 + $0x58] sm:$0xff]
  %v1635 = vld [vmem:[%s292 + $0x60] sm:$0xff]
  %v1636 = vld [vmem:[%s292 + $0x68] sm:$0xff]
  %v1637 = vld [vmem:[%s292 + $0x70] sm:$0xff]
  %v1638 = vld [vmem:[%s292 + $0x78] sm:$0xff]
  %v1639 = vld [vmem:[%s292 + $0x80] sm:$0xff]
  %v1640 = vld [vmem:[%s292 + $0x88] sm:$0xff]
  %v1641 = vld [vmem:[%s292 + $0x90] sm:$0xff]
  %v1642 = vld [vmem:[%s292 + $0x98] sm:$0xff]
  %v1643 = vld [vmem:[%s292 + $0xa0] sm:$0xff]
  %v1644 = vld [vmem:[%s292 + $0xa8] sm:$0xff]
  %v1645 = vld [vmem:[%s292 + $0xb0] sm:$0xff]
  %v1646 = vld [vmem:[%s292 + $0xb8] sm:$0xff]
  %v1647 = vld [vmem:[%s292 + $0xc0] sm:$0x3f]
  %v1648 = vld [vmem:[%s292 + $0xc8] sm:$0x3f]
  %v1650 = vsel %vm128, %v1622, 0
  %v1653 = vsel %vm132, %v1647, 0
  %v1656 = vsel %vm132, %v1648, 0
  %1658 = vmatprep.subr.mxu0 %v1624
  %1659 = vmatpush1.msra.mxu0 %v1623
  %1660 = vmatprep.subr.mxu0 %v1626
  %1661 = vmatpush1.msra.mxu0 %v1625
  %1662 = vmatprep.subr.mxu0 %v1628
  %1663 = vmatpush1.msra.mxu0 %v1627
  %1664 = vmatprep.subr.mxu0 %v1630
  %1665 = vmatpush1.msra.mxu0 %v1629
  %1666 = vmatprep.subr.mxu0 %v1632
  %1667 = vmatpush1.msra.mxu0 %v1631
  %1668 = vmatprep.subr.mxu0 %v1634
  %1669 = vmatpush1.msra.mxu0 %v1633
  %1670 = vmatprep.subr.mxu0 %v1636
  %1671 = vmatpush1.msra.mxu0 %v1635
  %1672 = vmatprep.subr.mxu0 %v1638
  %1673 = vmatpush1.msra.mxu0 %v1637
  %1674 = vmatprep.subr.mxu0 %v1640
  %1675 = vmatpush1.msra.mxu0 %v1639
  %1676 = vmatprep.subr.mxu0 %v1642
  %1677 = vmatpush1.msra.mxu0 %v1641
  %1678 = vmatprep.subr.mxu0 %v1644
  %1679 = vmatpush1.msra.mxu0 %v1643
  %1680 = vmatprep.subr.mxu0 %v1646
  %1681 = vmatpush1.msra.mxu0 %v1645
  %1682 = vmatprep.subr.mxu0 %v1656
  %1683 = vmatpush1.msra.mxu0 %v1653
  %1684 = vmatprep.subr.mxu0 0.0
  %1685 = vmatpush1.msra.mxu0 0.0
  %1686 = vmatprep.subr.mxu0 0.0
  %1687 = vmatpush1.msra.mxu0 0.0
  %1688 = vmatprep.subr.mxu0 0.0
  %1689 = vmatpush1.msra.mxu0 0.0
  %1690 = vmatprep.subr.mxu0 0.0
  %1691 = vmatpush1.msra.mxu0 0.0
  %1692 = vmatprep.subr.mxu0 0.0
  %1693 = vmatpush1.msra.mxu0 0.0
  %1694 = vmatprep.subr.mxu0 0.0
  %1695 = vmatpush1.msra.mxu0 0.0
  %1696 = vmatprep.subr.mxu0 0.0
  %1697 = vmatpush1.msra.mxu0 0.0
  %1698 = vmatprep.subr.mxu0 0.0
  %1699 = vmatpush1.msra.mxu0 0.0
  %1700 = vmatprep.subr.mxu0 0.0
  %1701 = vmatpush1.msra.mxu0 0.0
  %1702 = vmatprep.subr.mxu0 0.0
  %1703 = vmatpush1.msra.mxu0 0.0
  %1704 = vmatprep.subr.mxu0 0.0
  %1705 = vmatpush1.msra.mxu0 0.0
  %1706 = vmatprep.subr.mxu0 0.0
  %1707 = vmatpush1.msra.mxu0 0.0
  %1708 = vmatprep.subr.mxu0 0.0
  %1709 = vmatpush1.msra.mxu0 0.0
  %1710 = vmatprep.subr.mxu0 0.0
  %1711 = vmatpush1.msra.mxu0 0.0
  %1712 = vmatprep.subr.mxu0 0.0
  %1713 = vmatpush1.msra.mxu0 0.0
  %1714 = vmatprep.subr.mxu0 0.0
  %1715 = vmatpush1.msra.mxu0 0.0
  %1716 = vmatprep.subr.mxu0 0.0
  %1717 = vmatpush1.msra.mxu0 0.0
  %1718 = vmatprep.subr.mxu0 0.0
  %1719 = vmatpush1.msra.mxu0 0.0
  %1720 = vmatprep.subr.mxu0 0.0
  %1721 = vmatpush1.msra.mxu0 0.0
  %1722 = vmatprep.mubr.f32.mxu0 0.0
  %1723 = vmatmul.mubr.f32.gmra.mrb[0].mxu0 %v1650
  %v1724 = vpop.f32.mrb[0].mxu0
  %v1725 = vadd.f32 0.0, %v1724
  %v1726 = vpop.f32.mrb[0].mxu0
  %v1727 = vadd.f32 0.0, %v1726
  %1728 = vdwg.mxu0
  %v1729 = vadd.f32 %v1618, %v1725
  %v1730 = vadd.f32 %v1620, %v1727
  %v1731 = vld [vmem:[%s99 + $0x1] sm:$0xf]
  %v1732 = vld [vmem:[%s403] sm:$0xff]
  %v1733 = vld [vmem:[%s403 + $0x8] sm:$0xff]
  %v1734 = vld [vmem:[%s403 + $0x10] sm:$0xff]
  %v1735 = vld [vmem:[%s403 + $0x18] sm:$0xff]
  %v1736 = vld [vmem:[%s403 + $0x20] sm:$0xff]
  %v1737 = vld [vmem:[%s403 + $0x28] sm:$0xff]
  %v1738 = vld [vmem:[%s403 + $0x30] sm:$0xff]
  %v1739 = vld [vmem:[%s403 + $0x38] sm:$0xff]
  %v1740 = vld [vmem:[%s403 + $0x40] sm:$0xff]
  %v1741 = vld [vmem:[%s403 + $0x48] sm:$0xff]
  %v1742 = vld [vmem:[%s403 + $0x50] sm:$0xff]
  %v1743 = vld [vmem:[%s403 + $0x58] sm:$0xff]
  %v1744 = vld [vmem:[%s403 + $0x60] sm:$0xff]
  %v1745 = vld [vmem:[%s403 + $0x68] sm:$0xff]
  %v1746 = vld [vmem:[%s403 + $0x70] sm:$0xff]
  %v1747 = vld [vmem:[%s403 + $0x78] sm:$0xff]
  %v1748 = vld [vmem:[%s403 + $0x80] sm:$0xff]
  %v1749 = vld [vmem:[%s403 + $0x88] sm:$0xff]
  %v1750 = vld [vmem:[%s403 + $0x90] sm:$0xff]
  %v1751 = vld [vmem:[%s403 + $0x98] sm:$0xff]
  %v1752 = vld [vmem:[%s403 + $0xa0] sm:$0xff]
  %v1753 = vld [vmem:[%s403 + $0xa8] sm:$0xff]
  %v1754 = vld [vmem:[%s403 + $0xb0] sm:$0xff]
  %v1755 = vld [vmem:[%s403 + $0xb8] sm:$0xff]
  %v1756 = vld [vmem:[%s403 + $0xc0] sm:$0x3f]
  %v1757 = vld [vmem:[%s403 + $0xc8] sm:$0x3f]
  %v1759 = vsel %vm128, %v1731, 0
  %v1762 = vsel %vm132, %v1756, 0
  %v1765 = vsel %vm132, %v1757, 0
  %1767 = vmatprep.subr.mxu0 %v1733
  %1768 = vmatpush1.msra.mxu0 %v1732
  %1769 = vmatprep.subr.mxu0 %v1735
  %1770 = vmatpush1.msra.mxu0 %v1734
  %1771 = vmatprep.subr.mxu0 %v1737
  %1772 = vmatpush1.msra.mxu0 %v1736
  %1773 = vmatprep.subr.mxu0 %v1739
  %1774 = vmatpush1.msra.mxu0 %v1738
  %1775 = vmatprep.subr.mxu0 %v1741
  %1776 = vmatpush1.msra.mxu0 %v1740
  %1777 = vmatprep.subr.mxu0 %v1743
  %1778 = vmatpush1.msra.mxu0 %v1742
  %1779 = vmatprep.subr.mxu0 %v1745
  %1780 = vmatpush1.msra.mxu0 %v1744
  %1781 = vmatprep.subr.mxu0 %v1747
  %1782 = vmatpush1.msra.mxu0 %v1746
  %1783 = vmatprep.subr.mxu0 %v1749
  %1784 = vmatpush1.msra.mxu0 %v1748
  %1785 = vmatprep.subr.mxu0 %v1751
  %1786 = vmatpush1.msra.mxu0 %v1750
  %1787 = vmatprep.subr.mxu0 %v1753
  %1788 = vmatpush1.msra.mxu0 %v1752
  %1789 = vmatprep.subr.mxu0 %v1755
  %1790 = vmatpush1.msra.mxu0 %v1754
  %1791 = vmatprep.subr.mxu0 %v1765
  %1792 = vmatpush1.msra.mxu0 %v1762
  %1793 = vmatprep.subr.mxu0 0.0
  %1794 = vmatpush1.msra.mxu0 0.0
  %1795 = vmatprep.subr.mxu0 0.0
  %1796 = vmatpush1.msra.mxu0 0.0
  %1797 = vmatprep.subr.mxu0 0.0
  %1798 = vmatpush1.msra.mxu0 0.0
  %1799 = vmatprep.subr.mxu0 0.0
  %1800 = vmatpush1.msra.mxu0 0.0
  %1801 = vmatprep.subr.mxu0 0.0
  %1802 = vmatpush1.msra.mxu0 0.0
  %1803 = vmatprep.subr.mxu0 0.0
  %1804 = vmatpush1.msra.mxu0 0.0
  %1805 = vmatprep.subr.mxu0 0.0
  %1806 = vmatpush1.msra.mxu0 0.0
  %1807 = vmatprep.subr.mxu0 0.0
  %1808 = vmatpush1.msra.mxu0 0.0
  %1809 = vmatprep.subr.mxu0 0.0
  %1810 = vmatpush1.msra.mxu0 0.0
  %1811 = vmatprep.subr.mxu0 0.0
  %1812 = vmatpush1.msra.mxu0 0.0
  %1813 = vmatprep.subr.mxu0 0.0
  %1814 = vmatpush1.msra.mxu0 0.0
  %1815 = vmatprep.subr.mxu0 0.0
  %1816 = vmatpush1.msra.mxu0 0.0
  %1817 = vmatprep.subr.mxu0 0.0
  %1818 = vmatpush1.msra.mxu0 0.0
  %1819 = vmatprep.subr.mxu0 0.0
  %1820 = vmatpush1.msra.mxu0 0.0
  %1821 = vmatprep.subr.mxu0 0.0
  %1822 = vmatpush1.msra.mxu0 0.0
  %1823 = vmatprep.subr.mxu0 0.0
  %1824 = vmatpush1.msra.mxu0 0.0
  %1825 = vmatprep.subr.mxu0 0.0
  %1826 = vmatpush1.msra.mxu0 0.0
  %1827 = vmatprep.subr.mxu0 0.0
  %1828 = vmatpush1.msra.mxu0 0.0
  %1829 = vmatprep.subr.mxu0 0.0
  %1830 = vmatpush1.msra.mxu0 0.0
  %1831 = vmatprep.mubr.f32.mxu0 0.0
  %1832 = vmatmul.mubr.f32.gmra.mrb[0].mxu0 %v1759
  %v1833 = vpop.f32.mrb[0].mxu0
  %v1834 = vadd.f32 0.0, %v1833
  %v1835 = vpop.f32.mrb[0].mxu0
  %v1836 = vadd.f32 0.0, %v1835
  %1837 = vdwg.mxu0
  %v1838 = vadd.f32 %v1729, %v1834
  %v1839 = vadd.f32 %v1730, %v1836
  %vm1840 = vcmp.ge.f32.partialorder %v1838, 0.0
  %vm1841 = vcmp.ge.f32.partialorder %v1839, 0.0
  %v1842 = vmul.f32 %v1838, 0.05
  %v1843 = vmul.f32 %v1839, 0.05
  %v1844 = vsel %vm1840, %v1838, %v1842
  %v1845 = vsel %vm1841, %v1839, %v1843
  %v1848 = vrot.slane %v1844, 7
  %v1849 = vrot.slane %v1845, 7
  %1852 = vst [vmem:[#allocation2] sm:$0x1e] %v1848
  %vm1853 = vcmask 126977
  %1854 = vst.msk [vmem:[#allocation2 + $0x8] sm:$0x1e] %vm1853, %v1849
  %v1855 = vld [vmem:[%s0 + $0x5] sm:$0xf]
  %v1856 = vld [vmem:[%s1] sm:$0xff]
  %v1857 = vld [vmem:[%s1 + $0x8] sm:$0xff]
  %v1858 = vld [vmem:[%s1 + $0x10] sm:$0xff]
  %v1859 = vld [vmem:[%s1 + $0x18] sm:$0xff]
  %v1860 = vld [vmem:[%s1 + $0x20] sm:$0xff]
  %v1861 = vld [vmem:[%s1 + $0x28] sm:$0xff]
  %v1862 = vld [vmem:[%s1 + $0x30] sm:$0xff]
  %v1863 = vld [vmem:[%s1 + $0x38] sm:$0xff]
  %v1864 = vld [vmem:[%s1 + $0x40] sm:$0xff]
  %v1865 = vld [vmem:[%s1 + $0x48] sm:$0xff]
  %v1866 = vld [vmem:[%s1 + $0x50] sm:$0xff]
  %v1867 = vld [vmem:[%s1 + $0x58] sm:$0xff]
  %v1868 = vld [vmem:[%s1 + $0x60] sm:$0xff]
  %v1869 = vld [vmem:[%s1 + $0x68] sm:$0xff]
  %v1870 = vld [vmem:[%s1 + $0x70] sm:$0xff]
  %v1871 = vld [vmem:[%s1 + $0x78] sm:$0xff]
  %v1872 = vld [vmem:[%s1 + $0x80] sm:$0xff]
  %v1873 = vld [vmem:[%s1 + $0x88] sm:$0xff]
  %v1874 = vld [vmem:[%s1 + $0x90] sm:$0xff]
  %v1875 = vld [vmem:[%s1 + $0x98] sm:$0xff]
  %v1876 = vld [vmem:[%s1 + $0xa0] sm:$0xff]
  %v1877 = vld [vmem:[%s1 + $0xa8] sm:$0xff]
  %v1878 = vld [vmem:[%s1 + $0xb0] sm:$0xff]
  %v1879 = vld [vmem:[%s1 + $0xb8] sm:$0xff]
  %v1880 = vld [vmem:[%s1 + $0xc0] sm:$0x3f]
  %v1881 = vld [vmem:[%s1 + $0xc8] sm:$0x3f]
  %v1882 = vld [vmem:[%s99 + $0x5] sm:$0xf]
  %v1883 = vld [vmem:[%s101] sm:$0xff]
  %v1884 = vld [vmem:[%s101 + $0x8] sm:$0xff]
  %v1885 = vld [vmem:[%s101 + $0x10] sm:$0xff]
  %v1886 = vld [vmem:[%s101 + $0x18] sm:$0xff]
  %v1887 = vld [vmem:[%s101 + $0x20] sm:$0xff]
  %v1888 = vld [vmem:[%s101 + $0x28] sm:$0xff]
  %v1889 = vld [vmem:[%s101 + $0x30] sm:$0xff]
  %v1890 = vld [vmem:[%s101 + $0x38] sm:$0xff]
  %v1891 = vld [vmem:[%s101 + $0x40] sm:$0xff]
  %v1892 = vld [vmem:[%s101 + $0x48] sm:$0xff]
  %v1893 = vld [vmem:[%s101 + $0x50] sm:$0xff]
  %v1894 = vld [vmem:[%s101 + $0x58] sm:$0xff]
  %v1895 = vld [vmem:[%s101 + $0x60] sm:$0xff]
  %v1896 = vld [vmem:[%s101 + $0x68] sm:$0xff]
  %v1897 = vld [vmem:[%s101 + $0x70] sm:$0xff]
  %v1898 = vld [vmem:[%s101 + $0x78] sm:$0xff]
  %v1899 = vld [vmem:[%s101 + $0x80] sm:$0xff]
  %v1900 = vld [vmem:[%s101 + $0x88] sm:$0xff]
  %v1901 = vld [vmem:[%s101 + $0x90] sm:$0xff]
  %v1902 = vld [vmem:[%s101 + $0x98] sm:$0xff]
  %v1903 = vld [vmem:[%s101 + $0xa0] sm:$0xff]
  %v1904 = vld [vmem:[%s101 + $0xa8] sm:$0xff]
  %v1905 = vld [vmem:[%s101 + $0xb0] sm:$0xff]
  %v1906 = vld [vmem:[%s101 + $0xb8] sm:$0xff]
  %v1907 = vld [vmem:[%s101 + $0xc0] sm:$0x3f]
  %v1908 = vld [vmem:[%s101 + $0xc8] sm:$0x3f]
  %v1910 = vsel %vm128, %v1882, 0
  %v1913 = vsel %vm132, %v1907, 0
  %v1916 = vsel %vm132, %v1908, 0
  %1918 = vmatprep.subr.mxu0 %v1884
  %1919 = vmatpush1.msra.mxu0 %v1883
  %1920 = vmatprep.subr.mxu0 %v1886
  %1921 = vmatpush1.msra.mxu0 %v1885
  %1922 = vmatprep.subr.mxu0 %v1888
  %1923 = vmatpush1.msra.mxu0 %v1887
  %1924 = vmatprep.subr.mxu0 %v1890
  %1925 = vmatpush1.msra.mxu0 %v1889
  %1926 = vmatprep.subr.mxu0 %v1892
  %1927 = vmatpush1.msra.mxu0 %v1891
  %1928 = vmatprep.subr.mxu0 %v1894
  %1929 = vmatpush1.msra.mxu0 %v1893
  %1930 = vmatprep.subr.mxu0 %v1896
  %1931 = vmatpush1.msra.mxu0 %v1895
  %1932 = vmatprep.subr.mxu0 %v1898
  %1933 = vmatpush1.msra.mxu0 %v1897
  %1934 = vmatprep.subr.mxu0 %v1900
  %1935 = vmatpush1.msra.mxu0 %v1899
  %1936 = vmatprep.subr.mxu0 %v1902
  %1937 = vmatpush1.msra.mxu0 %v1901
  %1938 = vmatprep.subr.mxu0 %v1904
  %1939 = vmatpush1.msra.mxu0 %v1903
  %1940 = vmatprep.subr.mxu0 %v1906
  %1941 = vmatpush1.msra.mxu0 %v1905
  %1942 = vmatprep.subr.mxu0 %v1916
  %1943 = vmatpush1.msra.mxu0 %v1913
  %1944 = vmatprep.subr.mxu0 0.0
  %1945 = vmatpush1.msra.mxu0 0.0
  %1946 = vmatprep.subr.mxu0 0.0
  %1947 = vmatpush1.msra.mxu0 0.0
  %1948 = vmatprep.subr.mxu0 0.0
  %1949 = vmatpush1.msra.mxu0 0.0
  %1950 = vmatprep.subr.mxu0 0.0
  %1951 = vmatpush1.msra.mxu0 0.0
  %1952 = vmatprep.subr.mxu0 0.0
  %1953 = vmatpush1.msra.mxu0 0.0
  %1954 = vmatprep.subr.mxu0 0.0
  %1955 = vmatpush1.msra.mxu0 0.0
  %1956 = vmatprep.subr.mxu0 0.0
  %1957 = vmatpush1.msra.mxu0 0.0
  %1958 = vmatprep.subr.mxu0 0.0
  %1959 = vmatpush1.msra.mxu0 0.0
  %1960 = vmatprep.subr.mxu0 0.0
  %1961 = vmatpush1.msra.mxu0 0.0
  %1962 = vmatprep.subr.mxu0 0.0
  %1963 = vmatpush1.msra.mxu0 0.0
  %1964 = vmatprep.subr.mxu0 0.0
  %1965 = vmatpush1.msra.mxu0 0.0
  %1966 = vmatprep.subr.mxu0 0.0
  %1967 = vmatpush1.msra.mxu0 0.0
  %1968 = vmatprep.subr.mxu0 0.0
  %1969 = vmatpush1.msra.mxu0 0.0
  %1970 = vmatprep.subr.mxu0 0.0
  %1971 = vmatpush1.msra.mxu0 0.0
  %1972 = vmatprep.subr.mxu0 0.0
  %1973 = vmatpush1.msra.mxu0 0.0
  %1974 = vmatprep.subr.mxu0 0.0
  %1975 = vmatpush1.msra.mxu0 0.0
  %1976 = vmatprep.subr.mxu0 0.0
  %1977 = vmatpush1.msra.mxu0 0.0
  %1978 = vmatprep.subr.mxu0 0.0
  %1979 = vmatpush1.msra.mxu0 0.0
  %1980 = vmatprep.subr.mxu0 0.0
  %1981 = vmatpush1.msra.mxu0 0.0
  %1982 = vmatprep.mubr.f32.mxu0 0.0
  %1983 = vmatmul.mubr.f32.gmra.mrb[0].mxu0 %v1910
  %v1984 = vpop.f32.mrb[0].mxu0
  %v1985 = vadd.f32 0.0, %v1984
  %v1986 = vpop.f32.mrb[0].mxu0
  %v1987 = vadd.f32 0.0, %v1986
  %1988 = vdwg.mxu0
  %v1990 = vsel %vm128, %v1855, 0
  %v1993 = vsel %vm132, %v1880, 0
  %v1996 = vsel %vm132, %v1881, 0
  %1998 = vmatprep.subr.mxu0 %v1857
  %1999 = vmatpush1.msra.mxu0 %v1856
  %2000 = vmatprep.subr.mxu0 %v1859
  %2001 = vmatpush1.msra.mxu0 %v1858
  %2002 = vmatprep.subr.mxu0 %v1861
  %2003 = vmatpush1.msra.mxu0 %v1860
  %2004 = vmatprep.subr.mxu0 %v1863
  %2005 = vmatpush1.msra.mxu0 %v1862
  %2006 = vmatprep.subr.mxu0 %v1865
  %2007 = vmatpush1.msra.mxu0 %v1864
  %2008 = vmatprep.subr.mxu0 %v1867
  %2009 = vmatpush1.msra.mxu0 %v1866
  %2010 = vmatprep.subr.mxu0 %v1869
  %2011 = vmatpush1.msra.mxu0 %v1868
  %2012 = vmatprep.subr.mxu0 %v1871
  %2013 = vmatpush1.msra.mxu0 %v1870
  %2014 = vmatprep.subr.mxu0 %v1873
  %2015 = vmatpush1.msra.mxu0 %v1872
  %2016 = vmatprep.subr.mxu0 %v1875
  %2017 = vmatpush1.msra.mxu0 %v1874
  %2018 = vmatprep.subr.mxu0 %v1877
  %2019 = vmatpush1.msra.mxu0 %v1876
  %2020 = vmatprep.subr.mxu0 %v1879
  %2021 = vmatpush1.msra.mxu0 %v1878
  %2022 = vmatprep.subr.mxu0 %v1996
  %2023 = vmatpush1.msra.mxu0 %v1993
  %2024 = vmatprep.subr.mxu0 0.0
  %2025 = vmatpush1.msra.mxu0 0.0
  %2026 = vmatprep.subr.mxu0 0.0
  %2027 = vmatpush1.msra.mxu0 0.0
  %2028 = vmatprep.subr.mxu0 0.0
  %2029 = vmatpush1.msra.mxu0 0.0
  %2030 = vmatprep.subr.mxu0 0.0
  %2031 = vmatpush1.msra.mxu0 0.0
  %2032 = vmatprep.subr.mxu0 0.0
  %2033 = vmatpush1.msra.mxu0 0.0
  %2034 = vmatprep.subr.mxu0 0.0
  %2035 = vmatpush1.msra.mxu0 0.0
  %2036 = vmatprep.subr.mxu0 0.0
  %2037 = vmatpush1.msra.mxu0 0.0
  %2038 = vmatprep.subr.mxu0 0.0
  %2039 = vmatpush1.msra.mxu0 0.0
  %2040 = vmatprep.subr.mxu0 0.0
  %2041 = vmatpush1.msra.mxu0 0.0
  %2042 = vmatprep.subr.mxu0 0.0
  %2043 = vmatpush1.msra.mxu0 0.0
  %2044 = vmatprep.subr.mxu0 0.0
  %2045 = vmatpush1.msra.mxu0 0.0
  %2046 = vmatprep.subr.mxu0 0.0
  %2047 = vmatpush1.msra.mxu0 0.0
  %2048 = vmatprep.subr.mxu0 0.0
  %2049 = vmatpush1.msra.mxu0 0.0
  %2050 = vmatprep.subr.mxu0 0.0
  %2051 = vmatpush1.msra.mxu0 0.0
  %2052 = vmatprep.subr.mxu0 0.0
  %2053 = vmatpush1.msra.mxu0 0.0
  %2054 = vmatprep.subr.mxu0 0.0
  %2055 = vmatpush1.msra.mxu0 0.0
  %2056 = vmatprep.subr.mxu0 0.0
  %2057 = vmatpush1.msra.mxu0 0.0
  %2058 = vmatprep.subr.mxu0 0.0
  %2059 = vmatpush1.msra.mxu0 0.0
  %2060 = vmatprep.subr.mxu0 0.0
  %2061 = vmatpush1.msra.mxu0 0.0
  %2062 = vmatprep.mubr.f32.mxu0 0.0
  %2063 = vmatmul.mubr.f32.gmra.mrb[0].mxu0 %v1990
  %v2064 = vpop.f32.mrb[0].mxu0
  %v2065 = vadd.f32 %v1985, %v2064
  %v2066 = vpop.f32.mrb[0].mxu0
  %v2067 = vadd.f32 %v1987, %v2066
  %2068 = vdwg.mxu0
  %v2069 = vld [vmem:[%s290 + $0x5] sm:$0xf]
  %v2070 = vld [vmem:[%s292] sm:$0xff]
  %v2071 = vld [vmem:[%s292 + $0x8] sm:$0xff]
  %v2072 = vld [vmem:[%s292 + $0x10] sm:$0xff]
  %v2073 = vld [vmem:[%s292 + $0x18] sm:$0xff]
  %v2074 = vld [vmem:[%s292 + $0x20] sm:$0xff]
  %v2075 = vld [vmem:[%s292 + $0x28] sm:$0xff]
  %v2076 = vld [vmem:[%s292 + $0x30] sm:$0xff]
  %v2077 = vld [vmem:[%s292 + $0x38] sm:$0xff]
  %v2078 = vld [vmem:[%s292 + $0x40] sm:$0xff]
  %v2079 = vld [vmem:[%s292 + $0x48] sm:$0xff]
  %v2080 = vld [vmem:[%s292 + $0x50] sm:$0xff]
  %v2081 = vld [vmem:[%s292 + $0x58] sm:$0xff]
  %v2082 = vld [vmem:[%s292 + $0x60] sm:$0xff]
  %v2083 = vld [vmem:[%s292 + $0x68] sm:$0xff]
  %v2084 = vld [vmem:[%s292 + $0x70] sm:$0xff]
  %v2085 = vld [vmem:[%s292 + $0x78] sm:$0xff]
  %v2086 = vld [vmem:[%s292 + $0x80] sm:$0xff]
  %v2087 = vld [vmem:[%s292 + $0x88] sm:$0xff]
  %v2088 = vld [vmem:[%s292 + $0x90] sm:$0xff]
  %v2089 = vld [vmem:[%s292 + $0x98] sm:$0xff]
  %v2090 = vld [vmem:[%s292 + $0xa0] sm:$0xff]
  %v2091 = vld [vmem:[%s292 + $0xa8] sm:$0xff]
  %v2092 = vld [vmem:[%s292 + $0xb0] sm:$0xff]
  %v2093 = vld [vmem:[%s292 + $0xb8] sm:$0xff]
  %v2094 = vld [vmem:[%s292 + $0xc0] sm:$0x3f]
  %v2095 = vld [vmem:[%s292 + $0xc8] sm:$0x3f]
  %v2097 = vsel %vm128, %v2069, 0
  %v2100 = vsel %vm132, %v2094, 0
  %v2103 = vsel %vm132, %v2095, 0
  %2105 = vmatprep.subr.mxu0 %v2071
  %2106 = vmatpush1.msra.mxu0 %v2070
  %2107 = vmatprep.subr.mxu0 %v2073
  %2108 = vmatpush1.msra.mxu0 %v2072
  %2109 = vmatprep.subr.mxu0 %v2075
  %2110 = vmatpush1.msra.mxu0 %v2074
  %2111 = vmatprep.subr.mxu0 %v2077
  %2112 = vmatpush1.msra.mxu0 %v2076
  %2113 = vmatprep.subr.mxu0 %v2079
  %2114 = vmatpush1.msra.mxu0 %v2078
  %2115 = vmatprep.subr.mxu0 %v2081
  %2116 = vmatpush1.msra.mxu0 %v2080
  %2117 = vmatprep.subr.mxu0 %v2083
  %2118 = vmatpush1.msra.mxu0 %v2082
  %2119 = vmatprep.subr.mxu0 %v2085
  %2120 = vmatpush1.msra.mxu0 %v2084
  %2121 = vmatprep.subr.mxu0 %v2087
  %2122 = vmatpush1.msra.mxu0 %v2086
  %2123 = vmatprep.subr.mxu0 %v2089
  %2124 = vmatpush1.msra.mxu0 %v2088
  %2125 = vmatprep.subr.mxu0 %v2091
  %2126 = vmatpush1.msra.mxu0 %v2090
  %2127 = vmatprep.subr.mxu0 %v2093
  %2128 = vmatpush1.msra.mxu0 %v2092
  %2129 = vmatprep.subr.mxu0 %v2103
  %2130 = vmatpush1.msra.mxu0 %v2100
  %2131 = vmatprep.subr.mxu0 0.0
  %2132 = vmatpush1.msra.mxu0 0.0
  %2133 = vmatprep.subr.mxu0 0.0
  %2134 = vmatpush1.msra.mxu0 0.0
  %2135 = vmatprep.subr.mxu0 0.0
  %2136 = vmatpush1.msra.mxu0 0.0
  %2137 = vmatprep.subr.mxu0 0.0
  %2138 = vmatpush1.msra.mxu0 0.0
  %2139 = vmatprep.subr.mxu0 0.0
  %2140 = vmatpush1.msra.mxu0 0.0
  %2141 = vmatprep.subr.mxu0 0.0
  %2142 = vmatpush1.msra.mxu0 0.0
  %2143 = vmatprep.subr.mxu0 0.0
  %2144 = vmatpush1.msra.mxu0 0.0
  %2145 = vmatprep.subr.mxu0 0.0
  %2146 = vmatpush1.msra.mxu0 0.0
  %2147 = vmatprep.subr.mxu0 0.0
  %2148 = vmatpush1.msra.mxu0 0.0
  %2149 = vmatprep.subr.mxu0 0.0
  %2150 = vmatpush1.msra.mxu0 0.0
  %2151 = vmatprep.subr.mxu0 0.0
  %2152 = vmatpush1.msra.mxu0 0.0
  %2153 = vmatprep.subr.mxu0 0.0
  %2154 = vmatpush1.msra.mxu0 0.0
  %2155 = vmatprep.subr.mxu0 0.0
  %2156 = vmatpush1.msra.mxu0 0.0
  %2157 = vmatprep.subr.mxu0 0.0
  %2158 = vmatpush1.msra.mxu0 0.0
  %2159 = vmatprep.subr.mxu0 0.0
  %2160 = vmatpush1.msra.mxu0 0.0
  %2161 = vmatprep.subr.mxu0 0.0
  %2162 = vmatpush1.msra.mxu0 0.0
  %2163 = vmatprep.subr.mxu0 0.0
  %2164 = vmatpush1.msra.mxu0 0.0
  %2165 = vmatprep.subr.mxu0 0.0
  %2166 = vmatpush1.msra.mxu0 0.0
  %2167 = vmatprep.subr.mxu0 0.0
  %2168 = vmatpush1.msra.mxu0 0.0
  %2169 = vmatprep.mubr.f32.mxu0 0.0
  %2170 = vmatmul.mubr.f32.gmra.mrb[0].mxu0 %v2097
  %v2171 = vpop.f32.mrb[0].mxu0
  %v2172 = vadd.f32 0.0, %v2171
  %v2173 = vpop.f32.mrb[0].mxu0
  %v2174 = vadd.f32 0.0, %v2173
  %2175 = vdwg.mxu0
  %v2176 = vadd.f32 %v2065, %v2172
  %v2177 = vadd.f32 %v2067, %v2174
  %v2178 = vld [vmem:[%s401 + $0x5] sm:$0xf]
  %v2179 = vld [vmem:[%s403] sm:$0xff]
  %v2180 = vld [vmem:[%s403 + $0x8] sm:$0xff]
  %v2181 = vld [vmem:[%s403 + $0x10] sm:$0xff]
  %v2182 = vld [vmem:[%s403 + $0x18] sm:$0xff]
  %v2183 = vld [vmem:[%s403 + $0x20] sm:$0xff]
  %v2184 = vld [vmem:[%s403 + $0x28] sm:$0xff]
  %v2185 = vld [vmem:[%s403 + $0x30] sm:$0xff]
  %v2186 = vld [vmem:[%s403 + $0x38] sm:$0xff]
  %v2187 = vld [vmem:[%s403 + $0x40] sm:$0xff]
  %v2188 = vld [vmem:[%s403 + $0x48] sm:$0xff]
  %v2189 = vld [vmem:[%s403 + $0x50] sm:$0xff]
  %v2190 = vld [vmem:[%s403 + $0x58] sm:$0xff]
  %v2191 = vld [vmem:[%s403 + $0x60] sm:$0xff]
  %v2192 = vld [vmem:[%s403 + $0x68] sm:$0xff]
  %v2193 = vld [vmem:[%s403 + $0x70] sm:$0xff]
  %v2194 = vld [vmem:[%s403 + $0x78] sm:$0xff]
  %v2195 = vld [vmem:[%s403 + $0x80] sm:$0xff]
  %v2196 = vld [vmem:[%s403 + $0x88] sm:$0xff]
  %v2197 = vld [vmem:[%s403 + $0x90] sm:$0xff]
  %v2198 = vld [vmem:[%s403 + $0x98] sm:$0xff]
  %v2199 = vld [vmem:[%s403 + $0xa0] sm:$0xff]
  %v2200 = vld [vmem:[%s403 + $0xa8] sm:$0xff]
  %v2201 = vld [vmem:[%s403 + $0xb0] sm:$0xff]
  %v2202 = vld [vmem:[%s403 + $0xb8] sm:$0xff]
  %v2203 = vld [vmem:[%s403 + $0xc0] sm:$0x3f]
  %v2204 = vld [vmem:[%s403 + $0xc8] sm:$0x3f]
  %v2206 = vsel %vm128, %v2178, 0
  %v2209 = vsel %vm132, %v2203, 0
  %v2212 = vsel %vm132, %v2204, 0
  %2214 = vmatprep.subr.mxu0 %v2180
  %2215 = vmatpush1.msra.mxu0 %v2179
  %2216 = vmatprep.subr.mxu0 %v2182
  %2217 = vmatpush1.msra.mxu0 %v2181
  %2218 = vmatprep.subr.mxu0 %v2184
  %2219 = vmatpush1.msra.mxu0 %v2183
  %2220 = vmatprep.subr.mxu0 %v2186
  %2221 = vmatpush1.msra.mxu0 %v2185
  %2222 = vmatprep.subr.mxu0 %v2188
  %2223 = vmatpush1.msra.mxu0 %v2187
  %2224 = vmatprep.subr.mxu0 %v2190
  %2225 = vmatpush1.msra.mxu0 %v2189
  %2226 = vmatprep.subr.mxu0 %v2192
  %2227 = vmatpush1.msra.mxu0 %v2191
  %2228 = vmatprep.subr.mxu0 %v2194
  %2229 = vmatpush1.msra.mxu0 %v2193
  %2230 = vmatprep.subr.mxu0 %v2196
  %2231 = vmatpush1.msra.mxu0 %v2195
  %2232 = vmatprep.subr.mxu0 %v2198
  %2233 = vmatpush1.msra.mxu0 %v2197
  %2234 = vmatprep.subr.mxu0 %v2200
  %2235 = vmatpush1.msra.mxu0 %v2199
  %2236 = vmatprep.subr.mxu0 %v2202
  %2237 = vmatpush1.msra.mxu0 %v2201
  %2238 = vmatprep.subr.mxu0 %v2212
  %2239 = vmatpush1.msra.mxu0 %v2209
  %2240 = vmatprep.subr.mxu0 0.0
  %2241 = vmatpush1.msra.mxu0 0.0
  %2242 = vmatprep.subr.mxu0 0.0
  %2243 = vmatpush1.msra.mxu0 0.0
  %2244 = vmatprep.subr.mxu0 0.0
  %2245 = vmatpush1.msra.mxu0 0.0
  %2246 = vmatprep.subr.mxu0 0.0
  %2247 = vmatpush1.msra.mxu0 0.0
  %2248 = vmatprep.subr.mxu0 0.0
  %2249 = vmatpush1.msra.mxu0 0.0
  %2250 = vmatprep.subr.mxu0 0.0
  %2251 = vmatpush1.msra.mxu0 0.0
  %2252 = vmatprep.subr.mxu0 0.0
  %2253 = vmatpush1.msra.mxu0 0.0
  %2254 = vmatprep.subr.mxu0 0.0
  %2255 = vmatpush1.msra.mxu0 0.0
  %2256 = vmatprep.subr.mxu0 0.0
  %2257 = vmatpush1.msra.mxu0 0.0
  %2258 = vmatprep.subr.mxu0 0.0
  %2259 = vmatpush1.msra.mxu0 0.0
  %2260 = vmatprep.subr.mxu0 0.0
  %2261 = vmatpush1.msra.mxu0 0.0
  %2262 = vmatprep.subr.mxu0 0.0
  %2263 = vmatpush1.msra.mxu0 0.0
  %2264 = vmatprep.subr.mxu0 0.0
  %2265 = vmatpush1.msra.mxu0 0.0
  %2266 = vmatprep.subr.mxu0 0.0
  %2267 = vmatpush1.msra.mxu0 0.0
  %2268 = vmatprep.subr.mxu0 0.0
  %2269 = vmatpush1.msra.mxu0 0.0
  %2270 = vmatprep.subr.mxu0 0.0
  %2271 = vmatpush1.msra.mxu0 0.0
  %2272 = vmatprep.subr.mxu0 0.0
  %2273 = vmatpush1.msra.mxu0 0.0
  %2274 = vmatprep.subr.mxu0 0.0
  %2275 = vmatpush1.msra.mxu0 0.0
  %2276 = vmatprep.subr.mxu0 0.0
  %2277 = vmatpush1.msra.mxu0 0.0
  %2278 = vmatprep.mubr.f32.mxu0 0.0
  %2279 = vmatmul.mubr.f32.gmra.mrb[0].mxu0 %v2206
  %v2280 = vpop.f32.mrb[0].mxu0
  %v2281 = vadd.f32 0.0, %v2280
  %v2282 = vpop.f32.mrb[0].mxu0
  %v2283 = vadd.f32 0.0, %v2282
  %2284 = vdwg.mxu0
  %v2285 = vadd.f32 %v2176, %v2281
  %v2286 = vadd.f32 %v2177, %v2283
  %vm2287 = vcmp.ge.f32.partialorder %v2285, 0.0
  %vm2288 = vcmp.ge.f32.partialorder %v2286, 0.0
  %v2289 = vmul.f32 %v2285, 0.05
  %v2290 = vmul.f32 %v2286, 0.05
  %v2291 = vsel %vm2287, %v2285, %v2289
  %v2292 = vsel %vm2288, %v2286, %v2290
  %v2295 = vrot.slane %v2291, 3
  %v2296 = vrot.slane %v2292, 3
  %2299 = vst [vmem:[%s518] sm:$0xe0] %v2295
  %vm2300 = vcmask 130053
  %2301 = vst.msk [vmem:[%s518 + $0x8] sm:$0xe0] %vm2300, %v2296
  %2302 = vst [vmem:[%s518 + $0x10] sm:$0x1] %v2295
  %vm2303 = vcmask 122880
  %2304 = vst.msk [vmem:[%s518 + $0x18] sm:$0x1] %vm2303, %v2296
  %v2305 = vld [vmem:[%s290 + $0x5] sm:$0xf]
  %v2306 = vld [vmem:[%s1] sm:$0xff]
  %v2307 = vld [vmem:[%s1 + $0x8] sm:$0xff]
  %v2308 = vld [vmem:[%s1 + $0x10] sm:$0xff]
  %v2309 = vld [vmem:[%s1 + $0x18] sm:$0xff]
  %v2310 = vld [vmem:[%s1 + $0x20] sm:$0xff]
  %v2311 = vld [vmem:[%s1 + $0x28] sm:$0xff]
  %v2312 = vld [vmem:[%s1 + $0x30] sm:$0xff]
  %v2313 = vld [vmem:[%s1 + $0x38] sm:$0xff]
  %v2314 = vld [vmem:[%s1 + $0x40] sm:$0xff]
  %v2315 = vld [vmem:[%s1 + $0x48] sm:$0xff]
  %v2316 = vld [vmem:[%s1 + $0x50] sm:$0xff]
  %v2317 = vld [vmem:[%s1 + $0x58] sm:$0xff]
  %v2318 = vld [vmem:[%s1 + $0x60] sm:$0xff]
  %v2319 = vld [vmem:[%s1 + $0x68] sm:$0xff]
  %v2320 = vld [vmem:[%s1 + $0x70] sm:$0xff]
  %v2321 = vld [vmem:[%s1 + $0x78] sm:$0xff]
  %v2322 = vld [vmem:[%s1 + $0x80] sm:$0xff]
  %v2323 = vld [vmem:[%s1 + $0x88] sm:$0xff]
  %v2324 = vld [vmem:[%s1 + $0x90] sm:$0xff]
  %v2325 = vld [vmem:[%s1 + $0x98] sm:$0xff]
  %v2326 = vld [vmem:[%s1 + $0xa0] sm:$0xff]
  %v2327 = vld [vmem:[%s1 + $0xa8] sm:$0xff]
  %v2328 = vld [vmem:[%s1 + $0xb0] sm:$0xff]
  %v2329 = vld [vmem:[%s1 + $0xb8] sm:$0xff]
  %v2330 = vld [vmem:[%s1 + $0xc0] sm:$0x3f]
  %v2331 = vld [vmem:[%s1 + $0xc8] sm:$0x3f]
  %v2332 = vld [vmem:[%s401 + $0x5] sm:$0xf]
  %v2333 = vld [vmem:[%s101] sm:$0xff]
  %v2334 = vld [vmem:[%s101 + $0x8] sm:$0xff]
  %v2335 = vld [vmem:[%s101 + $0x10] sm:$0xff]
  %v2336 = vld [vmem:[%s101 + $0x18] sm:$0xff]
  %v2337 = vld [vmem:[%s101 + $0x20] sm:$0xff]
  %v2338 = vld [vmem:[%s101 + $0x28] sm:$0xff]
  %v2339 = vld [vmem:[%s101 + $0x30] sm:$0xff]
  %v2340 = vld [vmem:[%s101 + $0x38] sm:$0xff]
  %v2341 = vld [vmem:[%s101 + $0x40] sm:$0xff]
  %v2342 = vld [vmem:[%s101 + $0x48] sm:$0xff]
  %v2343 = vld [vmem:[%s101 + $0x50] sm:$0xff]
  %v2344 = vld [vmem:[%s101 + $0x58] sm:$0xff]
  %v2345 = vld [vmem:[%s101 + $0x60] sm:$0xff]
  %v2346 = vld [vmem:[%s101 + $0x68] sm:$0xff]
  %v2347 = vld [vmem:[%s101 + $0x70] sm:$0xff]
  %v2348 = vld [vmem:[%s101 + $0x78] sm:$0xff]
  %v2349 = vld [vmem:[%s101 + $0x80] sm:$0xff]
  %v2350 = vld [vmem:[%s101 + $0x88] sm:$0xff]
  %v2351 = vld [vmem:[%s101 + $0x90] sm:$0xff]
  %v2352 = vld [vmem:[%s101 + $0x98] sm:$0xff]
  %v2353 = vld [vmem:[%s101 + $0xa0] sm:$0xff]
  %v2354 = vld [vmem:[%s101 + $0xa8] sm:$0xff]
  %v2355 = vld [vmem:[%s101 + $0xb0] sm:$0xff]
  %v2356 = vld [vmem:[%s101 + $0xb8] sm:$0xff]
  %v2357 = vld [vmem:[%s101 + $0xc0] sm:$0x3f]
  %v2358 = vld [vmem:[%s101 + $0xc8] sm:$0x3f]
  %v2360 = vsel %vm128, %v2332, 0
  %v2363 = vsel %vm132, %v2357, 0
  %v2366 = vsel %vm132, %v2358, 0
  %2368 = vmatprep.subr.mxu0 %v2334
  %2369 = vmatpush1.msra.mxu0 %v2333
  %2370 = vmatprep.subr.mxu0 %v2336
  %2371 = vmatpush1.msra.mxu0 %v2335
  %2372 = vmatprep.subr.mxu0 %v2338
  %2373 = vmatpush1.msra.mxu0 %v2337
  %2374 = vmatprep.subr.mxu0 %v2340
  %2375 = vmatpush1.msra.mxu0 %v2339
  %2376 = vmatprep.subr.mxu0 %v2342
  %2377 = vmatpush1.msra.mxu0 %v2341
  %2378 = vmatprep.subr.mxu0 %v2344
  %2379 = vmatpush1.msra.mxu0 %v2343
  %2380 = vmatprep.subr.mxu0 %v2346
  %2381 = vmatpush1.msra.mxu0 %v2345
  %2382 = vmatprep.subr.mxu0 %v2348
  %2383 = vmatpush1.msra.mxu0 %v2347
  %2384 = vmatprep.subr.mxu0 %v2350
  %2385 = vmatpush1.msra.mxu0 %v2349
  %2386 = vmatprep.subr.mxu0 %v2352
  %2387 = vmatpush1.msra.mxu0 %v2351
  %2388 = vmatprep.subr.mxu0 %v2354
  %2389 = vmatpush1.msra.mxu0 %v2353
  %2390 = vmatprep.subr.mxu0 %v2356
  %2391 = vmatpush1.msra.mxu0 %v2355
  %2392 = vmatprep.subr.mxu0 %v2366
  %2393 = vmatpush1.msra.mxu0 %v2363
  %2394 = vmatprep.subr.mxu0 0.0
  %2395 = vmatpush1.msra.mxu0 0.0
  %2396 = vmatprep.subr.mxu0 0.0
  %2397 = vmatpush1.msra.mxu0 0.0
  %2398 = vmatprep.subr.mxu0 0.0
  %2399 = vmatpush1.msra.mxu0 0.0
  %2400 = vmatprep.subr.mxu0 0.0
  %2401 = vmatpush1.msra.mxu0 0.0
  %2402 = vmatprep.subr.mxu0 0.0
  %2403 = vmatpush1.msra.mxu0 0.0
  %2404 = vmatprep.subr.mxu0 0.0
  %2405 = vmatpush1.msra.mxu0 0.0
  %2406 = vmatprep.subr.mxu0 0.0
  %2407 = vmatpush1.msra.mxu0 0.0
  %2408 = vmatprep.subr.mxu0 0.0
  %2409 = vmatpush1.msra.mxu0 0.0
  %2410 = vmatprep.subr.mxu0 0.0
  %2411 = vmatpush1.msra.mxu0 0.0
  %2412 = vmatprep.subr.mxu0 0.0
  %2413 = vmatpush1.msra.mxu0 0.0
  %2414 = vmatprep.subr.mxu0 0.0
  %2415 = vmatpush1.msra.mxu0 0.0
  %2416 = vmatprep.subr.mxu0 0.0
  %2417 = vmatpush1.msra.mxu0 0.0
  %2418 = vmatprep.subr.mxu0 0.0
  %2419 = vmatpush1.msra.mxu0 0.0
  %2420 = vmatprep.subr.mxu0 0.0
  %2421 = vmatpush1.msra.mxu0 0.0
  %2422 = vmatprep.subr.mxu0 0.0
  %2423 = vmatpush1.msra.mxu0 0.0
  %2424 = vmatprep.subr.mxu0 0.0
  %2425 = vmatpush1.msra.mxu0 0.0
  %2426 = vmatprep.subr.mxu0 0.0
  %2427 = vmatpush1.msra.mxu0 0.0
  %2428 = vmatprep.subr.mxu0 0.0
  %2429 = vmatpush1.msra.mxu0 0.0
  %2430 = vmatprep.subr.mxu0 0.0
  %2431 = vmatpush1.msra.mxu0 0.0
  %2432 = vmatprep.mubr.f32.mxu0 0.0
  %2433 = vmatmul.mubr.f32.gmra.mrb[0].mxu0 %v2360
  %v2434 = vpop.f32.mrb[0].mxu0
  %v2435 = vadd.f32 0.0, %v2434
  %v2436 = vpop.f32.mrb[0].mxu0
  %v2437 = vadd.f32 0.0, %v2436
  %2438 = vdwg.mxu0
  %v2440 = vsel %vm128, %v2305, 0
  %v2443 = vsel %vm132, %v2330, 0
  %v2446 = vsel %vm132, %v2331, 0
  %2448 = vmatprep.subr.mxu0 %v2307
  %2449 = vmatpush1.msra.mxu0 %v2306
  %2450 = vmatprep.subr.mxu0 %v2309
  %2451 = vmatpush1.msra.mxu0 %v2308
  %2452 = vmatprep.subr.mxu0 %v2311
  %2453 = vmatpush1.msra.mxu0 %v2310
  %2454 = vmatprep.subr.mxu0 %v2313
  %2455 = vmatpush1.msra.mxu0 %v2312
  %2456 = vmatprep.subr.mxu0 %v2315
  %2457 = vmatpush1.msra.mxu0 %v2314
  %2458 = vmatprep.subr.mxu0 %v2317
  %2459 = vmatpush1.msra.mxu0 %v2316
  %2460 = vmatprep.subr.mxu0 %v2319
  %2461 = vmatpush1.msra.mxu0 %v2318
  %2462 = vmatprep.subr.mxu0 %v2321
  %2463 = vmatpush1.msra.mxu0 %v2320
  %2464 = vmatprep.subr.mxu0 %v2323
  %2465 = vmatpush1.msra.mxu0 %v2322
  %2466 = vmatprep.subr.mxu0 %v2325
  %2467 = vmatpush1.msra.mxu0 %v2324
  %2468 = vmatprep.subr.mxu0 %v2327
  %2469 = vmatpush1.msra.mxu0 %v2326
  %2470 = vmatprep.subr.mxu0 %v2329
  %2471 = vmatpush1.msra.mxu0 %v2328
  %2472 = vmatprep.subr.mxu0 %v2446
  %2473 = vmatpush1.msra.mxu0 %v2443
  %2474 = vmatprep.subr.mxu0 0.0
  %2475 = vmatpush1.msra.mxu0 0.0
  %2476 = vmatprep.subr.mxu0 0.0
  %2477 = vmatpush1.msra.mxu0 0.0
  %2478 = vmatprep.subr.mxu0 0.0
  %2479 = vmatpush1.msra.mxu0 0.0
  %2480 = vmatprep.subr.mxu0 0.0
  %2481 = vmatpush1.msra.mxu0 0.0
  %2482 = vmatprep.subr.mxu0 0.0
  %2483 = vmatpush1.msra.mxu0 0.0
  %2484 = vmatprep.subr.mxu0 0.0
  %2485 = vmatpush1.msra.mxu0 0.0
  %2486 = vmatprep.subr.mxu0 0.0
  %2487 = vmatpush1.msra.mxu0 0.0
  %2488 = vmatprep.subr.mxu0 0.0
  %2489 = vmatpush1.msra.mxu0 0.0
  %2490 = vmatprep.subr.mxu0 0.0
  %2491 = vmatpush1.msra.mxu0 0.0
  %2492 = vmatprep.subr.mxu0 0.0
  %2493 = vmatpush1.msra.mxu0 0.0
  %2494 = vmatprep.subr.mxu0 0.0
  %2495 = vmatpush1.msra.mxu0 0.0
  %2496 = vmatprep.subr.mxu0 0.0
  %2497 = vmatpush1.msra.mxu0 0.0
  %2498 = vmatprep.subr.mxu0 0.0
  %2499 = vmatpush1.msra.mxu0 0.0
  %2500 = vmatprep.subr.mxu0 0.0
  %2501 = vmatpush1.msra.mxu0 0.0
  %2502 = vmatprep.subr.mxu0 0.0
  %2503 = vmatpush1.msra.mxu0 0.0
  %2504 = vmatprep.subr.mxu0 0.0
  %2505 = vmatpush1.msra.mxu0 0.0
  %2506 = vmatprep.subr.mxu0 0.0
  %2507 = vmatpush1.msra.mxu0 0.0
  %2508 = vmatprep.subr.mxu0 0.0
  %2509 = vmatpush1.msra.mxu0 0.0
  %2510 = vmatprep.subr.mxu0 0.0
  %2511 = vmatpush1.msra.mxu0 0.0
  %2512 = vmatprep.mubr.f32.mxu0 0.0
  %2513 = vmatmul.mubr.f32.gmra.mrb[0].mxu0 %v2440
  %v2514 = vpop.f32.mrb[0].mxu0
  %v2515 = vadd.f32 %v2435, %v2514
  %v2516 = vpop.f32.mrb[0].mxu0
  %v2517 = vadd.f32 %v2437, %v2516
  %2518 = vdwg.mxu0
  %v2519 = vld [vmem:[%s736 + $0x5] sm:$0xf]
  %v2520 = vld [vmem:[%s292] sm:$0xff]
  %v2521 = vld [vmem:[%s292 + $0x8] sm:$0xff]
  %v2522 = vld [vmem:[%s292 + $0x10] sm:$0xff]
  %v2523 = vld [vmem:[%s292 + $0x18] sm:$0xff]
  %v2524 = vld [vmem:[%s292 + $0x20] sm:$0xff]
  %v2525 = vld [vmem:[%s292 + $0x28] sm:$0xff]
  %v2526 = vld [vmem:[%s292 + $0x30] sm:$0xff]
  %v2527 = vld [vmem:[%s292 + $0x38] sm:$0xff]
  %v2528 = vld [vmem:[%s292 + $0x40] sm:$0xff]
  %v2529 = vld [vmem:[%s292 + $0x48] sm:$0xff]
  %v2530 = vld [vmem:[%s292 + $0x50] sm:$0xff]
  %v2531 = vld [vmem:[%s292 + $0x58] sm:$0xff]
  %v2532 = vld [vmem:[%s292 + $0x60] sm:$0xff]
  %v2533 = vld [vmem:[%s292 + $0x68] sm:$0xff]
  %v2534 = vld [vmem:[%s292 + $0x70] sm:$0xff]
  %v2535 = vld [vmem:[%s292 + $0x78] sm:$0xff]
  %v2536 = vld [vmem:[%s292 + $0x80] sm:$0xff]
  %v2537 = vld [vmem:[%s292 + $0x88] sm:$0xff]
  %v2538 = vld [vmem:[%s292 + $0x90] sm:$0xff]
  %v2539 = vld [vmem:[%s292 + $0x98] sm:$0xff]
  %v2540 = vld [vmem:[%s292 + $0xa0] sm:$0xff]
  %v2541 = vld [vmem:[%s292 + $0xa8] sm:$0xff]
  %v2542 = vld [vmem:[%s292 + $0xb0] sm:$0xff]
  %v2543 = vld [vmem:[%s292 + $0xb8] sm:$0xff]
  %v2544 = vld [vmem:[%s292 + $0xc0] sm:$0x3f]
  %v2545 = vld [vmem:[%s292 + $0xc8] sm:$0x3f]
  %v2547 = vsel %vm128, %v2519, 0
  %v2550 = vsel %vm132, %v2544, 0
  %v2553 = vsel %vm132, %v2545, 0
  %2555 = vmatprep.subr.mxu0 %v2521
  %2556 = vmatpush1.msra.mxu0 %v2520
  %2557 = vmatprep.subr.mxu0 %v2523
  %2558 = vmatpush1.msra.mxu0 %v2522
  %2559 = vmatprep.subr.mxu0 %v2525
  %2560 = vmatpush1.msra.mxu0 %v2524
  %2561 = vmatprep.subr.mxu0 %v2527
  %2562 = vmatpush1.msra.mxu0 %v2526
  %2563 = vmatprep.subr.mxu0 %v2529
  %2564 = vmatpush1.msra.mxu0 %v2528
  %2565 = vmatprep.subr.mxu0 %v2531
  %2566 = vmatpush1.msra.mxu0 %v2530
  %2567 = vmatprep.subr.mxu0 %v2533
  %2568 = vmatpush1.msra.mxu0 %v2532
  %2569 = vmatprep.subr.mxu0 %v2535
  %2570 = vmatpush1.msra.mxu0 %v2534
  %2571 = vmatprep.subr.mxu0 %v2537
  %2572 = vmatpush1.msra.mxu0 %v2536
  %2573 = vmatprep.subr.mxu0 %v2539
  %2574 = vmatpush1.msra.mxu0 %v2538
  %2575 = vmatprep.subr.mxu0 %v2541
  %2576 = vmatpush1.msra.mxu0 %v2540
  %2577 = vmatprep.subr.mxu0 %v2543
  %2578 = vmatpush1.msra.mxu0 %v2542
  %2579 = vmatprep.subr.mxu0 %v2553
  %2580 = vmatpush1.msra.mxu0 %v2550
  %2581 = vmatprep.subr.mxu0 0.0
  %2582 = vmatpush1.msra.mxu0 0.0
  %2583 = vmatprep.subr.mxu0 0.0
  %2584 = vmatpush1.msra.mxu0 0.0
  %2585 = vmatprep.subr.mxu0 0.0
  %2586 = vmatpush1.msra.mxu0 0.0
  %2587 = vmatprep.subr.mxu0 0.0
  %2588 = vmatpush1.msra.mxu0 0.0
  %2589 = vmatprep.subr.mxu0 0.0
  %2590 = vmatpush1.msra.mxu0 0.0
  %2591 = vmatprep.subr.mxu0 0.0
  %2592 = vmatpush1.msra.mxu0 0.0
  %2593 = vmatprep.subr.mxu0 0.0
  %2594 = vmatpush1.msra.mxu0 0.0
  %2595 = vmatprep.subr.mxu0 0.0
  %2596 = vmatpush1.msra.mxu0 0.0
  %2597 = vmatprep.subr.mxu0 0.0
  %2598 = vmatpush1.msra.mxu0 0.0
  %2599 = vmatprep.subr.mxu0 0.0
  %2600 = vmatpush1.msra.mxu0 0.0
  %2601 = vmatprep.subr.mxu0 0.0
  %2602 = vmatpush1.msra.mxu0 0.0
  %2603 = vmatprep.subr.mxu0 0.0
  %2604 = vmatpush1.msra.mxu0 0.0
  %2605 = vmatprep.subr.mxu0 0.0
  %2606 = vmatpush1.msra.mxu0 0.0
  %2607 = vmatprep.subr.mxu0 0.0
  %2608 = vmatpush1.msra.mxu0 0.0
  %2609 = vmatprep.subr.mxu0 0.0
  %2610 = vmatpush1.msra.mxu0 0.0
  %2611 = vmatprep.subr.mxu0 0.0
  %2612 = vmatpush1.msra.mxu0 0.0
  %2613 = vmatprep.subr.mxu0 0.0
  %2614 = vmatpush1.msra.mxu0 0.0
  %2615 = vmatprep.subr.mxu0 0.0
  %2616 = vmatpush1.msra.mxu0 0.0
  %2617 = vmatprep.subr.mxu0 0.0
  %2618 = vmatpush1.msra.mxu0 0.0
  %2619 = vmatprep.mubr.f32.mxu0 0.0
  %2620 = vmatmul.mubr.f32.gmra.mrb[0].mxu0 %v2547
  %v2621 = vpop.f32.mrb[0].mxu0
  %v2622 = vadd.f32 0.0, %v2621
  %v2623 = vpop.f32.mrb[0].mxu0
  %v2624 = vadd.f32 0.0, %v2623
  %2625 = vdwg.mxu0
  %v2626 = vadd.f32 %v2515, %v2622
  %v2627 = vadd.f32 %v2517, %v2624
  %v2628 = vld [vmem:[%s846 + $0x5] sm:$0xf]
  %v2629 = vld [vmem:[%s403] sm:$0xff]
  %v2630 = vld [vmem:[%s403 + $0x8] sm:$0xff]
  %v2631 = vld [vmem:[%s403 + $0x10] sm:$0xff]
  %v2632 = vld [vmem:[%s403 + $0x18] sm:$0xff]
  %v2633 = vld [vmem:[%s403 + $0x20] sm:$0xff]
  %v2634 = vld [vmem:[%s403 + $0x28] sm:$0xff]
  %v2635 = vld [vmem:[%s403 + $0x30] sm:$0xff]
  %v2636 = vld [vmem:[%s403 + $0x38] sm:$0xff]
  %v2637 = vld [vmem:[%s403 + $0x40] sm:$0xff]
  %v2638 = vld [vmem:[%s403 + $0x48] sm:$0xff]
  %v2639 = vld [vmem:[%s403 + $0x50] sm:$0xff]
  %v2640 = vld [vmem:[%s403 + $0x58] sm:$0xff]
  %v2641 = vld [vmem:[%s403 + $0x60] sm:$0xff]
  %v2642 = vld [vmem:[%s403 + $0x68] sm:$0xff]
  %v2643 = vld [vmem:[%s403 + $0x70] sm:$0xff]
  %v2644 = vld [vmem:[%s403 + $0x78] sm:$0xff]
  %v2645 = vld [vmem:[%s403 + $0x80] sm:$0xff]
  %v2646 = vld [vmem:[%s403 + $0x88] sm:$0xff]
  %v2647 = vld [vmem:[%s403 + $0x90] sm:$0xff]
  %v2648 = vld [vmem:[%s403 + $0x98] sm:$0xff]
  %v2649 = vld [vmem:[%s403 + $0xa0] sm:$0xff]
  %v2650 = vld [vmem:[%s403 + $0xa8] sm:$0xff]
  %v2651 = vld [vmem:[%s403 + $0xb0] sm:$0xff]
  %v2652 = vld [vmem:[%s403 + $0xb8] sm:$0xff]
  %v2653 = vld [vmem:[%s403 + $0xc0] sm:$0x3f]
  %v2654 = vld [vmem:[%s403 + $0xc8] sm:$0x3f]
  %v2656 = vsel %vm128, %v2628, 0
  %v2659 = vsel %vm132, %v2653, 0
  %v2662 = vsel %vm132, %v2654, 0
  %2664 = vmatprep.subr.mxu0 %v2630
  %2665 = vmatpush1.msra.mxu0 %v2629
  %2666 = vmatprep.subr.mxu0 %v2632
  %2667 = vmatpush1.msra.mxu0 %v2631
  %2668 = vmatprep.subr.mxu0 %v2634
  %2669 = vmatpush1.msra.mxu0 %v2633
  %2670 = vmatprep.subr.mxu0 %v2636
  %2671 = vmatpush1.msra.mxu0 %v2635
  %2672 = vmatprep.subr.mxu0 %v2638
  %2673 = vmatpush1.msra.mxu0 %v2637
  %2674 = vmatprep.subr.mxu0 %v2640
  %2675 = vmatpush1.msra.mxu0 %v2639
  %2676 = vmatprep.subr.mxu0 %v2642
  %2677 = vmatpush1.msra.mxu0 %v2641
  %2678 = vmatprep.subr.mxu0 %v2644
  %2679 = vmatpush1.msra.mxu0 %v2643
  %2680 = vmatprep.subr.mxu0 %v2646
  %2681 = vmatpush1.msra.mxu0 %v2645
  %2682 = vmatprep.subr.mxu0 %v2648
  %2683 = vmatpush1.msra.mxu0 %v2647
  %2684 = vmatprep.subr.mxu0 %v2650
  %2685 = vmatpush1.msra.mxu0 %v2649
  %2686 = vmatprep.subr.mxu0 %v2652
  %2687 = vmatpush1.msra.mxu0 %v2651
  %2688 = vmatprep.subr.mxu0 %v2662
  %2689 = vmatpush1.msra.mxu0 %v2659
  %2690 = vmatprep.subr.mxu0 0.0
  %2691 = vmatpush1.msra.mxu0 0.0
  %2692 = vmatprep.subr.mxu0 0.0
  %2693 = vmatpush1.msra.mxu0 0.0
  %2694 = vmatprep.subr.mxu0 0.0
  %2695 = vmatpush1.msra.mxu0 0.0
  %2696 = vmatprep.subr.mxu0 0.0
  %2697 = vmatpush1.msra.mxu0 0.0
  %2698 = vmatprep.subr.mxu0 0.0
  %2699 = vmatpush1.msra.mxu0 0.0
  %2700 = vmatprep.subr.mxu0 0.0
  %2701 = vmatpush1.msra.mxu0 0.0
  %2702 = vmatprep.subr.mxu0 0.0
  %2703 = vmatpush1.msra.mxu0 0.0
  %2704 = vmatprep.subr.mxu0 0.0
  %2705 = vmatpush1.msra.mxu0 0.0
  %2706 = vmatprep.subr.mxu0 0.0
  %2707 = vmatpush1.msra.mxu0 0.0
  %2708 = vmatprep.subr.mxu0 0.0
  %2709 = vmatpush1.msra.mxu0 0.0
  %2710 = vmatprep.subr.mxu0 0.0
  %2711 = vmatpush1.msra.mxu0 0.0
  %2712 = vmatprep.subr.mxu0 0.0
  %2713 = vmatpush1.msra.mxu0 0.0
  %2714 = vmatprep.subr.mxu0 0.0
  %2715 = vmatpush1.msra.mxu0 0.0
  %2716 = vmatprep.subr.mxu0 0.0
  %2717 = vmatpush1.msra.mxu0 0.0
  %2718 = vmatprep.subr.mxu0 0.0
  %2719 = vmatpush1.msra.mxu0 0.0
  %2720 = vmatprep.subr.mxu0 0.0
  %2721 = vmatpush1.msra.mxu0 0.0
  %2722 = vmatprep.subr.mxu0 0.0
  %2723 = vmatpush1.msra.mxu0 0.0
  %2724 = vmatprep.subr.mxu0 0.0
  %2725 = vmatpush1.msra.mxu0 0.0
  %2726 = vmatprep.subr.mxu0 0.0
  %2727 = vmatpush1.msra.mxu0 0.0
  %2728 = vmatprep.mubr.f32.mxu0 0.0
  %2729 = vmatmul.mubr.f32.gmra.mrb[0].mxu0 %v2656
  %v2730 = vpop.f32.mrb[0].mxu0
  %v2731 = vadd.f32 0.0, %v2730
  %v2732 = vpop.f32.mrb[0].mxu0
  %v2733 = vadd.f32 0.0, %v2732
  %2734 = vdwg.mxu0
  %v2735 = vadd.f32 %v2626, %v2731
  %v2736 = vadd.f32 %v2627, %v2733
  %vm2737 = vcmp.ge.f32.partialorder %v2735, 0.0
  %vm2738 = vcmp.ge.f32.partialorder %v2736, 0.0
  %v2739 = vmul.f32 %v2735, 0.05
  %v2740 = vmul.f32 %v2736, 0.05
  %v2741 = vsel %vm2737, %v2735, %v2739
  %v2742 = vsel %vm2738, %v2736, %v2740
  %v2745 = vrot.slane %v2741, 3
  %v2746 = vrot.slane %v2742, 3
  %2749 = vst [vmem:[%s962] sm:$0xe0] %v2745
  %2750 = vst.msk [vmem:[%s962 + $0x8] sm:$0xe0] %vm2300, %v2746
  %2751 = vst [vmem:[%s962 + $0x10] sm:$0x1] %v2745
  %2752 = vst.msk [vmem:[%s962 + $0x18] sm:$0x1] %vm2303, %v2746
  %v2753 = vld [vmem:[%s736 + $0x5] sm:$0xf]
  %v2754 = vld [vmem:[%s1] sm:$0xff]
  %v2755 = vld [vmem:[%s1 + $0x8] sm:$0xff]
  %v2756 = vld [vmem:[%s1 + $0x10] sm:$0xff]
  %v2757 = vld [vmem:[%s1 + $0x18] sm:$0xff]
  %v2758 = vld [vmem:[%s1 + $0x20] sm:$0xff]
  %v2759 = vld [vmem:[%s1 + $0x28] sm:$0xff]
  %v2760 = vld [vmem:[%s1 + $0x30] sm:$0xff]
  %v2761 = vld [vmem:[%s1 + $0x38] sm:$0xff]
  %v2762 = vld [vmem:[%s1 + $0x40] sm:$0xff]
  %v2763 = vld [vmem:[%s1 + $0x48] sm:$0xff]
  %v2764 = vld [vmem:[%s1 + $0x50] sm:$0xff]
  %v2765 = vld [vmem:[%s1 + $0x58] sm:$0xff]
  %v2766 = vld [vmem:[%s1 + $0x60] sm:$0xff]
  %v2767 = vld [vmem:[%s1 + $0x68] sm:$0xff]
  %v2768 = vld [vmem:[%s1 + $0x70] sm:$0xff]
  %v2769 = vld [vmem:[%s1 + $0x78] sm:$0xff]
  %v2770 = vld [vmem:[%s1 + $0x80] sm:$0xff]
  %v2771 = vld [vmem:[%s1 + $0x88] sm:$0xff]
  %v2772 = vld [vmem:[%s1 + $0x90] sm:$0xff]
  %v2773 = vld [vmem:[%s1 + $0x98] sm:$0xff]
  %v2774 = vld [vmem:[%s1 + $0xa0] sm:$0xff]
  %v2775 = vld [vmem:[%s1 + $0xa8] sm:$0xff]
  %v2776 = vld [vmem:[%s1 + $0xb0] sm:$0xff]
  %v2777 = vld [vmem:[%s1 + $0xb8] sm:$0xff]
  %v2778 = vld [vmem:[%s1 + $0xc0] sm:$0x3f]
  %v2779 = vld [vmem:[%s1 + $0xc8] sm:$0x3f]
  %v2780 = vld [vmem:[%s846 + $0x5] sm:$0xf]
  %v2781 = vld [vmem:[%s101] sm:$0xff]
  %v2782 = vld [vmem:[%s101 + $0x8] sm:$0xff]
  %v2783 = vld [vmem:[%s101 + $0x10] sm:$0xff]
  %v2784 = vld [vmem:[%s101 + $0x18] sm:$0xff]
  %v2785 = vld [vmem:[%s101 + $0x20] sm:$0xff]
  %v2786 = vld [vmem:[%s101 + $0x28] sm:$0xff]
  %v2787 = vld [vmem:[%s101 + $0x30] sm:$0xff]
  %v2788 = vld [vmem:[%s101 + $0x38] sm:$0xff]
  %v2789 = vld [vmem:[%s101 + $0x40] sm:$0xff]
  %v2790 = vld [vmem:[%s101 + $0x48] sm:$0xff]
  %v2791 = vld [vmem:[%s101 + $0x50] sm:$0xff]
  %v2792 = vld [vmem:[%s101 + $0x58] sm:$0xff]
  %v2793 = vld [vmem:[%s101 + $0x60] sm:$0xff]
  %v2794 = vld [vmem:[%s101 + $0x68] sm:$0xff]
  %v2795 = vld [vmem:[%s101 + $0x70] sm:$0xff]
  %v2796 = vld [vmem:[%s101 + $0x78] sm:$0xff]
  %v2797 = vld [vmem:[%s101 + $0x80] sm:$0xff]
  %v2798 = vld [vmem:[%s101 + $0x88] sm:$0xff]
  %v2799 = vld [vmem:[%s101 + $0x90] sm:$0xff]
  %v2800 = vld [vmem:[%s101 + $0x98] sm:$0xff]
  %v2801 = vld [vmem:[%s101 + $0xa0] sm:$0xff]
  %v2802 = vld [vmem:[%s101 + $0xa8] sm:$0xff]
  %v2803 = vld [vmem:[%s101 + $0xb0] sm:$0xff]
  %v2804 = vld [vmem:[%s101 + $0xb8] sm:$0xff]
  %v2805 = vld [vmem:[%s101 + $0xc0] sm:$0x3f]
  %v2806 = vld [vmem:[%s101 + $0xc8] sm:$0x3f]
  %v2808 = vsel %vm128, %v2780, 0
  %v2811 = vsel %vm132, %v2805, 0
  %v2814 = vsel %vm132, %v2806, 0
  %2816 = vmatprep.subr.mxu0 %v2782
  %2817 = vmatpush1.msra.mxu0 %v2781
  %2818 = vmatprep.subr.mxu0 %v2784
  %2819 = vmatpush1.msra.mxu0 %v2783
  %2820 = vmatprep.subr.mxu0 %v2786
  %2821 = vmatpush1.msra.mxu0 %v2785
  %2822 = vmatprep.subr.mxu0 %v2788
  %2823 = vmatpush1.msra.mxu0 %v2787
  %2824 = vmatprep.subr.mxu0 %v2790
  %2825 = vmatpush1.msra.mxu0 %v2789
  %2826 = vmatprep.subr.mxu0 %v2792
  %2827 = vmatpush1.msra.mxu0 %v2791
  %2828 = vmatprep.subr.mxu0 %v2794
  %2829 = vmatpush1.msra.mxu0 %v2793
  %2830 = vmatprep.subr.mxu0 %v2796
  %2831 = vmatpush1.msra.mxu0 %v2795
  %2832 = vmatprep.subr.mxu0 %v2798
  %2833 = vmatpush1.msra.mxu0 %v2797
  %2834 = vmatprep.subr.mxu0 %v2800
  %2835 = vmatpush1.msra.mxu0 %v2799
  %2836 = vmatprep.subr.mxu0 %v2802
  %2837 = vmatpush1.msra.mxu0 %v2801
  %2838 = vmatprep.subr.mxu0 %v2804
  %2839 = vmatpush1.msra.mxu0 %v2803
  %2840 = vmatprep.subr.mxu0 %v2814
  %2841 = vmatpush1.msra.mxu0 %v2811
  %2842 = vmatprep.subr.mxu0 0.0
  %2843 = vmatpush1.msra.mxu0 0.0
  %2844 = vmatprep.subr.mxu0 0.0
  %2845 = vmatpush1.msra.mxu0 0.0
  %2846 = vmatprep.subr.mxu0 0.0
  %2847 = vmatpush1.msra.mxu0 0.0
  %2848 = vmatprep.subr.mxu0 0.0
  %2849 = vmatpush1.msra.mxu0 0.0
  %2850 = vmatprep.subr.mxu0 0.0
  %2851 = vmatpush1.msra.mxu0 0.0
  %2852 = vmatprep.subr.mxu0 0.0
  %2853 = vmatpush1.msra.mxu0 0.0
  %2854 = vmatprep.subr.mxu0 0.0
  %2855 = vmatpush1.msra.mxu0 0.0
  %2856 = vmatprep.subr.mxu0 0.0
  %2857 = vmatpush1.msra.mxu0 0.0
  %2858 = vmatprep.subr.mxu0 0.0
  %2859 = vmatpush1.msra.mxu0 0.0
  %2860 = vmatprep.subr.mxu0 0.0
  %2861 = vmatpush1.msra.mxu0 0.0
  %2862 = vmatprep.subr.mxu0 0.0
  %2863 = vmatpush1.msra.mxu0 0.0
  %2864 = vmatprep.subr.mxu0 0.0
  %2865 = vmatpush1.msra.mxu0 0.0
  %2866 = vmatprep.subr.mxu0 0.0
  %2867 = vmatpush1.msra.mxu0 0.0
  %2868 = vmatprep.subr.mxu0 0.0
  %2869 = vmatpush1.msra.mxu0 0.0
  %2870 = vmatprep.subr.mxu0 0.0
  %2871 = vmatpush1.msra.mxu0 0.0
  %2872 = vmatprep.subr.mxu0 0.0
  %2873 = vmatpush1.msra.mxu0 0.0
  %2874 = vmatprep.subr.mxu0 0.0
  %2875 = vmatpush1.msra.mxu0 0.0
  %2876 = vmatprep.subr.mxu0 0.0
  %2877 = vmatpush1.msra.mxu0 0.0
  %2878 = vmatprep.subr.mxu0 0.0
  %2879 = vmatpush1.msra.mxu0 0.0
  %2880 = vmatprep.mubr.f32.mxu0 0.0
  %2881 = vmatmul.mubr.f32.gmra.mrb[0].mxu0 %v2808
  %v2882 = vpop.f32.mrb[0].mxu0
  %v2883 = vadd.f32 0.0, %v2882
  %v2884 = vpop.f32.mrb[0].mxu0
  %v2885 = vadd.f32 0.0, %v2884
  %2886 = vdwg.mxu0
  %v2888 = vsel %vm128, %v2753, 0
  %v2891 = vsel %vm132, %v2778, 0
  %v2894 = vsel %vm132, %v2779, 0
  %2896 = vmatprep.subr.mxu0 %v2755
  %2897 = vmatpush1.msra.mxu0 %v2754
  %2898 = vmatprep.subr.mxu0 %v2757
  %2899 = vmatpush1.msra.mxu0 %v2756
  %2900 = vmatprep.subr.mxu0 %v2759
  %2901 = vmatpush1.msra.mxu0 %v2758
  %2902 = vmatprep.subr.mxu0 %v2761
  %2903 = vmatpush1.msra.mxu0 %v2760
  %2904 = vmatprep.subr.mxu0 %v2763
  %2905 = vmatpush1.msra.mxu0 %v2762
  %2906 = vmatprep.subr.mxu0 %v2765
  %2907 = vmatpush1.msra.mxu0 %v2764
  %2908 = vmatprep.subr.mxu0 %v2767
  %2909 = vmatpush1.msra.mxu0 %v2766
  %2910 = vmatprep.subr.mxu0 %v2769
  %2911 = vmatpush1.msra.mxu0 %v2768
  %2912 = vmatprep.subr.mxu0 %v2771
  %2913 = vmatpush1.msra.mxu0 %v2770
  %2914 = vmatprep.subr.mxu0 %v2773
  %2915 = vmatpush1.msra.mxu0 %v2772
  %2916 = vmatprep.subr.mxu0 %v2775
  %2917 = vmatpush1.msra.mxu0 %v2774
  %2918 = vmatprep.subr.mxu0 %v2777
  %2919 = vmatpush1.msra.mxu0 %v2776
  %2920 = vmatprep.subr.mxu0 %v2894
  %2921 = vmatpush1.msra.mxu0 %v2891
  %2922 = vmatprep.subr.mxu0 0.0
  %2923 = vmatpush1.msra.mxu0 0.0
  %2924 = vmatprep.subr.mxu0 0.0
  %2925 = vmatpush1.msra.mxu0 0.0
  %2926 = vmatprep.subr.mxu0 0.0
  %2927 = vmatpush1.msra.mxu0 0.0
  %2928 = vmatprep.subr.mxu0 0.0
  %2929 = vmatpush1.msra.mxu0 0.0
  %2930 = vmatprep.subr.mxu0 0.0
  %2931 = vmatpush1.msra.mxu0 0.0
  %2932 = vmatprep.subr.mxu0 0.0
  %2933 = vmatpush1.msra.mxu0 0.0
  %2934 = vmatprep.subr.mxu0 0.0
  %2935 = vmatpush1.msra.mxu0 0.0
  %2936 = vmatprep.subr.mxu0 0.0
  %2937 = vmatpush1.msra.mxu0 0.0
  %2938 = vmatprep.subr.mxu0 0.0
  %2939 = vmatpush1.msra.mxu0 0.0
  %2940 = vmatprep.subr.mxu0 0.0
  %2941 = vmatpush1.msra.mxu0 0.0
  %2942 = vmatprep.subr.mxu0 0.0
  %2943 = vmatpush1.msra.mxu0 0.0
  %2944 = vmatprep.subr.mxu0 0.0
  %2945 = vmatpush1.msra.mxu0 0.0
  %2946 = vmatprep.subr.mxu0 0.0
  %2947 = vmatpush1.msra.mxu0 0.0
  %2948 = vmatprep.subr.mxu0 0.0
  %2949 = vmatpush1.msra.mxu0 0.0
  %2950 = vmatprep.subr.mxu0 0.0
  %2951 = vmatpush1.msra.mxu0 0.0
  %2952 = vmatprep.subr.mxu0 0.0
  %2953 = vmatpush1.msra.mxu0 0.0
  %2954 = vmatprep.subr.mxu0 0.0
  %2955 = vmatpush1.msra.mxu0 0.0
  %2956 = vmatprep.subr.mxu0 0.0
  %2957 = vmatpush1.msra.mxu0 0.0
  %2958 = vmatprep.subr.mxu0 0.0
  %2959 = vmatpush1.msra.mxu0 0.0
  %2960 = vmatprep.mubr.f32.mxu0 0.0
  %2961 = vmatmul.mubr.f32.gmra.mrb[0].mxu0 %v2888
  %v2962 = vpop.f32.mrb[0].mxu0
  %v2963 = vadd.f32 %v2883, %v2962
  %v2964 = vpop.f32.mrb[0].mxu0
  %v2965 = vadd.f32 %v2885, %v2964
  %2966 = vdwg.mxu0
  %v2967 = vld [vmem:[%s1179 + $0x5] sm:$0xf]
  %v2968 = vld [vmem:[%s292] sm:$0xff]
  %v2969 = vld [vmem:[%s292 + $0x8] sm:$0xff]
  %v2970 = vld [vmem:[%s292 + $0x10] sm:$0xff]
  %v2971 = vld [vmem:[%s292 + $0x18] sm:$0xff]
  %v2972 = vld [vmem:[%s292 + $0x20] sm:$0xff]
  %v2973 = vld [vmem:[%s292 + $0x28] sm:$0xff]
  %v2974 = vld [vmem:[%s292 + $0x30] sm:$0xff]
  %v2975 = vld [vmem:[%s292 + $0x38] sm:$0xff]
  %v2976 = vld [vmem:[%s292 + $0x40] sm:$0xff]
  %v2977 = vld [vmem:[%s292 + $0x48] sm:$0xff]
  %v2978 = vld [vmem:[%s292 + $0x50] sm:$0xff]
  %v2979 = vld [vmem:[%s292 + $0x58] sm:$0xff]
  %v2980 = vld [vmem:[%s292 + $0x60] sm:$0xff]
  %v2981 = vld [vmem:[%s292 + $0x68] sm:$0xff]
  %v2982 = vld [vmem:[%s292 + $0x70] sm:$0xff]
  %v2983 = vld [vmem:[%s292 + $0x78] sm:$0xff]
  %v2984 = vld [vmem:[%s292 + $0x80] sm:$0xff]
  %v2985 = vld [vmem:[%s292 + $0x88] sm:$0xff]
  %v2986 = vld [vmem:[%s292 + $0x90] sm:$0xff]
  %v2987 = vld [vmem:[%s292 + $0x98] sm:$0xff]
  %v2988 = vld [vmem:[%s292 + $0xa0] sm:$0xff]
  %v2989 = vld [vmem:[%s292 + $0xa8] sm:$0xff]
  %v2990 = vld [vmem:[%s292 + $0xb0] sm:$0xff]
  %v2991 = vld [vmem:[%s292 + $0xb8] sm:$0xff]
  %v2992 = vld [vmem:[%s292 + $0xc0] sm:$0x3f]
  %v2993 = vld [vmem:[%s292 + $0xc8] sm:$0x3f]
  %v2995 = vsel %vm128, %v2967, 0
  %v2998 = vsel %vm132, %v2992, 0
  %v3001 = vsel %vm132, %v2993, 0
  %3003 = vmatprep.subr.mxu0 %v2969
  %3004 = vmatpush1.msra.mxu0 %v2968
  %3005 = vmatprep.subr.mxu0 %v2971
  %3006 = vmatpush1.msra.mxu0 %v2970
  %3007 = vmatprep.subr.mxu0 %v2973
  %3008 = vmatpush1.msra.mxu0 %v2972
  %3009 = vmatprep.subr.mxu0 %v2975
  %3010 = vmatpush1.msra.mxu0 %v2974
  %3011 = vmatprep.subr.mxu0 %v2977
  %3012 = vmatpush1.msra.mxu0 %v2976
  %3013 = vmatprep.subr.mxu0 %v2979
  %3014 = vmatpush1.msra.mxu0 %v2978
  %3015 = vmatprep.subr.mxu0 %v2981
  %3016 = vmatpush1.msra.mxu0 %v2980
  %3017 = vmatprep.subr.mxu0 %v2983
  %3018 = vmatpush1.msra.mxu0 %v2982
  %3019 = vmatprep.subr.mxu0 %v2985
  %3020 = vmatpush1.msra.mxu0 %v2984
  %3021 = vmatprep.subr.mxu0 %v2987
  %3022 = vmatpush1.msra.mxu0 %v2986
  %3023 = vmatprep.subr.mxu0 %v2989
  %3024 = vmatpush1.msra.mxu0 %v2988
  %3025 = vmatprep.subr.mxu0 %v2991
  %3026 = vmatpush1.msra.mxu0 %v2990
  %3027 = vmatprep.subr.mxu0 %v3001
  %3028 = vmatpush1.msra.mxu0 %v2998
  %3029 = vmatprep.subr.mxu0 0.0
  %3030 = vmatpush1.msra.mxu0 0.0
  %3031 = vmatprep.subr.mxu0 0.0
  %3032 = vmatpush1.msra.mxu0 0.0
  %3033 = vmatprep.subr.mxu0 0.0
  %3034 = vmatpush1.msra.mxu0 0.0
  %3035 = vmatprep.subr.mxu0 0.0
  %3036 = vmatpush1.msra.mxu0 0.0
  %3037 = vmatprep.subr.mxu0 0.0
  %3038 = vmatpush1.msra.mxu0 0.0
  %3039 = vmatprep.subr.mxu0 0.0
  %3040 = vmatpush1.msra.mxu0 0.0
  %3041 = vmatprep.subr.mxu0 0.0
  %3042 = vmatpush1.msra.mxu0 0.0
  %3043 = vmatprep.subr.mxu0 0.0
  %3044 = vmatpush1.msra.mxu0 0.0
  %3045 = vmatprep.subr.mxu0 0.0
  %3046 = vmatpush1.msra.mxu0 0.0
  %3047 = vmatprep.subr.mxu0 0.0
  %3048 = vmatpush1.msra.mxu0 0.0
  %3049 = vmatprep.subr.mxu0 0.0
  %3050 = vmatpush1.msra.mxu0 0.0
  %3051 = vmatprep.subr.mxu0 0.0
  %3052 = vmatpush1.msra.mxu0 0.0
  %3053 = vmatprep.subr.mxu0 0.0
  %3054 = vmatpush1.msra.mxu0 0.0
  %3055 = vmatprep.subr.mxu0 0.0
  %3056 = vmatpush1.msra.mxu0 0.0
  %3057 = vmatprep.subr.mxu0 0.0
  %3058 = vmatpush1.msra.mxu0 0.0
  %3059 = vmatprep.subr.mxu0 0.0
  %3060 = vmatpush1.msra.mxu0 0.0
  %3061 = vmatprep.subr.mxu0 0.0
  %3062 = vmatpush1.msra.mxu0 0.0
  %3063 = vmatprep.subr.mxu0 0.0
  %3064 = vmatpush1.msra.mxu0 0.0
  %3065 = vmatprep.subr.mxu0 0.0
  %3066 = vmatpush1.msra.mxu0 0.0
  %3067 = vmatprep.mubr.f32.mxu0 0.0
  %3068 = vmatmul.mubr.f32.gmra.mrb[0].mxu0 %v2995
  %v3069 = vpop.f32.mrb[0].mxu0
  %v3070 = vadd.f32 0.0, %v3069
  %v3071 = vpop.f32.mrb[0].mxu0
  %v3072 = vadd.f32 0.0, %v3071
  %3073 = vdwg.mxu0
  %v3074 = vadd.f32 %v2963, %v3070
  %v3075 = vadd.f32 %v2965, %v3072
  %v3076 = vld [vmem:[%s1289 + $0x5] sm:$0xf]
  %v3077 = vld [vmem:[%s403] sm:$0xff]
  %v3078 = vld [vmem:[%s403 + $0x8] sm:$0xff]
  %v3079 = vld [vmem:[%s403 + $0x10] sm:$0xff]
  %v3080 = vld [vmem:[%s403 + $0x18] sm:$0xff]
  %v3081 = vld [vmem:[%s403 + $0x20] sm:$0xff]
  %v3082 = vld [vmem:[%s403 + $0x28] sm:$0xff]
  %v3083 = vld [vmem:[%s403 + $0x30] sm:$0xff]
  %v3084 = vld [vmem:[%s403 + $0x38] sm:$0xff]
  %v3085 = vld [vmem:[%s403 + $0x40] sm:$0xff]
  %v3086 = vld [vmem:[%s403 + $0x48] sm:$0xff]
  %v3087 = vld [vmem:[%s403 + $0x50] sm:$0xff]
  %v3088 = vld [vmem:[%s403 + $0x58] sm:$0xff]
  %v3089 = vld [vmem:[%s403 + $0x60] sm:$0xff]
  %v3090 = vld [vmem:[%s403 + $0x68] sm:$0xff]
  %v3091 = vld [vmem:[%s403 + $0x70] sm:$0xff]
  %v3092 = vld [vmem:[%s403 + $0x78] sm:$0xff]
  %v3093 = vld [vmem:[%s403 + $0x80] sm:$0xff]
  %v3094 = vld [vmem:[%s403 + $0x88] sm:$0xff]
  %v3095 = vld [vmem:[%s403 + $0x90] sm:$0xff]
  %v3096 = vld [vmem:[%s403 + $0x98] sm:$0xff]
  %v3097 = vld [vmem:[%s403 + $0xa0] sm:$0xff]
  %v3098 = vld [vmem:[%s403 + $0xa8] sm:$0xff]
  %v3099 = vld [vmem:[%s403 + $0xb0] sm:$0xff]
  %v3100 = vld [vmem:[%s403 + $0xb8] sm:$0xff]
  %v3101 = vld [vmem:[%s403 + $0xc0] sm:$0x3f]
  %v3102 = vld [vmem:[%s403 + $0xc8] sm:$0x3f]
  %v3104 = vsel %vm128, %v3076, 0
  %v3107 = vsel %vm132, %v3101, 0
  %v3110 = vsel %vm132, %v3102, 0
  %3112 = vmatprep.subr.mxu0 %v3078
  %3113 = vmatpush1.msra.mxu0 %v3077
  %3114 = vmatprep.subr.mxu0 %v3080
  %3115 = vmatpush1.msra.mxu0 %v3079
  %3116 = vmatprep.subr.mxu0 %v3082
  %3117 = vmatpush1.msra.mxu0 %v3081
  %3118 = vmatprep.subr.mxu0 %v3084
  %3119 = vmatpush1.msra.mxu0 %v3083
  %3120 = vmatprep.subr.mxu0 %v3086
  %3121 = vmatpush1.msra.mxu0 %v3085
  %3122 = vmatprep.subr.mxu0 %v3088
  %3123 = vmatpush1.msra.mxu0 %v3087
  %3124 = vmatprep.subr.mxu0 %v3090
  %3125 = vmatpush1.msra.mxu0 %v3089
  %3126 = vmatprep.subr.mxu0 %v3092
  %3127 = vmatpush1.msra.mxu0 %v3091
  %3128 = vmatprep.subr.mxu0 %v3094
  %3129 = vmatpush1.msra.mxu0 %v3093
  %3130 = vmatprep.subr.mxu0 %v3096
  %3131 = vmatpush1.msra.mxu0 %v3095
  %3132 = vmatprep.subr.mxu0 %v3098
  %3133 = vmatpush1.msra.mxu0 %v3097
  %3134 = vmatprep.subr.mxu0 %v3100
  %3135 = vmatpush1.msra.mxu0 %v3099
  %3136 = vmatprep.subr.mxu0 %v3110
  %3137 = vmatpush1.msra.mxu0 %v3107
  %3138 = vmatprep.subr.mxu0 0.0
  %3139 = vmatpush1.msra.mxu0 0.0
  %3140 = vmatprep.subr.mxu0 0.0
  %3141 = vmatpush1.msra.mxu0 0.0
  %3142 = vmatprep.subr.mxu0 0.0
  %3143 = vmatpush1.msra.mxu0 0.0
  %3144 = vmatprep.subr.mxu0 0.0
  %3145 = vmatpush1.msra.mxu0 0.0
  %3146 = vmatprep.subr.mxu0 0.0
  %3147 = vmatpush1.msra.mxu0 0.0
  %3148 = vmatprep.subr.mxu0 0.0
  %3149 = vmatpush1.msra.mxu0 0.0
  %3150 = vmatprep.subr.mxu0 0.0
  %3151 = vmatpush1.msra.mxu0 0.0
  %3152 = vmatprep.subr.mxu0 0.0
  %3153 = vmatpush1.msra.mxu0 0.0
  %3154 = vmatprep.subr.mxu0 0.0
  %3155 = vmatpush1.msra.mxu0 0.0
  %3156 = vmatprep.subr.mxu0 0.0
  %3157 = vmatpush1.msra.mxu0 0.0
  %3158 = vmatprep.subr.mxu0 0.0
  %3159 = vmatpush1.msra.mxu0 0.0
  %3160 = vmatprep.subr.mxu0 0.0
  %3161 = vmatpush1.msra.mxu0 0.0
  %3162 = vmatprep.subr.mxu0 0.0
  %3163 = vmatpush1.msra.mxu0 0.0
  %3164 = vmatprep.subr.mxu0 0.0
  %3165 = vmatpush1.msra.mxu0 0.0
  %3166 = vmatprep.subr.mxu0 0.0
  %3167 = vmatpush1.msra.mxu0 0.0
  %3168 = vmatprep.subr.mxu0 0.0
  %3169 = vmatpush1.msra.mxu0 0.0
  %3170 = vmatprep.subr.mxu0 0.0
  %3171 = vmatpush1.msra.mxu0 0.0
  %3172 = vmatprep.subr.mxu0 0.0
  %3173 = vmatpush1.msra.mxu0 0.0
  %3174 = vmatprep.subr.mxu0 0.0
  %3175 = vmatpush1.msra.mxu0 0.0
  %3176 = vmatprep.mubr.f32.mxu0 0.0
  %3177 = vmatmul.mubr.f32.gmra.mrb[0].mxu0 %v3104
  %v3178 = vpop.f32.mrb[0].mxu0
  %v3179 = vadd.f32 0.0, %v3178
  %v3180 = vpop.f32.mrb[0].mxu0
  %v3181 = vadd.f32 0.0, %v3180
  %3182 = vdwg.mxu0
  %v3183 = vadd.f32 %v3074, %v3179
  %v3184 = vadd.f32 %v3075, %v3181
  %vm3185 = vcmp.ge.f32.partialorder %v3183, 0.0
  %vm3186 = vcmp.ge.f32.partialorder %v3184, 0.0
  %v3187 = vmul.f32 %v3183, 0.05
  %v3188 = vmul.f32 %v3184, 0.05
  %v3189 = vsel %vm3185, %v3183, %v3187
  %v3190 = vsel %vm3186, %v3184, %v3188
  %v3193 = vrot.slane %v3189, 3
  %v3194 = vrot.slane %v3190, 3
  %3197 = vst [vmem:[%s1405] sm:$0xe0] %v3193
  %3198 = vst.msk [vmem:[%s1405 + $0x8] sm:$0xe0] %vm2300, %v3194
  %3199 = vst [vmem:[%s1405 + $0x10] sm:$0x1] %v3193
  %3200 = vst.msk [vmem:[%s1405 + $0x18] sm:$0x1] %vm2303, %v3194
  %v3201 = vld [vmem:[%s1179 + $0x5] sm:$0xf]
  %v3202 = vld [vmem:[%s1] sm:$0xff]
  %v3203 = vld [vmem:[%s1 + $0x8] sm:$0xff]
  %v3204 = vld [vmem:[%s1 + $0x10] sm:$0xff]
  %v3205 = vld [vmem:[%s1 + $0x18] sm:$0xff]
  %v3206 = vld [vmem:[%s1 + $0x20] sm:$0xff]
  %v3207 = vld [vmem:[%s1 + $0x28] sm:$0xff]
  %v3208 = vld [vmem:[%s1 + $0x30] sm:$0xff]
  %v3209 = vld [vmem:[%s1 + $0x38] sm:$0xff]
  %v3210 = vld [vmem:[%s1 + $0x40] sm:$0xff]
  %v3211 = vld [vmem:[%s1 + $0x48] sm:$0xff]
  %v3212 = vld [vmem:[%s1 + $0x50] sm:$0xff]
  %v3213 = vld [vmem:[%s1 + $0x58] sm:$0xff]
  %v3214 = vld [vmem:[%s1 + $0x60] sm:$0xff]
  %v3215 = vld [vmem:[%s1 + $0x68] sm:$0xff]
  %v3216 = vld [vmem:[%s1 + $0x70] sm:$0xff]
  %v3217 = vld [vmem:[%s1 + $0x78] sm:$0xff]
  %v3218 = vld [vmem:[%s1 + $0x80] sm:$0xff]
  %v3219 = vld [vmem:[%s1 + $0x88] sm:$0xff]
  %v3220 = vld [vmem:[%s1 + $0x90] sm:$0xff]
  %v3221 = vld [vmem:[%s1 + $0x98] sm:$0xff]
  %v3222 = vld [vmem:[%s1 + $0xa0] sm:$0xff]
  %v3223 = vld [vmem:[%s1 + $0xa8] sm:$0xff]
  %v3224 = vld [vmem:[%s1 + $0xb0] sm:$0xff]
  %v3225 = vld [vmem:[%s1 + $0xb8] sm:$0xff]
  %v3226 = vld [vmem:[%s1 + $0xc0] sm:$0x3f]
  %v3227 = vld [vmem:[%s1 + $0xc8] sm:$0x3f]
  %v3228 = vld [vmem:[%s1289 + $0x5] sm:$0xf]
  %v3229 = vld [vmem:[%s101] sm:$0xff]
  %v3230 = vld [vmem:[%s101 + $0x8] sm:$0xff]
  %v3231 = vld [vmem:[%s101 + $0x10] sm:$0xff]
  %v3232 = vld [vmem:[%s101 + $0x18] sm:$0xff]
  %v3233 = vld [vmem:[%s101 + $0x20] sm:$0xff]
  %v3234 = vld [vmem:[%s101 + $0x28] sm:$0xff]
  %v3235 = vld [vmem:[%s101 + $0x30] sm:$0xff]
  %v3236 = vld [vmem:[%s101 + $0x38] sm:$0xff]
  %v3237 = vld [vmem:[%s101 + $0x40] sm:$0xff]
  %v3238 = vld [vmem:[%s101 + $0x48] sm:$0xff]
  %v3239 = vld [vmem:[%s101 + $0x50] sm:$0xff]
  %v3240 = vld [vmem:[%s101 + $0x58] sm:$0xff]
  %v3241 = vld [vmem:[%s101 + $0x60] sm:$0xff]
  %v3242 = vld [vmem:[%s101 + $0x68] sm:$0xff]
  %v3243 = vld [vmem:[%s101 + $0x70] sm:$0xff]
  %v3244 = vld [vmem:[%s101 + $0x78] sm:$0xff]
  %v3245 = vld [vmem:[%s101 + $0x80] sm:$0xff]
  %v3246 = vld [vmem:[%s101 + $0x88] sm:$0xff]
  %v3247 = vld [vmem:[%s101 + $0x90] sm:$0xff]
  %v3248 = vld [vmem:[%s101 + $0x98] sm:$0xff]
  %v3249 = vld [vmem:[%s101 + $0xa0] sm:$0xff]
  %v3250 = vld [vmem:[%s101 + $0xa8] sm:$0xff]
  %v3251 = vld [vmem:[%s101 + $0xb0] sm:$0xff]
  %v3252 = vld [vmem:[%s101 + $0xb8] sm:$0xff]
  %v3253 = vld [vmem:[%s101 + $0xc0] sm:$0x3f]
  %v3254 = vld [vmem:[%s101 + $0xc8] sm:$0x3f]
  %v3256 = vsel %vm128, %v3228, 0
  %v3259 = vsel %vm132, %v3253, 0
  %v3262 = vsel %vm132, %v3254, 0
  %3264 = vmatprep.subr.mxu0 %v3230
  %3265 = vmatpush1.msra.mxu0 %v3229
  %3266 = vmatprep.subr.mxu0 %v3232
  %3267 = vmatpush1.msra.mxu0 %v3231
  %3268 = vmatprep.subr.mxu0 %v3234
  %3269 = vmatpush1.msra.mxu0 %v3233
  %3270 = vmatprep.subr.mxu0 %v3236
  %3271 = vmatpush1.msra.mxu0 %v3235
  %3272 = vmatprep.subr.mxu0 %v3238
  %3273 = vmatpush1.msra.mxu0 %v3237
  %3274 = vmatprep.subr.mxu0 %v3240
  %3275 = vmatpush1.msra.mxu0 %v3239
  %3276 = vmatprep.subr.mxu0 %v3242
  %3277 = vmatpush1.msra.mxu0 %v3241
  %3278 = vmatprep.subr.mxu0 %v3244
  %3279 = vmatpush1.msra.mxu0 %v3243
  %3280 = vmatprep.subr.mxu0 %v3246
  %3281 = vmatpush1.msra.mxu0 %v3245
  %3282 = vmatprep.subr.mxu0 %v3248
  %3283 = vmatpush1.msra.mxu0 %v3247
  %3284 = vmatprep.subr.mxu0 %v3250
  %3285 = vmatpush1.msra.mxu0 %v3249
  %3286 = vmatprep.subr.mxu0 %v3252
  %3287 = vmatpush1.msra.mxu0 %v3251
  %3288 = vmatprep.subr.mxu0 %v3262
  %3289 = vmatpush1.msra.mxu0 %v3259
  %3290 = vmatprep.subr.mxu0 0.0
  %3291 = vmatpush1.msra.mxu0 0.0
  %3292 = vmatprep.subr.mxu0 0.0
  %3293 = vmatpush1.msra.mxu0 0.0
  %3294 = vmatprep.subr.mxu0 0.0
  %3295 = vmatpush1.msra.mxu0 0.0
  %3296 = vmatprep.subr.mxu0 0.0
  %3297 = vmatpush1.msra.mxu0 0.0
  %3298 = vmatprep.subr.mxu0 0.0
  %3299 = vmatpush1.msra.mxu0 0.0
  %3300 = vmatprep.subr.mxu0 0.0
  %3301 = vmatpush1.msra.mxu0 0.0
  %3302 = vmatprep.subr.mxu0 0.0
  %3303 = vmatpush1.msra.mxu0 0.0
  %3304 = vmatprep.subr.mxu0 0.0
  %3305 = vmatpush1.msra.mxu0 0.0
  %3306 = vmatprep.subr.mxu0 0.0
  %3307 = vmatpush1.msra.mxu0 0.0
  %3308 = vmatprep.subr.mxu0 0.0
  %3309 = vmatpush1.msra.mxu0 0.0
  %3310 = vmatprep.subr.mxu0 0.0
  %3311 = vmatpush1.msra.mxu0 0.0
  %3312 = vmatprep.subr.mxu0 0.0
  %3313 = vmatpush1.msra.mxu0 0.0
  %3314 = vmatprep.subr.mxu0 0.0
  %3315 = vmatpush1.msra.mxu0 0.0
  %3316 = vmatprep.subr.mxu0 0.0
  %3317 = vmatpush1.msra.mxu0 0.0
  %3318 = vmatprep.subr.mxu0 0.0
  %3319 = vmatpush1.msra.mxu0 0.0
  %3320 = vmatprep.subr.mxu0 0.0
  %3321 = vmatpush1.msra.mxu0 0.0
  %3322 = vmatprep.subr.mxu0 0.0
  %3323 = vmatpush1.msra.mxu0 0.0
  %3324 = vmatprep.subr.mxu0 0.0
  %3325 = vmatpush1.msra.mxu0 0.0
  %3326 = vmatprep.subr.mxu0 0.0
  %3327 = vmatpush1.msra.mxu0 0.0
  %3328 = vmatprep.mubr.f32.mxu0 0.0
  %3329 = vmatmul.mubr.f32.gmra.mrb[0].mxu0 %v3256
  %v3330 = vpop.f32.mrb[0].mxu0
  %v3331 = vadd.f32 0.0, %v3330
  %v3332 = vpop.f32.mrb[0].mxu0
  %v3333 = vadd.f32 0.0, %v3332
  %3334 = vdwg.mxu0
  %v3336 = vsel %vm128, %v3201, 0
  %v3339 = vsel %vm132, %v3226, 0
  %v3342 = vsel %vm132, %v3227, 0
  %3344 = vmatprep.subr.mxu0 %v3203
  %3345 = vmatpush1.msra.mxu0 %v3202
  %3346 = vmatprep.subr.mxu0 %v3205
  %3347 = vmatpush1.msra.mxu0 %v3204
  %3348 = vmatprep.subr.mxu0 %v3207
  %3349 = vmatpush1.msra.mxu0 %v3206
  %3350 = vmatprep.subr.mxu0 %v3209
  %3351 = vmatpush1.msra.mxu0 %v3208
  %3352 = vmatprep.subr.mxu0 %v3211
  %3353 = vmatpush1.msra.mxu0 %v3210
  %3354 = vmatprep.subr.mxu0 %v3213
  %3355 = vmatpush1.msra.mxu0 %v3212
  %3356 = vmatprep.subr.mxu0 %v3215
  %3357 = vmatpush1.msra.mxu0 %v3214
  %3358 = vmatprep.subr.mxu0 %v3217
  %3359 = vmatpush1.msra.mxu0 %v3216
  %3360 = vmatprep.subr.mxu0 %v3219
  %3361 = vmatpush1.msra.mxu0 %v3218
  %3362 = vmatprep.subr.mxu0 %v3221
  %3363 = vmatpush1.msra.mxu0 %v3220
  %3364 = vmatprep.subr.mxu0 %v3223
  %3365 = vmatpush1.msra.mxu0 %v3222
  %3366 = vmatprep.subr.mxu0 %v3225
  %3367 = vmatpush1.msra.mxu0 %v3224
  %3368 = vmatprep.subr.mxu0 %v3342
  %3369 = vmatpush1.msra.mxu0 %v3339
  %3370 = vmatprep.subr.mxu0 0.0
  %3371 = vmatpush1.msra.mxu0 0.0
  %3372 = vmatprep.subr.mxu0 0.0
  %3373 = vmatpush1.msra.mxu0 0.0
  %3374 = vmatprep.subr.mxu0 0.0
  %3375 = vmatpush1.msra.mxu0 0.0
  %3376 = vmatprep.subr.mxu0 0.0
  %3377 = vmatpush1.msra.mxu0 0.0
  %3378 = vmatprep.subr.mxu0 0.0
  %3379 = vmatpush1.msra.mxu0 0.0
  %3380 = vmatprep.subr.mxu0 0.0
  %3381 = vmatpush1.msra.mxu0 0.0
  %3382 = vmatprep.subr.mxu0 0.0
  %3383 = vmatpush1.msra.mxu0 0.0
  %3384 = vmatprep.subr.mxu0 0.0
  %3385 = vmatpush1.msra.mxu0 0.0
  %3386 = vmatprep.subr.mxu0 0.0
  %3387 = vmatpush1.msra.mxu0 0.0
  %3388 = vmatprep.subr.mxu0 0.0
  %3389 = vmatpush1.msra.mxu0 0.0
  %3390 = vmatprep.subr.mxu0 0.0
  %3391 = vmatpush1.msra.mxu0 0.0
  %3392 = vmatprep.subr.mxu0 0.0
  %3393 = vmatpush1.msra.mxu0 0.0
  %3394 = vmatprep.subr.mxu0 0.0
  %3395 = vmatpush1.msra.mxu0 0.0
  %3396 = vmatprep.subr.mxu0 0.0
  %3397 = vmatpush1.msra.mxu0 0.0
  %3398 = vmatprep.subr.mxu0 0.0
  %3399 = vmatpush1.msra.mxu0 0.0
  %3400 = vmatprep.subr.mxu0 0.0
  %3401 = vmatpush1.msra.mxu0 0.0
  %3402 = vmatprep.subr.mxu0 0.0
  %3403 = vmatpush1.msra.mxu0 0.0
  %3404 = vmatprep.subr.mxu0 0.0
  %3405 = vmatpush1.msra.mxu0 0.0
  %3406 = vmatprep.subr.mxu0 0.0
  %3407 = vmatpush1.msra.mxu0 0.0
  %3408 = vmatprep.mubr.f32.mxu0 0.0
  %3409 = vmatmul.mubr.f32.gmra.mrb[0].mxu0 %v3336
  %v3410 = vpop.f32.mrb[0].mxu0
  %v3411 = vadd.f32 %v3331, %v3410
  %v3412 = vpop.f32.mrb[0].mxu0
  %v3413 = vadd.f32 %v3333, %v3412
  %3414 = vdwg.mxu0
  %v3415 = vld [vmem:[%s0 + $0x6] sm:$0xf]
  %v3416 = vld [vmem:[%s292] sm:$0xff]
  %v3417 = vld [vmem:[%s292 + $0x8] sm:$0xff]
  %v3418 = vld [vmem:[%s292 + $0x10] sm:$0xff]
  %v3419 = vld [vmem:[%s292 + $0x18] sm:$0xff]
  %v3420 = vld [vmem:[%s292 + $0x20] sm:$0xff]
  %v3421 = vld [vmem:[%s292 + $0x28] sm:$0xff]
  %v3422 = vld [vmem:[%s292 + $0x30] sm:$0xff]
  %v3423 = vld [vmem:[%s292 + $0x38] sm:$0xff]
  %v3424 = vld [vmem:[%s292 + $0x40] sm:$0xff]
  %v3425 = vld [vmem:[%s292 + $0x48] sm:$0xff]
  %v3426 = vld [vmem:[%s292 + $0x50] sm:$0xff]
  %v3427 = vld [vmem:[%s292 + $0x58] sm:$0xff]
  %v3428 = vld [vmem:[%s292 + $0x60] sm:$0xff]
  %v3429 = vld [vmem:[%s292 + $0x68] sm:$0xff]
  %v3430 = vld [vmem:[%s292 + $0x70] sm:$0xff]
  %v3431 = vld [vmem:[%s292 + $0x78] sm:$0xff]
  %v3432 = vld [vmem:[%s292 + $0x80] sm:$0xff]
  %v3433 = vld [vmem:[%s292 + $0x88] sm:$0xff]
  %v3434 = vld [vmem:[%s292 + $0x90] sm:$0xff]
  %v3435 = vld [vmem:[%s292 + $0x98] sm:$0xff]
  %v3436 = vld [vmem:[%s292 + $0xa0] sm:$0xff]
  %v3437 = vld [vmem:[%s292 + $0xa8] sm:$0xff]
  %v3438 = vld [vmem:[%s292 + $0xb0] sm:$0xff]
  %v3439 = vld [vmem:[%s292 + $0xb8] sm:$0xff]
  %v3440 = vld [vmem:[%s292 + $0xc0] sm:$0x3f]
  %v3441 = vld [vmem:[%s292 + $0xc8] sm:$0x3f]
  %v3443 = vsel %vm128, %v3415, 0
  %v3446 = vsel %vm132, %v3440, 0
  %v3449 = vsel %vm132, %v3441, 0
  %3451 = vmatprep.subr.mxu0 %v3417
  %3452 = vmatpush1.msra.mxu0 %v3416
  %3453 = vmatprep.subr.mxu0 %v3419
  %3454 = vmatpush1.msra.mxu0 %v3418
  %3455 = vmatprep.subr.mxu0 %v3421
  %3456 = vmatpush1.msra.mxu0 %v3420
  %3457 = vmatprep.subr.mxu0 %v3423
  %3458 = vmatpush1.msra.mxu0 %v3422
  %3459 = vmatprep.subr.mxu0 %v3425
  %3460 = vmatpush1.msra.mxu0 %v3424
  %3461 = vmatprep.subr.mxu0 %v3427
  %3462 = vmatpush1.msra.mxu0 %v3426
  %3463 = vmatprep.subr.mxu0 %v3429
  %3464 = vmatpush1.msra.mxu0 %v3428
  %3465 = vmatprep.subr.mxu0 %v3431
  %3466 = vmatpush1.msra.mxu0 %v3430
  %3467 = vmatprep.subr.mxu0 %v3433
  %3468 = vmatpush1.msra.mxu0 %v3432
  %3469 = vmatprep.subr.mxu0 %v3435
  %3470 = vmatpush1.msra.mxu0 %v3434
  %3471 = vmatprep.subr.mxu0 %v3437
  %3472 = vmatpush1.msra.mxu0 %v3436
  %3473 = vmatprep.subr.mxu0 %v3439
  %3474 = vmatpush1.msra.mxu0 %v3438
  %3475 = vmatprep.subr.mxu0 %v3449
  %3476 = vmatpush1.msra.mxu0 %v3446
  %3477 = vmatprep.subr.mxu0 0.0
  %3478 = vmatpush1.msra.mxu0 0.0
  %3479 = vmatprep.subr.mxu0 0.0
  %3480 = vmatpush1.msra.mxu0 0.0
  %3481 = vmatprep.subr.mxu0 0.0
  %3482 = vmatpush1.msra.mxu0 0.0
  %3483 = vmatprep.subr.mxu0 0.0
  %3484 = vmatpush1.msra.mxu0 0.0
  %3485 = vmatprep.subr.mxu0 0.0
  %3486 = vmatpush1.msra.mxu0 0.0
  %3487 = vmatprep.subr.mxu0 0.0
  %3488 = vmatpush1.msra.mxu0 0.0
  %3489 = vmatprep.subr.mxu0 0.0
  %3490 = vmatpush1.msra.mxu0 0.0
  %3491 = vmatprep.subr.mxu0 0.0
  %3492 = vmatpush1.msra.mxu0 0.0
  %3493 = vmatprep.subr.mxu0 0.0
  %3494 = vmatpush1.msra.mxu0 0.0
  %3495 = vmatprep.subr.mxu0 0.0
  %3496 = vmatpush1.msra.mxu0 0.0
  %3497 = vmatprep.subr.mxu0 0.0
  %3498 = vmatpush1.msra.mxu0 0.0
  %3499 = vmatprep.subr.mxu0 0.0
  %3500 = vmatpush1.msra.mxu0 0.0
  %3501 = vmatprep.subr.mxu0 0.0
  %3502 = vmatpush1.msra.mxu0 0.0
  %3503 = vmatprep.subr.mxu0 0.0
  %3504 = vmatpush1.msra.mxu0 0.0
  %3505 = vmatprep.subr.mxu0 0.0
  %3506 = vmatpush1.msra.mxu0 0.0
  %3507 = vmatprep.subr.mxu0 0.0
  %3508 = vmatpush1.msra.mxu0 0.0
  %3509 = vmatprep.subr.mxu0 0.0
  %3510 = vmatpush1.msra.mxu0 0.0
  %3511 = vmatprep.subr.mxu0 0.0
  %3512 = vmatpush1.msra.mxu0 0.0
  %3513 = vmatprep.subr.mxu0 0.0
  %3514 = vmatpush1.msra.mxu0 0.0
  %3515 = vmatprep.mubr.f32.mxu0 0.0
  %3516 = vmatmul.mubr.f32.gmra.mrb[0].mxu0 %v3443
  %v3517 = vpop.f32.mrb[0].mxu0
  %v3518 = vadd.f32 0.0, %v3517
  %v3519 = vpop.f32.mrb[0].mxu0
  %v3520 = vadd.f32 0.0, %v3519
  %3521 = vdwg.mxu0
  %v3522 = vadd.f32 %v3411, %v3518
  %v3523 = vadd.f32 %v3413, %v3520
  %v3524 = vld [vmem:[%s99 + $0x6] sm:$0xf]
  %v3525 = vld [vmem:[%s403] sm:$0xff]
  %v3526 = vld [vmem:[%s403 + $0x8] sm:$0xff]
  %v3527 = vld [vmem:[%s403 + $0x10] sm:$0xff]
  %v3528 = vld [vmem:[%s403 + $0x18] sm:$0xff]
  %v3529 = vld [vmem:[%s403 + $0x20] sm:$0xff]
  %v3530 = vld [vmem:[%s403 + $0x28] sm:$0xff]
  %v3531 = vld [vmem:[%s403 + $0x30] sm:$0xff]
  %v3532 = vld [vmem:[%s403 + $0x38] sm:$0xff]
  %v3533 = vld [vmem:[%s403 + $0x40] sm:$0xff]
  %v3534 = vld [vmem:[%s403 + $0x48] sm:$0xff]
  %v3535 = vld [vmem:[%s403 + $0x50] sm:$0xff]
  %v3536 = vld [vmem:[%s403 + $0x58] sm:$0xff]
  %v3537 = vld [vmem:[%s403 + $0x60] sm:$0xff]
  %v3538 = vld [vmem:[%s403 + $0x68] sm:$0xff]
  %v3539 = vld [vmem:[%s403 + $0x70] sm:$0xff]
  %v3540 = vld [vmem:[%s403 + $0x78] sm:$0xff]
  %v3541 = vld [vmem:[%s403 + $0x80] sm:$0xff]
  %v3542 = vld [vmem:[%s403 + $0x88] sm:$0xff]
  %v3543 = vld [vmem:[%s403 + $0x90] sm:$0xff]
  %v3544 = vld [vmem:[%s403 + $0x98] sm:$0xff]
  %v3545 = vld [vmem:[%s403 + $0xa0] sm:$0xff]
  %v3546 = vld [vmem:[%s403 + $0xa8] sm:$0xff]
  %v3547 = vld [vmem:[%s403 + $0xb0] sm:$0xff]
  %v3548 = vld [vmem:[%s403 + $0xb8] sm:$0xff]
  %v3549 = vld [vmem:[%s403 + $0xc0] sm:$0x3f]
  %v3550 = vld [vmem:[%s403 + $0xc8] sm:$0x3f]
  %v3552 = vsel %vm128, %v3524, 0
  %v3555 = vsel %vm132, %v3549, 0
  %v3558 = vsel %vm132, %v3550, 0
  %3560 = vmatprep.subr.mxu0 %v3526
  %3561 = vmatpush1.msra.mxu0 %v3525
  %3562 = vmatprep.subr.mxu0 %v3528
  %3563 = vmatpush1.msra.mxu0 %v3527
  %3564 = vmatprep.subr.mxu0 %v3530
  %3565 = vmatpush1.msra.mxu0 %v3529
  %3566 = vmatprep.subr.mxu0 %v3532
  %3567 = vmatpush1.msra.mxu0 %v3531
  %3568 = vmatprep.subr.mxu0 %v3534
  %3569 = vmatpush1.msra.mxu0 %v3533
  %3570 = vmatprep.subr.mxu0 %v3536
  %3571 = vmatpush1.msra.mxu0 %v3535
  %3572 = vmatprep.subr.mxu0 %v3538
  %3573 = vmatpush1.msra.mxu0 %v3537
  %3574 = vmatprep.subr.mxu0 %v3540
  %3575 = vmatpush1.msra.mxu0 %v3539
  %3576 = vmatprep.subr.mxu0 %v3542
  %3577 = vmatpush1.msra.mxu0 %v3541
  %3578 = vmatprep.subr.mxu0 %v3544
  %3579 = vmatpush1.msra.mxu0 %v3543
  %3580 = vmatprep.subr.mxu0 %v3546
  %3581 = vmatpush1.msra.mxu0 %v3545
  %3582 = vmatprep.subr.mxu0 %v3548
  %3583 = vmatpush1.msra.mxu0 %v3547
  %3584 = vmatprep.subr.mxu0 %v3558
  %3585 = vmatpush1.msra.mxu0 %v3555
  %3586 = vmatprep.subr.mxu0 0.0
  %3587 = vmatpush1.msra.mxu0 0.0
  %3588 = vmatprep.subr.mxu0 0.0
  %3589 = vmatpush1.msra.mxu0 0.0
  %3590 = vmatprep.subr.mxu0 0.0
  %3591 = vmatpush1.msra.mxu0 0.0
  %3592 = vmatprep.subr.mxu0 0.0
  %3593 = vmatpush1.msra.mxu0 0.0
  %3594 = vmatprep.subr.mxu0 0.0
  %3595 = vmatpush1.msra.mxu0 0.0
  %3596 = vmatprep.subr.mxu0 0.0
  %3597 = vmatpush1.msra.mxu0 0.0
  %3598 = vmatprep.subr.mxu0 0.0
  %3599 = vmatpush1.msra.mxu0 0.0
  %3600 = vmatprep.subr.mxu0 0.0
  %3601 = vmatpush1.msra.mxu0 0.0
  %3602 = vmatprep.subr.mxu0 0.0
  %3603 = vmatpush1.msra.mxu0 0.0
  %3604 = vmatprep.subr.mxu0 0.0
  %3605 = vmatpush1.msra.mxu0 0.0
  %3606 = vmatprep.subr.mxu0 0.0
  %3607 = vmatpush1.msra.mxu0 0.0
  %3608 = vmatprep.subr.mxu0 0.0
  %3609 = vmatpush1.msra.mxu0 0.0
  %3610 = vmatprep.subr.mxu0 0.0
  %3611 = vmatpush1.msra.mxu0 0.0
  %3612 = vmatprep.subr.mxu0 0.0
  %3613 = vmatpush1.msra.mxu0 0.0
  %3614 = vmatprep.subr.mxu0 0.0
  %3615 = vmatpush1.msra.mxu0 0.0
  %3616 = vmatprep.subr.mxu0 0.0
  %3617 = vmatpush1.msra.mxu0 0.0
  %3618 = vmatprep.subr.mxu0 0.0
  %3619 = vmatpush1.msra.mxu0 0.0
  %3620 = vmatprep.subr.mxu0 0.0
  %3621 = vmatpush1.msra.mxu0 0.0
  %3622 = vmatprep.subr.mxu0 0.0
  %3623 = vmatpush1.msra.mxu0 0.0
  %3624 = vmatprep.mubr.f32.mxu0 0.0
  %3625 = vmatmul.mubr.f32.gmra.mrb[0].mxu0 %v3552
  %v3626 = vpop.f32.mrb[0].mxu0
  %v3627 = vadd.f32 0.0, %v3626
  %v3628 = vpop.f32.mrb[0].mxu0
  %v3629 = vadd.f32 0.0, %v3628
  %3630 = vdwg.mxu0
  %v3631 = vadd.f32 %v3522, %v3627
  %v3632 = vadd.f32 %v3523, %v3629
  %vm3633 = vcmp.ge.f32.partialorder %v3631, 0.0
  %vm3634 = vcmp.ge.f32.partialorder %v3632, 0.0
  %v3635 = vmul.f32 %v3631, 0.05
  %v3636 = vmul.f32 %v3632, 0.05
  %v3637 = vsel %vm3633, %v3631, %v3635
  %v3638 = vsel %vm3634, %v3632, %v3636
  %v3641 = vrot.slane %v3637, 2
  %v3642 = vrot.slane %v3638, 2
  %3645 = vst [vmem:[#allocation2] sm:$0xc0] %v3641
  %vm3646 = vcmask 130054
  %3647 = vst.msk [vmem:[#allocation2 + $0x8] sm:$0xc0] %vm3646, %v3642
  %3648 = vst [vmem:[#allocation2 + $0x10] sm:$0x3] %v3641
  %3649 = vst.msk [vmem:[#allocation2 + $0x18] sm:$0x3] %vm48, %v3642
  %v3650 = vld [vmem:[#allocation2] sm:$0xf]
  %v3651 = vld [vmem:[#allocation2 + $0x8] sm:$0xf]
  %v3652 = vld [vmem:[%s2] sm:$0xff]
  %v3653 = vld [vmem:[%s2 + $0x8] sm:$0xff]
  %v3654 = vld [vmem:[%s2 + $0x10] sm:$0xff]
  %v3655 = vld [vmem:[%s2 + $0x18] sm:$0xff]
  %v3656 = vld [vmem:[%s2 + $0x20] sm:$0xff]
  %v3657 = vld [vmem:[%s2 + $0x28] sm:$0xff]
  %v3658 = vld [vmem:[%s2 + $0x30] sm:$0xff]
  %v3659 = vld [vmem:[%s2 + $0x38] sm:$0xff]
  %v3660 = vld [vmem:[%s2 + $0x40] sm:$0xff]
  %v3661 = vld [vmem:[%s2 + $0x48] sm:$0xff]
  %v3662 = vld [vmem:[%s2 + $0x50] sm:$0xff]
  %v3663 = vld [vmem:[%s2 + $0x58] sm:$0xff]
  %v3664 = vld [vmem:[%s2 + $0x60] sm:$0xff]
  %v3665 = vld [vmem:[%s2 + $0x68] sm:$0xff]
  %v3666 = vld [vmem:[%s2 + $0x70] sm:$0xff]
  %v3667 = vld [vmem:[%s2 + $0x78] sm:$0xff]
  %v3668 = vld [vmem:[%s2 + $0x80] sm:$0xff]
  %v3669 = vld [vmem:[%s2 + $0x88] sm:$0xff]
  %v3670 = vld [vmem:[%s2 + $0x90] sm:$0xff]
  %v3671 = vld [vmem:[%s2 + $0x98] sm:$0xff]
  %v3672 = vld [vmem:[%s2 + $0xa0] sm:$0xff]
  %v3673 = vld [vmem:[%s2 + $0xa8] sm:$0xff]
  %v3674 = vld [vmem:[%s2 + $0xb0] sm:$0xff]
  %v3675 = vld [vmem:[%s2 + $0xb8] sm:$0xff]
  %v3676 = vld [vmem:[%s2 + $0xc0] sm:$0xff]
  %v3677 = vld [vmem:[%s2 + $0xc8] sm:$0xff]
  %v3678 = vld [vmem:[%s2 + $0xd0] sm:$0xff]
  %v3679 = vld [vmem:[%s2 + $0xd8] sm:$0xff]
  %v3680 = vld [vmem:[%s2 + $0xe0] sm:$0xff]
  %v3681 = vld [vmem:[%s2 + $0xe8] sm:$0xff]
  %v3682 = vld [vmem:[%s2 + $0xf0] sm:$0xff]
  %v3683 = vld [vmem:[%s2 + $0xf8] sm:$0xff]
  %v3684 = vld [vmem:[%s2 + $0x100] sm:$0xff]
  %v3685 = vld [vmem:[%s2 + $0x108] sm:$0xff]
  %v3686 = vld [vmem:[%s2 + $0x110] sm:$0xff]
  %v3687 = vld [vmem:[%s2 + $0x118] sm:$0xff]
  %v3688 = vld [vmem:[%s518] sm:$0xf]
  %v3689 = vld [vmem:[%s518 + $0x8] sm:$0xf]
  %s3690 = scalar_lea.vmem %s2, 288
  %v3691 = vld [vmem:[%s3690] sm:$0xff]
  %v3692 = vld [vmem:[%s3690 + $0x8] sm:$0xff]
  %v3693 = vld [vmem:[%s3690 + $0x10] sm:$0xff]
  %v3694 = vld [vmem:[%s3690 + $0x18] sm:$0xff]
  %v3695 = vld [vmem:[%s3690 + $0x20] sm:$0xff]
  %v3696 = vld [vmem:[%s3690 + $0x28] sm:$0xff]
  %v3697 = vld [vmem:[%s3690 + $0x30] sm:$0xff]
  %v3698 = vld [vmem:[%s3690 + $0x38] sm:$0xff]
  %v3699 = vld [vmem:[%s3690 + $0x40] sm:$0xff]
  %v3700 = vld [vmem:[%s3690 + $0x48] sm:$0xff]
  %v3701 = vld [vmem:[%s3690 + $0x50] sm:$0xff]
  %v3702 = vld [vmem:[%s3690 + $0x58] sm:$0xff]
  %v3703 = vld [vmem:[%s3690 + $0x60] sm:$0xff]
  %v3704 = vld [vmem:[%s3690 + $0x68] sm:$0xff]
  %v3705 = vld [vmem:[%s3690 + $0x70] sm:$0xff]
  %v3706 = vld [vmem:[%s3690 + $0x78] sm:$0xff]
  %v3707 = vld [vmem:[%s3690 + $0x80] sm:$0xff]
  %v3708 = vld [vmem:[%s3690 + $0x88] sm:$0xff]
  %v3709 = vld [vmem:[%s3690 + $0x90] sm:$0xff]
  %v3710 = vld [vmem:[%s3690 + $0x98] sm:$0xff]
  %v3711 = vld [vmem:[%s3690 + $0xa0] sm:$0xff]
  %v3712 = vld [vmem:[%s3690 + $0xa8] sm:$0xff]
  %v3713 = vld [vmem:[%s3690 + $0xb0] sm:$0xff]
  %v3714 = vld [vmem:[%s3690 + $0xb8] sm:$0xff]
  %v3715 = vld [vmem:[%s3690 + $0xc0] sm:$0xff]
  %v3716 = vld [vmem:[%s3690 + $0xc8] sm:$0xff]
  %v3717 = vld [vmem:[%s3690 + $0xd0] sm:$0xff]
  %v3718 = vld [vmem:[%s3690 + $0xd8] sm:$0xff]
  %v3719 = vld [vmem:[%s3690 + $0xe0] sm:$0xff]
  %v3720 = vld [vmem:[%s3690 + $0xe8] sm:$0xff]
  %v3721 = vld [vmem:[%s3690 + $0xf0] sm:$0xff]
  %v3722 = vld [vmem:[%s3690 + $0xf8] sm:$0xff]
  %v3723 = vld [vmem:[%s3690 + $0x100] sm:$0xff]
  %v3724 = vld [vmem:[%s3690 + $0x108] sm:$0xff]
  %v3725 = vld [vmem:[%s3690 + $0x110] sm:$0xff]
  %v3726 = vld [vmem:[%s3690 + $0x118] sm:$0xff]
  %v3728 = vsel %vm45, %v3689, 0
  %3730 = vmatprep.subr.mxu0 %v3692
  %3731 = vmatpush1.msra.mxu0 %v3691
  %3732 = vmatprep.subr.mxu0 %v3694
  %3733 = vmatpush1.msra.mxu0 %v3693
  %3734 = vmatprep.subr.mxu0 %v3696
  %3735 = vmatpush1.msra.mxu0 %v3695
  %3736 = vmatprep.subr.mxu0 %v3698
  %3737 = vmatpush1.msra.mxu0 %v3697
  %3738 = vmatprep.subr.mxu0 %v3700
  %3739 = vmatpush1.msra.mxu0 %v3699
  %3740 = vmatprep.subr.mxu0 %v3702
  %3741 = vmatpush1.msra.mxu0 %v3701
  %3742 = vmatprep.subr.mxu0 %v3704
  %3743 = vmatpush1.msra.mxu0 %v3703
  %3744 = vmatprep.subr.mxu0 %v3706
  %3745 = vmatpush1.msra.mxu0 %v3705
  %3746 = vmatprep.subr.mxu0 %v3708
  %3747 = vmatpush1.msra.mxu0 %v3707
  %3748 = vmatprep.subr.mxu0 %v3710
  %3749 = vmatpush1.msra.mxu0 %v3709
  %3750 = vmatprep.subr.mxu0 %v3712
  %3751 = vmatpush1.msra.mxu0 %v3711
  %3752 = vmatprep.subr.mxu0 %v3714
  %3753 = vmatpush1.msra.mxu0 %v3713
  %3754 = vmatprep.subr.mxu0 %v3716
  %3755 = vmatpush1.msra.mxu0 %v3715
  %3756 = vmatprep.subr.mxu0 %v3718
  %3757 = vmatpush1.msra.mxu0 %v3717
  %3758 = vmatprep.subr.mxu0 %v3720
  %3759 = vmatpush1.msra.mxu0 %v3719
  %3760 = vmatprep.subr.mxu0 %v3722
  %3761 = vmatpush1.msra.mxu0 %v3721
  %3762 = vmatprep.subr.mxu0 %v3724
  %3763 = vmatpush1.msra.mxu0 %v3723
  %3764 = vmatprep.subr.mxu0 %v3726
  %3765 = vmatpush1.msra.mxu0 %v3725
  %3766 = vmatprep.subr.mxu0 0.0
  %3767 = vmatpush1.msra.mxu0 0.0
  %3768 = vmatprep.subr.mxu0 0.0
  %3769 = vmatpush1.msra.mxu0 0.0
  %3770 = vmatprep.subr.mxu0 0.0
  %3771 = vmatpush1.msra.mxu0 0.0
  %3772 = vmatprep.subr.mxu0 0.0
  %3773 = vmatpush1.msra.mxu0 0.0
  %3774 = vmatprep.subr.mxu0 0.0
  %3775 = vmatpush1.msra.mxu0 0.0
  %3776 = vmatprep.subr.mxu0 0.0
  %3777 = vmatpush1.msra.mxu0 0.0
  %3778 = vmatprep.subr.mxu0 0.0
  %3779 = vmatpush1.msra.mxu0 0.0
  %3780 = vmatprep.subr.mxu0 0.0
  %3781 = vmatpush1.msra.mxu0 0.0
  %3782 = vmatprep.subr.mxu0 0.0
  %3783 = vmatpush1.msra.mxu0 0.0
  %3784 = vmatprep.subr.mxu0 0.0
  %3785 = vmatpush1.msra.mxu0 0.0
  %3786 = vmatprep.subr.mxu0 0.0
  %3787 = vmatpush1.msra.mxu0 0.0
  %3788 = vmatprep.subr.mxu0 0.0
  %3789 = vmatpush1.msra.mxu0 0.0
  %3790 = vmatprep.subr.mxu0 0.0
  %3791 = vmatpush1.msra.mxu0 0.0
  %3792 = vmatprep.subr.mxu0 0.0
  %3793 = vmatpush1.msra.mxu0 0.0
  %3794 = vmatprep.mubr.f32.mxu0 %v3728
  %3795 = vmatmul.mubr.f32.gmra.mrb[0].mxu0 %v3688
  %v3796 = vpop.f32.mrb[0].mxu0
  %v3797 = vadd.f32 0.0, %v3796
  %v3798 = vpop.f32.mrb[0].mxu0
  %v3799 = vadd.f32 0.0, %v3798
  %3800 = vdwg.mxu0
  %v3802 = vsel %vm45, %v3651, 0
  %3804 = vmatprep.subr.mxu0 %v3653
  %3805 = vmatpush1.msra.mxu0 %v3652
  %3806 = vmatprep.subr.mxu0 %v3655
  %3807 = vmatpush1.msra.mxu0 %v3654
  %3808 = vmatprep.subr.mxu0 %v3657
  %3809 = vmatpush1.msra.mxu0 %v3656
  %3810 = vmatprep.subr.mxu0 %v3659
  %3811 = vmatpush1.msra.mxu0 %v3658
  %3812 = vmatprep.subr.mxu0 %v3661
  %3813 = vmatpush1.msra.mxu0 %v3660
  %3814 = vmatprep.subr.mxu0 %v3663
  %3815 = vmatpush1.msra.mxu0 %v3662
  %3816 = vmatprep.subr.mxu0 %v3665
  %3817 = vmatpush1.msra.mxu0 %v3664
  %3818 = vmatprep.subr.mxu0 %v3667
  %3819 = vmatpush1.msra.mxu0 %v3666
  %3820 = vmatprep.subr.mxu0 %v3669
  %3821 = vmatpush1.msra.mxu0 %v3668
  %3822 = vmatprep.subr.mxu0 %v3671
  %3823 = vmatpush1.msra.mxu0 %v3670
  %3824 = vmatprep.subr.mxu0 %v3673
  %3825 = vmatpush1.msra.mxu0 %v3672
  %3826 = vmatprep.subr.mxu0 %v3675
  %3827 = vmatpush1.msra.mxu0 %v3674
  %3828 = vmatprep.subr.mxu0 %v3677
  %3829 = vmatpush1.msra.mxu0 %v3676
  %3830 = vmatprep.subr.mxu0 %v3679
  %3831 = vmatpush1.msra.mxu0 %v3678
  %3832 = vmatprep.subr.mxu0 %v3681
  %3833 = vmatpush1.msra.mxu0 %v3680
  %3834 = vmatprep.subr.mxu0 %v3683
  %3835 = vmatpush1.msra.mxu0 %v3682
  %3836 = vmatprep.subr.mxu0 %v3685
  %3837 = vmatpush1.msra.mxu0 %v3684
  %3838 = vmatprep.subr.mxu0 %v3687
  %3839 = vmatpush1.msra.mxu0 %v3686
  %3840 = vmatprep.subr.mxu0 0.0
  %3841 = vmatpush1.msra.mxu0 0.0
  %3842 = vmatprep.subr.mxu0 0.0
  %3843 = vmatpush1.msra.mxu0 0.0
  %3844 = vmatprep.subr.mxu0 0.0
  %3845 = vmatpush1.msra.mxu0 0.0
  %3846 = vmatprep.subr.mxu0 0.0
  %3847 = vmatpush1.msra.mxu0 0.0
  %3848 = vmatprep.subr.mxu0 0.0
  %3849 = vmatpush1.msra.mxu0 0.0
  %3850 = vmatprep.subr.mxu0 0.0
  %3851 = vmatpush1.msra.mxu0 0.0
  %3852 = vmatprep.subr.mxu0 0.0
  %3853 = vmatpush1.msra.mxu0 0.0
  %3854 = vmatprep.subr.mxu0 0.0
  %3855 = vmatpush1.msra.mxu0 0.0
  %3856 = vmatprep.subr.mxu0 0.0
  %3857 = vmatpush1.msra.mxu0 0.0
  %3858 = vmatprep.subr.mxu0 0.0
  %3859 = vmatpush1.msra.mxu0 0.0
  %3860 = vmatprep.subr.mxu0 0.0
  %3861 = vmatpush1.msra.mxu0 0.0
  %3862 = vmatprep.subr.mxu0 0.0
  %3863 = vmatpush1.msra.mxu0 0.0
  %3864 = vmatprep.subr.mxu0 0.0
  %3865 = vmatpush1.msra.mxu0 0.0
  %3866 = vmatprep.subr.mxu0 0.0
  %3867 = vmatpush1.msra.mxu0 0.0
  %3868 = vmatprep.mubr.f32.mxu0 %v3802
  %3869 = vmatmul.mubr.f32.gmra.mrb[0].mxu0 %v3650
  %v3870 = vpop.f32.mrb[0].mxu0
  %v3871 = vadd.f32 %v3797, %v3870
  %v3872 = vpop.f32.mrb[0].mxu0
  %v3873 = vadd.f32 %v3799, %v3872
  %3874 = vdwg.mxu0
  %v3875 = vld [vmem:[%s962] sm:$0xf]
  %v3876 = vld [vmem:[%s962 + $0x8] sm:$0xf]
  %s3877 = scalar_lea.vmem %s2, 576
  %v3878 = vld [vmem:[%s3877] sm:$0xff]
  %v3879 = vld [vmem:[%s3877 + $0x8] sm:$0xff]
  %v3880 = vld [vmem:[%s3877 + $0x10] sm:$0xff]
  %v3881 = vld [vmem:[%s3877 + $0x18] sm:$0xff]
  %v3882 = vld [vmem:[%s3877 + $0x20] sm:$0xff]
  %v3883 = vld [vmem:[%s3877 + $0x28] sm:$0xff]
  %v3884 = vld [vmem:[%s3877 + $0x30] sm:$0xff]
  %v3885 = vld [vmem:[%s3877 + $0x38] sm:$0xff]
  %v3886 = vld [vmem:[%s3877 + $0x40] sm:$0xff]
  %v3887 = vld [vmem:[%s3877 + $0x48] sm:$0xff]
  %v3888 = vld [vmem:[%s3877 + $0x50] sm:$0xff]
  %v3889 = vld [vmem:[%s3877 + $0x58] sm:$0xff]
  %v3890 = vld [vmem:[%s3877 + $0x60] sm:$0xff]
  %v3891 = vld [vmem:[%s3877 + $0x68] sm:$0xff]
  %v3892 = vld [vmem:[%s3877 + $0x70] sm:$0xff]
  %v3893 = vld [vmem:[%s3877 + $0x78] sm:$0xff]
  %v3894 = vld [vmem:[%s3877 + $0x80] sm:$0xff]
  %v3895 = vld [vmem:[%s3877 + $0x88] sm:$0xff]
  %v3896 = vld [vmem:[%s3877 + $0x90] sm:$0xff]
  %v3897 = vld [vmem:[%s3877 + $0x98] sm:$0xff]
  %v3898 = vld [vmem:[%s3877 + $0xa0] sm:$0xff]
  %v3899 = vld [vmem:[%s3877 + $0xa8] sm:$0xff]
  %v3900 = vld [vmem:[%s3877 + $0xb0] sm:$0xff]
  %v3901 = vld [vmem:[%s3877 + $0xb8] sm:$0xff]
  %v3902 = vld [vmem:[%s3877 + $0xc0] sm:$0xff]
  %v3903 = vld [vmem:[%s3877 + $0xc8] sm:$0xff]
  %v3904 = vld [vmem:[%s3877 + $0xd0] sm:$0xff]
  %v3905 = vld [vmem:[%s3877 + $0xd8] sm:$0xff]
  %v3906 = vld [vmem:[%s3877 + $0xe0] sm:$0xff]
  %v3907 = vld [vmem:[%s3877 + $0xe8] sm:$0xff]
  %v3908 = vld [vmem:[%s3877 + $0xf0] sm:$0xff]
  %v3909 = vld [vmem:[%s3877 + $0xf8] sm:$0xff]
  %v3910 = vld [vmem:[%s3877 + $0x100] sm:$0xff]
  %v3911 = vld [vmem:[%s3877 + $0x108] sm:$0xff]
  %v3912 = vld [vmem:[%s3877 + $0x110] sm:$0xff]
  %v3913 = vld [vmem:[%s3877 + $0x118] sm:$0xff]
  %v3915 = vsel %vm45, %v3876, 0
  %3917 = vmatprep.subr.mxu0 %v3879
  %3918 = vmatpush1.msra.mxu0 %v3878
  %3919 = vmatprep.subr.mxu0 %v3881
  %3920 = vmatpush1.msra.mxu0 %v3880
  %3921 = vmatprep.subr.mxu0 %v3883
  %3922 = vmatpush1.msra.mxu0 %v3882
  %3923 = vmatprep.subr.mxu0 %v3885
  %3924 = vmatpush1.msra.mxu0 %v3884
  %3925 = vmatprep.subr.mxu0 %v3887
  %3926 = vmatpush1.msra.mxu0 %v3886
  %3927 = vmatprep.subr.mxu0 %v3889
  %3928 = vmatpush1.msra.mxu0 %v3888
  %3929 = vmatprep.subr.mxu0 %v3891
  %3930 = vmatpush1.msra.mxu0 %v3890
  %3931 = vmatprep.subr.mxu0 %v3893
  %3932 = vmatpush1.msra.mxu0 %v3892
  %3933 = vmatprep.subr.mxu0 %v3895
  %3934 = vmatpush1.msra.mxu0 %v3894
  %3935 = vmatprep.subr.mxu0 %v3897
  %3936 = vmatpush1.msra.mxu0 %v3896
  %3937 = vmatprep.subr.mxu0 %v3899
  %3938 = vmatpush1.msra.mxu0 %v3898
  %3939 = vmatprep.subr.mxu0 %v3901
  %3940 = vmatpush1.msra.mxu0 %v3900
  %3941 = vmatprep.subr.mxu0 %v3903
  %3942 = vmatpush1.msra.mxu0 %v3902
  %3943 = vmatprep.subr.mxu0 %v3905
  %3944 = vmatpush1.msra.mxu0 %v3904
  %3945 = vmatprep.subr.mxu0 %v3907
  %3946 = vmatpush1.msra.mxu0 %v3906
  %3947 = vmatprep.subr.mxu0 %v3909
  %3948 = vmatpush1.msra.mxu0 %v3908
  %3949 = vmatprep.subr.mxu0 %v3911
  %3950 = vmatpush1.msra.mxu0 %v3910
  %3951 = vmatprep.subr.mxu0 %v3913
  %3952 = vmatpush1.msra.mxu0 %v3912
  %3953 = vmatprep.subr.mxu0 0.0
  %3954 = vmatpush1.msra.mxu0 0.0
  %3955 = vmatprep.subr.mxu0 0.0
  %3956 = vmatpush1.msra.mxu0 0.0
  %3957 = vmatprep.subr.mxu0 0.0
  %3958 = vmatpush1.msra.mxu0 0.0
  %3959 = vmatprep.subr.mxu0 0.0
  %3960 = vmatpush1.msra.mxu0 0.0
  %3961 = vmatprep.subr.mxu0 0.0
  %3962 = vmatpush1.msra.mxu0 0.0
  %3963 = vmatprep.subr.mxu0 0.0
  %3964 = vmatpush1.msra.mxu0 0.0
  %3965 = vmatprep.subr.mxu0 0.0
  %3966 = vmatpush1.msra.mxu0 0.0
  %3967 = vmatprep.subr.mxu0 0.0
  %3968 = vmatpush1.msra.mxu0 0.0
  %3969 = vmatprep.subr.mxu0 0.0
  %3970 = vmatpush1.msra.mxu0 0.0
  %3971 = vmatprep.subr.mxu0 0.0
  %3972 = vmatpush1.msra.mxu0 0.0
  %3973 = vmatprep.subr.mxu0 0.0
  %3974 = vmatpush1.msra.mxu0 0.0
  %3975 = vmatprep.subr.mxu0 0.0
  %3976 = vmatpush1.msra.mxu0 0.0
  %3977 = vmatprep.subr.mxu0 0.0
  %3978 = vmatpush1.msra.mxu0 0.0
  %3979 = vmatprep.subr.mxu0 0.0
  %3980 = vmatpush1.msra.mxu0 0.0
  %3981 = vmatprep.mubr.f32.mxu0 %v3915
  %3982 = vmatmul.mubr.f32.gmra.mrb[0].mxu0 %v3875
  %v3983 = vpop.f32.mrb[0].mxu0
  %v3984 = vadd.f32 0.0, %v3983
  %v3985 = vpop.f32.mrb[0].mxu0
  %v3986 = vadd.f32 0.0, %v3985
  %3987 = vdwg.mxu0
  %v3988 = vadd.f32 %v3871, %v3984
  %v3989 = vadd.f32 %v3873, %v3986
  %v3990 = vld [vmem:[%s1405] sm:$0xf]
  %v3991 = vld [vmem:[%s1405 + $0x8] sm:$0xf]
  %s3992 = scalar_lea.vmem %s2, 864
  %v3993 = vld [vmem:[%s3992] sm:$0xff]
  %v3994 = vld [vmem:[%s3992 + $0x8] sm:$0xff]
  %v3995 = vld [vmem:[%s3992 + $0x10] sm:$0xff]
  %v3996 = vld [vmem:[%s3992 + $0x18] sm:$0xff]
  %v3997 = vld [vmem:[%s3992 + $0x20] sm:$0xff]
  %v3998 = vld [vmem:[%s3992 + $0x28] sm:$0xff]
  %v3999 = vld [vmem:[%s3992 + $0x30] sm:$0xff]
  %v4000 = vld [vmem:[%s3992 + $0x38] sm:$0xff]
  %v4001 = vld [vmem:[%s3992 + $0x40] sm:$0xff]
  %v4002 = vld [vmem:[%s3992 + $0x48] sm:$0xff]
  %v4003 = vld [vmem:[%s3992 + $0x50] sm:$0xff]
  %v4004 = vld [vmem:[%s3992 + $0x58] sm:$0xff]
  %v4005 = vld [vmem:[%s3992 + $0x60] sm:$0xff]
  %v4006 = vld [vmem:[%s3992 + $0x68] sm:$0xff]
  %v4007 = vld [vmem:[%s3992 + $0x70] sm:$0xff]
  %v4008 = vld [vmem:[%s3992 + $0x78] sm:$0xff]
  %v4009 = vld [vmem:[%s3992 + $0x80] sm:$0xff]
  %v4010 = vld [vmem:[%s3992 + $0x88] sm:$0xff]
  %v4011 = vld [vmem:[%s3992 + $0x90] sm:$0xff]
  %v4012 = vld [vmem:[%s3992 + $0x98] sm:$0xff]
  %v4013 = vld [vmem:[%s3992 + $0xa0] sm:$0xff]
  %v4014 = vld [vmem:[%s3992 + $0xa8] sm:$0xff]
  %v4015 = vld [vmem:[%s3992 + $0xb0] sm:$0xff]
  %v4016 = vld [vmem:[%s3992 + $0xb8] sm:$0xff]
  %v4017 = vld [vmem:[%s3992 + $0xc0] sm:$0xff]
  %v4018 = vld [vmem:[%s3992 + $0xc8] sm:$0xff]
  %v4019 = vld [vmem:[%s3992 + $0xd0] sm:$0xff]
  %v4020 = vld [vmem:[%s3992 + $0xd8] sm:$0xff]
  %v4021 = vld [vmem:[%s3992 + $0xe0] sm:$0xff]
  %v4022 = vld [vmem:[%s3992 + $0xe8] sm:$0xff]
  %v4023 = vld [vmem:[%s3992 + $0xf0] sm:$0xff]
  %v4024 = vld [vmem:[%s3992 + $0xf8] sm:$0xff]
  %v4025 = vld [vmem:[%s3992 + $0x100] sm:$0xff]
  %v4026 = vld [vmem:[%s3992 + $0x108] sm:$0xff]
  %v4027 = vld [vmem:[%s3992 + $0x110] sm:$0xff]
  %v4028 = vld [vmem:[%s3992 + $0x118] sm:$0xff]
  %v4030 = vsel %vm45, %v3991, 0
  %4032 = vmatprep.subr.mxu0 %v3994
  %4033 = vmatpush1.msra.mxu0 %v3993
  %4034 = vmatprep.subr.mxu0 %v3996
  %4035 = vmatpush1.msra.mxu0 %v3995
  %4036 = vmatprep.subr.mxu0 %v3998
  %4037 = vmatpush1.msra.mxu0 %v3997
  %4038 = vmatprep.subr.mxu0 %v4000
  %4039 = vmatpush1.msra.mxu0 %v3999
  %4040 = vmatprep.subr.mxu0 %v4002
  %4041 = vmatpush1.msra.mxu0 %v4001
  %4042 = vmatprep.subr.mxu0 %v4004
  %4043 = vmatpush1.msra.mxu0 %v4003
  %4044 = vmatprep.subr.mxu0 %v4006
  %4045 = vmatpush1.msra.mxu0 %v4005
  %4046 = vmatprep.subr.mxu0 %v4008
  %4047 = vmatpush1.msra.mxu0 %v4007
  %4048 = vmatprep.subr.mxu0 %v4010
  %4049 = vmatpush1.msra.mxu0 %v4009
  %4050 = vmatprep.subr.mxu0 %v4012
  %4051 = vmatpush1.msra.mxu0 %v4011
  %4052 = vmatprep.subr.mxu0 %v4014
  %4053 = vmatpush1.msra.mxu0 %v4013
  %4054 = vmatprep.subr.mxu0 %v4016
  %4055 = vmatpush1.msra.mxu0 %v4015
  %4056 = vmatprep.subr.mxu0 %v4018
  %4057 = vmatpush1.msra.mxu0 %v4017
  %4058 = vmatprep.subr.mxu0 %v4020
  %4059 = vmatpush1.msra.mxu0 %v4019
  %4060 = vmatprep.subr.mxu0 %v4022
  %4061 = vmatpush1.msra.mxu0 %v4021
  %4062 = vmatprep.subr.mxu0 %v4024
  %4063 = vmatpush1.msra.mxu0 %v4023
  %4064 = vmatprep.subr.mxu0 %v4026
  %4065 = vmatpush1.msra.mxu0 %v4025
  %4066 = vmatprep.subr.mxu0 %v4028
  %4067 = vmatpush1.msra.mxu0 %v4027
  %4068 = vmatprep.subr.mxu0 0.0
  %4069 = vmatpush1.msra.mxu0 0.0
  %4070 = vmatprep.subr.mxu0 0.0
  %4071 = vmatpush1.msra.mxu0 0.0
  %4072 = vmatprep.subr.mxu0 0.0
  %4073 = vmatpush1.msra.mxu0 0.0
  %4074 = vmatprep.subr.mxu0 0.0
  %4075 = vmatpush1.msra.mxu0 0.0
  %4076 = vmatprep.subr.mxu0 0.0
  %4077 = vmatpush1.msra.mxu0 0.0
  %4078 = vmatprep.subr.mxu0 0.0
  %4079 = vmatpush1.msra.mxu0 0.0
  %4080 = vmatprep.subr.mxu0 0.0
  %4081 = vmatpush1.msra.mxu0 0.0
  %4082 = vmatprep.subr.mxu0 0.0
  %4083 = vmatpush1.msra.mxu0 0.0
  %4084 = vmatprep.subr.mxu0 0.0
  %4085 = vmatpush1.msra.mxu0 0.0
  %4086 = vmatprep.subr.mxu0 0.0
  %4087 = vmatpush1.msra.mxu0 0.0
  %4088 = vmatprep.subr.mxu0 0.0
  %4089 = vmatpush1.msra.mxu0 0.0
  %4090 = vmatprep.subr.mxu0 0.0
  %4091 = vmatpush1.msra.mxu0 0.0
  %4092 = vmatprep.subr.mxu0 0.0
  %4093 = vmatpush1.msra.mxu0 0.0
  %4094 = vmatprep.subr.mxu0 0.0
  %4095 = vmatpush1.msra.mxu0 0.0
  %4096 = vmatprep.mubr.f32.mxu0 %v4030
  %4097 = vmatmul.mubr.f32.gmra.mrb[0].mxu0 %v3990
  %v4098 = vpop.f32.mrb[0].mxu0
  %v4099 = vadd.f32 0.0, %v4098
  %v4100 = vpop.f32.mrb[0].mxu0
  %v4101 = vadd.f32 0.0, %v4100
  %4102 = vdwg.mxu0
  %v4103 = vadd.f32 %v3988, %v4099
  %v4104 = vadd.f32 %v3989, %v4101
  %vm4105 = vcmask 1043456
  %v4106 = vsel %vm4105, %v4103, 0.0
  %v4107 = vrot.slane %v4106, 4
  %v4108 = vadd.f32 %v4106, %v4107
  %v4109 = vrot.slane %v4108, 2
  %v4110 = vadd.f32 %v4108, %v4109
  %v4111 = vrot.slane %v4110, 1
  %v4112 = vadd.f32 %v4110, %v4111
  %vm4113 = vcmask 257024
  %v4114 = vsel %vm4113, %v4104, 0.0
  %v4115 = vrot.slane %v4114, 4
  %v4116 = vadd.f32 %v4114, %v4115
  %v4117 = vrot.slane %v4116, 2
  %v4118 = vadd.f32 %v4116, %v4117
  %v4119 = vrot.slane %v4118, 1
  %v4120 = vadd.f32 %v4118, %v4119
  %v4121 = vmul.f32 %v4103, %v4103
  %v4122 = vmul.f32 %v4104, %v4104
  %v4123 = vsel %vm4105, %v4121, 0.0
  %v4124 = vrot.slane %v4123, 4
  %v4125 = vadd.f32 %v4123, %v4124
  %v4126 = vrot.slane %v4125, 2
  %v4127 = vadd.f32 %v4125, %v4126
  %v4128 = vrot.slane %v4127, 1
  %v4129 = vadd.f32 %v4127, %v4128
  %v4130 = vsel %vm4113, %v4122, 0.0
  %v4131 = vrot.slane %v4130, 4
  %v4132 = vadd.f32 %v4130, %v4131
  %v4133 = vrot.slane %v4132, 2
  %v4134 = vadd.f32 %v4132, %v4133
  %v4135 = vrot.slane %v4134, 1
  %v4136 = vadd.f32 %v4134, %v4135
  %4137 = vmatprep.subr.mxu0 %v3692
  %4138 = vmatpush1.msra.mxu0 %v3691
  %4139 = vmatprep.subr.mxu0 %v3694
  %4140 = vmatpush1.msra.mxu0 %v3693
  %4141 = vmatprep.subr.mxu0 %v3696
  %4142 = vmatpush1.msra.mxu0 %v3695
  %4143 = vmatprep.subr.mxu0 %v3698
  %4144 = vmatpush1.msra.mxu0 %v3697
  %4145 = vmatprep.subr.mxu0 %v3700
  %4146 = vmatpush1.msra.mxu0 %v3699
  %4147 = vmatprep.subr.mxu0 %v3702
  %4148 = vmatpush1.msra.mxu0 %v3701
  %4149 = vmatprep.subr.mxu0 %v3704
  %4150 = vmatpush1.msra.mxu0 %v3703
  %4151 = vmatprep.subr.mxu0 %v3706
  %4152 = vmatpush1.msra.mxu0 %v3705
  %4153 = vmatprep.subr.mxu0 %v3708
  %4154 = vmatpush1.msra.mxu0 %v3707
  %4155 = vmatprep.subr.mxu0 %v3710
  %4156 = vmatpush1.msra.mxu0 %v3709
  %4157 = vmatprep.subr.mxu0 %v3712
  %4158 = vmatpush1.msra.mxu0 %v3711
  %4159 = vmatprep.subr.mxu0 %v3714
  %4160 = vmatpush1.msra.mxu0 %v3713
  %4161 = vmatprep.subr.mxu0 %v3716
  %4162 = vmatpush1.msra.mxu0 %v3715
  %4163 = vmatprep.subr.mxu0 %v3718
  %4164 = vmatpush1.msra.mxu0 %v3717
  %4165 = vmatprep.subr.mxu0 %v3720
  %4166 = vmatpush1.msra.mxu0 %v3719
  %4167 = vmatprep.subr.mxu0 %v3722
  %4168 = vmatpush1.msra.mxu0 %v3721
  %4169 = vmatprep.subr.mxu0 %v3724
  %4170 = vmatpush1.msra.mxu0 %v3723
  %4171 = vmatprep.subr.mxu0 %v3726
  %4172 = vmatpush1.msra.mxu0 %v3725
  %4173 = vmatprep.subr.mxu0 0.0
  %4174 = vmatpush1.msra.mxu0 0.0
  %4175 = vmatprep.subr.mxu0 0.0
  %4176 = vmatpush1.msra.mxu0 0.0
  %4177 = vmatprep.subr.mxu0 0.0
  %4178 = vmatpush1.msra.mxu0 0.0
  %4179 = vmatprep.subr.mxu0 0.0
  %4180 = vmatpush1.msra.mxu0 0.0
  %4181 = vmatprep.subr.mxu0 0.0
  %4182 = vmatpush1.msra.mxu0 0.0
  %4183 = vmatprep.subr.mxu0 0.0
  %4184 = vmatpush1.msra.mxu0 0.0
  %4185 = vmatprep.subr.mxu0 0.0
  %4186 = vmatpush1.msra.mxu0 0.0
  %4187 = vmatprep.subr.mxu0 0.0
  %4188 = vmatpush1.msra.mxu0 0.0
  %4189 = vmatprep.subr.mxu0 0.0
  %4190 = vmatpush1.msra.mxu0 0.0
  %4191 = vmatprep.subr.mxu0 0.0
  %4192 = vmatpush1.msra.mxu0 0.0
  %4193 = vmatprep.subr.mxu0 0.0
  %4194 = vmatpush1.msra.mxu0 0.0
  %4195 = vmatprep.subr.mxu0 0.0
  %4196 = vmatpush1.msra.mxu0 0.0
  %4197 = vmatprep.subr.mxu0 0.0
  %4198 = vmatpush1.msra.mxu0 0.0
  %4199 = vmatprep.subr.mxu0 0.0
  %4200 = vmatpush1.msra.mxu0 0.0
  %4201 = vmatprep.mubr.f32.mxu0 %v4030
  %4202 = vmatmul.mubr.f32.gmra.mrb[0].mxu0 %v3990
  %v4203 = vpop.f32.mrb[0].mxu0
  %v4204 = vadd.f32 0.0, %v4203
  %v4205 = vpop.f32.mrb[0].mxu0
  %v4206 = vadd.f32 0.0, %v4205
  %4207 = vdwg.mxu0
  %4208 = vmatprep.subr.mxu0 %v3653
  %4209 = vmatpush1.msra.mxu0 %v3652
  %4210 = vmatprep.subr.mxu0 %v3655
  %4211 = vmatpush1.msra.mxu0 %v3654
  %4212 = vmatprep.subr.mxu0 %v3657
  %4213 = vmatpush1.msra.mxu0 %v3656
  %4214 = vmatprep.subr.mxu0 %v3659
  %4215 = vmatpush1.msra.mxu0 %v3658
  %4216 = vmatprep.subr.mxu0 %v3661
  %4217 = vmatpush1.msra.mxu0 %v3660
  %4218 = vmatprep.subr.mxu0 %v3663
  %4219 = vmatpush1.msra.mxu0 %v3662
  %4220 = vmatprep.subr.mxu0 %v3665
  %4221 = vmatpush1.msra.mxu0 %v3664
  %4222 = vmatprep.subr.mxu0 %v3667
  %4223 = vmatpush1.msra.mxu0 %v3666
  %4224 = vmatprep.subr.mxu0 %v3669
  %4225 = vmatpush1.msra.mxu0 %v3668
  %4226 = vmatprep.subr.mxu0 %v3671
  %4227 = vmatpush1.msra.mxu0 %v3670
  %4228 = vmatprep.subr.mxu0 %v3673
  %4229 = vmatpush1.msra.mxu0 %v3672
  %4230 = vmatprep.subr.mxu0 %v3675
  %4231 = vmatpush1.msra.mxu0 %v3674
  %4232 = vmatprep.subr.mxu0 %v3677
  %4233 = vmatpush1.msra.mxu0 %v3676
  %4234 = vmatprep.subr.mxu0 %v3679
  %4235 = vmatpush1.msra.mxu0 %v3678
  %4236 = vmatprep.subr.mxu0 %v3681
  %4237 = vmatpush1.msra.mxu0 %v3680
  %4238 = vmatprep.subr.mxu0 %v3683
  %4239 = vmatpush1.msra.mxu0 %v3682
  %4240 = vmatprep.subr.mxu0 %v3685
  %4241 = vmatpush1.msra.mxu0 %v3684
  %4242 = vmatprep.subr.mxu0 %v3687
  %4243 = vmatpush1.msra.mxu0 %v3686
  %4244 = vmatprep.subr.mxu0 0.0
  %4245 = vmatpush1.msra.mxu0 0.0
  %4246 = vmatprep.subr.mxu0 0.0
  %4247 = vmatpush1.msra.mxu0 0.0
  %4248 = vmatprep.subr.mxu0 0.0
  %4249 = vmatpush1.msra.mxu0 0.0
  %4250 = vmatprep.subr.mxu0 0.0
  %4251 = vmatpush1.msra.mxu0 0.0
  %4252 = vmatprep.subr.mxu0 0.0
  %4253 = vmatpush1.msra.mxu0 0.0
  %4254 = vmatprep.subr.mxu0 0.0
  %4255 = vmatpush1.msra.mxu0 0.0
  %4256 = vmatprep.subr.mxu0 0.0
  %4257 = vmatpush1.msra.mxu0 0.0
  %4258 = vmatprep.subr.mxu0 0.0
  %4259 = vmatpush1.msra.mxu0 0.0
  %4260 = vmatprep.subr.mxu0 0.0
  %4261 = vmatpush1.msra.mxu0 0.0
  %4262 = vmatprep.subr.mxu0 0.0
  %4263 = vmatpush1.msra.mxu0 0.0
  %4264 = vmatprep.subr.mxu0 0.0
  %4265 = vmatpush1.msra.mxu0 0.0
  %4266 = vmatprep.subr.mxu0 0.0
  %4267 = vmatpush1.msra.mxu0 0.0
  %4268 = vmatprep.subr.mxu0 0.0
  %4269 = vmatpush1.msra.mxu0 0.0
  %4270 = vmatprep.subr.mxu0 0.0
  %4271 = vmatpush1.msra.mxu0 0.0
  %4272 = vmatprep.mubr.f32.mxu0 %v3915
  %4273 = vmatmul.mubr.f32.gmra.mrb[0].mxu0 %v3875
  %v4274 = vpop.f32.mrb[0].mxu0
  %v4275 = vadd.f32 %v4204, %v4274
  %v4276 = vpop.f32.mrb[0].mxu0
  %v4277 = vadd.f32 %v4206, %v4276
  %4278 = vdwg.mxu0
  %v4279 = vld [vmem:[#allocation2] sm:$0x1e]
  %v4280 = vld [vmem:[#allocation2 + $0x8] sm:$0x1e]
  %v4283 = vrot.slane %v4279, 1
  %v4284 = vrot.slane %v4280, 1
  %v4286 = vsel %vm45, %v4284, 0
  %4288 = vmatprep.subr.mxu0 %v3879
  %4289 = vmatpush1.msra.mxu0 %v3878
  %4290 = vmatprep.subr.mxu0 %v3881
  %4291 = vmatpush1.msra.mxu0 %v3880
  %4292 = vmatprep.subr.mxu0 %v3883
  %4293 = vmatpush1.msra.mxu0 %v3882
  %4294 = vmatprep.subr.mxu0 %v3885
  %4295 = vmatpush1.msra.mxu0 %v3884
  %4296 = vmatprep.subr.mxu0 %v3887
  %4297 = vmatpush1.msra.mxu0 %v3886
  %4298 = vmatprep.subr.mxu0 %v3889
  %4299 = vmatpush1.msra.mxu0 %v3888
  %4300 = vmatprep.subr.mxu0 %v3891
  %4301 = vmatpush1.msra.mxu0 %v3890
  %4302 = vmatprep.subr.mxu0 %v3893
  %4303 = vmatpush1.msra.mxu0 %v3892
  %4304 = vmatprep.subr.mxu0 %v3895
  %4305 = vmatpush1.msra.mxu0 %v3894
  %4306 = vmatprep.subr.mxu0 %v3897
  %4307 = vmatpush1.msra.mxu0 %v3896
  %4308 = vmatprep.subr.mxu0 %v3899
  %4309 = vmatpush1.msra.mxu0 %v3898
  %4310 = vmatprep.subr.mxu0 %v3901
  %4311 = vmatpush1.msra.mxu0 %v3900
  %4312 = vmatprep.subr.mxu0 %v3903
  %4313 = vmatpush1.msra.mxu0 %v3902
  %4314 = vmatprep.subr.mxu0 %v3905
  %4315 = vmatpush1.msra.mxu0 %v3904
  %4316 = vmatprep.subr.mxu0 %v3907
  %4317 = vmatpush1.msra.mxu0 %v3906
  %4318 = vmatprep.subr.mxu0 %v3909
  %4319 = vmatpush1.msra.mxu0 %v3908
  %4320 = vmatprep.subr.mxu0 %v3911
  %4321 = vmatpush1.msra.mxu0 %v3910
  %4322 = vmatprep.subr.mxu0 %v3913
  %4323 = vmatpush1.msra.mxu0 %v3912
  %4324 = vmatprep.subr.mxu0 0.0
  %4325 = vmatpush1.msra.mxu0 0.0
  %4326 = vmatprep.subr.mxu0 0.0
  %4327 = vmatpush1.msra.mxu0 0.0
  %4328 = vmatprep.subr.mxu0 0.0
  %4329 = vmatpush1.msra.mxu0 0.0
  %4330 = vmatprep.subr.mxu0 0.0
  %4331 = vmatpush1.msra.mxu0 0.0
  %4332 = vmatprep.subr.mxu0 0.0
  %4333 = vmatpush1.msra.mxu0 0.0
  %4334 = vmatprep.subr.mxu0 0.0
  %4335 = vmatpush1.msra.mxu0 0.0
  %4336 = vmatprep.subr.mxu0 0.0
  %4337 = vmatpush1.msra.mxu0 0.0
  %4338 = vmatprep.subr.mxu0 0.0
  %4339 = vmatpush1.msra.mxu0 0.0
  %4340 = vmatprep.subr.mxu0 0.0
  %4341 = vmatpush1.msra.mxu0 0.0
  %4342 = vmatprep.subr.mxu0 0.0
  %4343 = vmatpush1.msra.mxu0 0.0
  %4344 = vmatprep.subr.mxu0 0.0
  %4345 = vmatpush1.msra.mxu0 0.0
  %4346 = vmatprep.subr.mxu0 0.0
  %4347 = vmatpush1.msra.mxu0 0.0
  %4348 = vmatprep.subr.mxu0 0.0
  %4349 = vmatpush1.msra.mxu0 0.0
  %4350 = vmatprep.subr.mxu0 0.0
  %4351 = vmatpush1.msra.mxu0 0.0
  %4352 = vmatprep.mubr.f32.mxu0 %v4286
  %4353 = vmatmul.mubr.f32.gmra.mrb[0].mxu0 %v4283
  %v4354 = vpop.f32.mrb[0].mxu0
  %v4355 = vadd.f32 0.0, %v4354
  %v4356 = vpop.f32.mrb[0].mxu0
  %v4357 = vadd.f32 0.0, %v4356
  %4358 = vdwg.mxu0
  %v4359 = vadd.f32 %v4275, %v4355
  %v4360 = vadd.f32 %v4277, %v4357
  %v4361 = vld [vmem:[%s518] sm:$0x1e]
  %v4362 = vld [vmem:[%s518 + $0x8] sm:$0x1e]
  %v4365 = vrot.slane %v4361, 1
  %v4366 = vrot.slane %v4362, 1
  %v4368 = vsel %vm45, %v4366, 0
  %4370 = vmatprep.subr.mxu0 %v3994
  %4371 = vmatpush1.msra.mxu0 %v3993
  %4372 = vmatprep.subr.mxu0 %v3996
  %4373 = vmatpush1.msra.mxu0 %v3995
  %4374 = vmatprep.subr.mxu0 %v3998
  %4375 = vmatpush1.msra.mxu0 %v3997
  %4376 = vmatprep.subr.mxu0 %v4000
  %4377 = vmatpush1.msra.mxu0 %v3999
  %4378 = vmatprep.subr.mxu0 %v4002
  %4379 = vmatpush1.msra.mxu0 %v4001
  %4380 = vmatprep.subr.mxu0 %v4004
  %4381 = vmatpush1.msra.mxu0 %v4003
  %4382 = vmatprep.subr.mxu0 %v4006
  %4383 = vmatpush1.msra.mxu0 %v4005
  %4384 = vmatprep.subr.mxu0 %v4008
  %4385 = vmatpush1.msra.mxu0 %v4007
  %4386 = vmatprep.subr.mxu0 %v4010
  %4387 = vmatpush1.msra.mxu0 %v4009
  %4388 = vmatprep.subr.mxu0 %v4012
  %4389 = vmatpush1.msra.mxu0 %v4011
  %4390 = vmatprep.subr.mxu0 %v4014
  %4391 = vmatpush1.msra.mxu0 %v4013
  %4392 = vmatprep.subr.mxu0 %v4016
  %4393 = vmatpush1.msra.mxu0 %v4015
  %4394 = vmatprep.subr.mxu0 %v4018
  %4395 = vmatpush1.msra.mxu0 %v4017
  %4396 = vmatprep.subr.mxu0 %v4020
  %4397 = vmatpush1.msra.mxu0 %v4019
  %4398 = vmatprep.subr.mxu0 %v4022
  %4399 = vmatpush1.msra.mxu0 %v4021
  %4400 = vmatprep.subr.mxu0 %v4024
  %4401 = vmatpush1.msra.mxu0 %v4023
  %4402 = vmatprep.subr.mxu0 %v4026
  %4403 = vmatpush1.msra.mxu0 %v4025
  %4404 = vmatprep.subr.mxu0 %v4028
  %4405 = vmatpush1.msra.mxu0 %v4027
  %4406 = vmatprep.subr.mxu0 0.0
  %4407 = vmatpush1.msra.mxu0 0.0
  %4408 = vmatprep.subr.mxu0 0.0
  %4409 = vmatpush1.msra.mxu0 0.0
  %4410 = vmatprep.subr.mxu0 0.0
  %4411 = vmatpush1.msra.mxu0 0.0
  %4412 = vmatprep.subr.mxu0 0.0
  %4413 = vmatpush1.msra.mxu0 0.0
  %4414 = vmatprep.subr.mxu0 0.0
  %4415 = vmatpush1.msra.mxu0 0.0
  %4416 = vmatprep.subr.mxu0 0.0
  %4417 = vmatpush1.msra.mxu0 0.0
  %4418 = vmatprep.subr.mxu0 0.0
  %4419 = vmatpush1.msra.mxu0 0.0
  %4420 = vmatprep.subr.mxu0 0.0
  %4421 = vmatpush1.msra.mxu0 0.0
  %4422 = vmatprep.subr.mxu0 0.0
  %4423 = vmatpush1.msra.mxu0 0.0
  %4424 = vmatprep.subr.mxu0 0.0
  %4425 = vmatpush1.msra.mxu0 0.0
  %4426 = vmatprep.subr.mxu0 0.0
  %4427 = vmatpush1.msra.mxu0 0.0
  %4428 = vmatprep.subr.mxu0 0.0
  %4429 = vmatpush1.msra.mxu0 0.0
  %4430 = vmatprep.subr.mxu0 0.0
  %4431 = vmatpush1.msra.mxu0 0.0
  %4432 = vmatprep.subr.mxu0 0.0
  %4433 = vmatpush1.msra.mxu0 0.0
  %4434 = vmatprep.mubr.f32.mxu0 %v4368
  %4435 = vmatmul.mubr.f32.gmra.mrb[0].mxu0 %v4365
  %v4436 = vpop.f32.mrb[0].mxu0
  %v4437 = vadd.f32 0.0, %v4436
  %v4438 = vpop.f32.mrb[0].mxu0
  %v4439 = vadd.f32 0.0, %v4438
  %4440 = vdwg.mxu0
  %v4441 = vadd.f32 %v4359, %v4437
  %v4442 = vadd.f32 %v4360, %v4439
  %v4443 = vsel %vm4105, %v4441, 0.0
  %v4444 = vrot.slane %v4443, 4
  %v4445 = vadd.f32 %v4443, %v4444
  %v4446 = vrot.slane %v4445, 2
  %v4447 = vadd.f32 %v4445, %v4446
  %v4448 = vrot.slane %v4447, 1
  %v4449 = vadd.f32 %v4447, %v4448
  %v4450 = vsel %vm4113, %v4442, 0.0
  %v4451 = vrot.slane %v4450, 4
  %v4452 = vadd.f32 %v4450, %v4451
  %v4453 = vrot.slane %v4452, 2
  %v4454 = vadd.f32 %v4452, %v4453
  %v4455 = vrot.slane %v4454, 1
  %v4456 = vadd.f32 %v4454, %v4455
  %v4457 = vmul.f32 %v4441, %v4441
  %v4458 = vmul.f32 %v4442, %v4442
  %v4459 = vsel %vm4105, %v4457, 0.0
  %v4460 = vrot.slane %v4459, 4
  %v4461 = vadd.f32 %v4459, %v4460
  %v4462 = vrot.slane %v4461, 2
  %v4463 = vadd.f32 %v4461, %v4462
  %v4464 = vrot.slane %v4463, 1
  %v4465 = vadd.f32 %v4463, %v4464
  %v4466 = vsel %vm4113, %v4458, 0.0
  %v4467 = vrot.slane %v4466, 4
  %v4468 = vadd.f32 %v4466, %v4467
  %v4469 = vrot.slane %v4468, 2
  %v4470 = vadd.f32 %v4468, %v4469
  %v4471 = vrot.slane %v4470, 1
  %v4472 = vadd.f32 %v4470, %v4471
  %v4473 = vadd.f32 %v4112, %v4449
  %v4474 = vadd.f32 %v4120, %v4456
  %v4475 = vadd.f32 %v4129, %v4465
  %v4476 = vadd.f32 %v4136, %v4472
  %v4477 = vld [vmem:[#allocation2] sm:$0xe0]
  %v4478 = vld [vmem:[#allocation2 + $0x8] sm:$0xe0]
  %v4479 = vld [vmem:[#allocation2 + $0x10] sm:$0x1]
  %v4480 = vld [vmem:[#allocation2 + $0x18] sm:$0x1]
  %v4481 = vld [vmem:[%s518] sm:$0xe0]
  %v4482 = vld [vmem:[%s518 + $0x8] sm:$0xe0]
  %v4483 = vld [vmem:[%s518 + $0x10] sm:$0x1]
  %v4484 = vld [vmem:[%s518 + $0x18] sm:$0x1]
  %vm4489 = vcmask 1042432
  %v4490 = vrot.slane %v4481, 5
  %v4491 = vrot.slane %v4483, 5
  %v4492 = vsel %vm4489, %v4490, %v4491
  %v4493 = vrot.slane %v4482, 5
  %v4494 = vrot.slane %v4484, 5
  %v4495 = vsel %vm4489, %v4493, %v4494
  %v4497 = vsel %vm45, %v4495, 0
  %4499 = vmatprep.subr.mxu0 %v3692
  %4500 = vmatpush1.msra.mxu0 %v3691
  %4501 = vmatprep.subr.mxu0 %v3694
  %4502 = vmatpush1.msra.mxu0 %v3693
  %4503 = vmatprep.subr.mxu0 %v3696
  %4504 = vmatpush1.msra.mxu0 %v3695
  %4505 = vmatprep.subr.mxu0 %v3698
  %4506 = vmatpush1.msra.mxu0 %v3697
  %4507 = vmatprep.subr.mxu0 %v3700
  %4508 = vmatpush1.msra.mxu0 %v3699
  %4509 = vmatprep.subr.mxu0 %v3702
  %4510 = vmatpush1.msra.mxu0 %v3701
  %4511 = vmatprep.subr.mxu0 %v3704
  %4512 = vmatpush1.msra.mxu0 %v3703
  %4513 = vmatprep.subr.mxu0 %v3706
  %4514 = vmatpush1.msra.mxu0 %v3705
  %4515 = vmatprep.subr.mxu0 %v3708
  %4516 = vmatpush1.msra.mxu0 %v3707
  %4517 = vmatprep.subr.mxu0 %v3710
  %4518 = vmatpush1.msra.mxu0 %v3709
  %4519 = vmatprep.subr.mxu0 %v3712
  %4520 = vmatpush1.msra.mxu0 %v3711
  %4521 = vmatprep.subr.mxu0 %v3714
  %4522 = vmatpush1.msra.mxu0 %v3713
  %4523 = vmatprep.subr.mxu0 %v3716
  %4524 = vmatpush1.msra.mxu0 %v3715
  %4525 = vmatprep.subr.mxu0 %v3718
  %4526 = vmatpush1.msra.mxu0 %v3717
  %4527 = vmatprep.subr.mxu0 %v3720
  %4528 = vmatpush1.msra.mxu0 %v3719
  %4529 = vmatprep.subr.mxu0 %v3722
  %4530 = vmatpush1.msra.mxu0 %v3721
  %4531 = vmatprep.subr.mxu0 %v3724
  %4532 = vmatpush1.msra.mxu0 %v3723
  %4533 = vmatprep.subr.mxu0 %v3726
  %4534 = vmatpush1.msra.mxu0 %v3725
  %4535 = vmatprep.subr.mxu0 0.0
  %4536 = vmatpush1.msra.mxu0 0.0
  %4537 = vmatprep.subr.mxu0 0.0
  %4538 = vmatpush1.msra.mxu0 0.0
  %4539 = vmatprep.subr.mxu0 0.0
  %4540 = vmatpush1.msra.mxu0 0.0
  %4541 = vmatprep.subr.mxu0 0.0
  %4542 = vmatpush1.msra.mxu0 0.0
  %4543 = vmatprep.subr.mxu0 0.0
  %4544 = vmatpush1.msra.mxu0 0.0
  %4545 = vmatprep.subr.mxu0 0.0
  %4546 = vmatpush1.msra.mxu0 0.0
  %4547 = vmatprep.subr.mxu0 0.0
  %4548 = vmatpush1.msra.mxu0 0.0
  %4549 = vmatprep.subr.mxu0 0.0
  %4550 = vmatpush1.msra.mxu0 0.0
  %4551 = vmatprep.subr.mxu0 0.0
  %4552 = vmatpush1.msra.mxu0 0.0
  %4553 = vmatprep.subr.mxu0 0.0
  %4554 = vmatpush1.msra.mxu0 0.0
  %4555 = vmatprep.subr.mxu0 0.0
  %4556 = vmatpush1.msra.mxu0 0.0
  %4557 = vmatprep.subr.mxu0 0.0
  %4558 = vmatpush1.msra.mxu0 0.0
  %4559 = vmatprep.subr.mxu0 0.0
  %4560 = vmatpush1.msra.mxu0 0.0
  %4561 = vmatprep.subr.mxu0 0.0
  %4562 = vmatpush1.msra.mxu0 0.0
  %4563 = vmatprep.mubr.f32.mxu0 %v4497
  %4564 = vmatmul.mubr.f32.gmra.mrb[0].mxu0 %v4492
  %v4565 = vpop.f32.mrb[0].mxu0
  %v4566 = vadd.f32 0.0, %v4565
  %v4567 = vpop.f32.mrb[0].mxu0
  %v4568 = vadd.f32 0.0, %v4567
  %4569 = vdwg.mxu0
  %v4574 = vrot.slane %v4477, 5
  %v4575 = vrot.slane %v4479, 5
  %v4576 = vsel %vm4489, %v4574, %v4575
  %v4577 = vrot.slane %v4478, 5
  %v4578 = vrot.slane %v4480, 5
  %v4579 = vsel %vm4489, %v4577, %v4578
  %v4581 = vsel %vm45, %v4579, 0
  %4583 = vmatprep.subr.mxu0 %v3653
  %4584 = vmatpush1.msra.mxu0 %v3652
  %4585 = vmatprep.subr.mxu0 %v3655
  %4586 = vmatpush1.msra.mxu0 %v3654
  %4587 = vmatprep.subr.mxu0 %v3657
  %4588 = vmatpush1.msra.mxu0 %v3656
  %4589 = vmatprep.subr.mxu0 %v3659
  %4590 = vmatpush1.msra.mxu0 %v3658
  %4591 = vmatprep.subr.mxu0 %v3661
  %4592 = vmatpush1.msra.mxu0 %v3660
  %4593 = vmatprep.subr.mxu0 %v3663
  %4594 = vmatpush1.msra.mxu0 %v3662
  %4595 = vmatprep.subr.mxu0 %v3665
  %4596 = vmatpush1.msra.mxu0 %v3664
  %4597 = vmatprep.subr.mxu0 %v3667
  %4598 = vmatpush1.msra.mxu0 %v3666
  %4599 = vmatprep.subr.mxu0 %v3669
  %4600 = vmatpush1.msra.mxu0 %v3668
  %4601 = vmatprep.subr.mxu0 %v3671
  %4602 = vmatpush1.msra.mxu0 %v3670
  %4603 = vmatprep.subr.mxu0 %v3673
  %4604 = vmatpush1.msra.mxu0 %v3672
  %4605 = vmatprep.subr.mxu0 %v3675
  %4606 = vmatpush1.msra.mxu0 %v3674
  %4607 = vmatprep.subr.mxu0 %v3677
  %4608 = vmatpush1.msra.mxu0 %v3676
  %4609 = vmatprep.subr.mxu0 %v3679
  %4610 = vmatpush1.msra.mxu0 %v3678
  %4611 = vmatprep.subr.mxu0 %v3681
  %4612 = vmatpush1.msra.mxu0 %v3680
  %4613 = vmatprep.subr.mxu0 %v3683
  %4614 = vmatpush1.msra.mxu0 %v3682
  %4615 = vmatprep.subr.mxu0 %v3685
  %4616 = vmatpush1.msra.mxu0 %v3684
  %4617 = vmatprep.subr.mxu0 %v3687
  %4618 = vmatpush1.msra.mxu0 %v3686
  %4619 = vmatprep.subr.mxu0 0.0
  %4620 = vmatpush1.msra.mxu0 0.0
  %4621 = vmatprep.subr.mxu0 0.0
  %4622 = vmatpush1.msra.mxu0 0.0
  %4623 = vmatprep.subr.mxu0 0.0
  %4624 = vmatpush1.msra.mxu0 0.0
  %4625 = vmatprep.subr.mxu0 0.0
  %4626 = vmatpush1.msra.mxu0 0.0
  %4627 = vmatprep.subr.mxu0 0.0
  %4628 = vmatpush1.msra.mxu0 0.0
  %4629 = vmatprep.subr.mxu0 0.0
  %4630 = vmatpush1.msra.mxu0 0.0
  %4631 = vmatprep.subr.mxu0 0.0
  %4632 = vmatpush1.msra.mxu0 0.0
  %4633 = vmatprep.subr.mxu0 0.0
  %4634 = vmatpush1.msra.mxu0 0.0
  %4635 = vmatprep.subr.mxu0 0.0
  %4636 = vmatpush1.msra.mxu0 0.0
  %4637 = vmatprep.subr.mxu0 0.0
  %4638 = vmatpush1.msra.mxu0 0.0
  %4639 = vmatprep.subr.mxu0 0.0
  %4640 = vmatpush1.msra.mxu0 0.0
  %4641 = vmatprep.subr.mxu0 0.0
  %4642 = vmatpush1.msra.mxu0 0.0
  %4643 = vmatprep.subr.mxu0 0.0
  %4644 = vmatpush1.msra.mxu0 0.0
  %4645 = vmatprep.subr.mxu0 0.0
  %4646 = vmatpush1.msra.mxu0 0.0
  %4647 = vmatprep.mubr.f32.mxu0 %v4581
  %4648 = vmatmul.mubr.f32.gmra.mrb[0].mxu0 %v4576
  %v4649 = vpop.f32.mrb[0].mxu0
  %v4650 = vadd.f32 %v4566, %v4649
  %v4651 = vpop.f32.mrb[0].mxu0
  %v4652 = vadd.f32 %v4568, %v4651
  %4653 = vdwg.mxu0
  %v4654 = vld [vmem:[%s962] sm:$0xe0]
  %v4655 = vld [vmem:[%s962 + $0x8] sm:$0xe0]
  %v4656 = vld [vmem:[%s962 + $0x10] sm:$0x1]
  %v4657 = vld [vmem:[%s962 + $0x18] sm:$0x1]
  %v4662 = vrot.slane %v4654, 5
  %v4663 = vrot.slane %v4656, 5
  %v4664 = vsel %vm4489, %v4662, %v4663
  %v4665 = vrot.slane %v4655, 5
  %v4666 = vrot.slane %v4657, 5
  %v4667 = vsel %vm4489, %v4665, %v4666
  %v4669 = vsel %vm45, %v4667, 0
  %4671 = vmatprep.subr.mxu0 %v3879
  %4672 = vmatpush1.msra.mxu0 %v3878
  %4673 = vmatprep.subr.mxu0 %v3881
  %4674 = vmatpush1.msra.mxu0 %v3880
  %4675 = vmatprep.subr.mxu0 %v3883
  %4676 = vmatpush1.msra.mxu0 %v3882
  %4677 = vmatprep.subr.mxu0 %v3885
  %4678 = vmatpush1.msra.mxu0 %v3884
  %4679 = vmatprep.subr.mxu0 %v3887
  %4680 = vmatpush1.msra.mxu0 %v3886
  %4681 = vmatprep.subr.mxu0 %v3889
  %4682 = vmatpush1.msra.mxu0 %v3888
  %4683 = vmatprep.subr.mxu0 %v3891
  %4684 = vmatpush1.msra.mxu0 %v3890
  %4685 = vmatprep.subr.mxu0 %v3893
  %4686 = vmatpush1.msra.mxu0 %v3892
  %4687 = vmatprep.subr.mxu0 %v3895
  %4688 = vmatpush1.msra.mxu0 %v3894
  %4689 = vmatprep.subr.mxu0 %v3897
  %4690 = vmatpush1.msra.mxu0 %v3896
  %4691 = vmatprep.subr.mxu0 %v3899
  %4692 = vmatpush1.msra.mxu0 %v3898
  %4693 = vmatprep.subr.mxu0 %v3901
  %4694 = vmatpush1.msra.mxu0 %v3900
  %4695 = vmatprep.subr.mxu0 %v3903
  %4696 = vmatpush1.msra.mxu0 %v3902
  %4697 = vmatprep.subr.mxu0 %v3905
  %4698 = vmatpush1.msra.mxu0 %v3904
  %4699 = vmatprep.subr.mxu0 %v3907
  %4700 = vmatpush1.msra.mxu0 %v3906
  %4701 = vmatprep.subr.mxu0 %v3909
  %4702 = vmatpush1.msra.mxu0 %v3908
  %4703 = vmatprep.subr.mxu0 %v3911
  %4704 = vmatpush1.msra.mxu0 %v3910
  %4705 = vmatprep.subr.mxu0 %v3913
  %4706 = vmatpush1.msra.mxu0 %v3912
  %4707 = vmatprep.subr.mxu0 0.0
  %4708 = vmatpush1.msra.mxu0 0.0
  %4709 = vmatprep.subr.mxu0 0.0
  %4710 = vmatpush1.msra.mxu0 0.0
  %4711 = vmatprep.subr.mxu0 0.0
  %4712 = vmatpush1.msra.mxu0 0.0
  %4713 = vmatprep.subr.mxu0 0.0
  %4714 = vmatpush1.msra.mxu0 0.0
  %4715 = vmatprep.subr.mxu0 0.0
  %4716 = vmatpush1.msra.mxu0 0.0
  %4717 = vmatprep.subr.mxu0 0.0
  %4718 = vmatpush1.msra.mxu0 0.0
  %4719 = vmatprep.subr.mxu0 0.0
  %4720 = vmatpush1.msra.mxu0 0.0
  %4721 = vmatprep.subr.mxu0 0.0
  %4722 = vmatpush1.msra.mxu0 0.0
  %4723 = vmatprep.subr.mxu0 0.0
  %4724 = vmatpush1.msra.mxu0 0.0
  %4725 = vmatprep.subr.mxu0 0.0
  %4726 = vmatpush1.msra.mxu0 0.0
  %4727 = vmatprep.subr.mxu0 0.0
  %4728 = vmatpush1.msra.mxu0 0.0
  %4729 = vmatprep.subr.mxu0 0.0
  %4730 = vmatpush1.msra.mxu0 0.0
  %4731 = vmatprep.subr.mxu0 0.0
  %4732 = vmatpush1.msra.mxu0 0.0
  %4733 = vmatprep.subr.mxu0 0.0
  %4734 = vmatpush1.msra.mxu0 0.0
  %4735 = vmatprep.mubr.f32.mxu0 %v4669
  %4736 = vmatmul.mubr.f32.gmra.mrb[0].mxu0 %v4664
  %v4737 = vpop.f32.mrb[0].mxu0
  %v4738 = vadd.f32 0.0, %v4737
  %v4739 = vpop.f32.mrb[0].mxu0
  %v4740 = vadd.f32 0.0, %v4739
  %4741 = vdwg.mxu0
  %v4742 = vadd.f32 %v4650, %v4738
  %v4743 = vadd.f32 %v4652, %v4740
  %v4744 = vld [vmem:[%s1405] sm:$0xe0]
  %v4745 = vld [vmem:[%s1405 + $0x8] sm:$0xe0]
  %v4746 = vld [vmem:[%s1405 + $0x10] sm:$0x1]
  %v4747 = vld [vmem:[%s1405 + $0x18] sm:$0x1]
  %v4752 = vrot.slane %v4744, 5
  %v4753 = vrot.slane %v4746, 5
  %v4754 = vsel %vm4489, %v4752, %v4753
  %v4755 = vrot.slane %v4745, 5
  %v4756 = vrot.slane %v4747, 5
  %v4757 = vsel %vm4489, %v4755, %v4756
  %v4759 = vsel %vm45, %v4757, 0
  %4761 = vmatprep.subr.mxu0 %v3994
  %4762 = vmatpush1.msra.mxu0 %v3993
  %4763 = vmatprep.subr.mxu0 %v3996
  %4764 = vmatpush1.msra.mxu0 %v3995
  %4765 = vmatprep.subr.mxu0 %v3998
  %4766 = vmatpush1.msra.mxu0 %v3997
  %4767 = vmatprep.subr.mxu0 %v4000
  %4768 = vmatpush1.msra.mxu0 %v3999
  %4769 = vmatprep.subr.mxu0 %v4002
  %4770 = vmatpush1.msra.mxu0 %v4001
  %4771 = vmatprep.subr.mxu0 %v4004
  %4772 = vmatpush1.msra.mxu0 %v4003
  %4773 = vmatprep.subr.mxu0 %v4006
  %4774 = vmatpush1.msra.mxu0 %v4005
  %4775 = vmatprep.subr.mxu0 %v4008
  %4776 = vmatpush1.msra.mxu0 %v4007
  %4777 = vmatprep.subr.mxu0 %v4010
  %4778 = vmatpush1.msra.mxu0 %v4009
  %4779 = vmatprep.subr.mxu0 %v4012
  %4780 = vmatpush1.msra.mxu0 %v4011
  %4781 = vmatprep.subr.mxu0 %v4014
  %4782 = vmatpush1.msra.mxu0 %v4013
  %4783 = vmatprep.subr.mxu0 %v4016
  %4784 = vmatpush1.msra.mxu0 %v4015
  %4785 = vmatprep.subr.mxu0 %v4018
  %4786 = vmatpush1.msra.mxu0 %v4017
  %4787 = vmatprep.subr.mxu0 %v4020
  %4788 = vmatpush1.msra.mxu0 %v4019
  %4789 = vmatprep.subr.mxu0 %v4022
  %4790 = vmatpush1.msra.mxu0 %v4021
  %4791 = vmatprep.subr.mxu0 %v4024
  %4792 = vmatpush1.msra.mxu0 %v4023
  %4793 = vmatprep.subr.mxu0 %v4026
  %4794 = vmatpush1.msra.mxu0 %v4025
  %4795 = vmatprep.subr.mxu0 %v4028
  %4796 = vmatpush1.msra.mxu0 %v4027
  %4797 = vmatprep.subr.mxu0 0.0
  %4798 = vmatpush1.msra.mxu0 0.0
  %4799 = vmatprep.subr.mxu0 0.0
  %4800 = vmatpush1.msra.mxu0 0.0
  %4801 = vmatprep.subr.mxu0 0.0
  %4802 = vmatpush1.msra.mxu0 0.0
  %4803 = vmatprep.subr.mxu0 0.0
  %4804 = vmatpush1.msra.mxu0 0.0
  %4805 = vmatprep.subr.mxu0 0.0
  %4806 = vmatpush1.msra.mxu0 0.0
  %4807 = vmatprep.subr.mxu0 0.0
  %4808 = vmatpush1.msra.mxu0 0.0
  %4809 = vmatprep.subr.mxu0 0.0
  %4810 = vmatpush1.msra.mxu0 0.0
  %4811 = vmatprep.subr.mxu0 0.0
  %4812 = vmatpush1.msra.mxu0 0.0
  %4813 = vmatprep.subr.mxu0 0.0
  %4814 = vmatpush1.msra.mxu0 0.0
  %4815 = vmatprep.subr.mxu0 0.0
  %4816 = vmatpush1.msra.mxu0 0.0
  %4817 = vmatprep.subr.mxu0 0.0
  %4818 = vmatpush1.msra.mxu0 0.0
  %4819 = vmatprep.subr.mxu0 0.0
  %4820 = vmatpush1.msra.mxu0 0.0
  %4821 = vmatprep.subr.mxu0 0.0
  %4822 = vmatpush1.msra.mxu0 0.0
  %4823 = vmatprep.subr.mxu0 0.0
  %4824 = vmatpush1.msra.mxu0 0.0
  %4825 = vmatprep.mubr.f32.mxu0 %v4759
  %4826 = vmatmul.mubr.f32.gmra.mrb[0].mxu0 %v4754
  %v4827 = vpop.f32.mrb[0].mxu0
  %v4828 = vadd.f32 0.0, %v4827
  %v4829 = vpop.f32.mrb[0].mxu0
  %v4830 = vadd.f32 0.0, %v4829
  %4831 = vdwg.mxu0
  %v4832 = vadd.f32 %v4742, %v4828
  %v4833 = vadd.f32 %v4743, %v4830
  %v4834 = vsel %vm4105, %v4832, 0.0
  %v4835 = vrot.slane %v4834, 4
  %v4836 = vadd.f32 %v4834, %v4835
  %v4837 = vrot.slane %v4836, 2
  %v4838 = vadd.f32 %v4836, %v4837
  %v4839 = vrot.slane %v4838, 1
  %v4840 = vadd.f32 %v4838, %v4839
  %v4841 = vsel %vm4113, %v4833, 0.0
  %v4842 = vrot.slane %v4841, 4
  %v4843 = vadd.f32 %v4841, %v4842
  %v4844 = vrot.slane %v4843, 2
  %v4845 = vadd.f32 %v4843, %v4844
  %v4846 = vrot.slane %v4845, 1
  %v4847 = vadd.f32 %v4845, %v4846
  %v4848 = vmul.f32 %v4832, %v4832
  %v4849 = vmul.f32 %v4833, %v4833
  %v4850 = vsel %vm4105, %v4848, 0.0
  %v4851 = vrot.slane %v4850, 4
  %v4852 = vadd.f32 %v4850, %v4851
  %v4853 = vrot.slane %v4852, 2
  %v4854 = vadd.f32 %v4852, %v4853
  %v4855 = vrot.slane %v4854, 1
  %v4856 = vadd.f32 %v4854, %v4855
  %v4857 = vsel %vm4113, %v4849, 0.0
  %v4858 = vrot.slane %v4857, 4
  %v4859 = vadd.f32 %v4857, %v4858
  %v4860 = vrot.slane %v4859, 2
  %v4861 = vadd.f32 %v4859, %v4860
  %v4862 = vrot.slane %v4861, 1
  %v4863 = vadd.f32 %v4861, %v4862
  %v4864 = vadd.f32 %v4473, %v4840
  %v4865 = vadd.f32 %v4474, %v4847
  %v4866 = vadd.f32 %v4475, %v4856
  %v4867 = vadd.f32 %v4476, %v4863
  %4868 = vmatprep.subr.mxu0 %v3692
  %4869 = vmatpush1.msra.mxu0 %v3691
  %4870 = vmatprep.subr.mxu0 %v3694
  %4871 = vmatpush1.msra.mxu0 %v3693
  %4872 = vmatprep.subr.mxu0 %v3696
  %4873 = vmatpush1.msra.mxu0 %v3695
  %4874 = vmatprep.subr.mxu0 %v3698
  %4875 = vmatpush1.msra.mxu0 %v3697
  %4876 = vmatprep.subr.mxu0 %v3700
  %4877 = vmatpush1.msra.mxu0 %v3699
  %4878 = vmatprep.subr.mxu0 %v3702
  %4879 = vmatpush1.msra.mxu0 %v3701
  %4880 = vmatprep.subr.mxu0 %v3704
  %4881 = vmatpush1.msra.mxu0 %v3703
  %4882 = vmatprep.subr.mxu0 %v3706
  %4883 = vmatpush1.msra.mxu0 %v3705
  %4884 = vmatprep.subr.mxu0 %v3708
  %4885 = vmatpush1.msra.mxu0 %v3707
  %4886 = vmatprep.subr.mxu0 %v3710
  %4887 = vmatpush1.msra.mxu0 %v3709
  %4888 = vmatprep.subr.mxu0 %v3712
  %4889 = vmatpush1.msra.mxu0 %v3711
  %4890 = vmatprep.subr.mxu0 %v3714
  %4891 = vmatpush1.msra.mxu0 %v3713
  %4892 = vmatprep.subr.mxu0 %v3716
  %4893 = vmatpush1.msra.mxu0 %v3715
  %4894 = vmatprep.subr.mxu0 %v3718
  %4895 = vmatpush1.msra.mxu0 %v3717
  %4896 = vmatprep.subr.mxu0 %v3720
  %4897 = vmatpush1.msra.mxu0 %v3719
  %4898 = vmatprep.subr.mxu0 %v3722
  %4899 = vmatpush1.msra.mxu0 %v3721
  %4900 = vmatprep.subr.mxu0 %v3724
  %4901 = vmatpush1.msra.mxu0 %v3723
  %4902 = vmatprep.subr.mxu0 %v3726
  %4903 = vmatpush1.msra.mxu0 %v3725
  %4904 = vmatprep.subr.mxu0 0.0
  %4905 = vmatpush1.msra.mxu0 0.0
  %4906 = vmatprep.subr.mxu0 0.0
  %4907 = vmatpush1.msra.mxu0 0.0
  %4908 = vmatprep.subr.mxu0 0.0
  %4909 = vmatpush1.msra.mxu0 0.0
  %4910 = vmatprep.subr.mxu0 0.0
  %4911 = vmatpush1.msra.mxu0 0.0
  %4912 = vmatprep.subr.mxu0 0.0
  %4913 = vmatpush1.msra.mxu0 0.0
  %4914 = vmatprep.subr.mxu0 0.0
  %4915 = vmatpush1.msra.mxu0 0.0
  %4916 = vmatprep.subr.mxu0 0.0
  %4917 = vmatpush1.msra.mxu0 0.0
  %4918 = vmatprep.subr.mxu0 0.0
  %4919 = vmatpush1.msra.mxu0 0.0
  %4920 = vmatprep.subr.mxu0 0.0
  %4921 = vmatpush1.msra.mxu0 0.0
  %4922 = vmatprep.subr.mxu0 0.0
  %4923 = vmatpush1.msra.mxu0 0.0
  %4924 = vmatprep.subr.mxu0 0.0
  %4925 = vmatpush1.msra.mxu0 0.0
  %4926 = vmatprep.subr.mxu0 0.0
  %4927 = vmatpush1.msra.mxu0 0.0
  %4928 = vmatprep.subr.mxu0 0.0
  %4929 = vmatpush1.msra.mxu0 0.0
  %4930 = vmatprep.subr.mxu0 0.0
  %4931 = vmatpush1.msra.mxu0 0.0
  %4932 = vmatprep.mubr.f32.mxu0 %v4759
  %4933 = vmatmul.mubr.f32.gmra.mrb[0].mxu0 %v4754
  %v4934 = vpop.f32.mrb[0].mxu0
  %v4935 = vadd.f32 0.0, %v4934
  %v4936 = vpop.f32.mrb[0].mxu0
  %v4937 = vadd.f32 0.0, %v4936
  %4938 = vdwg.mxu0
  %4939 = vmatprep.subr.mxu0 %v3653
  %4940 = vmatpush1.msra.mxu0 %v3652
  %4941 = vmatprep.subr.mxu0 %v3655
  %4942 = vmatpush1.msra.mxu0 %v3654
  %4943 = vmatprep.subr.mxu0 %v3657
  %4944 = vmatpush1.msra.mxu0 %v3656
  %4945 = vmatprep.subr.mxu0 %v3659
  %4946 = vmatpush1.msra.mxu0 %v3658
  %4947 = vmatprep.subr.mxu0 %v3661
  %4948 = vmatpush1.msra.mxu0 %v3660
  %4949 = vmatprep.subr.mxu0 %v3663
  %4950 = vmatpush1.msra.mxu0 %v3662
  %4951 = vmatprep.subr.mxu0 %v3665
  %4952 = vmatpush1.msra.mxu0 %v3664
  %4953 = vmatprep.subr.mxu0 %v3667
  %4954 = vmatpush1.msra.mxu0 %v3666
  %4955 = vmatprep.subr.mxu0 %v3669
  %4956 = vmatpush1.msra.mxu0 %v3668
  %4957 = vmatprep.subr.mxu0 %v3671
  %4958 = vmatpush1.msra.mxu0 %v3670
  %4959 = vmatprep.subr.mxu0 %v3673
  %4960 = vmatpush1.msra.mxu0 %v3672
  %4961 = vmatprep.subr.mxu0 %v3675
  %4962 = vmatpush1.msra.mxu0 %v3674
  %4963 = vmatprep.subr.mxu0 %v3677
  %4964 = vmatpush1.msra.mxu0 %v3676
  %4965 = vmatprep.subr.mxu0 %v3679
  %4966 = vmatpush1.msra.mxu0 %v3678
  %4967 = vmatprep.subr.mxu0 %v3681
  %4968 = vmatpush1.msra.mxu0 %v3680
  %4969 = vmatprep.subr.mxu0 %v3683
  %4970 = vmatpush1.msra.mxu0 %v3682
  %4971 = vmatprep.subr.mxu0 %v3685
  %4972 = vmatpush1.msra.mxu0 %v3684
  %4973 = vmatprep.subr.mxu0 %v3687
  %4974 = vmatpush1.msra.mxu0 %v3686
  %4975 = vmatprep.subr.mxu0 0.0
  %4976 = vmatpush1.msra.mxu0 0.0
  %4977 = vmatprep.subr.mxu0 0.0
  %4978 = vmatpush1.msra.mxu0 0.0
  %4979 = vmatprep.subr.mxu0 0.0
  %4980 = vmatpush1.msra.mxu0 0.0
  %4981 = vmatprep.subr.mxu0 0.0
  %4982 = vmatpush1.msra.mxu0 0.0
  %4983 = vmatprep.subr.mxu0 0.0
  %4984 = vmatpush1.msra.mxu0 0.0
  %4985 = vmatprep.subr.mxu0 0.0
  %4986 = vmatpush1.msra.mxu0 0.0
  %4987 = vmatprep.subr.mxu0 0.0
  %4988 = vmatpush1.msra.mxu0 0.0
  %4989 = vmatprep.subr.mxu0 0.0
  %4990 = vmatpush1.msra.mxu0 0.0
  %4991 = vmatprep.subr.mxu0 0.0
  %4992 = vmatpush1.msra.mxu0 0.0
  %4993 = vmatprep.subr.mxu0 0.0
  %4994 = vmatpush1.msra.mxu0 0.0
  %4995 = vmatprep.subr.mxu0 0.0
  %4996 = vmatpush1.msra.mxu0 0.0
  %4997 = vmatprep.subr.mxu0 0.0
  %4998 = vmatpush1.msra.mxu0 0.0
  %4999 = vmatprep.subr.mxu0 0.0
  %5000 = vmatpush1.msra.mxu0 0.0
  %5001 = vmatprep.subr.mxu0 0.0
  %5002 = vmatpush1.msra.mxu0 0.0
  %5003 = vmatprep.mubr.f32.mxu0 %v4669
  %5004 = vmatmul.mubr.f32.gmra.mrb[0].mxu0 %v4664
  %v5005 = vpop.f32.mrb[0].mxu0
  %v5006 = vadd.f32 %v4935, %v5005
  %v5007 = vpop.f32.mrb[0].mxu0
  %v5008 = vadd.f32 %v4937, %v5007
  %5009 = vdwg.mxu0
  %v5010 = vld [vmem:[#allocation2] sm:$0xc0]
  %v5011 = vld [vmem:[#allocation2 + $0x8] sm:$0xc0]
  %v5012 = vld [vmem:[#allocation2 + $0x10] sm:$0x3]
  %v5013 = vld [vmem:[#allocation2 + $0x18] sm:$0x3]
  %vm5018 = vcmask 1041408
  %v5019 = vrot.slane %v5010, 6
  %v5020 = vrot.slane %v5012, 6
  %v5021 = vsel %vm5018, %v5019, %v5020
  %v5022 = vrot.slane %v5011, 6
  %v5023 = vrot.slane %v5013, 6
  %v5024 = vsel %vm5018, %v5022, %v5023
  %v5026 = vsel %vm45, %v5024, 0
  %5028 = vmatprep.subr.mxu0 %v3879
  %5029 = vmatpush1.msra.mxu0 %v3878
  %5030 = vmatprep.subr.mxu0 %v3881
  %5031 = vmatpush1.msra.mxu0 %v3880
  %5032 = vmatprep.subr.mxu0 %v3883
  %5033 = vmatpush1.msra.mxu0 %v3882
  %5034 = vmatprep.subr.mxu0 %v3885
  %5035 = vmatpush1.msra.mxu0 %v3884
  %5036 = vmatprep.subr.mxu0 %v3887
  %5037 = vmatpush1.msra.mxu0 %v3886
  %5038 = vmatprep.subr.mxu0 %v3889
  %5039 = vmatpush1.msra.mxu0 %v3888
  %5040 = vmatprep.subr.mxu0 %v3891
  %5041 = vmatpush1.msra.mxu0 %v3890
  %5042 = vmatprep.subr.mxu0 %v3893
  %5043 = vmatpush1.msra.mxu0 %v3892
  %5044 = vmatprep.subr.mxu0 %v3895
  %5045 = vmatpush1.msra.mxu0 %v3894
  %5046 = vmatprep.subr.mxu0 %v3897
  %5047 = vmatpush1.msra.mxu0 %v3896
  %5048 = vmatprep.subr.mxu0 %v3899
  %5049 = vmatpush1.msra.mxu0 %v3898
  %5050 = vmatprep.subr.mxu0 %v3901
  %5051 = vmatpush1.msra.mxu0 %v3900
  %5052 = vmatprep.subr.mxu0 %v3903
  %5053 = vmatpush1.msra.mxu0 %v3902
  %5054 = vmatprep.subr.mxu0 %v3905
  %5055 = vmatpush1.msra.mxu0 %v3904
  %5056 = vmatprep.subr.mxu0 %v3907
  %5057 = vmatpush1.msra.mxu0 %v3906
  %5058 = vmatprep.subr.mxu0 %v3909
  %5059 = vmatpush1.msra.mxu0 %v3908
  %5060 = vmatprep.subr.mxu0 %v3911
  %5061 = vmatpush1.msra.mxu0 %v3910
  %5062 = vmatprep.subr.mxu0 %v3913
  %5063 = vmatpush1.msra.mxu0 %v3912
  %5064 = vmatprep.subr.mxu0 0.0
  %5065 = vmatpush1.msra.mxu0 0.0
  %5066 = vmatprep.subr.mxu0 0.0
  %5067 = vmatpush1.msra.mxu0 0.0
  %5068 = vmatprep.subr.mxu0 0.0
  %5069 = vmatpush1.msra.mxu0 0.0
  %5070 = vmatprep.subr.mxu0 0.0
  %5071 = vmatpush1.msra.mxu0 0.0
  %5072 = vmatprep.subr.mxu0 0.0
  %5073 = vmatpush1.msra.mxu0 0.0
  %5074 = vmatprep.subr.mxu0 0.0
  %5075 = vmatpush1.msra.mxu0 0.0
  %5076 = vmatprep.subr.mxu0 0.0
  %5077 = vmatpush1.msra.mxu0 0.0
  %5078 = vmatprep.subr.mxu0 0.0
  %5079 = vmatpush1.msra.mxu0 0.0
  %5080 = vmatprep.subr.mxu0 0.0
  %5081 = vmatpush1.msra.mxu0 0.0
  %5082 = vmatprep.subr.mxu0 0.0
  %5083 = vmatpush1.msra.mxu0 0.0
  %5084 = vmatprep.subr.mxu0 0.0
  %5085 = vmatpush1.msra.mxu0 0.0
  %5086 = vmatprep.subr.mxu0 0.0
  %5087 = vmatpush1.msra.mxu0 0.0
  %5088 = vmatprep.subr.mxu0 0.0
  %5089 = vmatpush1.msra.mxu0 0.0
  %5090 = vmatprep.subr.mxu0 0.0
  %5091 = vmatpush1.msra.mxu0 0.0
  %5092 = vmatprep.mubr.f32.mxu0 %v5026
  %5093 = vmatmul.mubr.f32.gmra.mrb[0].mxu0 %v5021
  %v5094 = vpop.f32.mrb[0].mxu0
  %v5095 = vadd.f32 0.0, %v5094
  %v5096 = vpop.f32.mrb[0].mxu0
  %v5097 = vadd.f32 0.0, %v5096
  %5098 = vdwg.mxu0
  %v5099 = vadd.f32 %v5006, %v5095
  %v5100 = vadd.f32 %v5008, %v5097
  %v5101 = vld [vmem:[%s518] sm:$0xc0]
  %v5102 = vld [vmem:[%s518 + $0x8] sm:$0xc0]
  %v5103 = vld [vmem:[%s518 + $0x10] sm:$0x3]
  %v5104 = vld [vmem:[%s518 + $0x18] sm:$0x3]
  %v5109 = vrot.slane %v5101, 6
  %v5110 = vrot.slane %v5103, 6
  %v5111 = vsel %vm5018, %v5109, %v5110
  %v5112 = vrot.slane %v5102, 6
  %v5113 = vrot.slane %v5104, 6
  %v5114 = vsel %vm5018, %v5112, %v5113
  %v5116 = vsel %vm45, %v5114, 0
  %5118 = vmatprep.subr.mxu0 %v3994
  %5119 = vmatpush1.msra.mxu0 %v3993
  %5120 = vmatprep.subr.mxu0 %v3996
  %5121 = vmatpush1.msra.mxu0 %v3995
  %5122 = vmatprep.subr.mxu0 %v3998
  %5123 = vmatpush1.msra.mxu0 %v3997
  %5124 = vmatprep.subr.mxu0 %v4000
  %5125 = vmatpush1.msra.mxu0 %v3999
  %5126 = vmatprep.subr.mxu0 %v4002
  %5127 = vmatpush1.msra.mxu0 %v4001
  %5128 = vmatprep.subr.mxu0 %v4004
  %5129 = vmatpush1.msra.mxu0 %v4003
  %5130 = vmatprep.subr.mxu0 %v4006
  %5131 = vmatpush1.msra.mxu0 %v4005
  %5132 = vmatprep.subr.mxu0 %v4008
  %5133 = vmatpush1.msra.mxu0 %v4007
  %5134 = vmatprep.subr.mxu0 %v4010
  %5135 = vmatpush1.msra.mxu0 %v4009
  %5136 = vmatprep.subr.mxu0 %v4012
  %5137 = vmatpush1.msra.mxu0 %v4011
  %5138 = vmatprep.subr.mxu0 %v4014
  %5139 = vmatpush1.msra.mxu0 %v4013
  %5140 = vmatprep.subr.mxu0 %v4016
  %5141 = vmatpush1.msra.mxu0 %v4015
  %5142 = vmatprep.subr.mxu0 %v4018
  %5143 = vmatpush1.msra.mxu0 %v4017
  %5144 = vmatprep.subr.mxu0 %v4020
  %5145 = vmatpush1.msra.mxu0 %v4019
  %5146 = vmatprep.subr.mxu0 %v4022
  %5147 = vmatpush1.msra.mxu0 %v4021
  %5148 = vmatprep.subr.mxu0 %v4024
  %5149 = vmatpush1.msra.mxu0 %v4023
  %5150 = vmatprep.subr.mxu0 %v4026
  %5151 = vmatpush1.msra.mxu0 %v4025
  %5152 = vmatprep.subr.mxu0 %v4028
  %5153 = vmatpush1.msra.mxu0 %v4027
  %5154 = vmatprep.subr.mxu0 0.0
  %5155 = vmatpush1.msra.mxu0 0.0
  %5156 = vmatprep.subr.mxu0 0.0
  %5157 = vmatpush1.msra.mxu0 0.0
  %5158 = vmatprep.subr.mxu0 0.0
  %5159 = vmatpush1.msra.mxu0 0.0
  %5160 = vmatprep.subr.mxu0 0.0
  %5161 = vmatpush1.msra.mxu0 0.0
  %5162 = vmatprep.subr.mxu0 0.0
  %5163 = vmatpush1.msra.mxu0 0.0
  %5164 = vmatprep.subr.mxu0 0.0
  %5165 = vmatpush1.msra.mxu0 0.0
  %5166 = vmatprep.subr.mxu0 0.0
  %5167 = vmatpush1.msra.mxu0 0.0
  %5168 = vmatprep.subr.mxu0 0.0
  %5169 = vmatpush1.msra.mxu0 0.0
  %5170 = vmatprep.subr.mxu0 0.0
  %5171 = vmatpush1.msra.mxu0 0.0
  %5172 = vmatprep.subr.mxu0 0.0
  %5173 = vmatpush1.msra.mxu0 0.0
  %5174 = vmatprep.subr.mxu0 0.0
  %5175 = vmatpush1.msra.mxu0 0.0
  %5176 = vmatprep.subr.mxu0 0.0
  %5177 = vmatpush1.msra.mxu0 0.0
  %5178 = vmatprep.subr.mxu0 0.0
  %5179 = vmatpush1.msra.mxu0 0.0
  %5180 = vmatprep.subr.mxu0 0.0
  %5181 = vmatpush1.msra.mxu0 0.0
  %5182 = vmatprep.mubr.f32.mxu0 %v5116
  %5183 = vmatmul.mubr.f32.gmra.mrb[0].mxu0 %v5111
  %v5184 = vpop.f32.mrb[0].mxu0
  %v5185 = vadd.f32 0.0, %v5184
  %v5186 = vpop.f32.mrb[0].mxu0
  %v5187 = vadd.f32 0.0, %v5186
  %5188 = vdwg.mxu0
  %v5189 = vadd.f32 %v5099, %v5185
  %v5190 = vadd.f32 %v5100, %v5187
  %v5191 = vsel %vm4105, %v5189, 0.0
  %v5192 = vrot.slane %v5191, 4
  %v5193 = vadd.f32 %v5191, %v5192
  %v5194 = vrot.slane %v5193, 2
  %v5195 = vadd.f32 %v5193, %v5194
  %v5196 = vrot.slane %v5195, 1
  %v5197 = vadd.f32 %v5195, %v5196
  %v5198 = vsel %vm4113, %v5190, 0.0
  %v5199 = vrot.slane %v5198, 4
  %v5200 = vadd.f32 %v5198, %v5199
  %v5201 = vrot.slane %v5200, 2
  %v5202 = vadd.f32 %v5200, %v5201
  %v5203 = vrot.slane %v5202, 1
  %v5204 = vadd.f32 %v5202, %v5203
  %v5205 = vmul.f32 %v5189, %v5189
  %v5206 = vmul.f32 %v5190, %v5190
  %v5207 = vsel %vm4105, %v5205, 0.0
  %v5208 = vrot.slane %v5207, 4
  %v5209 = vadd.f32 %v5207, %v5208
  %v5210 = vrot.slane %v5209, 2
  %v5211 = vadd.f32 %v5209, %v5210
  %v5212 = vrot.slane %v5211, 1
  %v5213 = vadd.f32 %v5211, %v5212
  %v5214 = vsel %vm4113, %v5206, 0.0
  %v5215 = vrot.slane %v5214, 4
  %v5216 = vadd.f32 %v5214, %v5215
  %v5217 = vrot.slane %v5216, 2
  %v5218 = vadd.f32 %v5216, %v5217
  %v5219 = vrot.slane %v5218, 1
  %v5220 = vadd.f32 %v5218, %v5219
  %v5221 = vadd.f32 %v4864, %v5197
  %v5222 = vadd.f32 %v4865, %v5204
  %v5223 = vadd.f32 %v4866, %v5213
  %v5224 = vadd.f32 %v4867, %v5220
  %v5225 = vld [vmem:[%s4] sm:$0xff]
  %v5226 = vld [vmem:[%s4 + $0x8] sm:$0xff]
  %v5227 = vld [vmem:[%s4 + $0x10] sm:$0xff]
  %v5228 = vld [vmem:[%s4 + $0x18] sm:$0xff]
  %v5229 = vld [vmem:[%s4 + $0x20] sm:$0xff]
  %v5230 = vld [vmem:[%s4 + $0x28] sm:$0xff]
  %v5231 = vld [vmem:[%s4 + $0x30] sm:$0xff]
  %v5232 = vld [vmem:[%s4 + $0x38] sm:$0xff]
  %v5233 = vld [vmem:[%s4 + $0x40] sm:$0xff]
  %v5234 = vld [vmem:[%s4 + $0x48] sm:$0xff]
  %v5235 = vld [vmem:[%s4 + $0x50] sm:$0xff]
  %v5236 = vld [vmem:[%s4 + $0x58] sm:$0xff]
  %v5237 = vld [vmem:[%s4 + $0x60] sm:$0xff]
  %v5238 = vld [vmem:[%s4 + $0x68] sm:$0xff]
  %v5239 = vld [vmem:[%s4 + $0x70] sm:$0xff]
  %v5240 = vld [vmem:[%s4 + $0x78] sm:$0xff]
  %v5241 = vld [vmem:[%s4 + $0x80] sm:$0xff]
  %v5242 = vld [vmem:[%s4 + $0x88] sm:$0xff]
  %v5243 = vld [vmem:[%s4 + $0x90] sm:$0xff]
  %v5244 = vld [vmem:[%s4 + $0x98] sm:$0xff]
  %v5246 = vsel %vm63, %v5222, 0
  %5248 = vmatprep.subr.mxu0 0.0
  %5249 = vmatpush1.msra.mxu0 %v5225
  %5250 = vmatprep.subr.mxu0 0.0
  %5251 = vmatpush1.msra.mxu0 %v5226
  %5252 = vmatprep.subr.mxu0 0.0
  %5253 = vmatpush1.msra.mxu0 %v5227
  %5254 = vmatprep.subr.mxu0 0.0
  %5255 = vmatpush1.msra.mxu0 %v5228
  %5256 = vmatprep.subr.mxu0 0.0
  %5257 = vmatpush1.msra.mxu0 %v5229
  %5258 = vmatprep.subr.mxu0 0.0
  %5259 = vmatpush1.msra.mxu0 %v5230
  %5260 = vmatprep.subr.mxu0 0.0
  %5261 = vmatpush1.msra.mxu0 %v5231
  %5262 = vmatprep.subr.mxu0 0.0
  %5263 = vmatpush1.msra.mxu0 %v5232
  %5264 = vmatprep.subr.mxu0 0.0
  %5265 = vmatpush1.msra.mxu0 %v5233
  %5266 = vmatprep.subr.mxu0 0.0
  %5267 = vmatpush1.msra.mxu0 %v5234
  %5268 = vmatprep.subr.mxu0 0.0
  %5269 = vmatpush1.msra.mxu0 %v5235
  %5270 = vmatprep.subr.mxu0 0.0
  %5271 = vmatpush1.msra.mxu0 %v5236
  %5272 = vmatprep.subr.mxu0 0.0
  %5273 = vmatpush1.msra.mxu0 %v5237
  %5274 = vmatprep.subr.mxu0 0.0
  %5275 = vmatpush1.msra.mxu0 %v5238
  %5276 = vmatprep.subr.mxu0 0.0
  %5277 = vmatpush1.msra.mxu0 %v5239
  %5278 = vmatprep.subr.mxu0 0.0
  %5279 = vmatpush1.msra.mxu0 %v5240
  %5280 = vmatprep.subr.mxu0 0.0
  %5281 = vmatpush1.msra.mxu0 %v5241
  %5282 = vmatprep.subr.mxu0 0.0
  %5283 = vmatpush1.msra.mxu0 %v5242
  %5284 = vmatprep.subr.mxu0 0.0
  %5285 = vmatpush1.msra.mxu0 %v5243
  %5286 = vmatprep.subr.mxu0 0.0
  %5287 = vmatpush1.msra.mxu0 %v5244
  %5288 = vmatprep.subr.mxu0 0.0
  %5289 = vmatpush1.msra.mxu0 0.0
  %5290 = vmatprep.subr.mxu0 0.0
  %5291 = vmatpush1.msra.mxu0 0.0
  %5292 = vmatprep.subr.mxu0 0.0
  %5293 = vmatpush1.msra.mxu0 0.0
  %5294 = vmatprep.subr.mxu0 0.0
  %5295 = vmatpush1.msra.mxu0 0.0
  %5296 = vmatprep.subr.mxu0 0.0
  %5297 = vmatpush1.msra.mxu0 0.0
  %5298 = vmatprep.subr.mxu0 0.0
  %5299 = vmatpush1.msra.mxu0 0.0
  %5300 = vmatprep.subr.mxu0 0.0
  %5301 = vmatpush1.msra.mxu0 0.0
  %5302 = vmatprep.subr.mxu0 0.0
  %5303 = vmatpush1.msra.mxu0 0.0
  %5304 = vmatprep.subr.mxu0 0.0
  %5305 = vmatpush1.msra.mxu0 0.0
  %5306 = vmatprep.subr.mxu0 0.0
  %5307 = vmatpush1.msra.mxu0 0.0
  %5308 = vmatprep.subr.mxu0 0.0
  %5309 = vmatpush1.msra.mxu0 0.0
  %5310 = vmatprep.subr.mxu0 0.0
  %5311 = vmatpush1.msra.mxu0 0.0
  %5312 = vmatprep.mubr.f32.mxu0 %v5246
  %5313 = vmatmul.mubr.f32.gmra.mrb[0].mxu0 %v5221
  %v5314 = vpop.f32.mrb[0].mxu0
  %v5315 = vadd.f32 0.0, %v5314
  %v5316 = vpop.f32.mrb[0].mxu0
  %5317 = vdwg.mxu0
  %v5318 = vrcp.pop 128.0
  %v5319 = vmul.f32 %v5315, %v5318
  %v5321 = vsel %vm63, %v5224, 0
  %5323 = vmatprep.subr.mxu0 0.0
  %5324 = vmatpush1.msra.mxu0 %v5225
  %5325 = vmatprep.subr.mxu0 0.0
  %5326 = vmatpush1.msra.mxu0 %v5226
  %5327 = vmatprep.subr.mxu0 0.0
  %5328 = vmatpush1.msra.mxu0 %v5227
  %5329 = vmatprep.subr.mxu0 0.0
  %5330 = vmatpush1.msra.mxu0 %v5228
  %5331 = vmatprep.subr.mxu0 0.0
  %5332 = vmatpush1.msra.mxu0 %v5229
  %5333 = vmatprep.subr.mxu0 0.0
  %5334 = vmatpush1.msra.mxu0 %v5230
  %5335 = vmatprep.subr.mxu0 0.0
  %5336 = vmatpush1.msra.mxu0 %v5231
  %5337 = vmatprep.subr.mxu0 0.0
  %5338 = vmatpush1.msra.mxu0 %v5232
  %5339 = vmatprep.subr.mxu0 0.0
  %5340 = vmatpush1.msra.mxu0 %v5233
  %5341 = vmatprep.subr.mxu0 0.0
  %5342 = vmatpush1.msra.mxu0 %v5234
  %5343 = vmatprep.subr.mxu0 0.0
  %5344 = vmatpush1.msra.mxu0 %v5235
  %5345 = vmatprep.subr.mxu0 0.0
  %5346 = vmatpush1.msra.mxu0 %v5236
  %5347 = vmatprep.subr.mxu0 0.0
  %5348 = vmatpush1.msra.mxu0 %v5237
  %5349 = vmatprep.subr.mxu0 0.0
  %5350 = vmatpush1.msra.mxu0 %v5238
  %5351 = vmatprep.subr.mxu0 0.0
  %5352 = vmatpush1.msra.mxu0 %v5239
  %5353 = vmatprep.subr.mxu0 0.0
  %5354 = vmatpush1.msra.mxu0 %v5240
  %5355 = vmatprep.subr.mxu0 0.0
  %5356 = vmatpush1.msra.mxu0 %v5241
  %5357 = vmatprep.subr.mxu0 0.0
  %5358 = vmatpush1.msra.mxu0 %v5242
  %5359 = vmatprep.subr.mxu0 0.0
  %5360 = vmatpush1.msra.mxu0 %v5243
  %5361 = vmatprep.subr.mxu0 0.0
  %5362 = vmatpush1.msra.mxu0 %v5244
  %5363 = vmatprep.subr.mxu0 0.0
  %5364 = vmatpush1.msra.mxu0 0.0
  %5365 = vmatprep.subr.mxu0 0.0
  %5366 = vmatpush1.msra.mxu0 0.0
  %5367 = vmatprep.subr.mxu0 0.0
  %5368 = vmatpush1.msra.mxu0 0.0
  %5369 = vmatprep.subr.mxu0 0.0
  %5370 = vmatpush1.msra.mxu0 0.0
  %5371 = vmatprep.subr.mxu0 0.0
  %5372 = vmatpush1.msra.mxu0 0.0
  %5373 = vmatprep.subr.mxu0 0.0
  %5374 = vmatpush1.msra.mxu0 0.0
  %5375 = vmatprep.subr.mxu0 0.0
  %5376 = vmatpush1.msra.mxu0 0.0
  %5377 = vmatprep.subr.mxu0 0.0
  %5378 = vmatpush1.msra.mxu0 0.0
  %5379 = vmatprep.subr.mxu0 0.0
  %5380 = vmatpush1.msra.mxu0 0.0
  %5381 = vmatprep.subr.mxu0 0.0
  %5382 = vmatpush1.msra.mxu0 0.0
  %5383 = vmatprep.subr.mxu0 0.0
  %5384 = vmatpush1.msra.mxu0 0.0
  %5385 = vmatprep.subr.mxu0 0.0
  %5386 = vmatpush1.msra.mxu0 0.0
  %5387 = vmatprep.mubr.f32.mxu0 %v5321
  %5388 = vmatmul.mubr.f32.gmra.mrb[0].mxu0 %v5223
  %v5389 = vpop.f32.mrb[0].mxu0
  %v5390 = vadd.f32 0.0, %v5389
  %v5391 = vpop.f32.mrb[0].mxu0
  %5392 = vdwg.mxu0
  %v5393 = vmul.f32 %v5390, %v5318
  %v5394 = vmul.f32 %v5319, %v5319
  %v5395 = vsub.f32 %v5393, %v5394
  %v5396 = vmax.f32 %v5395, 0.0
  %v5397 = vld [vmem:[%s6] sm:$0x1]
  %v5398 = vadd.f32 %v5396, 1e-05
  %v5399 = vrsqrt.pop %v5398
  %v5400 = vmul.f32 %v5397, %v5399
  %v5401 = vld [vmem:[%s7] sm:$0x1]
  %v5402 = vmul.f32 %v5319, %v5400
  %v5403 = vsub.f32 %v5401, %v5402
  %v5404 = vld [vmem:[%s5] sm:$0xff]
  %v5405 = vld [vmem:[%s5 + $0x8] sm:$0xff]
  %v5406 = vld [vmem:[%s5 + $0x10] sm:$0xff]
  %v5407 = vld [vmem:[%s5 + $0x18] sm:$0xff]
  %v5409 = vsel %vm45, %v5400, 0
  %5411 = vmatprep.subr.mxu0 %v5405
  %5412 = vmatpush1.msra.mxu0 %v5404
  %5413 = vmatprep.subr.mxu0 %v5407
  %5414 = vmatpush1.msra.mxu0 %v5406
  %5415 = vmatprep.subr.mxu0 0.0
  %5416 = vmatpush1.msra.mxu0 0.0
  %5417 = vmatprep.subr.mxu0 0.0
  %5418 = vmatpush1.msra.mxu0 0.0
  %5419 = vmatprep.subr.mxu0 0.0
  %5420 = vmatpush1.msra.mxu0 0.0
  %5421 = vmatprep.subr.mxu0 0.0
  %5422 = vmatpush1.msra.mxu0 0.0
  %5423 = vmatprep.subr.mxu0 0.0
  %5424 = vmatpush1.msra.mxu0 0.0
  %5425 = vmatprep.subr.mxu0 0.0
  %5426 = vmatpush1.msra.mxu0 0.0
  %5427 = vmatprep.subr.mxu0 0.0
  %5428 = vmatpush1.msra.mxu0 0.0
  %5429 = vmatprep.subr.mxu0 0.0
  %5430 = vmatpush1.msra.mxu0 0.0
  %5431 = vmatprep.subr.mxu0 0.0
  %5432 = vmatpush1.msra.mxu0 0.0
  %5433 = vmatprep.subr.mxu0 0.0
  %5434 = vmatpush1.msra.mxu0 0.0
  %5435 = vmatprep.subr.mxu0 0.0
  %5436 = vmatpush1.msra.mxu0 0.0
  %5437 = vmatprep.subr.mxu0 0.0
  %5438 = vmatpush1.msra.mxu0 0.0
  %5439 = vmatprep.subr.mxu0 0.0
  %5440 = vmatpush1.msra.mxu0 0.0
  %5441 = vmatprep.subr.mxu0 0.0
  %5442 = vmatpush1.msra.mxu0 0.0
  %5443 = vmatprep.subr.mxu0 0.0
  %5444 = vmatpush1.msra.mxu0 0.0
  %5445 = vmatprep.subr.mxu0 0.0
  %5446 = vmatpush1.msra.mxu0 0.0
  %5447 = vmatprep.subr.mxu0 0.0
  %5448 = vmatpush1.msra.mxu0 0.0
  %5449 = vmatprep.subr.mxu0 0.0
  %5450 = vmatpush1.msra.mxu0 0.0
  %5451 = vmatprep.subr.mxu0 0.0
  %5452 = vmatpush1.msra.mxu0 0.0
  %5453 = vmatprep.subr.mxu0 0.0
  %5454 = vmatpush1.msra.mxu0 0.0
  %5455 = vmatprep.subr.mxu0 0.0
  %5456 = vmatpush1.msra.mxu0 0.0
  %5457 = vmatprep.subr.mxu0 0.0
  %5458 = vmatpush1.msra.mxu0 0.0
  %5459 = vmatprep.subr.mxu0 0.0
  %5460 = vmatpush1.msra.mxu0 0.0
  %5461 = vmatprep.subr.mxu0 0.0
  %5462 = vmatpush1.msra.mxu0 0.0
  %5463 = vmatprep.subr.mxu0 0.0
  %5464 = vmatpush1.msra.mxu0 0.0
  %5465 = vmatprep.subr.mxu0 0.0
  %5466 = vmatpush1.msra.mxu0 0.0
  %5467 = vmatprep.subr.mxu0 0.0
  %5468 = vmatpush1.msra.mxu0 0.0
  %5469 = vmatprep.subr.mxu0 0.0
  %5470 = vmatpush1.msra.mxu0 0.0
  %5471 = vmatprep.subr.mxu0 0.0
  %5472 = vmatpush1.msra.mxu0 0.0
  %5473 = vmatprep.subr.mxu0 0.0
  %5474 = vmatpush1.msra.mxu0 0.0
  %5475 = vmatprep.mubr.f32.mxu0 0.0
  %5476 = vmatmul.mubr.f32.gmra.mrb[0].mxu0 %v5409
  %v5477 = vpop.f32.mrb[0].mxu0
  %v5478 = vadd.f32 0.0, %v5477
  %v5479 = vpop.f32.mrb[0].mxu0
  %v5480 = vadd.f32 0.0, %v5479
  %5481 = vdwg.mxu0
  %v5483 = vsel %vm45, %v5403, 0
  %5485 = vmatprep.subr.mxu0 %v5405
  %5486 = vmatpush1.msra.mxu0 %v5404
  %5487 = vmatprep.subr.mxu0 %v5407
  %5488 = vmatpush1.msra.mxu0 %v5406
  %5489 = vmatprep.subr.mxu0 0.0
  %5490 = vmatpush1.msra.mxu0 0.0
  %5491 = vmatprep.subr.mxu0 0.0
  %5492 = vmatpush1.msra.mxu0 0.0
  %5493 = vmatprep.subr.mxu0 0.0
  %5494 = vmatpush1.msra.mxu0 0.0
  %5495 = vmatprep.subr.mxu0 0.0
  %5496 = vmatpush1.msra.mxu0 0.0
  %5497 = vmatprep.subr.mxu0 0.0
  %5498 = vmatpush1.msra.mxu0 0.0
  %5499 = vmatprep.subr.mxu0 0.0
  %5500 = vmatpush1.msra.mxu0 0.0
  %5501 = vmatprep.subr.mxu0 0.0
  %5502 = vmatpush1.msra.mxu0 0.0
  %5503 = vmatprep.subr.mxu0 0.0
  %5504 = vmatpush1.msra.mxu0 0.0
  %5505 = vmatprep.subr.mxu0 0.0
  %5506 = vmatpush1.msra.mxu0 0.0
  %5507 = vmatprep.subr.mxu0 0.0
  %5508 = vmatpush1.msra.mxu0 0.0
  %5509 = vmatprep.subr.mxu0 0.0
  %5510 = vmatpush1.msra.mxu0 0.0
  %5511 = vmatprep.subr.mxu0 0.0
  %5512 = vmatpush1.msra.mxu0 0.0
  %5513 = vmatprep.subr.mxu0 0.0
  %5514 = vmatpush1.msra.mxu0 0.0
  %5515 = vmatprep.subr.mxu0 0.0
  %5516 = vmatpush1.msra.mxu0 0.0
  %5517 = vmatprep.subr.mxu0 0.0
  %5518 = vmatpush1.msra.mxu0 0.0
  %5519 = vmatprep.subr.mxu0 0.0
  %5520 = vmatpush1.msra.mxu0 0.0
  %5521 = vmatprep.subr.mxu0 0.0
  %5522 = vmatpush1.msra.mxu0 0.0
  %5523 = vmatprep.subr.mxu0 0.0
  %5524 = vmatpush1.msra.mxu0 0.0
  %5525 = vmatprep.subr.mxu0 0.0
  %5526 = vmatpush1.msra.mxu0 0.0
  %5527 = vmatprep.subr.mxu0 0.0
  %5528 = vmatpush1.msra.mxu0 0.0
  %5529 = vmatprep.subr.mxu0 0.0
  %5530 = vmatpush1.msra.mxu0 0.0
  %5531 = vmatprep.subr.mxu0 0.0
  %5532 = vmatpush1.msra.mxu0 0.0
  %5533 = vmatprep.subr.mxu0 0.0
  %5534 = vmatpush1.msra.mxu0 0.0
  %5535 = vmatprep.subr.mxu0 0.0
  %5536 = vmatpush1.msra.mxu0 0.0
  %5537 = vmatprep.subr.mxu0 0.0
  %5538 = vmatpush1.msra.mxu0 0.0
  %5539 = vmatprep.subr.mxu0 0.0
  %5540 = vmatpush1.msra.mxu0 0.0
  %5541 = vmatprep.subr.mxu0 0.0
  %5542 = vmatpush1.msra.mxu0 0.0
  %5543 = vmatprep.subr.mxu0 0.0
  %5544 = vmatpush1.msra.mxu0 0.0
  %5545 = vmatprep.subr.mxu0 0.0
  %5546 = vmatpush1.msra.mxu0 0.0
  %5547 = vmatprep.subr.mxu0 0.0
  %5548 = vmatpush1.msra.mxu0 0.0
  %5549 = vmatprep.mubr.f32.mxu0 0.0
  %5550 = vmatmul.mubr.f32.gmra.mrb[0].mxu0 %v5483
  %v5551 = vpop.f32.mrb[0].mxu0
  %v5552 = vadd.f32 0.0, %v5551
  %v5553 = vpop.f32.mrb[0].mxu0
  %v5554 = vadd.f32 0.0, %v5553
  %5555 = vdwg.mxu0
  %v5556 = vlaneseq
  %v5557 = vshrl.u32 %v5556, 7
  %v5558 = vsub.s32 0, %v5557
  %v5559 = vrot.slane %v5478, %v5558
  %v5560 = vlaneseq
  %v5561 = vshrl.u32 %v5560, 7
  %v5562 = vsub.s32 0, %v5561
  %v5563 = vrot.slane %v5480, %v5562
  %v5564 = vmul.f32 %v4103, %v5559
  %v5565 = vmul.f32 %v4104, %v5563
  %v5566 = vlaneseq
  %v5567 = vshrl.u32 %v5566, 7
  %v5568 = vsub.s32 0, %v5567
  %v5569 = vrot.slane %v5552, %v5568
  %v5570 = vlaneseq
  %v5571 = vshrl.u32 %v5570, 7
  %v5572 = vsub.s32 0, %v5571
  %v5573 = vrot.slane %v5554, %v5572
  %v5574 = vadd.f32 %v5564, %v5569
  %v5575 = vadd.f32 %v5565, %v5573
  %vm5576 = vcmp.ge.f32.partialorder %v5574, 0.0
  %vm5577 = vcmp.ge.f32.partialorder %v5575, 0.0
  %v5578 = vmul.f32 %v5574, 0.05
  %v5579 = vmul.f32 %v5575, 0.05
  %v5580 = vsel %vm5576, %v5574, %v5578
  %v5581 = vsel %vm5577, %v5575, %v5579
  %s5582 = scalar_lea.vmem [#allocation3], 32
  %5583 = vst [vmem:[%s5582] sm:$0xf] %v5580
  %5584 = vst.msk [vmem:[%s5582 + $0x8] sm:$0xf] %vm4113, %v5581
  %v5585 = vmul.f32 %v4441, %v5559
  %v5586 = vmul.f32 %v4442, %v5563
  %v5587 = vadd.f32 %v5585, %v5569
  %v5588 = vadd.f32 %v5586, %v5573
  %vm5589 = vcmp.ge.f32.partialorder %v5587, 0.0
  %vm5590 = vcmp.ge.f32.partialorder %v5588, 0.0
  %v5591 = vmul.f32 %v5587, 0.05
  %v5592 = vmul.f32 %v5588, 0.05
  %v5593 = vsel %vm5589, %v5587, %v5591
  %v5594 = vsel %vm5590, %v5588, %v5592
  %v5597 = vrot.slane %v5593, 7
  %v5598 = vrot.slane %v5594, 7
  %5601 = vst [vmem:[#allocation3] sm:$0x1e] %v5597
  %vm5602 = vcmask 258049
  %5603 = vst.msk [vmem:[#allocation3 + $0x8] sm:$0x1e] %vm5602, %v5598
  %v5604 = vmul.f32 %v4832, %v5559
  %v5605 = vmul.f32 %v4833, %v5563
  %v5606 = vadd.f32 %v5604, %v5569
  %v5607 = vadd.f32 %v5605, %v5573
  %vm5608 = vcmp.ge.f32.partialorder %v5606, 0.0
  %vm5609 = vcmp.ge.f32.partialorder %v5607, 0.0
  %v5610 = vmul.f32 %v5606, 0.05
  %v5611 = vmul.f32 %v5607, 0.05
  %v5612 = vsel %vm5608, %v5606, %v5610
  %v5613 = vsel %vm5609, %v5607, %v5611
  %v5616 = vrot.slane %v5612, 3
  %v5617 = vrot.slane %v5613, 3
  %5620 = vst [vmem:[%s5582] sm:$0xe0] %v5616
  %vm5621 = vcmask 261125
  %5622 = vst.msk [vmem:[%s5582 + $0x8] sm:$0xe0] %vm5621, %v5617
  %5623 = vst [vmem:[%s5582 + $0x10] sm:$0x1] %v5616
  %vm5624 = vcmask 253952
  %5625 = vst.msk [vmem:[%s5582 + $0x18] sm:$0x1] %vm5624, %v5617
  %v5626 = vmul.f32 %v5189, %v5559
  %v5627 = vmul.f32 %v5190, %v5563
  %v5628 = vadd.f32 %v5626, %v5569
  %v5629 = vadd.f32 %v5627, %v5573
  %vm5630 = vcmp.ge.f32.partialorder %v5628, 0.0
  %vm5631 = vcmp.ge.f32.partialorder %v5629, 0.0
  %v5632 = vmul.f32 %v5628, 0.05
  %v5633 = vmul.f32 %v5629, 0.05
  %v5634 = vsel %vm5630, %v5628, %v5632
  %v5635 = vsel %vm5631, %v5629, %v5633
  %v5638 = vrot.slane %v5634, 2
  %v5639 = vrot.slane %v5635, 2
  %5642 = vst [vmem:[#allocation3] sm:$0xc0] %v5638
  %vm5643 = vcmask 261126
  %5644 = vst.msk [vmem:[#allocation3 + $0x8] sm:$0xc0] %vm5643, %v5639
  %5645 = vst [vmem:[#allocation3 + $0x10] sm:$0x3] %v5638
  %5646 = vst.msk [vmem:[#allocation3 + $0x18] sm:$0x3] %vm66, %v5639
  %v5647 = vld [vmem:[#allocation3] sm:$0xf]
  %v5648 = vld [vmem:[#allocation3 + $0x8] sm:$0xf]
  %v5649 = vld [vmem:[%s3] sm:$0xff]
  %v5650 = vld [vmem:[%s3 + $0x8] sm:$0xff]
  %v5651 = vld [vmem:[%s3 + $0x10] sm:$0xff]
  %v5652 = vld [vmem:[%s3 + $0x18] sm:$0xff]
  %v5653 = vld [vmem:[%s3 + $0x20] sm:$0xff]
  %v5654 = vld [vmem:[%s3 + $0x28] sm:$0xff]
  %v5655 = vld [vmem:[%s3 + $0x30] sm:$0xff]
  %v5656 = vld [vmem:[%s3 + $0x38] sm:$0xff]
  %v5657 = vld [vmem:[%s3 + $0x40] sm:$0xff]
  %v5658 = vld [vmem:[%s3 + $0x48] sm:$0xff]
  %v5659 = vld [vmem:[%s3 + $0x50] sm:$0xff]
  %v5660 = vld [vmem:[%s3 + $0x58] sm:$0xff]
  %v5661 = vld [vmem:[%s3 + $0x60] sm:$0xff]
  %v5662 = vld [vmem:[%s3 + $0x68] sm:$0xff]
  %v5663 = vld [vmem:[%s3 + $0x70] sm:$0xff]
  %v5664 = vld [vmem:[%s3 + $0x78] sm:$0xff]
  %v5665 = vld [vmem:[%s3 + $0x80] sm:$0xff]
  %v5666 = vld [vmem:[%s3 + $0x88] sm:$0xff]
  %v5667 = vld [vmem:[%s3 + $0x90] sm:$0xff]
  %v5668 = vld [vmem:[%s3 + $0x98] sm:$0xff]
  %v5669 = vld [vmem:[%s5582] sm:$0xf]
  %v5670 = vld [vmem:[%s5582 + $0x8] sm:$0xf]
  %s5671 = scalar_lea.vmem %s3, 160
  %v5672 = vld [vmem:[%s5671] sm:$0xff]
  %v5673 = vld [vmem:[%s5671 + $0x8] sm:$0xff]
  %v5674 = vld [vmem:[%s5671 + $0x10] sm:$0xff]
  %v5675 = vld [vmem:[%s5671 + $0x18] sm:$0xff]
  %v5676 = vld [vmem:[%s5671 + $0x20] sm:$0xff]
  %v5677 = vld [vmem:[%s5671 + $0x28] sm:$0xff]
  %v5678 = vld [vmem:[%s5671 + $0x30] sm:$0xff]
  %v5679 = vld [vmem:[%s5671 + $0x38] sm:$0xff]
  %v5680 = vld [vmem:[%s5671 + $0x40] sm:$0xff]
  %v5681 = vld [vmem:[%s5671 + $0x48] sm:$0xff]
  %v5682 = vld [vmem:[%s5671 + $0x50] sm:$0xff]
  %v5683 = vld [vmem:[%s5671 + $0x58] sm:$0xff]
  %v5684 = vld [vmem:[%s5671 + $0x60] sm:$0xff]
  %v5685 = vld [vmem:[%s5671 + $0x68] sm:$0xff]
  %v5686 = vld [vmem:[%s5671 + $0x70] sm:$0xff]
  %v5687 = vld [vmem:[%s5671 + $0x78] sm:$0xff]
  %v5688 = vld [vmem:[%s5671 + $0x80] sm:$0xff]
  %v5689 = vld [vmem:[%s5671 + $0x88] sm:$0xff]
  %v5690 = vld [vmem:[%s5671 + $0x90] sm:$0xff]
  %v5691 = vld [vmem:[%s5671 + $0x98] sm:$0xff]
  %v5693 = vsel %vm63, %v5670, 0
  %5695 = vmatprep.subr.mxu0 0.0
  %5696 = vmatpush1.msra.mxu0 %v5672
  %5697 = vmatprep.subr.mxu0 0.0
  %5698 = vmatpush1.msra.mxu0 %v5673
  %5699 = vmatprep.subr.mxu0 0.0
  %5700 = vmatpush1.msra.mxu0 %v5674
  %5701 = vmatprep.subr.mxu0 0.0
  %5702 = vmatpush1.msra.mxu0 %v5675
  %5703 = vmatprep.subr.mxu0 0.0
  %5704 = vmatpush1.msra.mxu0 %v5676
  %5705 = vmatprep.subr.mxu0 0.0
  %5706 = vmatpush1.msra.mxu0 %v5677
  %5707 = vmatprep.subr.mxu0 0.0
  %5708 = vmatpush1.msra.mxu0 %v5678
  %5709 = vmatprep.subr.mxu0 0.0
  %5710 = vmatpush1.msra.mxu0 %v5679
  %5711 = vmatprep.subr.mxu0 0.0
  %5712 = vmatpush1.msra.mxu0 %v5680
  %5713 = vmatprep.subr.mxu0 0.0
  %5714 = vmatpush1.msra.mxu0 %v5681
  %5715 = vmatprep.subr.mxu0 0.0
  %5716 = vmatpush1.msra.mxu0 %v5682
  %5717 = vmatprep.subr.mxu0 0.0
  %5718 = vmatpush1.msra.mxu0 %v5683
  %5719 = vmatprep.subr.mxu0 0.0
  %5720 = vmatpush1.msra.mxu0 %v5684
  %5721 = vmatprep.subr.mxu0 0.0
  %5722 = vmatpush1.msra.mxu0 %v5685
  %5723 = vmatprep.subr.mxu0 0.0
  %5724 = vmatpush1.msra.mxu0 %v5686
  %5725 = vmatprep.subr.mxu0 0.0
  %5726 = vmatpush1.msra.mxu0 %v5687
  %5727 = vmatprep.subr.mxu0 0.0
  %5728 = vmatpush1.msra.mxu0 %v5688
  %5729 = vmatprep.subr.mxu0 0.0
  %5730 = vmatpush1.msra.mxu0 %v5689
  %5731 = vmatprep.subr.mxu0 0.0
  %5732 = vmatpush1.msra.mxu0 %v5690
  %5733 = vmatprep.subr.mxu0 0.0
  %5734 = vmatpush1.msra.mxu0 %v5691
  %5735 = vmatprep.subr.mxu0 0.0
  %5736 = vmatpush1.msra.mxu0 0.0
  %5737 = vmatprep.subr.mxu0 0.0
  %5738 = vmatpush1.msra.mxu0 0.0
  %5739 = vmatprep.subr.mxu0 0.0
  %5740 = vmatpush1.msra.mxu0 0.0
  %5741 = vmatprep.subr.mxu0 0.0
  %5742 = vmatpush1.msra.mxu0 0.0
  %5743 = vmatprep.subr.mxu0 0.0
  %5744 = vmatpush1.msra.mxu0 0.0
  %5745 = vmatprep.subr.mxu0 0.0
  %5746 = vmatpush1.msra.mxu0 0.0
  %5747 = vmatprep.subr.mxu0 0.0
  %5748 = vmatpush1.msra.mxu0 0.0
  %5749 = vmatprep.subr.mxu0 0.0
  %5750 = vmatpush1.msra.mxu0 0.0
  %5751 = vmatprep.subr.mxu0 0.0
  %5752 = vmatpush1.msra.mxu0 0.0
  %5753 = vmatprep.subr.mxu0 0.0
  %5754 = vmatpush1.msra.mxu0 0.0
  %5755 = vmatprep.subr.mxu0 0.0
  %5756 = vmatpush1.msra.mxu0 0.0
  %5757 = vmatprep.subr.mxu0 0.0
  %5758 = vmatpush1.msra.mxu0 0.0
  %5759 = vmatprep.mubr.f32.mxu0 %v5693
  %5760 = vmatmul.mubr.f32.gmra.mrb[0].mxu0 %v5669
  %v5761 = vpop.f32.mrb[0].mxu0
  %v5762 = vadd.f32 0.0, %v5761
  %v5763 = vpop.f32.mrb[0].mxu0
  %5764 = vdwg.mxu0
  %v5766 = vsel %vm63, %v5648, 0
  %5768 = vmatprep.subr.mxu0 0.0
  %5769 = vmatpush1.msra.mxu0 %v5649
  %5770 = vmatprep.subr.mxu0 0.0
  %5771 = vmatpush1.msra.mxu0 %v5650
  %5772 = vmatprep.subr.mxu0 0.0
  %5773 = vmatpush1.msra.mxu0 %v5651
  %5774 = vmatprep.subr.mxu0 0.0
  %5775 = vmatpush1.msra.mxu0 %v5652
  %5776 = vmatprep.subr.mxu0 0.0
  %5777 = vmatpush1.msra.mxu0 %v5653
  %5778 = vmatprep.subr.mxu0 0.0
  %5779 = vmatpush1.msra.mxu0 %v5654
  %5780 = vmatprep.subr.mxu0 0.0
  %5781 = vmatpush1.msra.mxu0 %v5655
  %5782 = vmatprep.subr.mxu0 0.0
  %5783 = vmatpush1.msra.mxu0 %v5656
  %5784 = vmatprep.subr.mxu0 0.0
  %5785 = vmatpush1.msra.mxu0 %v5657
  %5786 = vmatprep.subr.mxu0 0.0
  %5787 = vmatpush1.msra.mxu0 %v5658
  %5788 = vmatprep.subr.mxu0 0.0
  %5789 = vmatpush1.msra.mxu0 %v5659
  %5790 = vmatprep.subr.mxu0 0.0
  %5791 = vmatpush1.msra.mxu0 %v5660
  %5792 = vmatprep.subr.mxu0 0.0
  %5793 = vmatpush1.msra.mxu0 %v5661
  %5794 = vmatprep.subr.mxu0 0.0
  %5795 = vmatpush1.msra.mxu0 %v5662
  %5796 = vmatprep.subr.mxu0 0.0
  %5797 = vmatpush1.msra.mxu0 %v5663
  %5798 = vmatprep.subr.mxu0 0.0
  %5799 = vmatpush1.msra.mxu0 %v5664
  %5800 = vmatprep.subr.mxu0 0.0
  %5801 = vmatpush1.msra.mxu0 %v5665
  %5802 = vmatprep.subr.mxu0 0.0
  %5803 = vmatpush1.msra.mxu0 %v5666
  %5804 = vmatprep.subr.mxu0 0.0
  %5805 = vmatpush1.msra.mxu0 %v5667
  %5806 = vmatprep.subr.mxu0 0.0
  %5807 = vmatpush1.msra.mxu0 %v5668
  %5808 = vmatprep.subr.mxu0 0.0
  %5809 = vmatpush1.msra.mxu0 0.0
  %5810 = vmatprep.subr.mxu0 0.0
  %5811 = vmatpush1.msra.mxu0 0.0
  %5812 = vmatprep.subr.mxu0 0.0
  %5813 = vmatpush1.msra.mxu0 0.0
  %5814 = vmatprep.subr.mxu0 0.0
  %5815 = vmatpush1.msra.mxu0 0.0
  %5816 = vmatprep.subr.mxu0 0.0
  %5817 = vmatpush1.msra.mxu0 0.0
  %5818 = vmatprep.subr.mxu0 0.0
  %5819 = vmatpush1.msra.mxu0 0.0
  %5820 = vmatprep.subr.mxu0 0.0
  %5821 = vmatpush1.msra.mxu0 0.0
  %5822 = vmatprep.subr.mxu0 0.0
  %5823 = vmatpush1.msra.mxu0 0.0
  %5824 = vmatprep.subr.mxu0 0.0
  %5825 = vmatpush1.msra.mxu0 0.0
  %5826 = vmatprep.subr.mxu0 0.0
  %5827 = vmatpush1.msra.mxu0 0.0
  %5828 = vmatprep.subr.mxu0 0.0
  %5829 = vmatpush1.msra.mxu0 0.0
  %5830 = vmatprep.subr.mxu0 0.0
  %5831 = vmatpush1.msra.mxu0 0.0
  %5832 = vmatprep.mubr.f32.mxu0 %v5766
  %5833 = vmatmul.mubr.f32.gmra.mrb[0].mxu0 %v5647
  %v5834 = vpop.f32.mrb[0].mxu0
  %v5835 = vadd.f32 %v5762, %v5834
  %v5836 = vpop.f32.mrb[0].mxu0
  %5837 = vdwg.mxu0
  %v5838 = vld [vmem:[#allocation3] sm:$0x1e]
  %v5839 = vld [vmem:[#allocation3 + $0x8] sm:$0x1e]
  %s5840 = scalar_lea.vmem %s3, 320
  %v5841 = vld [vmem:[%s5840] sm:$0xff]
  %v5842 = vld [vmem:[%s5840 + $0x8] sm:$0xff]
  %v5843 = vld [vmem:[%s5840 + $0x10] sm:$0xff]
  %v5844 = vld [vmem:[%s5840 + $0x18] sm:$0xff]
  %v5845 = vld [vmem:[%s5840 + $0x20] sm:$0xff]
  %v5846 = vld [vmem:[%s5840 + $0x28] sm:$0xff]
  %v5847 = vld [vmem:[%s5840 + $0x30] sm:$0xff]
  %v5848 = vld [vmem:[%s5840 + $0x38] sm:$0xff]
  %v5849 = vld [vmem:[%s5840 + $0x40] sm:$0xff]
  %v5850 = vld [vmem:[%s5840 + $0x48] sm:$0xff]
  %v5851 = vld [vmem:[%s5840 + $0x50] sm:$0xff]
  %v5852 = vld [vmem:[%s5840 + $0x58] sm:$0xff]
  %v5853 = vld [vmem:[%s5840 + $0x60] sm:$0xff]
  %v5854 = vld [vmem:[%s5840 + $0x68] sm:$0xff]
  %v5855 = vld [vmem:[%s5840 + $0x70] sm:$0xff]
  %v5856 = vld [vmem:[%s5840 + $0x78] sm:$0xff]
  %v5857 = vld [vmem:[%s5840 + $0x80] sm:$0xff]
  %v5858 = vld [vmem:[%s5840 + $0x88] sm:$0xff]
  %v5859 = vld [vmem:[%s5840 + $0x90] sm:$0xff]
  %v5860 = vld [vmem:[%s5840 + $0x98] sm:$0xff]
  %v5863 = vrot.slane %v5838, 1
  %v5864 = vrot.slane %v5839, 1
  %v5866 = vsel %vm63, %v5864, 0
  %5868 = vmatprep.subr.mxu0 0.0
  %5869 = vmatpush1.msra.mxu0 %v5841
  %5870 = vmatprep.subr.mxu0 0.0
  %5871 = vmatpush1.msra.mxu0 %v5842
  %5872 = vmatprep.subr.mxu0 0.0
  %5873 = vmatpush1.msra.mxu0 %v5843
  %5874 = vmatprep.subr.mxu0 0.0
  %5875 = vmatpush1.msra.mxu0 %v5844
  %5876 = vmatprep.subr.mxu0 0.0
  %5877 = vmatpush1.msra.mxu0 %v5845
  %5878 = vmatprep.subr.mxu0 0.0
  %5879 = vmatpush1.msra.mxu0 %v5846
  %5880 = vmatprep.subr.mxu0 0.0
  %5881 = vmatpush1.msra.mxu0 %v5847
  %5882 = vmatprep.subr.mxu0 0.0
  %5883 = vmatpush1.msra.mxu0 %v5848
  %5884 = vmatprep.subr.mxu0 0.0
  %5885 = vmatpush1.msra.mxu0 %v5849
  %5886 = vmatprep.subr.mxu0 0.0
  %5887 = vmatpush1.msra.mxu0 %v5850
  %5888 = vmatprep.subr.mxu0 0.0
  %5889 = vmatpush1.msra.mxu0 %v5851
  %5890 = vmatprep.subr.mxu0 0.0
  %5891 = vmatpush1.msra.mxu0 %v5852
  %5892 = vmatprep.subr.mxu0 0.0
  %5893 = vmatpush1.msra.mxu0 %v5853
  %5894 = vmatprep.subr.mxu0 0.0
  %5895 = vmatpush1.msra.mxu0 %v5854
  %5896 = vmatprep.subr.mxu0 0.0
  %5897 = vmatpush1.msra.mxu0 %v5855
  %5898 = vmatprep.subr.mxu0 0.0
  %5899 = vmatpush1.msra.mxu0 %v5856
  %5900 = vmatprep.subr.mxu0 0.0
  %5901 = vmatpush1.msra.mxu0 %v5857
  %5902 = vmatprep.subr.mxu0 0.0
  %5903 = vmatpush1.msra.mxu0 %v5858
  %5904 = vmatprep.subr.mxu0 0.0
  %5905 = vmatpush1.msra.mxu0 %v5859
  %5906 = vmatprep.subr.mxu0 0.0
  %5907 = vmatpush1.msra.mxu0 %v5860
  %5908 = vmatprep.subr.mxu0 0.0
  %5909 = vmatpush1.msra.mxu0 0.0
  %5910 = vmatprep.subr.mxu0 0.0
  %5911 = vmatpush1.msra.mxu0 0.0
  %5912 = vmatprep.subr.mxu0 0.0
  %5913 = vmatpush1.msra.mxu0 0.0
  %5914 = vmatprep.subr.mxu0 0.0
  %5915 = vmatpush1.msra.mxu0 0.0
  %5916 = vmatprep.subr.mxu0 0.0
  %5917 = vmatpush1.msra.mxu0 0.0
  %5918 = vmatprep.subr.mxu0 0.0
  %5919 = vmatpush1.msra.mxu0 0.0
  %5920 = vmatprep.subr.mxu0 0.0
  %5921 = vmatpush1.msra.mxu0 0.0
  %5922 = vmatprep.subr.mxu0 0.0
  %5923 = vmatpush1.msra.mxu0 0.0
  %5924 = vmatprep.subr.mxu0 0.0
  %5925 = vmatpush1.msra.mxu0 0.0
  %5926 = vmatprep.subr.mxu0 0.0
  %5927 = vmatpush1.msra.mxu0 0.0
  %5928 = vmatprep.subr.mxu0 0.0
  %5929 = vmatpush1.msra.mxu0 0.0
  %5930 = vmatprep.subr.mxu0 0.0
  %5931 = vmatpush1.msra.mxu0 0.0
  %5932 = vmatprep.mubr.f32.mxu0 %v5866
  %5933 = vmatmul.mubr.f32.gmra.mrb[0].mxu0 %v5863
  %v5934 = vpop.f32.mrb[0].mxu0
  %v5935 = vadd.f32 0.0, %v5934
  %v5936 = vpop.f32.mrb[0].mxu0
  %5937 = vdwg.mxu0
  %v5938 = vadd.f32 %v5835, %v5935
  %v5939 = vld [vmem:[%s5582] sm:$0x1e]
  %v5940 = vld [vmem:[%s5582 + $0x8] sm:$0x1e]
  %s5941 = scalar_lea.vmem %s3, 480
  %v5942 = vld [vmem:[%s5941] sm:$0xff]
  %v5943 = vld [vmem:[%s5941 + $0x8] sm:$0xff]
  %v5944 = vld [vmem:[%s5941 + $0x10] sm:$0xff]
  %v5945 = vld [vmem:[%s5941 + $0x18] sm:$0xff]
  %v5946 = vld [vmem:[%s5941 + $0x20] sm:$0xff]
  %v5947 = vld [vmem:[%s5941 + $0x28] sm:$0xff]
  %v5948 = vld [vmem:[%s5941 + $0x30] sm:$0xff]
  %v5949 = vld [vmem:[%s5941 + $0x38] sm:$0xff]
  %v5950 = vld [vmem:[%s5941 + $0x40] sm:$0xff]
  %v5951 = vld [vmem:[%s5941 + $0x48] sm:$0xff]
  %v5952 = vld [vmem:[%s5941 + $0x50] sm:$0xff]
  %v5953 = vld [vmem:[%s5941 + $0x58] sm:$0xff]
  %v5954 = vld [vmem:[%s5941 + $0x60] sm:$0xff]
  %v5955 = vld [vmem:[%s5941 + $0x68] sm:$0xff]
  %v5956 = vld [vmem:[%s5941 + $0x70] sm:$0xff]
  %v5957 = vld [vmem:[%s5941 + $0x78] sm:$0xff]
  %v5958 = vld [vmem:[%s5941 + $0x80] sm:$0xff]
  %v5959 = vld [vmem:[%s5941 + $0x88] sm:$0xff]
  %v5960 = vld [vmem:[%s5941 + $0x90] sm:$0xff]
  %v5961 = vld [vmem:[%s5941 + $0x98] sm:$0xff]
  %v5964 = vrot.slane %v5939, 1
  %v5965 = vrot.slane %v5940, 1
  %v5967 = vsel %vm63, %v5965, 0
  %5969 = vmatprep.subr.mxu0 0.0
  %5970 = vmatpush1.msra.mxu0 %v5942
  %5971 = vmatprep.subr.mxu0 0.0
  %5972 = vmatpush1.msra.mxu0 %v5943
  %5973 = vmatprep.subr.mxu0 0.0
  %5974 = vmatpush1.msra.mxu0 %v5944
  %5975 = vmatprep.subr.mxu0 0.0
  %5976 = vmatpush1.msra.mxu0 %v5945
  %5977 = vmatprep.subr.mxu0 0.0
  %5978 = vmatpush1.msra.mxu0 %v5946
  %5979 = vmatprep.subr.mxu0 0.0
  %5980 = vmatpush1.msra.mxu0 %v5947
  %5981 = vmatprep.subr.mxu0 0.0
  %5982 = vmatpush1.msra.mxu0 %v5948
  %5983 = vmatprep.subr.mxu0 0.0
  %5984 = vmatpush1.msra.mxu0 %v5949
  %5985 = vmatprep.subr.mxu0 0.0
  %5986 = vmatpush1.msra.mxu0 %v5950
  %5987 = vmatprep.subr.mxu0 0.0
  %5988 = vmatpush1.msra.mxu0 %v5951
  %5989 = vmatprep.subr.mxu0 0.0
  %5990 = vmatpush1.msra.mxu0 %v5952
  %5991 = vmatprep.subr.mxu0 0.0
  %5992 = vmatpush1.msra.mxu0 %v5953
  %5993 = vmatprep.subr.mxu0 0.0
  %5994 = vmatpush1.msra.mxu0 %v5954
  %5995 = vmatprep.subr.mxu0 0.0
  %5996 = vmatpush1.msra.mxu0 %v5955
  %5997 = vmatprep.subr.mxu0 0.0
  %5998 = vmatpush1.msra.mxu0 %v5956
  %5999 = vmatprep.subr.mxu0 0.0
  %6000 = vmatpush1.msra.mxu0 %v5957
  %6001 = vmatprep.subr.mxu0 0.0
  %6002 = vmatpush1.msra.mxu0 %v5958
  %6003 = vmatprep.subr.mxu0 0.0
  %6004 = vmatpush1.msra.mxu0 %v5959
  %6005 = vmatprep.subr.mxu0 0.0
  %6006 = vmatpush1.msra.mxu0 %v5960
  %6007 = vmatprep.subr.mxu0 0.0
  %6008 = vmatpush1.msra.mxu0 %v5961
  %6009 = vmatprep.subr.mxu0 0.0
  %6010 = vmatpush1.msra.mxu0 0.0
  %6011 = vmatprep.subr.mxu0 0.0
  %6012 = vmatpush1.msra.mxu0 0.0
  %6013 = vmatprep.subr.mxu0 0.0
  %6014 = vmatpush1.msra.mxu0 0.0
  %6015 = vmatprep.subr.mxu0 0.0
  %6016 = vmatpush1.msra.mxu0 0.0
  %6017 = vmatprep.subr.mxu0 0.0
  %6018 = vmatpush1.msra.mxu0 0.0
  %6019 = vmatprep.subr.mxu0 0.0
  %6020 = vmatpush1.msra.mxu0 0.0
  %6021 = vmatprep.subr.mxu0 0.0
  %6022 = vmatpush1.msra.mxu0 0.0
  %6023 = vmatprep.subr.mxu0 0.0
  %6024 = vmatpush1.msra.mxu0 0.0
  %6025 = vmatprep.subr.mxu0 0.0
  %6026 = vmatpush1.msra.mxu0 0.0
  %6027 = vmatprep.subr.mxu0 0.0
  %6028 = vmatpush1.msra.mxu0 0.0
  %6029 = vmatprep.subr.mxu0 0.0
  %6030 = vmatpush1.msra.mxu0 0.0
  %6031 = vmatprep.subr.mxu0 0.0
  %6032 = vmatpush1.msra.mxu0 0.0
  %6033 = vmatprep.mubr.f32.mxu0 %v5967
  %6034 = vmatmul.mubr.f32.gmra.mrb[0].mxu0 %v5964
  %v6035 = vpop.f32.mrb[0].mxu0
  %v6036 = vadd.f32 0.0, %v6035
  %v6037 = vpop.f32.mrb[0].mxu0
  %6038 = vdwg.mxu0
  %v6039 = vadd.f32 %v5938, %v6036
  %v6040 = vsel %vm4105, %v6039, 0.0
  %v6041 = vrot.slane %v6040, 4
  %v6042 = vadd.f32 %v6040, %v6041
  %v6043 = vrot.slane %v6042, 2
  %v6044 = vadd.f32 %v6042, %v6043
  %v6045 = vrot.slane %v6044, 1
  %v6046 = vadd.f32 %v6044, %v6045
  %v6047 = vmul.f32 %v6039, %v6039
  %v6048 = vsel %vm4105, %v6047, 0.0
  %v6049 = vrot.slane %v6048, 4
  %v6050 = vadd.f32 %v6048, %v6049
  %v6051 = vrot.slane %v6050, 2
  %v6052 = vadd.f32 %v6050, %v6051
  %v6053 = vrot.slane %v6052, 1
  %v6054 = vadd.f32 %v6052, %v6053
  %v6055 = vld [vmem:[#allocation3] sm:$0xe0]
  %v6056 = vld [vmem:[#allocation3 + $0x8] sm:$0xe0]
  %v6057 = vld [vmem:[#allocation3 + $0x10] sm:$0x1]
  %v6058 = vld [vmem:[#allocation3 + $0x18] sm:$0x1]
  %v6059 = vld [vmem:[%s5582] sm:$0xe0]
  %v6060 = vld [vmem:[%s5582 + $0x8] sm:$0xe0]
  %v6061 = vld [vmem:[%s5582 + $0x10] sm:$0x1]
  %v6062 = vld [vmem:[%s5582 + $0x18] sm:$0x1]
  %v6067 = vrot.slane %v6059, 5
  %v6068 = vrot.slane %v6061, 5
  %v6069 = vsel %vm4489, %v6067, %v6068
  %v6070 = vrot.slane %v6060, 5
  %v6071 = vrot.slane %v6062, 5
  %v6072 = vsel %vm4489, %v6070, %v6071
  %v6074 = vsel %vm63, %v6072, 0
  %6076 = vmatprep.subr.mxu0 0.0
  %6077 = vmatpush1.msra.mxu0 %v5672
  %6078 = vmatprep.subr.mxu0 0.0
  %6079 = vmatpush1.msra.mxu0 %v5673
  %6080 = vmatprep.subr.mxu0 0.0
  %6081 = vmatpush1.msra.mxu0 %v5674
  %6082 = vmatprep.subr.mxu0 0.0
  %6083 = vmatpush1.msra.mxu0 %v5675
  %6084 = vmatprep.subr.mxu0 0.0
  %6085 = vmatpush1.msra.mxu0 %v5676
  %6086 = vmatprep.subr.mxu0 0.0
  %6087 = vmatpush1.msra.mxu0 %v5677
  %6088 = vmatprep.subr.mxu0 0.0
  %6089 = vmatpush1.msra.mxu0 %v5678
  %6090 = vmatprep.subr.mxu0 0.0
  %6091 = vmatpush1.msra.mxu0 %v5679
  %6092 = vmatprep.subr.mxu0 0.0
  %6093 = vmatpush1.msra.mxu0 %v5680
  %6094 = vmatprep.subr.mxu0 0.0
  %6095 = vmatpush1.msra.mxu0 %v5681
  %6096 = vmatprep.subr.mxu0 0.0
  %6097 = vmatpush1.msra.mxu0 %v5682
  %6098 = vmatprep.subr.mxu0 0.0
  %6099 = vmatpush1.msra.mxu0 %v5683
  %6100 = vmatprep.subr.mxu0 0.0
  %6101 = vmatpush1.msra.mxu0 %v5684
  %6102 = vmatprep.subr.mxu0 0.0
  %6103 = vmatpush1.msra.mxu0 %v5685
  %6104 = vmatprep.subr.mxu0 0.0
  %6105 = vmatpush1.msra.mxu0 %v5686
  %6106 = vmatprep.subr.mxu0 0.0
  %6107 = vmatpush1.msra.mxu0 %v5687
  %6108 = vmatprep.subr.mxu0 0.0
  %6109 = vmatpush1.msra.mxu0 %v5688
  %6110 = vmatprep.subr.mxu0 0.0
  %6111 = vmatpush1.msra.mxu0 %v5689
  %6112 = vmatprep.subr.mxu0 0.0
  %6113 = vmatpush1.msra.mxu0 %v5690
  %6114 = vmatprep.subr.mxu0 0.0
  %6115 = vmatpush1.msra.mxu0 %v5691
  %6116 = vmatprep.subr.mxu0 0.0
  %6117 = vmatpush1.msra.mxu0 0.0
  %6118 = vmatprep.subr.mxu0 0.0
  %6119 = vmatpush1.msra.mxu0 0.0
  %6120 = vmatprep.subr.mxu0 0.0
  %6121 = vmatpush1.msra.mxu0 0.0
  %6122 = vmatprep.subr.mxu0 0.0
  %6123 = vmatpush1.msra.mxu0 0.0
  %6124 = vmatprep.subr.mxu0 0.0
  %6125 = vmatpush1.msra.mxu0 0.0
  %6126 = vmatprep.subr.mxu0 0.0
  %6127 = vmatpush1.msra.mxu0 0.0
  %6128 = vmatprep.subr.mxu0 0.0
  %6129 = vmatpush1.msra.mxu0 0.0
  %6130 = vmatprep.subr.mxu0 0.0
  %6131 = vmatpush1.msra.mxu0 0.0
  %6132 = vmatprep.subr.mxu0 0.0
  %6133 = vmatpush1.msra.mxu0 0.0
  %6134 = vmatprep.subr.mxu0 0.0
  %6135 = vmatpush1.msra.mxu0 0.0
  %6136 = vmatprep.subr.mxu0 0.0
  %6137 = vmatpush1.msra.mxu0 0.0
  %6138 = vmatprep.subr.mxu0 0.0
  %6139 = vmatpush1.msra.mxu0 0.0
  %6140 = vmatprep.mubr.f32.mxu0 %v6074
  %6141 = vmatmul.mubr.f32.gmra.mrb[0].mxu0 %v6069
  %v6142 = vpop.f32.mrb[0].mxu0
  %v6143 = vadd.f32 0.0, %v6142
  %v6144 = vpop.f32.mrb[0].mxu0
  %6145 = vdwg.mxu0
  %v6150 = vrot.slane %v6055, 5
  %v6151 = vrot.slane %v6057, 5
  %v6152 = vsel %vm4489, %v6150, %v6151
  %v6153 = vrot.slane %v6056, 5
  %v6154 = vrot.slane %v6058, 5
  %v6155 = vsel %vm4489, %v6153, %v6154
  %v6157 = vsel %vm63, %v6155, 0
  %6159 = vmatprep.subr.mxu0 0.0
  %6160 = vmatpush1.msra.mxu0 %v5649
  %6161 = vmatprep.subr.mxu0 0.0
  %6162 = vmatpush1.msra.mxu0 %v5650
  %6163 = vmatprep.subr.mxu0 0.0
  %6164 = vmatpush1.msra.mxu0 %v5651
  %6165 = vmatprep.subr.mxu0 0.0
  %6166 = vmatpush1.msra.mxu0 %v5652
  %6167 = vmatprep.subr.mxu0 0.0
  %6168 = vmatpush1.msra.mxu0 %v5653
  %6169 = vmatprep.subr.mxu0 0.0
  %6170 = vmatpush1.msra.mxu0 %v5654
  %6171 = vmatprep.subr.mxu0 0.0
  %6172 = vmatpush1.msra.mxu0 %v5655
  %6173 = vmatprep.subr.mxu0 0.0
  %6174 = vmatpush1.msra.mxu0 %v5656
  %6175 = vmatprep.subr.mxu0 0.0
  %6176 = vmatpush1.msra.mxu0 %v5657
  %6177 = vmatprep.subr.mxu0 0.0
  %6178 = vmatpush1.msra.mxu0 %v5658
  %6179 = vmatprep.subr.mxu0 0.0
  %6180 = vmatpush1.msra.mxu0 %v5659
  %6181 = vmatprep.subr.mxu0 0.0
  %6182 = vmatpush1.msra.mxu0 %v5660
  %6183 = vmatprep.subr.mxu0 0.0
  %6184 = vmatpush1.msra.mxu0 %v5661
  %6185 = vmatprep.subr.mxu0 0.0
  %6186 = vmatpush1.msra.mxu0 %v5662
  %6187 = vmatprep.subr.mxu0 0.0
  %6188 = vmatpush1.msra.mxu0 %v5663
  %6189 = vmatprep.subr.mxu0 0.0
  %6190 = vmatpush1.msra.mxu0 %v5664
  %6191 = vmatprep.subr.mxu0 0.0
  %6192 = vmatpush1.msra.mxu0 %v5665
  %6193 = vmatprep.subr.mxu0 0.0
  %6194 = vmatpush1.msra.mxu0 %v5666
  %6195 = vmatprep.subr.mxu0 0.0
  %6196 = vmatpush1.msra.mxu0 %v5667
  %6197 = vmatprep.subr.mxu0 0.0
  %6198 = vmatpush1.msra.mxu0 %v5668
  %6199 = vmatprep.subr.mxu0 0.0
  %6200 = vmatpush1.msra.mxu0 0.0
  %6201 = vmatprep.subr.mxu0 0.0
  %6202 = vmatpush1.msra.mxu0 0.0
  %6203 = vmatprep.subr.mxu0 0.0
  %6204 = vmatpush1.msra.mxu0 0.0
  %6205 = vmatprep.subr.mxu0 0.0
  %6206 = vmatpush1.msra.mxu0 0.0
  %6207 = vmatprep.subr.mxu0 0.0
  %6208 = vmatpush1.msra.mxu0 0.0
  %6209 = vmatprep.subr.mxu0 0.0
  %6210 = vmatpush1.msra.mxu0 0.0
  %6211 = vmatprep.subr.mxu0 0.0
  %6212 = vmatpush1.msra.mxu0 0.0
  %6213 = vmatprep.subr.mxu0 0.0
  %6214 = vmatpush1.msra.mxu0 0.0
  %6215 = vmatprep.subr.mxu0 0.0
  %6216 = vmatpush1.msra.mxu0 0.0
  %6217 = vmatprep.subr.mxu0 0.0
  %6218 = vmatpush1.msra.mxu0 0.0
  %6219 = vmatprep.subr.mxu0 0.0
  %6220 = vmatpush1.msra.mxu0 0.0
  %6221 = vmatprep.subr.mxu0 0.0
  %6222 = vmatpush1.msra.mxu0 0.0
  %6223 = vmatprep.mubr.f32.mxu0 %v6157
  %6224 = vmatmul.mubr.f32.gmra.mrb[0].mxu0 %v6152
  %v6225 = vpop.f32.mrb[0].mxu0
  %v6226 = vadd.f32 %v6143, %v6225
  %v6227 = vpop.f32.mrb[0].mxu0
  %6228 = vdwg.mxu0
  %v6229 = vld [vmem:[#allocation3] sm:$0xc0]
  %v6230 = vld [vmem:[#allocation3 + $0x8] sm:$0xc0]
  %v6231 = vld [vmem:[#allocation3 + $0x10] sm:$0x3]
  %v6232 = vld [vmem:[#allocation3 + $0x18] sm:$0x3]
  %v6237 = vrot.slane %v6229, 6
  %v6238 = vrot.slane %v6231, 6
  %v6239 = vsel %vm5018, %v6237, %v6238
  %v6240 = vrot.slane %v6230, 6
  %v6241 = vrot.slane %v6232, 6
  %v6242 = vsel %vm5018, %v6240, %v6241
  %v6244 = vsel %vm63, %v6242, 0
  %6246 = vmatprep.subr.mxu0 0.0
  %6247 = vmatpush1.msra.mxu0 %v5841
  %6248 = vmatprep.subr.mxu0 0.0
  %6249 = vmatpush1.msra.mxu0 %v5842
  %6250 = vmatprep.subr.mxu0 0.0
  %6251 = vmatpush1.msra.mxu0 %v5843
  %6252 = vmatprep.subr.mxu0 0.0
  %6253 = vmatpush1.msra.mxu0 %v5844
  %6254 = vmatprep.subr.mxu0 0.0
  %6255 = vmatpush1.msra.mxu0 %v5845
  %6256 = vmatprep.subr.mxu0 0.0
  %6257 = vmatpush1.msra.mxu0 %v5846
  %6258 = vmatprep.subr.mxu0 0.0
  %6259 = vmatpush1.msra.mxu0 %v5847
  %6260 = vmatprep.subr.mxu0 0.0
  %6261 = vmatpush1.msra.mxu0 %v5848
  %6262 = vmatprep.subr.mxu0 0.0
  %6263 = vmatpush1.msra.mxu0 %v5849
  %6264 = vmatprep.subr.mxu0 0.0
  %6265 = vmatpush1.msra.mxu0 %v5850
  %6266 = vmatprep.subr.mxu0 0.0
  %6267 = vmatpush1.msra.mxu0 %v5851
  %6268 = vmatprep.subr.mxu0 0.0
  %6269 = vmatpush1.msra.mxu0 %v5852
  %6270 = vmatprep.subr.mxu0 0.0
  %6271 = vmatpush1.msra.mxu0 %v5853
  %6272 = vmatprep.subr.mxu0 0.0
  %6273 = vmatpush1.msra.mxu0 %v5854
  %6274 = vmatprep.subr.mxu0 0.0
  %6275 = vmatpush1.msra.mxu0 %v5855
  %6276 = vmatprep.subr.mxu0 0.0
  %6277 = vmatpush1.msra.mxu0 %v5856
  %6278 = vmatprep.subr.mxu0 0.0
  %6279 = vmatpush1.msra.mxu0 %v5857
  %6280 = vmatprep.subr.mxu0 0.0
  %6281 = vmatpush1.msra.mxu0 %v5858
  %6282 = vmatprep.subr.mxu0 0.0
  %6283 = vmatpush1.msra.mxu0 %v5859
  %6284 = vmatprep.subr.mxu0 0.0
  %6285 = vmatpush1.msra.mxu0 %v5860
  %6286 = vmatprep.subr.mxu0 0.0
  %6287 = vmatpush1.msra.mxu0 0.0
  %6288 = vmatprep.subr.mxu0 0.0
  %6289 = vmatpush1.msra.mxu0 0.0
  %6290 = vmatprep.subr.mxu0 0.0
  %6291 = vmatpush1.msra.mxu0 0.0
  %6292 = vmatprep.subr.mxu0 0.0
  %6293 = vmatpush1.msra.mxu0 0.0
  %6294 = vmatprep.subr.mxu0 0.0
  %6295 = vmatpush1.msra.mxu0 0.0
  %6296 = vmatprep.subr.mxu0 0.0
  %6297 = vmatpush1.msra.mxu0 0.0
  %6298 = vmatprep.subr.mxu0 0.0
  %6299 = vmatpush1.msra.mxu0 0.0
  %6300 = vmatprep.subr.mxu0 0.0
  %6301 = vmatpush1.msra.mxu0 0.0
  %6302 = vmatprep.subr.mxu0 0.0
  %6303 = vmatpush1.msra.mxu0 0.0
  %6304 = vmatprep.subr.mxu0 0.0
  %6305 = vmatpush1.msra.mxu0 0.0
  %6306 = vmatprep.subr.mxu0 0.0
  %6307 = vmatpush1.msra.mxu0 0.0
  %6308 = vmatprep.subr.mxu0 0.0
  %6309 = vmatpush1.msra.mxu0 0.0
  %6310 = vmatprep.mubr.f32.mxu0 %v6244
  %6311 = vmatmul.mubr.f32.gmra.mrb[0].mxu0 %v6239
  %v6312 = vpop.f32.mrb[0].mxu0
  %v6313 = vadd.f32 0.0, %v6312
  %v6314 = vpop.f32.mrb[0].mxu0
  %6315 = vdwg.mxu0
  %v6316 = vadd.f32 %v6226, %v6313
  %v6317 = vld [vmem:[%s5582] sm:$0xc0]
  %v6318 = vld [vmem:[%s5582 + $0x8] sm:$0xc0]
  %v6319 = vld [vmem:[%s5582 + $0x10] sm:$0x3]
  %v6320 = vld [vmem:[%s5582 + $0x18] sm:$0x3]
  %v6325 = vrot.slane %v6317, 6
  %v6326 = vrot.slane %v6319, 6
  %v6327 = vsel %vm5018, %v6325, %v6326
  %v6328 = vrot.slane %v6318, 6
  %v6329 = vrot.slane %v6320, 6
  %v6330 = vsel %vm5018, %v6328, %v6329
  %v6332 = vsel %vm63, %v6330, 0
  %6334 = vmatprep.subr.mxu0 0.0
  %6335 = vmatpush1.msra.mxu0 %v5942
  %6336 = vmatprep.subr.mxu0 0.0
  %6337 = vmatpush1.msra.mxu0 %v5943
  %6338 = vmatprep.subr.mxu0 0.0
  %6339 = vmatpush1.msra.mxu0 %v5944
  %6340 = vmatprep.subr.mxu0 0.0
  %6341 = vmatpush1.msra.mxu0 %v5945
  %6342 = vmatprep.subr.mxu0 0.0
  %6343 = vmatpush1.msra.mxu0 %v5946
  %6344 = vmatprep.subr.mxu0 0.0
  %6345 = vmatpush1.msra.mxu0 %v5947
  %6346 = vmatprep.subr.mxu0 0.0
  %6347 = vmatpush1.msra.mxu0 %v5948
  %6348 = vmatprep.subr.mxu0 0.0
  %6349 = vmatpush1.msra.mxu0 %v5949
  %6350 = vmatprep.subr.mxu0 0.0
  %6351 = vmatpush1.msra.mxu0 %v5950
  %6352 = vmatprep.subr.mxu0 0.0
  %6353 = vmatpush1.msra.mxu0 %v5951
  %6354 = vmatprep.subr.mxu0 0.0
  %6355 = vmatpush1.msra.mxu0 %v5952
  %6356 = vmatprep.subr.mxu0 0.0
  %6357 = vmatpush1.msra.mxu0 %v5953
  %6358 = vmatprep.subr.mxu0 0.0
  %6359 = vmatpush1.msra.mxu0 %v5954
  %6360 = vmatprep.subr.mxu0 0.0
  %6361 = vmatpush1.msra.mxu0 %v5955
  %6362 = vmatprep.subr.mxu0 0.0
  %6363 = vmatpush1.msra.mxu0 %v5956
  %6364 = vmatprep.subr.mxu0 0.0
  %6365 = vmatpush1.msra.mxu0 %v5957
  %6366 = vmatprep.subr.mxu0 0.0
  %6367 = vmatpush1.msra.mxu0 %v5958
  %6368 = vmatprep.subr.mxu0 0.0
  %6369 = vmatpush1.msra.mxu0 %v5959
  %6370 = vmatprep.subr.mxu0 0.0
  %6371 = vmatpush1.msra.mxu0 %v5960
  %6372 = vmatprep.subr.mxu0 0.0
  %6373 = vmatpush1.msra.mxu0 %v5961
  %6374 = vmatprep.subr.mxu0 0.0
  %6375 = vmatpush1.msra.mxu0 0.0
  %6376 = vmatprep.subr.mxu0 0.0
  %6377 = vmatpush1.msra.mxu0 0.0
  %6378 = vmatprep.subr.mxu0 0.0
  %6379 = vmatpush1.msra.mxu0 0.0
  %6380 = vmatprep.subr.mxu0 0.0
  %6381 = vmatpush1.msra.mxu0 0.0
  %6382 = vmatprep.subr.mxu0 0.0
  %6383 = vmatpush1.msra.mxu0 0.0
  %6384 = vmatprep.subr.mxu0 0.0
  %6385 = vmatpush1.msra.mxu0 0.0
  %6386 = vmatprep.subr.mxu0 0.0
  %6387 = vmatpush1.msra.mxu0 0.0
  %6388 = vmatprep.subr.mxu0 0.0
  %6389 = vmatpush1.msra.mxu0 0.0
  %6390 = vmatprep.subr.mxu0 0.0
  %6391 = vmatpush1.msra.mxu0 0.0
  %6392 = vmatprep.subr.mxu0 0.0
  %6393 = vmatpush1.msra.mxu0 0.0
  %6394 = vmatprep.subr.mxu0 0.0
  %6395 = vmatpush1.msra.mxu0 0.0
  %6396 = vmatprep.subr.mxu0 0.0
  %6397 = vmatpush1.msra.mxu0 0.0
  %6398 = vmatprep.mubr.f32.mxu0 %v6332
  %6399 = vmatmul.mubr.f32.gmra.mrb[0].mxu0 %v6327
  %v6400 = vpop.f32.mrb[0].mxu0
  %v6401 = vadd.f32 0.0, %v6400
  %v6402 = vpop.f32.mrb[0].mxu0
  %6403 = vdwg.mxu0
  %v6404 = vadd.f32 %v6316, %v6401
  %v6405 = vsel %vm4105, %v6404, 0.0
  %v6406 = vrot.slane %v6405, 4
  %v6407 = vadd.f32 %v6405, %v6406
  %v6408 = vrot.slane %v6407, 2
  %v6409 = vadd.f32 %v6407, %v6408
  %v6410 = vrot.slane %v6409, 1
  %v6411 = vadd.f32 %v6409, %v6410
  %v6412 = vmul.f32 %v6404, %v6404
  %v6413 = vsel %vm4105, %v6412, 0.0
  %v6414 = vrot.slane %v6413, 4
  %v6415 = vadd.f32 %v6413, %v6414
  %v6416 = vrot.slane %v6415, 2
  %v6417 = vadd.f32 %v6415, %v6416
  %v6418 = vrot.slane %v6417, 1
  %v6419 = vadd.f32 %v6417, %v6418
  %v6420 = vadd.f32 %v6046, %v6411
  %v6421 = vadd.f32 %v6054, %v6419
  %v6422 = vld [vmem:[%s8] sm:$0xff]
  %v6423 = vld [vmem:[%s8 + $0x8] sm:$0xff]
  %v6424 = vld [vmem:[%s8 + $0x10] sm:$0xff]
  %v6425 = vld [vmem:[%s8 + $0x18] sm:$0xff]
  %v6426 = vld [vmem:[%s8 + $0x20] sm:$0xff]
  %v6427 = vld [vmem:[%s8 + $0x28] sm:$0xff]
  %v6428 = vld [vmem:[%s8 + $0x30] sm:$0xff]
  %v6429 = vld [vmem:[%s8 + $0x38] sm:$0xff]
  %v6430 = vld [vmem:[%s8 + $0x40] sm:$0xff]
  %v6431 = vld [vmem:[%s8 + $0x48] sm:$0xff]
  %v6432 = vld [vmem:[%s8 + $0x50] sm:$0xff]
  %v6433 = vld [vmem:[%s8 + $0x58] sm:$0xff]
  %v6434 = vld [vmem:[%s8 + $0x60] sm:$0xff]
  %v6435 = vld [vmem:[%s8 + $0x68] sm:$0xff]
  %v6436 = vld [vmem:[%s8 + $0x70] sm:$0xff]
  %v6437 = vld [vmem:[%s8 + $0x78] sm:$0xff]
  %6438 = vmatprep.subr.mxu0 0.0
  %6439 = vmatpush1.msra.mxu0 %v6422
  %6440 = vmatprep.subr.mxu0 0.0
  %6441 = vmatpush1.msra.mxu0 %v6423
  %6442 = vmatprep.subr.mxu0 0.0
  %6443 = vmatpush1.msra.mxu0 %v6424
  %6444 = vmatprep.subr.mxu0 0.0
  %6445 = vmatpush1.msra.mxu0 %v6425
  %6446 = vmatprep.subr.mxu0 0.0
  %6447 = vmatpush1.msra.mxu0 %v6426
  %6448 = vmatprep.subr.mxu0 0.0
  %6449 = vmatpush1.msra.mxu0 %v6427
  %6450 = vmatprep.subr.mxu0 0.0
  %6451 = vmatpush1.msra.mxu0 %v6428
  %6452 = vmatprep.subr.mxu0 0.0
  %6453 = vmatpush1.msra.mxu0 %v6429
  %6454 = vmatprep.subr.mxu0 0.0
  %6455 = vmatpush1.msra.mxu0 %v6430
  %6456 = vmatprep.subr.mxu0 0.0
  %6457 = vmatpush1.msra.mxu0 %v6431
  %6458 = vmatprep.subr.mxu0 0.0
  %6459 = vmatpush1.msra.mxu0 %v6432
  %6460 = vmatprep.subr.mxu0 0.0
  %6461 = vmatpush1.msra.mxu0 %v6433
  %6462 = vmatprep.subr.mxu0 0.0
  %6463 = vmatpush1.msra.mxu0 %v6434
  %6464 = vmatprep.subr.mxu0 0.0
  %6465 = vmatpush1.msra.mxu0 %v6435
  %6466 = vmatprep.subr.mxu0 0.0
  %6467 = vmatpush1.msra.mxu0 %v6436
  %6468 = vmatprep.subr.mxu0 0.0
  %6469 = vmatpush1.msra.mxu0 %v6437
  %6470 = vmatprep.subr.mxu0 0.0
  %6471 = vmatpush1.msra.mxu0 0.0
  %6472 = vmatprep.subr.mxu0 0.0
  %6473 = vmatpush1.msra.mxu0 0.0
  %6474 = vmatprep.subr.mxu0 0.0
  %6475 = vmatpush1.msra.mxu0 0.0
  %6476 = vmatprep.subr.mxu0 0.0
  %6477 = vmatpush1.msra.mxu0 0.0
  %6478 = vmatprep.subr.mxu0 0.0
  %6479 = vmatpush1.msra.mxu0 0.0
  %6480 = vmatprep.subr.mxu0 0.0
  %6481 = vmatpush1.msra.mxu0 0.0
  %6482 = vmatprep.subr.mxu0 0.0
  %6483 = vmatpush1.msra.mxu0 0.0
  %6484 = vmatprep.subr.mxu0 0.0
  %6485 = vmatpush1.msra.mxu0 0.0
  %6486 = vmatprep.subr.mxu0 0.0
  %6487 = vmatpush1.msra.mxu0 0.0
  %6488 = vmatprep.subr.mxu0 0.0
  %6489 = vmatpush1.msra.mxu0 0.0
  %6490 = vmatprep.subr.mxu0 0.0
  %6491 = vmatpush1.msra.mxu0 0.0
  %6492 = vmatprep.subr.mxu0 0.0
  %6493 = vmatpush1.msra.mxu0 0.0
  %6494 = vmatprep.subr.mxu0 0.0
  %6495 = vmatpush1.msra.mxu0 0.0
  %6496 = vmatprep.subr.mxu0 0.0
  %6497 = vmatpush1.msra.mxu0 0.0
  %6498 = vmatprep.subr.mxu0 0.0
  %6499 = vmatpush1.msra.mxu0 0.0
  %6500 = vmatprep.subr.mxu0 0.0
  %6501 = vmatpush1.msra.mxu0 0.0
  %6502 = vmatprep.mubr.f32.mxu0 0.0
  %6503 = vmatmul.mubr.f32.gmra.mrb[0].mxu0 %v6420
  %v6504 = vpop.f32.mrb[0].mxu0
  %v6505 = vadd.f32 0.0, %v6504
  %v6506 = vpop.f32.mrb[0].mxu0
  %6507 = vdwg.mxu0
  %v6508 = vrcp.pop 32.0
  %v6509 = vmul.f32 %v6505, %v6508
  %6510 = vmatprep.subr.mxu0 0.0
  %6511 = vmatpush1.msra.mxu0 %v6422
  %6512 = vmatprep.subr.mxu0 0.0
  %6513 = vmatpush1.msra.mxu0 %v6423
  %6514 = vmatprep.subr.mxu0 0.0
  %6515 = vmatpush1.msra.mxu0 %v6424
  %6516 = vmatprep.subr.mxu0 0.0
  %6517 = vmatpush1.msra.mxu0 %v6425
  %6518 = vmatprep.subr.mxu0 0.0
  %6519 = vmatpush1.msra.mxu0 %v6426
  %6520 = vmatprep.subr.mxu0 0.0
  %6521 = vmatpush1.msra.mxu0 %v6427
  %6522 = vmatprep.subr.mxu0 0.0
  %6523 = vmatpush1.msra.mxu0 %v6428
  %6524 = vmatprep.subr.mxu0 0.0
  %6525 = vmatpush1.msra.mxu0 %v6429
  %6526 = vmatprep.subr.mxu0 0.0
  %6527 = vmatpush1.msra.mxu0 %v6430
  %6528 = vmatprep.subr.mxu0 0.0
  %6529 = vmatpush1.msra.mxu0 %v6431
  %6530 = vmatprep.subr.mxu0 0.0
  %6531 = vmatpush1.msra.mxu0 %v6432
  %6532 = vmatprep.subr.mxu0 0.0
  %6533 = vmatpush1.msra.mxu0 %v6433
  %6534 = vmatprep.subr.mxu0 0.0
  %6535 = vmatpush1.msra.mxu0 %v6434
  %6536 = vmatprep.subr.mxu0 0.0
  %6537 = vmatpush1.msra.mxu0 %v6435
  %6538 = vmatprep.subr.mxu0 0.0
  %6539 = vmatpush1.msra.mxu0 %v6436
  %6540 = vmatprep.subr.mxu0 0.0
  %6541 = vmatpush1.msra.mxu0 %v6437
  %6542 = vmatprep.subr.mxu0 0.0
  %6543 = vmatpush1.msra.mxu0 0.0
  %6544 = vmatprep.subr.mxu0 0.0
  %6545 = vmatpush1.msra.mxu0 0.0
  %6546 = vmatprep.subr.mxu0 0.0
  %6547 = vmatpush1.msra.mxu0 0.0
  %6548 = vmatprep.subr.mxu0 0.0
  %6549 = vmatpush1.msra.mxu0 0.0
  %6550 = vmatprep.subr.mxu0 0.0
  %6551 = vmatpush1.msra.mxu0 0.0
  %6552 = vmatprep.subr.mxu0 0.0
  %6553 = vmatpush1.msra.mxu0 0.0
  %6554 = vmatprep.subr.mxu0 0.0
  %6555 = vmatpush1.msra.mxu0 0.0
  %6556 = vmatprep.subr.mxu0 0.0
  %6557 = vmatpush1.msra.mxu0 0.0
  %6558 = vmatprep.subr.mxu0 0.0
  %6559 = vmatpush1.msra.mxu0 0.0
  %6560 = vmatprep.subr.mxu0 0.0
  %6561 = vmatpush1.msra.mxu0 0.0
  %6562 = vmatprep.subr.mxu0 0.0
  %6563 = vmatpush1.msra.mxu0 0.0
  %6564 = vmatprep.subr.mxu0 0.0
  %6565 = vmatpush1.msra.mxu0 0.0
  %6566 = vmatprep.subr.mxu0 0.0
  %6567 = vmatpush1.msra.mxu0 0.0
  %6568 = vmatprep.subr.mxu0 0.0
  %6569 = vmatpush1.msra.mxu0 0.0
  %6570 = vmatprep.subr.mxu0 0.0
  %6571 = vmatpush1.msra.mxu0 0.0
  %6572 = vmatprep.subr.mxu0 0.0
  %6573 = vmatpush1.msra.mxu0 0.0
  %6574 = vmatprep.mubr.f32.mxu0 0.0
  %6575 = vmatmul.mubr.f32.gmra.mrb[0].mxu0 %v6421
  %v6576 = vpop.f32.mrb[0].mxu0
  %v6577 = vadd.f32 0.0, %v6576
  %v6578 = vpop.f32.mrb[0].mxu0
  %6579 = vdwg.mxu0
  %v6580 = vmul.f32 %v6577, %v6508
  %v6581 = vmul.f32 %v6509, %v6509
  %v6582 = vsub.f32 %v6580, %v6581
  %v6583 = vmax.f32 %v6582, 0.0
  %v6584 = vld [vmem:[%s10] sm:$0x1]
  %v6585 = vadd.f32 %v6583, 1e-05
  %v6586 = vrsqrt.pop %v6585
  %v6587 = vmul.f32 %v6584, %v6586
  %v6588 = vld [vmem:[%s11] sm:$0x1]
  %v6589 = vmul.f32 %v6509, %v6587
  %v6590 = vsub.f32 %v6588, %v6589
  %v6591 = vld [vmem:[%s9] sm:$0xff]
  %v6592 = vld [vmem:[%s9 + $0x8] sm:$0xff]
  %v6593 = vld [vmem:[%s9 + $0x10] sm:$0xff]
  %v6594 = vld [vmem:[%s9 + $0x18] sm:$0xff]
  %v6596 = vsel %vm63, %v6587, 0
  %6598 = vmatprep.subr.mxu0 0.0
  %6599 = vmatpush1.msra.mxu0 %v6591
  %6600 = vmatprep.subr.mxu0 0.0
  %6601 = vmatpush1.msra.mxu0 %v6592
  %6602 = vmatprep.subr.mxu0 0.0
  %6603 = vmatpush1.msra.mxu0 %v6593
  %6604 = vmatprep.subr.mxu0 0.0
  %6605 = vmatpush1.msra.mxu0 %v6594
  %6606 = vmatprep.subr.mxu0 0.0
  %6607 = vmatpush1.msra.mxu0 0.0
  %6608 = vmatprep.subr.mxu0 0.0
  %6609 = vmatpush1.msra.mxu0 0.0
  %6610 = vmatprep.subr.mxu0 0.0
  %6611 = vmatpush1.msra.mxu0 0.0
  %6612 = vmatprep.subr.mxu0 0.0
  %6613 = vmatpush1.msra.mxu0 0.0
  %6614 = vmatprep.subr.mxu0 0.0
  %6615 = vmatpush1.msra.mxu0 0.0
  %6616 = vmatprep.subr.mxu0 0.0
  %6617 = vmatpush1.msra.mxu0 0.0
  %6618 = vmatprep.subr.mxu0 0.0
  %6619 = vmatpush1.msra.mxu0 0.0
  %6620 = vmatprep.subr.mxu0 0.0
  %6621 = vmatpush1.msra.mxu0 0.0
  %6622 = vmatprep.subr.mxu0 0.0
  %6623 = vmatpush1.msra.mxu0 0.0
  %6624 = vmatprep.subr.mxu0 0.0
  %6625 = vmatpush1.msra.mxu0 0.0
  %6626 = vmatprep.subr.mxu0 0.0
  %6627 = vmatpush1.msra.mxu0 0.0
  %6628 = vmatprep.subr.mxu0 0.0
  %6629 = vmatpush1.msra.mxu0 0.0
  %6630 = vmatprep.subr.mxu0 0.0
  %6631 = vmatpush1.msra.mxu0 0.0
  %6632 = vmatprep.subr.mxu0 0.0
  %6633 = vmatpush1.msra.mxu0 0.0
  %6634 = vmatprep.subr.mxu0 0.0
  %6635 = vmatpush1.msra.mxu0 0.0
  %6636 = vmatprep.subr.mxu0 0.0
  %6637 = vmatpush1.msra.mxu0 0.0
  %6638 = vmatprep.subr.mxu0 0.0
  %6639 = vmatpush1.msra.mxu0 0.0
  %6640 = vmatprep.subr.mxu0 0.0
  %6641 = vmatpush1.msra.mxu0 0.0
  %6642 = vmatprep.subr.mxu0 0.0
  %6643 = vmatpush1.msra.mxu0 0.0
  %6644 = vmatprep.subr.mxu0 0.0
  %6645 = vmatpush1.msra.mxu0 0.0
  %6646 = vmatprep.subr.mxu0 0.0
  %6647 = vmatpush1.msra.mxu0 0.0
  %6648 = vmatprep.subr.mxu0 0.0
  %6649 = vmatpush1.msra.mxu0 0.0
  %6650 = vmatprep.subr.mxu0 0.0
  %6651 = vmatpush1.msra.mxu0 0.0
  %6652 = vmatprep.subr.mxu0 0.0
  %6653 = vmatpush1.msra.mxu0 0.0
  %6654 = vmatprep.subr.mxu0 0.0
  %6655 = vmatpush1.msra.mxu0 0.0
  %6656 = vmatprep.subr.mxu0 0.0
  %6657 = vmatpush1.msra.mxu0 0.0
  %6658 = vmatprep.subr.mxu0 0.0
  %6659 = vmatpush1.msra.mxu0 0.0
  %6660 = vmatprep.subr.mxu0 0.0
  %6661 = vmatpush1.msra.mxu0 0.0
  %6662 = vmatprep.mubr.f32.mxu0 0.0
  %6663 = vmatmul.mubr.f32.gmra.mrb[0].mxu0 %v6596
  %v6664 = vpop.f32.mrb[0].mxu0
  %v6665 = vadd.f32 0.0, %v6664
  %v6666 = vpop.f32.mrb[0].mxu0
  %6667 = vdwg.mxu0
  %v6669 = vsel %vm63, %v6590, 0
  %6671 = vmatprep.subr.mxu0 0.0
  %6672 = vmatpush1.msra.mxu0 %v6591
  %6673 = vmatprep.subr.mxu0 0.0
  %6674 = vmatpush1.msra.mxu0 %v6592
  %6675 = vmatprep.subr.mxu0 0.0
  %6676 = vmatpush1.msra.mxu0 %v6593
  %6677 = vmatprep.subr.mxu0 0.0
  %6678 = vmatpush1.msra.mxu0 %v6594
  %6679 = vmatprep.subr.mxu0 0.0
  %6680 = vmatpush1.msra.mxu0 0.0
  %6681 = vmatprep.subr.mxu0 0.0
  %6682 = vmatpush1.msra.mxu0 0.0
  %6683 = vmatprep.subr.mxu0 0.0
  %6684 = vmatpush1.msra.mxu0 0.0
  %6685 = vmatprep.subr.mxu0 0.0
  %6686 = vmatpush1.msra.mxu0 0.0
  %6687 = vmatprep.subr.mxu0 0.0
  %6688 = vmatpush1.msra.mxu0 0.0
  %6689 = vmatprep.subr.mxu0 0.0
  %6690 = vmatpush1.msra.mxu0 0.0
  %6691 = vmatprep.subr.mxu0 0.0
  %6692 = vmatpush1.msra.mxu0 0.0
  %6693 = vmatprep.subr.mxu0 0.0
  %6694 = vmatpush1.msra.mxu0 0.0
  %6695 = vmatprep.subr.mxu0 0.0
  %6696 = vmatpush1.msra.mxu0 0.0
  %6697 = vmatprep.subr.mxu0 0.0
  %6698 = vmatpush1.msra.mxu0 0.0
  %6699 = vmatprep.subr.mxu0 0.0
  %6700 = vmatpush1.msra.mxu0 0.0
  %6701 = vmatprep.subr.mxu0 0.0
  %6702 = vmatpush1.msra.mxu0 0.0
  %6703 = vmatprep.subr.mxu0 0.0
  %6704 = vmatpush1.msra.mxu0 0.0
  %6705 = vmatprep.subr.mxu0 0.0
  %6706 = vmatpush1.msra.mxu0 0.0
  %6707 = vmatprep.subr.mxu0 0.0
  %6708 = vmatpush1.msra.mxu0 0.0
  %6709 = vmatprep.subr.mxu0 0.0
  %6710 = vmatpush1.msra.mxu0 0.0
  %6711 = vmatprep.subr.mxu0 0.0
  %6712 = vmatpush1.msra.mxu0 0.0
  %6713 = vmatprep.subr.mxu0 0.0
  %6714 = vmatpush1.msra.mxu0 0.0
  %6715 = vmatprep.subr.mxu0 0.0
  %6716 = vmatpush1.msra.mxu0 0.0
  %6717 = vmatprep.subr.mxu0 0.0
  %6718 = vmatpush1.msra.mxu0 0.0
  %6719 = vmatprep.subr.mxu0 0.0
  %6720 = vmatpush1.msra.mxu0 0.0
  %6721 = vmatprep.subr.mxu0 0.0
  %6722 = vmatpush1.msra.mxu0 0.0
  %6723 = vmatprep.subr.mxu0 0.0
  %6724 = vmatpush1.msra.mxu0 0.0
  %6725 = vmatprep.subr.mxu0 0.0
  %6726 = vmatpush1.msra.mxu0 0.0
  %6727 = vmatprep.subr.mxu0 0.0
  %6728 = vmatpush1.msra.mxu0 0.0
  %6729 = vmatprep.subr.mxu0 0.0
  %6730 = vmatpush1.msra.mxu0 0.0
  %6731 = vmatprep.subr.mxu0 0.0
  %6732 = vmatpush1.msra.mxu0 0.0
  %6733 = vmatprep.subr.mxu0 0.0
  %6734 = vmatpush1.msra.mxu0 0.0
  %6735 = vmatprep.mubr.f32.mxu0 0.0
  %6736 = vmatmul.mubr.f32.gmra.mrb[0].mxu0 %v6669
  %v6737 = vpop.f32.mrb[0].mxu0
  %v6738 = vadd.f32 0.0, %v6737
  %v6739 = vpop.f32.mrb[0].mxu0
  %6740 = vdwg.mxu0
  %v6741 = vlaneseq
  %v6742 = vshrl.u32 %v6741, 7
  %v6743 = vsub.s32 0, %v6742
  %v6744 = vrot.slane %v6665, %v6743
  %v6745 = vmul.f32 %v6039, %v6744
  %v6746 = vlaneseq
  %v6747 = vshrl.u32 %v6746, 7
  %v6748 = vsub.s32 0, %v6747
  %v6749 = vrot.slane %v6738, %v6748
  %v6750 = vadd.f32 %v6745, %v6749
  %vm6751 = vcmp.ge.f32.partialorder %v6750, 0.0
  %v6752 = vmul.f32 %v6750, 0.05
  %v6753 = vsel %vm6751, %v6750, %v6752
  %v6754 = vld [vmem:[%s12] sm:$0xff]
  %v6755 = vld [vmem:[%s12 + $0x8] sm:$0xff]
  %v6756 = vld [vmem:[%s12 + $0x10] sm:$0xff]
  %v6757 = vld [vmem:[%s12 + $0x18] sm:$0xff]
  %v6758 = vld [vmem:[%s12 + $0x20] sm:$0xff]
  %v6759 = vld [vmem:[%s12 + $0x28] sm:$0xff]
  %v6760 = vld [vmem:[%s12 + $0x30] sm:$0xff]
  %v6761 = vld [vmem:[%s12 + $0x38] sm:$0xff]
  %v6762 = vld [vmem:[%s12 + $0x40] sm:$0xff]
  %v6763 = vld [vmem:[%s12 + $0x48] sm:$0xff]
  %v6764 = vld [vmem:[%s12 + $0x50] sm:$0xff]
  %v6765 = vld [vmem:[%s12 + $0x58] sm:$0xff]
  %v6766 = vld [vmem:[%s12 + $0x60] sm:$0xff]
  %v6767 = vld [vmem:[%s12 + $0x68] sm:$0xff]
  %v6768 = vld [vmem:[%s12 + $0x70] sm:$0xff]
  %v6769 = vld [vmem:[%s12 + $0x78] sm:$0xff]
  %s6770 = scalar_lea.vmem %s12, 128
  %v6771 = vld [vmem:[%s6770] sm:$0xff]
  %v6772 = vld [vmem:[%s6770 + $0x8] sm:$0xff]
  %v6773 = vld [vmem:[%s6770 + $0x10] sm:$0xff]
  %v6774 = vld [vmem:[%s6770 + $0x18] sm:$0xff]
  %v6775 = vld [vmem:[%s6770 + $0x20] sm:$0xff]
  %v6776 = vld [vmem:[%s6770 + $0x28] sm:$0xff]
  %v6777 = vld [vmem:[%s6770 + $0x30] sm:$0xff]
  %v6778 = vld [vmem:[%s6770 + $0x38] sm:$0xff]
  %v6779 = vld [vmem:[%s6770 + $0x40] sm:$0xff]
  %v6780 = vld [vmem:[%s6770 + $0x48] sm:$0xff]
  %v6781 = vld [vmem:[%s6770 + $0x50] sm:$0xff]
  %v6782 = vld [vmem:[%s6770 + $0x58] sm:$0xff]
  %v6783 = vld [vmem:[%s6770 + $0x60] sm:$0xff]
  %v6784 = vld [vmem:[%s6770 + $0x68] sm:$0xff]
  %v6785 = vld [vmem:[%s6770 + $0x70] sm:$0xff]
  %v6786 = vld [vmem:[%s6770 + $0x78] sm:$0xff]
  %v6788 = vrot.slane %v6753, 1
  %6790 = vmatprep.subr.mxu0 0.0
  %6791 = vmatpush1.msra.mxu0 %v6771
  %6792 = vmatprep.subr.mxu0 0.0
  %6793 = vmatpush1.msra.mxu0 %v6772
  %6794 = vmatprep.subr.mxu0 0.0
  %6795 = vmatpush1.msra.mxu0 %v6773
  %6796 = vmatprep.subr.mxu0 0.0
  %6797 = vmatpush1.msra.mxu0 %v6774
  %6798 = vmatprep.subr.mxu0 0.0
  %6799 = vmatpush1.msra.mxu0 %v6775
  %6800 = vmatprep.subr.mxu0 0.0
  %6801 = vmatpush1.msra.mxu0 %v6776
  %6802 = vmatprep.subr.mxu0 0.0
  %6803 = vmatpush1.msra.mxu0 %v6777
  %6804 = vmatprep.subr.mxu0 0.0
  %6805 = vmatpush1.msra.mxu0 %v6778
  %6806 = vmatprep.subr.mxu0 0.0
  %6807 = vmatpush1.msra.mxu0 %v6779
  %6808 = vmatprep.subr.mxu0 0.0
  %6809 = vmatpush1.msra.mxu0 %v6780
  %6810 = vmatprep.subr.mxu0 0.0
  %6811 = vmatpush1.msra.mxu0 %v6781
  %6812 = vmatprep.subr.mxu0 0.0
  %6813 = vmatpush1.msra.mxu0 %v6782
  %6814 = vmatprep.subr.mxu0 0.0
  %6815 = vmatpush1.msra.mxu0 %v6783
  %6816 = vmatprep.subr.mxu0 0.0
  %6817 = vmatpush1.msra.mxu0 %v6784
  %6818 = vmatprep.subr.mxu0 0.0
  %6819 = vmatpush1.msra.mxu0 %v6785
  %6820 = vmatprep.subr.mxu0 0.0
  %6821 = vmatpush1.msra.mxu0 %v6786
  %6822 = vmatprep.subr.mxu0 0.0
  %6823 = vmatpush1.msra.mxu0 0.0
  %6824 = vmatprep.subr.mxu0 0.0
  %6825 = vmatpush1.msra.mxu0 0.0
  %6826 = vmatprep.subr.mxu0 0.0
  %6827 = vmatpush1.msra.mxu0 0.0
  %6828 = vmatprep.subr.mxu0 0.0
  %6829 = vmatpush1.msra.mxu0 0.0
  %6830 = vmatprep.subr.mxu0 0.0
  %6831 = vmatpush1.msra.mxu0 0.0
  %6832 = vmatprep.subr.mxu0 0.0
  %6833 = vmatpush1.msra.mxu0 0.0
  %6834 = vmatprep.subr.mxu0 0.0
  %6835 = vmatpush1.msra.mxu0 0.0
  %6836 = vmatprep.subr.mxu0 0.0
  %6837 = vmatpush1.msra.mxu0 0.0
  %6838 = vmatprep.subr.mxu0 0.0
  %6839 = vmatpush1.msra.mxu0 0.0
  %6840 = vmatprep.subr.mxu0 0.0
  %6841 = vmatpush1.msra.mxu0 0.0
  %6842 = vmatprep.subr.mxu0 0.0
  %6843 = vmatpush1.msra.mxu0 0.0
  %6844 = vmatprep.subr.mxu0 0.0
  %6845 = vmatpush1.msra.mxu0 0.0
  %6846 = vmatprep.subr.mxu0 0.0
  %6847 = vmatpush1.msra.mxu0 0.0
  %6848 = vmatprep.subr.mxu0 0.0
  %6849 = vmatpush1.msra.mxu0 0.0
  %6850 = vmatprep.subr.mxu0 0.0
  %6851 = vmatpush1.msra.mxu0 0.0
  %6852 = vmatprep.subr.mxu0 0.0
  %6853 = vmatpush1.msra.mxu0 0.0
  %6854 = vmatprep.mubr.f32.mxu0 0.0
  %6855 = vmatmul.mubr.f32.gmra.mrb[0].mxu0 %v6788
  %v6856 = vpop.f32.mrb[0].mxu0
  %v6857 = vadd.f32 0.0, %v6856
  %v6858 = vpop.f32.mrb[0].mxu0
  %6859 = vdwg.mxu0
  %6860 = vmatprep.subr.mxu0 0.0
  %6861 = vmatpush1.msra.mxu0 %v6754
  %6862 = vmatprep.subr.mxu0 0.0
  %6863 = vmatpush1.msra.mxu0 %v6755
  %6864 = vmatprep.subr.mxu0 0.0
  %6865 = vmatpush1.msra.mxu0 %v6756
  %6866 = vmatprep.subr.mxu0 0.0
  %6867 = vmatpush1.msra.mxu0 %v6757
  %6868 = vmatprep.subr.mxu0 0.0
  %6869 = vmatpush1.msra.mxu0 %v6758
  %6870 = vmatprep.subr.mxu0 0.0
  %6871 = vmatpush1.msra.mxu0 %v6759
  %6872 = vmatprep.subr.mxu0 0.0
  %6873 = vmatpush1.msra.mxu0 %v6760
  %6874 = vmatprep.subr.mxu0 0.0
  %6875 = vmatpush1.msra.mxu0 %v6761
  %6876 = vmatprep.subr.mxu0 0.0
  %6877 = vmatpush1.msra.mxu0 %v6762
  %6878 = vmatprep.subr.mxu0 0.0
  %6879 = vmatpush1.msra.mxu0 %v6763
  %6880 = vmatprep.subr.mxu0 0.0
  %6881 = vmatpush1.msra.mxu0 %v6764
  %6882 = vmatprep.subr.mxu0 0.0
  %6883 = vmatpush1.msra.mxu0 %v6765
  %6884 = vmatprep.subr.mxu0 0.0
  %6885 = vmatpush1.msra.mxu0 %v6766
  %6886 = vmatprep.subr.mxu0 0.0
  %6887 = vmatpush1.msra.mxu0 %v6767
  %6888 = vmatprep.subr.mxu0 0.0
  %6889 = vmatpush1.msra.mxu0 %v6768
  %6890 = vmatprep.subr.mxu0 0.0
  %6891 = vmatpush1.msra.mxu0 %v6769
  %6892 = vmatprep.subr.mxu0 0.0
  %6893 = vmatpush1.msra.mxu0 0.0
  %6894 = vmatprep.subr.mxu0 0.0
  %6895 = vmatpush1.msra.mxu0 0.0
  %6896 = vmatprep.subr.mxu0 0.0
  %6897 = vmatpush1.msra.mxu0 0.0
  %6898 = vmatprep.subr.mxu0 0.0
  %6899 = vmatpush1.msra.mxu0 0.0
  %6900 = vmatprep.subr.mxu0 0.0
  %6901 = vmatpush1.msra.mxu0 0.0
  %6902 = vmatprep.subr.mxu0 0.0
  %6903 = vmatpush1.msra.mxu0 0.0
  %6904 = vmatprep.subr.mxu0 0.0
  %6905 = vmatpush1.msra.mxu0 0.0
  %6906 = vmatprep.subr.mxu0 0.0
  %6907 = vmatpush1.msra.mxu0 0.0
  %6908 = vmatprep.subr.mxu0 0.0
  %6909 = vmatpush1.msra.mxu0 0.0
  %6910 = vmatprep.subr.mxu0 0.0
  %6911 = vmatpush1.msra.mxu0 0.0
  %6912 = vmatprep.subr.mxu0 0.0
  %6913 = vmatpush1.msra.mxu0 0.0
  %6914 = vmatprep.subr.mxu0 0.0
  %6915 = vmatpush1.msra.mxu0 0.0
  %6916 = vmatprep.subr.mxu0 0.0
  %6917 = vmatpush1.msra.mxu0 0.0
  %6918 = vmatprep.subr.mxu0 0.0
  %6919 = vmatpush1.msra.mxu0 0.0
  %6920 = vmatprep.subr.mxu0 0.0
  %6921 = vmatpush1.msra.mxu0 0.0
  %6922 = vmatprep.subr.mxu0 0.0
  %6923 = vmatpush1.msra.mxu0 0.0
  %6924 = vmatprep.mubr.f32.mxu0 0.0
  %6925 = vmatmul.mubr.f32.gmra.mrb[0].mxu0 %v6753
  %v6926 = vpop.f32.mrb[0].mxu0
  %v6927 = vadd.f32 %v6857, %v6926
  %v6928 = vpop.f32.mrb[0].mxu0
  %6929 = vdwg.mxu0
  %s6930 = scalar_lea.vmem %s12, 256
  %v6931 = vld [vmem:[%s6930] sm:$0xff]
  %v6932 = vld [vmem:[%s6930 + $0x8] sm:$0xff]
  %v6933 = vld [vmem:[%s6930 + $0x10] sm:$0xff]
  %v6934 = vld [vmem:[%s6930 + $0x18] sm:$0xff]
  %v6935 = vld [vmem:[%s6930 + $0x20] sm:$0xff]
  %v6936 = vld [vmem:[%s6930 + $0x28] sm:$0xff]
  %v6937 = vld [vmem:[%s6930 + $0x30] sm:$0xff]
  %v6938 = vld [vmem:[%s6930 + $0x38] sm:$0xff]
  %v6939 = vld [vmem:[%s6930 + $0x40] sm:$0xff]
  %v6940 = vld [vmem:[%s6930 + $0x48] sm:$0xff]
  %v6941 = vld [vmem:[%s6930 + $0x50] sm:$0xff]
  %v6942 = vld [vmem:[%s6930 + $0x58] sm:$0xff]
  %v6943 = vld [vmem:[%s6930 + $0x60] sm:$0xff]
  %v6944 = vld [vmem:[%s6930 + $0x68] sm:$0xff]
  %v6945 = vld [vmem:[%s6930 + $0x70] sm:$0xff]
  %v6946 = vld [vmem:[%s6930 + $0x78] sm:$0xff]
  %v6947 = vrot.slane %v6753, 2
  %6949 = vmatprep.subr.mxu0 0.0
  %6950 = vmatpush1.msra.mxu0 %v6931
  %6951 = vmatprep.subr.mxu0 0.0
  %6952 = vmatpush1.msra.mxu0 %v6932
  %6953 = vmatprep.subr.mxu0 0.0
  %6954 = vmatpush1.msra.mxu0 %v6933
  %6955 = vmatprep.subr.mxu0 0.0
  %6956 = vmatpush1.msra.mxu0 %v6934
  %6957 = vmatprep.subr.mxu0 0.0
  %6958 = vmatpush1.msra.mxu0 %v6935
  %6959 = vmatprep.subr.mxu0 0.0
  %6960 = vmatpush1.msra.mxu0 %v6936
  %6961 = vmatprep.subr.mxu0 0.0
  %6962 = vmatpush1.msra.mxu0 %v6937
  %6963 = vmatprep.subr.mxu0 0.0
  %6964 = vmatpush1.msra.mxu0 %v6938
  %6965 = vmatprep.subr.mxu0 0.0
  %6966 = vmatpush1.msra.mxu0 %v6939
  %6967 = vmatprep.subr.mxu0 0.0
  %6968 = vmatpush1.msra.mxu0 %v6940
  %6969 = vmatprep.subr.mxu0 0.0
  %6970 = vmatpush1.msra.mxu0 %v6941
  %6971 = vmatprep.subr.mxu0 0.0
  %6972 = vmatpush1.msra.mxu0 %v6942
  %6973 = vmatprep.subr.mxu0 0.0
  %6974 = vmatpush1.msra.mxu0 %v6943
  %6975 = vmatprep.subr.mxu0 0.0
  %6976 = vmatpush1.msra.mxu0 %v6944
  %6977 = vmatprep.subr.mxu0 0.0
  %6978 = vmatpush1.msra.mxu0 %v6945
  %6979 = vmatprep.subr.mxu0 0.0
  %6980 = vmatpush1.msra.mxu0 %v6946
  %6981 = vmatprep.subr.mxu0 0.0
  %6982 = vmatpush1.msra.mxu0 0.0
  %6983 = vmatprep.subr.mxu0 0.0
  %6984 = vmatpush1.msra.mxu0 0.0
  %6985 = vmatprep.subr.mxu0 0.0
  %6986 = vmatpush1.msra.mxu0 0.0
  %6987 = vmatprep.subr.mxu0 0.0
  %6988 = vmatpush1.msra.mxu0 0.0
  %6989 = vmatprep.subr.mxu0 0.0
  %6990 = vmatpush1.msra.mxu0 0.0
  %6991 = vmatprep.subr.mxu0 0.0
  %6992 = vmatpush1.msra.mxu0 0.0
  %6993 = vmatprep.subr.mxu0 0.0
  %6994 = vmatpush1.msra.mxu0 0.0
  %6995 = vmatprep.subr.mxu0 0.0
  %6996 = vmatpush1.msra.mxu0 0.0
  %6997 = vmatprep.subr.mxu0 0.0
  %6998 = vmatpush1.msra.mxu0 0.0
  %6999 = vmatprep.subr.mxu0 0.0
  %7000 = vmatpush1.msra.mxu0 0.0
  %7001 = vmatprep.subr.mxu0 0.0
  %7002 = vmatpush1.msra.mxu0 0.0
  %7003 = vmatprep.subr.mxu0 0.0
  %7004 = vmatpush1.msra.mxu0 0.0
  %7005 = vmatprep.subr.mxu0 0.0
  %7006 = vmatpush1.msra.mxu0 0.0
  %7007 = vmatprep.subr.mxu0 0.0
  %7008 = vmatpush1.msra.mxu0 0.0
  %7009 = vmatprep.subr.mxu0 0.0
  %7010 = vmatpush1.msra.mxu0 0.0
  %7011 = vmatprep.subr.mxu0 0.0
  %7012 = vmatpush1.msra.mxu0 0.0
  %7013 = vmatprep.mubr.f32.mxu0 0.0
  %7014 = vmatmul.mubr.f32.gmra.mrb[0].mxu0 %v6947
  %v7015 = vpop.f32.mrb[0].mxu0
  %v7016 = vadd.f32 0.0, %v7015
  %v7017 = vpop.f32.mrb[0].mxu0
  %7018 = vdwg.mxu0
  %v7019 = vadd.f32 %v6927, %v7016
  %s7020 = scalar_lea.vmem %s12, 384
  %v7021 = vld [vmem:[%s7020] sm:$0xff]
  %v7022 = vld [vmem:[%s7020 + $0x8] sm:$0xff]
  %v7023 = vld [vmem:[%s7020 + $0x10] sm:$0xff]
  %v7024 = vld [vmem:[%s7020 + $0x18] sm:$0xff]
  %v7025 = vld [vmem:[%s7020 + $0x20] sm:$0xff]
  %v7026 = vld [vmem:[%s7020 + $0x28] sm:$0xff]
  %v7027 = vld [vmem:[%s7020 + $0x30] sm:$0xff]
  %v7028 = vld [vmem:[%s7020 + $0x38] sm:$0xff]
  %v7029 = vld [vmem:[%s7020 + $0x40] sm:$0xff]
  %v7030 = vld [vmem:[%s7020 + $0x48] sm:$0xff]
  %v7031 = vld [vmem:[%s7020 + $0x50] sm:$0xff]
  %v7032 = vld [vmem:[%s7020 + $0x58] sm:$0xff]
  %v7033 = vld [vmem:[%s7020 + $0x60] sm:$0xff]
  %v7034 = vld [vmem:[%s7020 + $0x68] sm:$0xff]
  %v7035 = vld [vmem:[%s7020 + $0x70] sm:$0xff]
  %v7036 = vld [vmem:[%s7020 + $0x78] sm:$0xff]
  %v7037 = vrot.slane %v6753, 3
  %7039 = vmatprep.subr.mxu0 0.0
  %7040 = vmatpush1.msra.mxu0 %v7021
  %7041 = vmatprep.subr.mxu0 0.0
  %7042 = vmatpush1.msra.mxu0 %v7022
  %7043 = vmatprep.subr.mxu0 0.0
  %7044 = vmatpush1.msra.mxu0 %v7023
  %7045 = vmatprep.subr.mxu0 0.0
  %7046 = vmatpush1.msra.mxu0 %v7024
  %7047 = vmatprep.subr.mxu0 0.0
  %7048 = vmatpush1.msra.mxu0 %v7025
  %7049 = vmatprep.subr.mxu0 0.0
  %7050 = vmatpush1.msra.mxu0 %v7026
  %7051 = vmatprep.subr.mxu0 0.0
  %7052 = vmatpush1.msra.mxu0 %v7027
  %7053 = vmatprep.subr.mxu0 0.0
  %7054 = vmatpush1.msra.mxu0 %v7028
  %7055 = vmatprep.subr.mxu0 0.0
  %7056 = vmatpush1.msra.mxu0 %v7029
  %7057 = vmatprep.subr.mxu0 0.0
  %7058 = vmatpush1.msra.mxu0 %v7030
  %7059 = vmatprep.subr.mxu0 0.0
  %7060 = vmatpush1.msra.mxu0 %v7031
  %7061 = vmatprep.subr.mxu0 0.0
  %7062 = vmatpush1.msra.mxu0 %v7032
  %7063 = vmatprep.subr.mxu0 0.0
  %7064 = vmatpush1.msra.mxu0 %v7033
  %7065 = vmatprep.subr.mxu0 0.0
  %7066 = vmatpush1.msra.mxu0 %v7034
  %7067 = vmatprep.subr.mxu0 0.0
  %7068 = vmatpush1.msra.mxu0 %v7035
  %7069 = vmatprep.subr.mxu0 0.0
  %7070 = vmatpush1.msra.mxu0 %v7036
  %7071 = vmatprep.subr.mxu0 0.0
  %7072 = vmatpush1.msra.mxu0 0.0
  %7073 = vmatprep.subr.mxu0 0.0
  %7074 = vmatpush1.msra.mxu0 0.0
  %7075 = vmatprep.subr.mxu0 0.0
  %7076 = vmatpush1.msra.mxu0 0.0
  %7077 = vmatprep.subr.mxu0 0.0
  %7078 = vmatpush1.msra.mxu0 0.0
  %7079 = vmatprep.subr.mxu0 0.0
  %7080 = vmatpush1.msra.mxu0 0.0
  %7081 = vmatprep.subr.mxu0 0.0
  %7082 = vmatpush1.msra.mxu0 0.0
  %7083 = vmatprep.subr.mxu0 0.0
  %7084 = vmatpush1.msra.mxu0 0.0
  %7085 = vmatprep.subr.mxu0 0.0
  %7086 = vmatpush1.msra.mxu0 0.0
  %7087 = vmatprep.subr.mxu0 0.0
  %7088 = vmatpush1.msra.mxu0 0.0
  %7089 = vmatprep.subr.mxu0 0.0
  %7090 = vmatpush1.msra.mxu0 0.0
  %7091 = vmatprep.subr.mxu0 0.0
  %7092 = vmatpush1.msra.mxu0 0.0
  %7093 = vmatprep.subr.mxu0 0.0
  %7094 = vmatpush1.msra.mxu0 0.0
  %7095 = vmatprep.subr.mxu0 0.0
  %7096 = vmatpush1.msra.mxu0 0.0
  %7097 = vmatprep.subr.mxu0 0.0
  %7098 = vmatpush1.msra.mxu0 0.0
  %7099 = vmatprep.subr.mxu0 0.0
  %7100 = vmatpush1.msra.mxu0 0.0
  %7101 = vmatprep.subr.mxu0 0.0
  %7102 = vmatpush1.msra.mxu0 0.0
  %7103 = vmatprep.mubr.f32.mxu0 0.0
  %7104 = vmatmul.mubr.f32.gmra.mrb[0].mxu0 %v7037
  %v7105 = vpop.f32.mrb[0].mxu0
  %v7106 = vadd.f32 0.0, %v7105
  %v7107 = vpop.f32.mrb[0].mxu0
  %7108 = vdwg.mxu0
  %v7109 = vadd.f32 %v7019, %v7106
  %vm7110 = vcmask 0
  %7111 = vst.msk [vmem:[%s13] sm:$0x1] %vm7110, %v7109
  %v7112 = vmul.f32 %v6404, %v6744
  %v7113 = vadd.f32 %v7112, %v6749
  %vm7114 = vcmp.ge.f32.partialorder %v7113, 0.0
  %v7115 = vmul.f32 %v7113, 0.05
  %v7116 = vsel %vm7114, %v7113, %v7115
  %v7117 = vld [vmem:[%s12] sm:$0xff]
  %v7118 = vld [vmem:[%s12 + $0x8] sm:$0xff]
  %v7119 = vld [vmem:[%s12 + $0x10] sm:$0xff]
  %v7120 = vld [vmem:[%s12 + $0x18] sm:$0xff]
  %v7121 = vld [vmem:[%s12 + $0x20] sm:$0xff]
  %v7122 = vld [vmem:[%s12 + $0x28] sm:$0xff]
  %v7123 = vld [vmem:[%s12 + $0x30] sm:$0xff]
  %v7124 = vld [vmem:[%s12 + $0x38] sm:$0xff]
  %v7125 = vld [vmem:[%s12 + $0x40] sm:$0xff]
  %v7126 = vld [vmem:[%s12 + $0x48] sm:$0xff]
  %v7127 = vld [vmem:[%s12 + $0x50] sm:$0xff]
  %v7128 = vld [vmem:[%s12 + $0x58] sm:$0xff]
  %v7129 = vld [vmem:[%s12 + $0x60] sm:$0xff]
  %v7130 = vld [vmem:[%s12 + $0x68] sm:$0xff]
  %v7131 = vld [vmem:[%s12 + $0x70] sm:$0xff]
  %v7132 = vld [vmem:[%s12 + $0x78] sm:$0xff]
  %v7133 = vld [vmem:[%s6770] sm:$0xff]
  %v7134 = vld [vmem:[%s6770 + $0x8] sm:$0xff]
  %v7135 = vld [vmem:[%s6770 + $0x10] sm:$0xff]
  %v7136 = vld [vmem:[%s6770 + $0x18] sm:$0xff]
  %v7137 = vld [vmem:[%s6770 + $0x20] sm:$0xff]
  %v7138 = vld [vmem:[%s6770 + $0x28] sm:$0xff]
  %v7139 = vld [vmem:[%s6770 + $0x30] sm:$0xff]
  %v7140 = vld [vmem:[%s6770 + $0x38] sm:$0xff]
  %v7141 = vld [vmem:[%s6770 + $0x40] sm:$0xff]
  %v7142 = vld [vmem:[%s6770 + $0x48] sm:$0xff]
  %v7143 = vld [vmem:[%s6770 + $0x50] sm:$0xff]
  %v7144 = vld [vmem:[%s6770 + $0x58] sm:$0xff]
  %v7145 = vld [vmem:[%s6770 + $0x60] sm:$0xff]
  %v7146 = vld [vmem:[%s6770 + $0x68] sm:$0xff]
  %v7147 = vld [vmem:[%s6770 + $0x70] sm:$0xff]
  %v7148 = vld [vmem:[%s6770 + $0x78] sm:$0xff]
  %v7150 = vrot.slane %v7116, 1
  %7152 = vmatprep.subr.mxu0 0.0
  %7153 = vmatpush1.msra.mxu0 %v7133
  %7154 = vmatprep.subr.mxu0 0.0
  %7155 = vmatpush1.msra.mxu0 %v7134
  %7156 = vmatprep.subr.mxu0 0.0
  %7157 = vmatpush1.msra.mxu0 %v7135
  %7158 = vmatprep.subr.mxu0 0.0
  %7159 = vmatpush1.msra.mxu0 %v7136
  %7160 = vmatprep.subr.mxu0 0.0
  %7161 = vmatpush1.msra.mxu0 %v7137
  %7162 = vmatprep.subr.mxu0 0.0
  %7163 = vmatpush1.msra.mxu0 %v7138
  %7164 = vmatprep.subr.mxu0 0.0
  %7165 = vmatpush1.msra.mxu0 %v7139
  %7166 = vmatprep.subr.mxu0 0.0
  %7167 = vmatpush1.msra.mxu0 %v7140
  %7168 = vmatprep.subr.mxu0 0.0
  %7169 = vmatpush1.msra.mxu0 %v7141
  %7170 = vmatprep.subr.mxu0 0.0
  %7171 = vmatpush1.msra.mxu0 %v7142
  %7172 = vmatprep.subr.mxu0 0.0
  %7173 = vmatpush1.msra.mxu0 %v7143
  %7174 = vmatprep.subr.mxu0 0.0
  %7175 = vmatpush1.msra.mxu0 %v7144
  %7176 = vmatprep.subr.mxu0 0.0
  %7177 = vmatpush1.msra.mxu0 %v7145
  %7178 = vmatprep.subr.mxu0 0.0
  %7179 = vmatpush1.msra.mxu0 %v7146
  %7180 = vmatprep.subr.mxu0 0.0
  %7181 = vmatpush1.msra.mxu0 %v7147
  %7182 = vmatprep.subr.mxu0 0.0
  %7183 = vmatpush1.msra.mxu0 %v7148
  %7184 = vmatprep.subr.mxu0 0.0
  %7185 = vmatpush1.msra.mxu0 0.0
  %7186 = vmatprep.subr.mxu0 0.0
  %7187 = vmatpush1.msra.mxu0 0.0
  %7188 = vmatprep.subr.mxu0 0.0
  %7189 = vmatpush1.msra.mxu0 0.0
  %7190 = vmatprep.subr.mxu0 0.0
  %7191 = vmatpush1.msra.mxu0 0.0
  %7192 = vmatprep.subr.mxu0 0.0
  %7193 = vmatpush1.msra.mxu0 0.0
  %7194 = vmatprep.subr.mxu0 0.0
  %7195 = vmatpush1.msra.mxu0 0.0
  %7196 = vmatprep.subr.mxu0 0.0
  %7197 = vmatpush1.msra.mxu0 0.0
  %7198 = vmatprep.subr.mxu0 0.0
  %7199 = vmatpush1.msra.mxu0 0.0
  %7200 = vmatprep.subr.mxu0 0.0
  %7201 = vmatpush1.msra.mxu0 0.0
  %7202 = vmatprep.subr.mxu0 0.0
  %7203 = vmatpush1.msra.mxu0 0.0
  %7204 = vmatprep.subr.mxu0 0.0
  %7205 = vmatpush1.msra.mxu0 0.0
  %7206 = vmatprep.subr.mxu0 0.0
  %7207 = vmatpush1.msra.mxu0 0.0
  %7208 = vmatprep.subr.mxu0 0.0
  %7209 = vmatpush1.msra.mxu0 0.0
  %7210 = vmatprep.subr.mxu0 0.0
  %7211 = vmatpush1.msra.mxu0 0.0
  %7212 = vmatprep.subr.mxu0 0.0
  %7213 = vmatpush1.msra.mxu0 0.0
  %7214 = vmatprep.subr.mxu0 0.0
  %7215 = vmatpush1.msra.mxu0 0.0
  %7216 = vmatprep.mubr.f32.mxu0 0.0
  %7217 = vmatmul.mubr.f32.gmra.mrb[0].mxu0 %v7150
  %v7218 = vpop.f32.mrb[0].mxu0
  %v7219 = vadd.f32 0.0, %v7218
  %v7220 = vpop.f32.mrb[0].mxu0
  %7221 = vdwg.mxu0
  %7222 = vmatprep.subr.mxu0 0.0
  %7223 = vmatpush1.msra.mxu0 %v7117
  %7224 = vmatprep.subr.mxu0 0.0
  %7225 = vmatpush1.msra.mxu0 %v7118
  %7226 = vmatprep.subr.mxu0 0.0
  %7227 = vmatpush1.msra.mxu0 %v7119
  %7228 = vmatprep.subr.mxu0 0.0
  %7229 = vmatpush1.msra.mxu0 %v7120
  %7230 = vmatprep.subr.mxu0 0.0
  %7231 = vmatpush1.msra.mxu0 %v7121
  %7232 = vmatprep.subr.mxu0 0.0
  %7233 = vmatpush1.msra.mxu0 %v7122
  %7234 = vmatprep.subr.mxu0 0.0
  %7235 = vmatpush1.msra.mxu0 %v7123
  %7236 = vmatprep.subr.mxu0 0.0
  %7237 = vmatpush1.msra.mxu0 %v7124
  %7238 = vmatprep.subr.mxu0 0.0
  %7239 = vmatpush1.msra.mxu0 %v7125
  %7240 = vmatprep.subr.mxu0 0.0
  %7241 = vmatpush1.msra.mxu0 %v7126
  %7242 = vmatprep.subr.mxu0 0.0
  %7243 = vmatpush1.msra.mxu0 %v7127
  %7244 = vmatprep.subr.mxu0 0.0
  %7245 = vmatpush1.msra.mxu0 %v7128
  %7246 = vmatprep.subr.mxu0 0.0
  %7247 = vmatpush1.msra.mxu0 %v7129
  %7248 = vmatprep.subr.mxu0 0.0
  %7249 = vmatpush1.msra.mxu0 %v7130
  %7250 = vmatprep.subr.mxu0 0.0
  %7251 = vmatpush1.msra.mxu0 %v7131
  %7252 = vmatprep.subr.mxu0 0.0
  %7253 = vmatpush1.msra.mxu0 %v7132
  %7254 = vmatprep.subr.mxu0 0.0
  %7255 = vmatpush1.msra.mxu0 0.0
  %7256 = vmatprep.subr.mxu0 0.0
  %7257 = vmatpush1.msra.mxu0 0.0
  %7258 = vmatprep.subr.mxu0 0.0
  %7259 = vmatpush1.msra.mxu0 0.0
  %7260 = vmatprep.subr.mxu0 0.0
  %7261 = vmatpush1.msra.mxu0 0.0
  %7262 = vmatprep.subr.mxu0 0.0
  %7263 = vmatpush1.msra.mxu0 0.0
  %7264 = vmatprep.subr.mxu0 0.0
  %7265 = vmatpush1.msra.mxu0 0.0
  %7266 = vmatprep.subr.mxu0 0.0
  %7267 = vmatpush1.msra.mxu0 0.0
  %7268 = vmatprep.subr.mxu0 0.0
  %7269 = vmatpush1.msra.mxu0 0.0
  %7270 = vmatprep.subr.mxu0 0.0
  %7271 = vmatpush1.msra.mxu0 0.0
  %7272 = vmatprep.subr.mxu0 0.0
  %7273 = vmatpush1.msra.mxu0 0.0
  %7274 = vmatprep.subr.mxu0 0.0
  %7275 = vmatpush1.msra.mxu0 0.0
  %7276 = vmatprep.subr.mxu0 0.0
  %7277 = vmatpush1.msra.mxu0 0.0
  %7278 = vmatprep.subr.mxu0 0.0
  %7279 = vmatpush1.msra.mxu0 0.0
  %7280 = vmatprep.subr.mxu0 0.0
  %7281 = vmatpush1.msra.mxu0 0.0
  %7282 = vmatprep.subr.mxu0 0.0
  %7283 = vmatpush1.msra.mxu0 0.0
  %7284 = vmatprep.subr.mxu0 0.0
  %7285 = vmatpush1.msra.mxu0 0.0
  %7286 = vmatprep.mubr.f32.mxu0 0.0
  %7287 = vmatmul.mubr.f32.gmra.mrb[0].mxu0 %v7116
  %v7288 = vpop.f32.mrb[0].mxu0
  %v7289 = vadd.f32 %v7219, %v7288
  %v7290 = vpop.f32.mrb[0].mxu0
  %7291 = vdwg.mxu0
  %v7292 = vld [vmem:[%s6930] sm:$0xff]
  %v7293 = vld [vmem:[%s6930 + $0x8] sm:$0xff]
  %v7294 = vld [vmem:[%s6930 + $0x10] sm:$0xff]
  %v7295 = vld [vmem:[%s6930 + $0x18] sm:$0xff]
  %v7296 = vld [vmem:[%s6930 + $0x20] sm:$0xff]
  %v7297 = vld [vmem:[%s6930 + $0x28] sm:$0xff]
  %v7298 = vld [vmem:[%s6930 + $0x30] sm:$0xff]
  %v7299 = vld [vmem:[%s6930 + $0x38] sm:$0xff]
  %v7300 = vld [vmem:[%s6930 + $0x40] sm:$0xff]
  %v7301 = vld [vmem:[%s6930 + $0x48] sm:$0xff]
  %v7302 = vld [vmem:[%s6930 + $0x50] sm:$0xff]
  %v7303 = vld [vmem:[%s6930 + $0x58] sm:$0xff]
  %v7304 = vld [vmem:[%s6930 + $0x60] sm:$0xff]
  %v7305 = vld [vmem:[%s6930 + $0x68] sm:$0xff]
  %v7306 = vld [vmem:[%s6930 + $0x70] sm:$0xff]
  %v7307 = vld [vmem:[%s6930 + $0x78] sm:$0xff]
  %v7308 = vrot.slane %v7116, 2
  %7310 = vmatprep.subr.mxu0 0.0
  %7311 = vmatpush1.msra.mxu0 %v7292
  %7312 = vmatprep.subr.mxu0 0.0
  %7313 = vmatpush1.msra.mxu0 %v7293
  %7314 = vmatprep.subr.mxu0 0.0
  %7315 = vmatpush1.msra.mxu0 %v7294
  %7316 = vmatprep.subr.mxu0 0.0
  %7317 = vmatpush1.msra.mxu0 %v7295
  %7318 = vmatprep.subr.mxu0 0.0
  %7319 = vmatpush1.msra.mxu0 %v7296
  %7320 = vmatprep.subr.mxu0 0.0
  %7321 = vmatpush1.msra.mxu0 %v7297
  %7322 = vmatprep.subr.mxu0 0.0
  %7323 = vmatpush1.msra.mxu0 %v7298
  %7324 = vmatprep.subr.mxu0 0.0
  %7325 = vmatpush1.msra.mxu0 %v7299
  %7326 = vmatprep.subr.mxu0 0.0
  %7327 = vmatpush1.msra.mxu0 %v7300
  %7328 = vmatprep.subr.mxu0 0.0
  %7329 = vmatpush1.msra.mxu0 %v7301
  %7330 = vmatprep.subr.mxu0 0.0
  %7331 = vmatpush1.msra.mxu0 %v7302
  %7332 = vmatprep.subr.mxu0 0.0
  %7333 = vmatpush1.msra.mxu0 %v7303
  %7334 = vmatprep.subr.mxu0 0.0
  %7335 = vmatpush1.msra.mxu0 %v7304
  %7336 = vmatprep.subr.mxu0 0.0
  %7337 = vmatpush1.msra.mxu0 %v7305
  %7338 = vmatprep.subr.mxu0 0.0
  %7339 = vmatpush1.msra.mxu0 %v7306
  %7340 = vmatprep.subr.mxu0 0.0
  %7341 = vmatpush1.msra.mxu0 %v7307
  %7342 = vmatprep.subr.mxu0 0.0
  %7343 = vmatpush1.msra.mxu0 0.0
  %7344 = vmatprep.subr.mxu0 0.0
  %7345 = vmatpush1.msra.mxu0 0.0
  %7346 = vmatprep.subr.mxu0 0.0
  %7347 = vmatpush1.msra.mxu0 0.0
  %7348 = vmatprep.subr.mxu0 0.0
  %7349 = vmatpush1.msra.mxu0 0.0
  %7350 = vmatprep.subr.mxu0 0.0
  %7351 = vmatpush1.msra.mxu0 0.0
  %7352 = vmatprep.subr.mxu0 0.0
  %7353 = vmatpush1.msra.mxu0 0.0
  %7354 = vmatprep.subr.mxu0 0.0
  %7355 = vmatpush1.msra.mxu0 0.0
  %7356 = vmatprep.subr.mxu0 0.0
  %7357 = vmatpush1.msra.mxu0 0.0
  %7358 = vmatprep.subr.mxu0 0.0
  %7359 = vmatpush1.msra.mxu0 0.0
  %7360 = vmatprep.subr.mxu0 0.0
  %7361 = vmatpush1.msra.mxu0 0.0
  %7362 = vmatprep.subr.mxu0 0.0
  %7363 = vmatpush1.msra.mxu0 0.0
  %7364 = vmatprep.subr.mxu0 0.0
  %7365 = vmatpush1.msra.mxu0 0.0
  %7366 = vmatprep.subr.mxu0 0.0
  %7367 = vmatpush1.msra.mxu0 0.0
  %7368 = vmatprep.subr.mxu0 0.0
  %7369 = vmatpush1.msra.mxu0 0.0
  %7370 = vmatprep.subr.mxu0 0.0
  %7371 = vmatpush1.msra.mxu0 0.0
  %7372 = vmatprep.subr.mxu0 0.0
  %7373 = vmatpush1.msra.mxu0 0.0
  %7374 = vmatprep.mubr.f32.mxu0 0.0
  %7375 = vmatmul.mubr.f32.gmra.mrb[0].mxu0 %v7308
  %v7376 = vpop.f32.mrb[0].mxu0
  %v7377 = vadd.f32 0.0, %v7376
  %v7378 = vpop.f32.mrb[0].mxu0
  %7379 = vdwg.mxu0
  %v7380 = vadd.f32 %v7289, %v7377
  %v7381 = vld [vmem:[%s7020] sm:$0xff]
  %v7382 = vld [vmem:[%s7020 + $0x8] sm:$0xff]
  %v7383 = vld [vmem:[%s7020 + $0x10] sm:$0xff]
  %v7384 = vld [vmem:[%s7020 + $0x18] sm:$0xff]
  %v7385 = vld [vmem:[%s7020 + $0x20] sm:$0xff]
  %v7386 = vld [vmem:[%s7020 + $0x28] sm:$0xff]
  %v7387 = vld [vmem:[%s7020 + $0x30] sm:$0xff]
  %v7388 = vld [vmem:[%s7020 + $0x38] sm:$0xff]
  %v7389 = vld [vmem:[%s7020 + $0x40] sm:$0xff]
  %v7390 = vld [vmem:[%s7020 + $0x48] sm:$0xff]
  %v7391 = vld [vmem:[%s7020 + $0x50] sm:$0xff]
  %v7392 = vld [vmem:[%s7020 + $0x58] sm:$0xff]
  %v7393 = vld [vmem:[%s7020 + $0x60] sm:$0xff]
  %v7394 = vld [vmem:[%s7020 + $0x68] sm:$0xff]
  %v7395 = vld [vmem:[%s7020 + $0x70] sm:$0xff]
  %v7396 = vld [vmem:[%s7020 + $0x78] sm:$0xff]
  %v7397 = vrot.slane %v7116, 3
  %7399 = vmatprep.subr.mxu0 0.0
  %7400 = vmatpush1.msra.mxu0 %v7381
  %7401 = vmatprep.subr.mxu0 0.0
  %7402 = vmatpush1.msra.mxu0 %v7382
  %7403 = vmatprep.subr.mxu0 0.0
  %7404 = vmatpush1.msra.mxu0 %v7383
  %7405 = vmatprep.subr.mxu0 0.0
  %7406 = vmatpush1.msra.mxu0 %v7384
  %7407 = vmatprep.subr.mxu0 0.0
  %7408 = vmatpush1.msra.mxu0 %v7385
  %7409 = vmatprep.subr.mxu0 0.0
  %7410 = vmatpush1.msra.mxu0 %v7386
  %7411 = vmatprep.subr.mxu0 0.0
  %7412 = vmatpush1.msra.mxu0 %v7387
  %7413 = vmatprep.subr.mxu0 0.0
  %7414 = vmatpush1.msra.mxu0 %v7388
  %7415 = vmatprep.subr.mxu0 0.0
  %7416 = vmatpush1.msra.mxu0 %v7389
  %7417 = vmatprep.subr.mxu0 0.0
  %7418 = vmatpush1.msra.mxu0 %v7390
  %7419 = vmatprep.subr.mxu0 0.0
  %7420 = vmatpush1.msra.mxu0 %v7391
  %7421 = vmatprep.subr.mxu0 0.0
  %7422 = vmatpush1.msra.mxu0 %v7392
  %7423 = vmatprep.subr.mxu0 0.0
  %7424 = vmatpush1.msra.mxu0 %v7393
  %7425 = vmatprep.subr.mxu0 0.0
  %7426 = vmatpush1.msra.mxu0 %v7394
  %7427 = vmatprep.subr.mxu0 0.0
  %7428 = vmatpush1.msra.mxu0 %v7395
  %7429 = vmatprep.subr.mxu0 0.0
  %7430 = vmatpush1.msra.mxu0 %v7396
  %7431 = vmatprep.subr.mxu0 0.0
  %7432 = vmatpush1.msra.mxu0 0.0
  %7433 = vmatprep.subr.mxu0 0.0
  %7434 = vmatpush1.msra.mxu0 0.0
  %7435 = vmatprep.subr.mxu0 0.0
  %7436 = vmatpush1.msra.mxu0 0.0
  %7437 = vmatprep.subr.mxu0 0.0
  %7438 = vmatpush1.msra.mxu0 0.0
  %7439 = vmatprep.subr.mxu0 0.0
  %7440 = vmatpush1.msra.mxu0 0.0
  %7441 = vmatprep.subr.mxu0 0.0
  %7442 = vmatpush1.msra.mxu0 0.0
  %7443 = vmatprep.subr.mxu0 0.0
  %7444 = vmatpush1.msra.mxu0 0.0
  %7445 = vmatprep.subr.mxu0 0.0
  %7446 = vmatpush1.msra.mxu0 0.0
  %7447 = vmatprep.subr.mxu0 0.0
  %7448 = vmatpush1.msra.mxu0 0.0
  %7449 = vmatprep.subr.mxu0 0.0
  %7450 = vmatpush1.msra.mxu0 0.0
  %7451 = vmatprep.subr.mxu0 0.0
  %7452 = vmatpush1.msra.mxu0 0.0
  %7453 = vmatprep.subr.mxu0 0.0
  %7454 = vmatpush1.msra.mxu0 0.0
  %7455 = vmatprep.subr.mxu0 0.0
  %7456 = vmatpush1.msra.mxu0 0.0
  %7457 = vmatprep.subr.mxu0 0.0
  %7458 = vmatpush1.msra.mxu0 0.0
  %7459 = vmatprep.subr.mxu0 0.0
  %7460 = vmatpush1.msra.mxu0 0.0
  %7461 = vmatprep.subr.mxu0 0.0
  %7462 = vmatpush1.msra.mxu0 0.0
  %7463 = vmatprep.mubr.f32.mxu0 0.0
  %7464 = vmatmul.mubr.f32.gmra.mrb[0].mxu0 %v7397
  %v7465 = vpop.f32.mrb[0].mxu0
  %v7466 = vadd.f32 0.0, %v7465
  %v7467 = vpop.f32.mrb[0].mxu0
  %7468 = vdwg.mxu0
  %v7469 = vadd.f32 %v7380, %v7466
  %7470 = vst.msk [vmem:[%s13 + $0x1] sm:$0x1] %vm7110, %v7469
  // Predicated region
  $region54: #{d2_forward.1} parent=0 // pred_check
    _
  $region55: #{d2_forward.1} parent=0 // pred_check_branch
    %7472 = sbr.rel (0) target = $region57
  $region56: #{d2_forward.1} parent=0 // pred_region
    _
  $region57: #{d2_forward.1} parent=0 // pred_fallthru
    _
  // Predicated region
  $region58: #{d2_forward.1} parent=0 // pred_check
    _
  $region59: #{d2_forward.1} parent=0 // pred_check_branch
    %7474 = sbr.rel (0) target = $region61
  $region60: #{d2_forward.1} parent=0 // pred_region
    _
  $region61: #{d2_forward.1} parent=0 // pred_fallthru
    _

</llo_original>
